<compile_context>
chip_gen: v7x
topology: tpu7x:2x2x1
jax: 0.10.0
libtpu: 0.0.40
codegen_flags: <defaults>
</compile_context>

<pallas_src>
import functools
import math

import numpy as np

import jax
import jax.numpy as jnp
from jax.experimental import pallas as pl
from jax.experimental.pallas import tpu as pltpu


def _round_up(x, m):
    return ((x + m - 1) // m) * m


def _pick_tile(n, cap, quantum):
    """Pick a tile size: whole array if small, else a big divisor (no padding)."""
    n_q = _round_up(n, quantum)
    if n_q <= cap:
        return n_q
    for d in range(cap, quantum - 1, -quantum):
        if n % d == 0:
            if d >= cap // 4:
                return d
            break
    return cap


# ----------------------------------------------------------------------------
# One-time calibration of pltpu.roll's (shift, stride) sign convention.
# ----------------------------------------------------------------------------
@functools.lru_cache(maxsize=None)
def _strided_roll_convention():
    """Returns (sgn_shift, sgn_stride) in np.roll convention, or None."""
    try:
        rows, n = 8, 128
        xn = np.arange(rows * n, dtype=np.float32).reshape(rows, n)

        def probe_kernel(x_ref, o_ref):
            o_ref[...] = pltpu.roll(x_ref[...], 1, 1, stride=1, stride_axis=0)

        out = np.asarray(pl.pallas_call(
            probe_kernel,
            out_shape=jax.ShapeDtypeStruct((rows, n), jnp.float32),
        )(jnp.asarray(xn)))
        for sgn_s in (1, -1):
            for sgn_t in (1, -1):
                exp = np.stack([np.roll(xn[i], sgn_s + sgn_t * i)
                                for i in range(rows)])
                if np.array_equal(out, exp):
                    return (sgn_s, sgn_t)
    except Exception:  # lowering / API failure -> use fallback path
        pass
    return None


# ----------------------------------------------------------------------------
# Fused (LayerNorm) -> matmul -> (bias/act/GLU/scale/residual) kernel
# ----------------------------------------------------------------------------
def _linear_kernel(x_ref, w_ref, b_ref, *rest, act, out_scale, has_residual,
                   has_ln, ln_eps, true_k, glu_half):
    rest = list(rest)
    if has_ln:
        g_ref = rest.pop(0)
        beta_ref = rest.pop(0)
    if has_residual:
        res_ref = rest.pop(0)
    o_ref, acc_ref = rest

    k = pl.program_id(2)

    x = x_ref[...]
    if has_ln:
        # LayerNorm prologue (requires the full K dim in this tile).
        xf = x.astype(jnp.float32)
        mean = jnp.sum(xf, axis=-1, keepdims=True) * (1.0 / true_k)
        var = jnp.sum(xf * xf, axis=-1, keepdims=True) * (1.0 / true_k) - mean * mean
        xf = (xf - mean) * jax.lax.rsqrt(var + ln_eps) * g_ref[...] + beta_ref[...]
        xb = xf.astype(jnp.bfloat16)
    else:
        xb = x.astype(jnp.bfloat16)

    @pl.when(k == 0)
    def _():
        acc_ref[...] = jnp.zeros_like(acc_ref)

    acc_ref[...] += jnp.dot(xb, w_ref[...].astype(jnp.bfloat16),
                            preferred_element_type=jnp.float32)

    @pl.when(k == pl.num_programs(2) - 1)
    def _():
        y = acc_ref[...] + b_ref[...].astype(jnp.float32)
        if act == "swish":
            y = y * jax.nn.sigmoid(y)
        elif act == "relu":
            y = jnp.maximum(y, 0.0)
        if glu_half is not None:
            half = glu_half
            y = y[:, :half] * jax.nn.sigmoid(y[:, half:2 * half])
            pad = o_ref.shape[-1] - half
            if pad > 0:
                y = jnp.concatenate(
                    [y, jnp.zeros((y.shape[0], pad), y.dtype)], axis=-1)
        if out_scale != 1.0:
            y = y * out_scale
        if has_residual:
            y = y + res_ref[...].astype(jnp.float32)
        o_ref[...] = y.astype(o_ref.dtype)


def linear(x2d, w, b, act="none", residual=None, out_scale=1.0,
           ln=None, glu_half=None, ln_eps=1e-5):
    """y = act(LN?(x) @ w + b) [GLU?] * scale (+ residual).  bf16 in/out."""
    assert not (glu_half is not None and residual is not None)
    M, K = x2d.shape
    _, N = w.shape
    Kp = _round_up(K, 128)

    if ln is not None and Kp > 4096:
        # feature dim too large for a single resident K tile -> standalone LN
        x2d = layernorm(x2d, ln[0], ln[1], eps=ln_eps)
        ln = None

    if ln is not None or glu_half is not None or Kp <= 1024:
        tk = Kp
    else:
        tk = _pick_tile(Kp, 512, 128)
    Kp = _round_up(Kp, tk)

    if glu_half is not None:
        tn = _round_up(N, 128)
    else:
        tn = _pick_tile(N, 512, 128)
    Np = _round_up(N, tn)

    tm = _pick_tile(M, 512, 8)
    while tm > 8 and tm * (4 * tn + 4 * tk) > (12 << 20):
        tm = max(8, (tm // 2) // 8 * 8)
    Mp = _round_up(M, tm)

    xp = x2d
    if Mp > M or Kp > K:
        xp = jnp.pad(x2d, ((0, Mp - M), (0, Kp - K)))
    wp = w
    if Kp > K or Np > N:
        wp = jnp.pad(w, ((0, Kp - K), (0, Np - N)))
    bp = b.reshape(1, N).astype(jnp.float32)
    if Np > N:
        bp = jnp.pad(bp, ((0, 0), (0, Np - N)))

    inputs = [xp, wp, bp]
    in_specs = [
        pl.BlockSpec((tm, tk), lambda i, j, k: (i, k)),
        pl.BlockSpec((tk, tn), lambda i, j, k: (k, j)),
        pl.BlockSpec((1, tn), lambda i, j, k: (0, j)),
    ]
    if ln is not None:
        g = ln[0].reshape(1, K).astype(jnp.float32)
        bb = ln[1].reshape(1, K).astype(jnp.float32)
        if Kp > K:
            g = jnp.pad(g, ((0, 0), (0, Kp - K)))
            bb = jnp.pad(bb, ((0, 0), (0, Kp - K)))
        inputs += [g, bb]
        in_specs += [pl.BlockSpec((1, tk), lambda i, j, k: (0, k)),
                     pl.BlockSpec((1, tk), lambda i, j, k: (0, k))]
    if residual is not None:
        rp = residual
        if Mp > M or Np > N:
            rp = jnp.pad(residual, ((0, Mp - M), (0, Np - N)))
        inputs.append(rp)
        in_specs.append(pl.BlockSpec((tm, tn), lambda i, j, k: (i, j)))

    if glu_half is None:
        out_block_cols = tn
        out_cols = Np
    else:
        out_block_cols = _round_up(glu_half, 128)
        out_cols = out_block_cols

    out = pl.pallas_call(
        functools.partial(_linear_kernel, act=act, out_scale=out_scale,
                          has_residual=residual is not None,
                          has_ln=ln is not None, ln_eps=ln_eps, true_k=K,
                          glu_half=glu_half),
        grid=(Mp // tm, Np // tn, Kp // tk),
        in_specs=in_specs,
        out_specs=pl.BlockSpec((tm, out_block_cols), lambda i, j, k: (i, j)),
        out_shape=jax.ShapeDtypeStruct((Mp, out_cols), jnp.bfloat16),
        scratch_shapes=[pltpu.VMEM((tm, tn), jnp.float32)],
        compiler_params=pltpu.CompilerParams(
            dimension_semantics=("parallel", "parallel", "arbitrary"),
            vmem_limit_bytes=32 * 1024 * 1024),
    )(*inputs)

    n_keep = N if glu_half is None else glu_half
    if Mp > M or out_cols > n_keep:
        out = out[:M, :n_keep]
    return out


# ----------------------------------------------------------------------------
# Standalone LayerNorm (only for the final per-block LN)
# ----------------------------------------------------------------------------
def _layernorm_kernel(x_ref, g_ref, b_ref, o_ref, *, eps):
    x = x_ref[...].astype(jnp.float32)
    mean = jnp.mean(x, axis=-1, keepdims=True)
    var = jnp.mean(jnp.square(x - mean), axis=-1, keepdims=True)
    y = (x - mean) * jax.lax.rsqrt(var + eps) * g_ref[...] + b_ref[...]
    o_ref[...] = y.astype(o_ref.dtype)


def layernorm(x2d, g, b, eps=1e-5):
    M, D = x2d.shape
    tm = _pick_tile(M, 512, 8)
    Mp = _round_up(M, tm)
    xp = jnp.pad(x2d, ((0, Mp - M), (0, 0))) if Mp > M else x2d
    out = pl.pallas_call(
        functools.partial(_layernorm_kernel, eps=eps),
        grid=(Mp // tm,),
        in_specs=[pl.BlockSpec((tm, D), lambda i: (i, 0)),
                  pl.BlockSpec((1, D), lambda i: (0, 0)),
                  pl.BlockSpec((1, D), lambda i: (0, 0))],
        out_specs=pl.BlockSpec((tm, D), lambda i: (i, 0)),
        out_shape=jax.ShapeDtypeStruct((Mp, D), jnp.bfloat16),
        compiler_params=pltpu.CompilerParams(
            dimension_semantics=("parallel",)),
    )(xp, g.reshape(1, D).astype(jnp.float32),
      b.reshape(1, D).astype(jnp.float32))
    return out[:M] if Mp > M else out


# ----------------------------------------------------------------------------
# Fused relative-position multi-head self-attention kernel
# ----------------------------------------------------------------------------
def _relattn_kernel(q_ref, k_ref, v_ref, pos_ref, u_ref, vb_ref, o_ref, *,
                    hb, dh, t_true, tc, scale, shift_a, shift_b, stride_p,
                    fused):
    tr = q_ref.shape[1]
    npad = tc - tr
    row_ids = jax.lax.broadcasted_iota(jnp.int32, (tr, tc), 0)
    col_ids = jax.lax.broadcasted_iota(jnp.int32, (tr, tc), 1)
    key_mask = col_ids < t_true

    q_all = q_ref[0]
    k_all = k_ref[0]
    v_all = v_ref[0]
    u_all = u_ref[...].astype(jnp.float32)          # (1, hb*dh)
    vb_all = vb_ref[...].astype(jnp.float32)
    pos_all = pos_ref[...] if fused else pos_ref[0]

    def pad_keys(a):
        if npad > 0:
            a = jnp.concatenate(
                [a, jnp.zeros((npad, a.shape[-1]), a.dtype)], axis=0)
        return a

    outs = []
    for h in range(hb):
        sl = slice(h * dh, (h + 1) * dh)
        q_h = q_all[:, sl].astype(jnp.float32)                    # (tr, dh)
        qu = (q_h + u_all[:, sl]).astype(jnp.bfloat16)
        kp = pad_keys(k_all[:, sl].astype(jnp.bfloat16))          # (tc, dh)
        vp = pad_keys(v_all[:, sl].astype(jnp.bfloat16))

        content = jax.lax.dot_general(
            qu, kp, (((1,), (1,)), ((), ())),
            preferred_element_type=jnp.float32)                   # (tr, tc)

        if fused:
            qv = (q_h + vb_all[:, sl]).astype(jnp.bfloat16)
            pp = pad_keys(pos_all[:, sl].astype(jnp.bfloat16))
            pscore = jax.lax.dot_general(
                qv, pp, (((1,), (1,)), ((), ())),
                preferred_element_type=jnp.float32)               # (tr, tc)
            # Exact torch `_relative_shift`, realised fully in VMEM:
            #   shifted[i,j] = P[i, T-1+j-i]        for j <= i
            #                = 0                    for j == i+1
            #                = P[i+1, j-i-2]        for j >= i+2
            rot_a = pltpu.roll(pscore, shift_a, 1,
                               stride=stride_p, stride_axis=0)
            rot_b = pltpu.roll(pscore, shift_b, 1,
                               stride=stride_p, stride_axis=0)
            rot_b_up = jnp.concatenate(
                [rot_b[1:, :], jnp.zeros((1, tc), jnp.float32)], axis=0)
            pos_shift = jnp.where(
                col_ids <= row_ids, rot_a,
                jnp.where(col_ids >= row_ids + 2, rot_b_up, 0.0))
        else:
            pos_shift = pos_all[h]                                # (tr, tc) f32

        scores = (content + pos_shift) * scale
        scores = jnp.where(key_mask, scores, -1e30)
        m = jnp.max(scores, axis=-1, keepdims=True)
        e = jnp.exp(scores - m)
        denom = jnp.sum(e, axis=-1, keepdims=True)
        probs = (e / denom).astype(jnp.bfloat16)
        outs.append(jnp.dot(probs, vp, preferred_element_type=jnp.float32))

    o_ref[0] = jnp.concatenate(outs, axis=-1).astype(o_ref.dtype)


def relpos_attention(q, k, v, pos, u_bias, v_bias, num_heads, t_true, scale):
    """q/k/v: (B, Tr, D) bf16, pos: (Tr, D) bf16 -> context (B, Tr, D) bf16."""
    B, Tr, D = q.shape
    dh = D // num_heads
    hb = num_heads
    for cand in range(1, num_heads):
        if num_heads % cand == 0 and (cand * dh) % 128 == 0:
            hb = cand
            break
    L = hb * dh
    nL = num_heads // hb
    Tc = _round_up(Tr, 128)

    conv = _strided_roll_convention()
    fused = conv is not None
    if fused:
        sgn_s, sgn_t = conv
        shift_a = ((Tc - t_true + 1) * sgn_s) % Tc
        shift_b = (1 * sgn_s) % Tc
        stride_p = (1 * sgn_t) % Tc
        pos_in = pos
        pos_spec = pl.BlockSpec((Tr, L), lambda b, j: (0, j))
    else:
        # Fallback: shift computed with the reference concat/reshape in JAX.
        shift_a = shift_b = stride_p = 0
        qf = q.astype(jnp.float32)[:, :t_true].reshape(B, t_true, num_heads, dh)
        posf = pos.astype(jnp.float32)[:t_true].reshape(t_true, num_heads, dh)
        vb = v_bias.reshape(num_heads, dh)
        ps = jnp.einsum("bihd,jhd->bhij", qf + vb[None, None], posf)
        ps = relative_shift(ps)                                   # (B,H,T,T)
        ps = jnp.pad(ps, ((0, 0), (0, 0),
                          (0, Tr - t_true), (0, Tc - t_true)))
        pos_in = ps
        pos_spec = pl.BlockSpec((1, hb, Tr, Tc), lambda b, j: (b, j, 0, 0))

    kernel = functools.partial(_relattn_kernel, hb=hb, dh=dh, t_true=t_true,
                               tc=Tc, scale=scale, shift_a=shift_a,
                               shift_b=shift_b, stride_p=stride_p, fused=fused)
    return pl.pallas_call(
        kernel,
        grid=(B, nL),
        in_specs=[pl.BlockSpec((1, Tr, L), lambda b, j: (b, 0, j)),
                  pl.BlockSpec((1, Tr, L), lambda b, j: (b, 0, j)),
                  pl.BlockSpec((1, Tr, L), lambda b, j: (b, 0, j)),
                  pos_spec,
                  pl.BlockSpec((1, L), lambda b, j: (0, j)),
                  pl.BlockSpec((1, L), lambda b, j: (0, j))],
        out_specs=pl.BlockSpec((1, Tr, L), lambda b, j: (b, 0, j)),
        out_shape=jax.ShapeDtypeStruct((B, Tr, D), jnp.bfloat16),
        compiler_params=pltpu.CompilerParams(
            dimension_semantics=("parallel", "parallel"),
            vmem_limit_bytes=48 * 1024 * 1024),
    )(q, k, v, pos_in, u_bias, v_bias)


# ----------------------------------------------------------------------------
# Depthwise conv + BatchNorm(eval) + Swish, time-tiled
# ----------------------------------------------------------------------------
def _dwconv_bn_swish_kernel(x_ref, w_ref, g_ref, beta_ref, mean_ref, var_ref,
                            o_ref, *, K, tT, eps):
    j = pl.program_id(1)
    start = pl.multiple_of(j * tT, tT)
    window = x_ref[0, pl.ds(start, tT + K - 1), :].astype(jnp.float32)
    w = w_ref[...].astype(jnp.float32)
    acc = jnp.zeros((tT, o_ref.shape[-1]), jnp.float32)
    for kk in range(K):                               # static tap loop
        acc = acc + window[kk:kk + tT, :] * w[kk:kk + 1, :]
    # BatchNorm1d (eval mode, running statistics) + Swish
    acc = (acc - mean_ref[...]) * jax.lax.rsqrt(var_ref[...] + eps) \
        * g_ref[...] + beta_ref[...]
    o_ref[0] = (acc * jax.nn.sigmoid(acc)).astype(o_ref.dtype)


def depthwise_bn_swish(x, w, g, beta, mean, var, K, eps=1e-5):
    """x: (B, T, D) bf16; w: (K, D).  Depthwise conv (no bias) + BN + Swish."""
    B, T, D = x.shape
    pad = (K - 1) // 2
    tT = min(256, _round_up(T, 8))
    Tcv = _round_up(T, tT)
    Tin_p = _round_up(Tcv + K - 1, 8)
    xp = jnp.pad(x, ((0, 0), (pad, Tin_p - T - pad), (0, 0)))
    param = pl.BlockSpec((1, D), lambda b, j: (0, 0))
    out = pl.pallas_call(
        functools.partial(_dwconv_bn_swish_kernel, K=K, tT=tT, eps=eps),
        grid=(B, Tcv // tT),
        in_specs=[pl.BlockSpec((1, Tin_p, D), lambda b, j: (b, 0, 0)),
                  pl.BlockSpec((K, D), lambda b, j: (0, 0)),
                  param, param, param, param],
        out_specs=pl.BlockSpec((1, tT, D), lambda b, j: (b, j, 0)),
        out_shape=jax.ShapeDtypeStruct((B, Tcv, D), jnp.bfloat16),
        compiler_params=pltpu.CompilerParams(
            dimension_semantics=("parallel", "arbitrary"),
            vmem_limit_bytes=32 * 1024 * 1024),
    )(xp, w.astype(jnp.float32), g.reshape(1, D), beta.reshape(1, D),
      mean.reshape(1, D), var.reshape(1, D))
    return out[:, :T] if Tcv > T else out


# ----------------------------------------------------------------------------
# Subsampling (3x Conv2d k=3 s=2 p=1 + ReLU, channels-last) + projection
# ----------------------------------------------------------------------------
def conv2d_k3_s2_p1_nhwc(x, w, b):
    B, H, W, C = x.shape
    O = w.shape[0]
    k, stride, pad = 3, 2, 1
    Ho = (H + 2 * pad - k) // stride + 1
    Wo = (W + 2 * pad - k) // stride + 1
    xp = jnp.pad(x, ((0, 0), (pad, pad), (pad, pad), (0, 0)))
    cols = []
    for di in range(k):
        for dj in range(k):
            cols.append(xp[:, di:di + stride * Ho:stride,
                           dj:dj + stride * Wo:stride, :])
    # TODO(synk): fold the 9 taps into the matmul K grid axis instead of
    # materializing this im2col tensor in HBM.
    patches = jnp.concatenate(cols, axis=-1).reshape(B * Ho * Wo, k * k * C)
    wm = jnp.transpose(w, (2, 3, 1, 0)).reshape(k * k * C, O)
    y = linear(patches, wm, b, act="relu")
    return y.reshape(B, Ho, Wo, O)


def _sub_len(L):
    return (L + 2 - 3) // 2 + 1


def subsampling(p, x, lengths):
    # TODO(synk): FastConformerSubsampling is not defined in the reference;
    # implemented per the Fast Conformer paper: 3x (Conv2d k=3 s=2 p=1 + ReLU),
    # i.e. 8x time reduction, followed by a Linear projection to encoder_dim.
    h = x[:, :, :, None]
    h = conv2d_k3_s2_p1_nhwc(h, p["c1_w"], p["c1_b"])
    h = conv2d_k3_s2_p1_nhwc(h, p["c2_w"], p["c2_b"])
    h = conv2d_k3_s2_p1_nhwc(h, p["c3_w"], p["c3_b"])
    B, Tn, Fn, C = h.shape
    h = h.reshape(B * Tn, Fn * C)
    h = linear(h, p["proj_w"], p["proj_b"]).reshape(B, Tn, -1)
    out_len = lengths
    for _ in range(3):
        out_len = _sub_len(out_len)
    return h, out_len


# ----------------------------------------------------------------------------
# Model components
# ----------------------------------------------------------------------------
def sinusoidal_pe(length, d_model):
    position = np.arange(length, dtype=np.float32)[:, None]
    div_term = np.exp(np.arange(0, d_model, 2, dtype=np.float32)
                      * -(math.log(10000.0) / d_model))
    pe = np.zeros((length, d_model), np.float32)
    pe[:, 0::2] = np.sin(position * div_term)
    pe[:, 1::2] = np.cos(position * div_term)
    return jnp.asarray(pe, dtype=jnp.bfloat16)


def relative_shift(pos_score):
    # exact semantics of the PyTorch _relative_shift (used only in fallback)
    B, H, T1, T2 = pos_score.shape
    zeros = jnp.zeros((B, H, T1, 1), pos_score.dtype)
    padded = jnp.concatenate([zeros, pos_score], axis=-1)
    padded = padded.reshape(B, H, T2 + 1, T1)
    return padded[:, :, 1:].reshape(B, H, T1, T2)


def feed_forward(p, x, res_scale):
    """x + res_scale * FF(x); LN fused into w1, residual fused into w2."""
    B, T, D = x.shape
    x_flat = x.reshape(B * T, D)
    h = linear(x_flat, p["w1"], p["b1"], act="swish",
               ln=(p["ln_g"], p["ln_b"]))
    h = linear(h, p["w2"], p["b2"], residual=x_flat, out_scale=res_scale)
    return h.reshape(B, T, D)                         # dropout = identity


def mhsa(p, x, num_heads):
    """x + MHSA(LN(x)); LN fused into q/k/v, residual fused into out proj."""
    B, T, D = x.shape
    x_flat = x.reshape(B * T, D)
    ln = (p["ln_g"], p["ln_b"])
    q = linear(x_flat, p["wq"], p["bq"], ln=ln)
    k = linear(x_flat, p["wk"], p["bk"], ln=ln)
    v = linear(x_flat, p["wv"], p["bv"], ln=ln)
    pos = linear(sinusoidal_pe(T, D), p["wpos"], jnp.zeros((D,), jnp.float32))

    Tr = _round_up(T, 8)

    def to_btd(a):
        a = a.reshape(B, T, D)
        return jnp.pad(a, ((0, 0), (0, Tr - T), (0, 0))) if Tr > T else a

    q3, k3, v3 = to_btd(q), to_btd(k), to_btd(v)
    if Tr > T:
        pos = jnp.pad(pos, ((0, Tr - T), (0, 0)))

    # NOTE: reference (sooftware conformer) scales by 1/sqrt(d_model).
    ctx = relpos_attention(q3, k3, v3, pos,
                           p["u"].reshape(1, D), p["v"].reshape(1, D),
                           num_heads, T, 1.0 / math.sqrt(D))
    ctx = ctx[:, :T].reshape(B * T, D)
    out = linear(ctx, p["wo"], p["bo"], residual=x_flat)
    return out.reshape(B, T, D)                        # dropout = identity


def conv_module(p, x, kernel_size):
    """x + ConvModule(x); LN+GLU fused into pw1, residual fused into pw2."""
    B, T, D = x.shape
    x_flat = x.reshape(B * T, D)
    h = linear(x_flat, p["pw1_w"], p["pw1_b"],
               ln=(p["ln_g"], p["ln_b"]), glu_half=D)
    h = depthwise_bn_swish(h.reshape(B, T, D), p["dw_w"], p["bn_g"],
                           p["bn_b"], p["bn_mean"], p["bn_var"], kernel_size)
    h = linear(h.reshape(B * T, D), p["pw2_w"], p["pw2_b"], residual=x_flat)
    return h.reshape(B, T, D)                          # dropout = identity


def conformer_block(p, x, num_heads, kernel_size, ff_residual_factor=0.5):
    x = feed_forward(p["ff1"], x, ff_residual_factor)
    x = mhsa(p["attn"], x, num_heads)
    x = conv_module(p["conv"], x, kernel_size)
    x = feed_forward(p["ff2"], x, ff_residual_factor)
    B, T, D = x.shape
    return layernorm(x.reshape(B * T, D), p["ln_g"], p["ln_b"]).reshape(B, T, D)


def fast_conformer_encoder(params, inputs, input_lengths, num_heads,
                           kernel_size):
    x = inputs.astype(jnp.bfloat16)                    # bf16 at the boundary
    x, out_len = subsampling(params["subsampling"], x, input_lengths)
    # input dropout = identity (eval)
    for lp in params["layers"]:
        x = conformer_block(lp, x, num_heads, kernel_size)
    return x.astype(jnp.float32), out_len


# ----------------------------------------------------------------------------
# Deterministic parameter initialization (bf16 weights, f32 norms/biases)
# ----------------------------------------------------------------------------
def init_params(key, input_dim, encoder_dim, num_layers, num_heads,
                ff_expansion, conv_expansion, conv_kernel):
    D = encoder_dim
    dh = D // num_heads
    keys = iter(jax.random.split(key, 4096))

    def rndw(shape, scale=0.02):
        return (scale * jax.random.normal(next(keys), shape)).astype(jnp.bfloat16)

    def rndf(shape, scale=0.02):
        return (scale * jax.random.normal(next(keys), shape)).astype(jnp.float32)

    f = input_dim
    for _ in range(3):
        f = _sub_len(f)

    sub = dict(
        c1_w=rndw((D, 1, 3, 3)), c1_b=rndf((D,)),
        c2_w=rndw((D, D, 3, 3)), c2_b=rndf((D,)),
        c3_w=rndw((D, D, 3, 3)), c3_b=rndf((D,)),
        proj_w=rndw((D * f, D)), proj_b=rndf((D,)),
    )

    ones = lambda: jnp.ones((D,), jnp.float32)
    zeros = lambda: jnp.zeros((D,), jnp.float32)

    def ff():
        return dict(ln_g=ones(), ln_b=zeros(),
                    w1=rndw((D, D * ff_expansion)), b1=rndf((D * ff_expansion,)),
                    w2=rndw((D * ff_expansion, D)), b2=rndf((D,)))

    def attn():
        return dict(ln_g=ones(), ln_b=zeros(),
                    wq=rndw((D, D)), bq=rndf((D,)),
                    wk=rndw((D, D)), bk=rndf((D,)),
                    wv=rndw((D, D)), bv=rndf((D,)),
                    wpos=rndw((D, D)),
                    u=rndf((num_heads, dh)), v=rndf((num_heads, dh)),
                    wo=rndw((D, D)), bo=rndf((D,)))

    def conv():
        return dict(ln_g=ones(), ln_b=zeros(),
                    pw1_w=rndw((D, D * conv_expansion)),
                    pw1_b=rndf((D * conv_expansion,)),
                    dw_w=rndf((conv_kernel, D)),       # depthwise conv: no bias
                    bn_g=ones(), bn_b=zeros(),
                    bn_mean=zeros(), bn_var=jnp.ones((D,), jnp.float32),
                    pw2_w=rndw((D, D)), pw2_b=rndf((D,)))

    layers = [dict(ff1=ff(), attn=attn(), conv=conv(), ff2=ff(),
                   ln_g=ones(), ln_b=zeros())
              for _ in range(num_layers)]
    return dict(subsampling=sub, layers=layers)


# ----------------------------------------------------------------------------
if __name__ == "__main__":
    B, T0, input_dim = 2, 64, 16
    encoder_dim, num_layers, num_heads = 32, 2, 4
    ff_expansion, conv_expansion, conv_kernel = 4, 2, 9

    key = jax.random.PRNGKey(0)
    pkey, xkey = jax.random.split(key)
    params = init_params(pkey, input_dim, encoder_dim, num_layers, num_heads,
                         ff_expansion, conv_expansion, conv_kernel)

    inputs = jax.random.normal(xkey, (B, T0, input_dim), jnp.float32)
    input_lengths = jnp.array([T0, T0 - 16], jnp.int32)

    _strided_roll_convention()    # one-time on-TPU probe, outside jit

    fwd = jax.jit(fast_conformer_encoder, static_argnums=(3, 4))
    outputs, output_lengths = fwd(params, inputs, input_lengths,
                                  num_heads, conv_kernel)
    outputs = jax.block_until_ready(outputs)
    output_lengths = jax.block_until_ready(output_lengths)

    assert outputs.shape == (B, T0 // 8, encoder_dim), outputs.shape
    assert output_lengths.shape == (B,)
    assert bool(jnp.all(jnp.isfinite(outputs)))
    print("KERNEL_OK")
</pallas_src>

<mosaic_0001>
module attributes {stable_mosaic.version = 11 : i64} {
  func.func @probe_kernel(%arg0: memref<8x128xf32, #tpu.memory_space<vmem>>, %arg1: memref<8x128xf32, #tpu.memory_space<vmem>>) attributes {dimension_semantics = [], scalar_prefetch = 0 : i64, scratch_operands = 0 : i64, tpu.core_type = #tpu.core_type<tc>} {
    %c0 = arith.constant 0 : index
    %c0_0 = arith.constant 0 : index
    %0 = vector.load %arg0[%c0, %c0_0] : memref<8x128xf32, #tpu.memory_space<vmem>>, vector<8x128xf32>
    %c1_i32 = arith.constant 1 : i32
    %1 = tpu.dynamic_rotate %0 by %c1_i32 dim 1 {stride = 1 : si32, stride_dimension = 0 : si32} : vector<8x128xf32>, i32 -> vector<8x128xf32>
    %c0_1 = arith.constant 0 : index
    %c0_2 = arith.constant 0 : index
    %2 = vector.load %arg1[%c0_1, %c0_2] : memref<8x128xf32, #tpu.memory_space<vmem>>, vector<8x128xf32>
    tpu.vector_store %arg1[%c0_1, %c0_2], %1 {strides = array<i32>} : memref<8x128xf32, #tpu.memory_space<vmem>>, vector<8x128xf32>,
    return
  }
}

module attributes {stable_mosaic.version = 11 : i64} {
  func.func @_linear_kernel(%arg0: i32, %arg1: i32, %arg2: i32, %arg3: memref<512x128xbf16, #tpu.memory_space<vmem>>, %arg4: memref<128x128xbf16, #tpu.memory_space<vmem>>, %arg5: memref<1x128xf32, #tpu.memory_space<vmem>>, %arg6: memref<512x128xbf16, #tpu.memory_space<vmem>>, %arg7: memref<512x128xf32, #tpu.memory_space<vmem>>) attributes {dimension_semantics = [#tpu.dimension_semantics<parallel>, #tpu.dimension_semantics<parallel>, #tpu.dimension_semantics<arbitrary>], iteration_bounds = array<i64: 1, 1, 1>, scalar_prefetch = 0 : i64, scratch_operands = 1 : i64, tpu.core_type = #tpu.core_type<tc>, window_params = [{transform_indices = @transform_0, window_bounds = array<i64: 512, 128>}, {transform_indices = @transform_1, window_bounds = array<i64: 128, 128>}, {transform_indices = @transform_2, window_bounds = array<i64: 1, 128>}, {transform_indices = @transform_3, window_bounds = array<i64: 512, 128>}]} {
    %c0 = arith.constant 0 : index
    %c0_0 = arith.constant 0 : index
    %0 = vector.load %arg3[%c0, %c0_0] : memref<512x128xbf16, #tpu.memory_space<vmem>>, vector<512x128xbf16>
    %c0_i32 = arith.constant 0 : i32
    %1 = arith.cmpi eq, %arg2, %c0_i32 : i32
    %2 = arith.extui %1 : i1 to i32
    %c0_i32_1 = arith.constant 0 : i32
    %3 = arith.cmpi ne, %2, %c0_i32_1 : i32
    scf.if %3 {
      %cst_10 = arith.constant 0.000000e+00 : f32
      %12 = vector.broadcast %cst_10 : f32 to vector<512x128xf32>
      %c0_11 = arith.constant 0 : index
      %c0_12 = arith.constant 0 : index
      %13 = vector.load %arg7[%c0_11, %c0_12] : memref<512x128xf32, #tpu.memory_space<vmem>>, vector<512x128xf32>
      tpu.vector_store %arg7[%c0_11, %c0_12], %12 {strides = array<i32>} : memref<512x128xf32, #tpu.memory_space<vmem>>, vector<512x128xf32>,
    } else {
    }
    %c0_2 = arith.constant 0 : index
    %c0_3 = arith.constant 0 : index
    %4 = vector.load %arg7[%c0_2, %c0_3] : memref<512x128xf32, #tpu.memory_space<vmem>>, vector<512x128xf32>
    %c0_4 = arith.constant 0 : index
    %c0_5 = arith.constant 0 : index
    %5 = vector.load %arg4[%c0_4, %c0_5] : memref<128x128xbf16, #tpu.memory_space<vmem>>, vector<128x128xbf16>
    %cst = arith.constant dense<0.000000e+00> : vector<512x128xf32>
    %6 = tpu.matmul %0, %5, %cst {dimension_numbers = #tpu.dot_dimension_numbers<[1], [0], [0], [1], [0, 0, 1, 1], [], []>} : vector<512x128xbf16>, vector<128x128xbf16>, vector<512x128xf32> -> vector<512x128xf32>
    %7 = arith.addf %4, %6 : vector<512x128xf32>
    %c0_6 = arith.constant 0 : index
    %c0_7 = arith.constant 0 : index
    %8 = vector.load %arg7[%c0_6, %c0_7] : memref<512x128xf32, #tpu.memory_space<vmem>>, vector<512x128xf32>
    tpu.vector_store %arg7[%c0_6, %c0_7], %7 {strides = array<i32>} : memref<512x128xf32, #tpu.memory_space<vmem>>, vector<512x128xf32>,
    %c0_i32_8 = arith.constant 0 : i32
    %9 = arith.cmpi eq, %arg2, %c0_i32_8 : i32
    %10 = arith.extui %9 : i1 to i32
    %c0_i32_9 = arith.constant 0 : i32
    %11 = arith.cmpi ne, %10, %c0_i32_9 : i32
    scf.if %11 {
      %c0_10 = arith.constant 0 : index
      %c0_11 = arith.constant 0 : index
      %12 = vector.load %arg7[%c0_10, %c0_11] : memref<512x128xf32, #tpu.memory_space<vmem>>, vector<512x128xf32>
      %c0_12 = arith.constant 0 : index
      %c0_13 = arith.constant 0 : index
      %13 = vector.load %arg5[%c0_12, %c0_13] : memref<1x128xf32, #tpu.memory_space<vmem>>, vector<1x128xf32>
      %14 = vector.broadcast %13 : vector<1x128xf32> to vector<512x128xf32>
      %15 = arith.addf %12, %14 : vector<512x128xf32>
      %cst_14 = arith.constant 0.000000e+00 : f32
      %16 = vector.broadcast %cst_14 : f32 to vector<512x128xf32>
      %17 = arith.maximumf %15, %16 : vector<512x128xf32>
      %18 = arith.truncf %17 : vector<512x128xf32> to vector<512x128xbf16>
      %c0_15 = arith.constant 0 : index
      %c0_16 = arith.constant 0 : index
      %19 = vector.load %arg6[%c0_15, %c0_16] : memref<512x128xbf16, #tpu.memory_space<vmem>>, vector<512x128xbf16>
      tpu.vector_store %arg6[%c0_15, %c0_16], %18 {strides = array<i32>} : memref<512x128xbf16, #tpu.memory_space<vmem>>, vector<512x128xbf16>,
    } else {
    }
    return
  }
  func.func @transform_0(%arg0: i32, %arg1: i32, %arg2: i32) -> (i32, i32) {
    %c0_i32 = arith.constant 0 : i32
    return %arg0, %arg2 : i32, i32
  }
  func.func @transform_1(%arg0: i32, %arg1: i32, %arg2: i32) -> (i32, i32) {
    %c0_i32 = arith.constant 0 : i32
    return %arg2, %arg1 : i32, i32
  }
  func.func @transform_2(%arg0: i32, %arg1: i32, %arg2: i32) -> (i32, i32) {
    %c0_i32 = arith.constant 0 : i32
    %c0_i32_0 = arith.constant 0 : i32
    return %c0_i32, %arg1 : i32, i32
  }
  func.func @transform_3(%arg0: i32, %arg1: i32, %arg2: i32) -> (i32, i32) {
    %c0_i32 = arith.constant 0 : i32
    return %arg0, %arg1 : i32, i32
  }
}

module attributes {stable_mosaic.version = 11 : i64} {
  func.func @_linear_kernel(%arg0: i32, %arg1: i32, %arg2: i32, %arg3: memref<128x384xbf16, #tpu.memory_space<vmem>>, %arg4: memref<384x128xbf16, #tpu.memory_space<vmem>>, %arg5: memref<1x128xf32, #tpu.memory_space<vmem>>, %arg6: memref<128x128xbf16, #tpu.memory_space<vmem>>, %arg7: memref<128x128xf32, #tpu.memory_space<vmem>>) attributes {dimension_semantics = [#tpu.dimension_semantics<parallel>, #tpu.dimension_semantics<parallel>, #tpu.dimension_semantics<arbitrary>], iteration_bounds = array<i64: 1, 1, 1>, scalar_prefetch = 0 : i64, scratch_operands = 1 : i64, tpu.core_type = #tpu.core_type<tc>, window_params = [{transform_indices = @transform_0, window_bounds = array<i64: 128, 384>}, {transform_indices = @transform_1, window_bounds = array<i64: 384, 128>}, {transform_indices = @transform_2, window_bounds = array<i64: 1, 128>}, {transform_indices = @transform_3, window_bounds = array<i64: 128, 128>}]} {
    %c0 = arith.constant 0 : index
    %c0_0 = arith.constant 0 : index
    %0 = vector.load %arg3[%c0, %c0_0] : memref<128x384xbf16, #tpu.memory_space<vmem>>, vector<128x384xbf16>
    %c0_i32 = arith.constant 0 : i32
    %1 = arith.cmpi eq, %arg2, %c0_i32 : i32
    %2 = arith.extui %1 : i1 to i32
    %c0_i32_1 = arith.constant 0 : i32
    %3 = arith.cmpi ne, %2, %c0_i32_1 : i32
    scf.if %3 {
      %cst_10 = arith.constant 0.000000e+00 : f32
      %12 = vector.broadcast %cst_10 : f32 to vector<128x128xf32>
      %c0_11 = arith.constant 0 : index
      %c0_12 = arith.constant 0 : index
      %13 = vector.load %arg7[%c0_11, %c0_12] : memref<128x128xf32, #tpu.memory_space<vmem>>, vector<128x128xf32>
      tpu.vector_store %arg7[%c0_11, %c0_12], %12 {strides = array<i32>} : memref<128x128xf32, #tpu.memory_space<vmem>>, vector<128x128xf32>,
    } else {
    }
    %c0_2 = arith.constant 0 : index
    %c0_3 = arith.constant 0 : index
    %4 = vector.load %arg7[%c0_2, %c0_3] : memref<128x128xf32, #tpu.memory_space<vmem>>, vector<128x128xf32>
    %c0_4 = arith.constant 0 : index
    %c0_5 = arith.constant 0 : index
    %5 = vector.load %arg4[%c0_4, %c0_5] : memref<384x128xbf16, #tpu.memory_space<vmem>>, vector<384x128xbf16>
    %cst = arith.constant dense<0.000000e+00> : vector<128x128xf32>
    %6 = tpu.matmul %0, %5, %cst {dimension_numbers = #tpu.dot_dimension_numbers<[1], [0], [0], [1], [0, 0, 1, 1], [], []>} : vector<128x384xbf16>, vector<384x128xbf16>, vector<128x128xf32> -> vector<128x128xf32>
    %7 = arith.addf %4, %6 : vector<128x128xf32>
    %c0_6 = arith.constant 0 : index
    %c0_7 = arith.constant 0 : index
    %8 = vector.load %arg7[%c0_6, %c0_7] : memref<128x128xf32, #tpu.memory_space<vmem>>, vector<128x128xf32>
    tpu.vector_store %arg7[%c0_6, %c0_7], %7 {strides = array<i32>} : memref<128x128xf32, #tpu.memory_space<vmem>>, vector<128x128xf32>,
    %c0_i32_8 = arith.constant 0 : i32
    %9 = arith.cmpi eq, %arg2, %c0_i32_8 : i32
    %10 = arith.extui %9 : i1 to i32
    %c0_i32_9 = arith.constant 0 : i32
    %11 = arith.cmpi ne, %10, %c0_i32_9 : i32
    scf.if %11 {
      %c0_10 = arith.constant 0 : index
      %c0_11 = arith.constant 0 : index
      %12 = vector.load %arg7[%c0_10, %c0_11] : memref<128x128xf32, #tpu.memory_space<vmem>>, vector<128x128xf32>
      %c0_12 = arith.constant 0 : index
      %c0_13 = arith.constant 0 : index
      %13 = vector.load %arg5[%c0_12, %c0_13] : memref<1x128xf32, #tpu.memory_space<vmem>>, vector<1x128xf32>
      %14 = vector.broadcast %13 : vector<1x128xf32> to vector<128x128xf32>
      %15 = arith.addf %12, %14 : vector<128x128xf32>
      %cst_14 = arith.constant 0.000000e+00 : f32
      %16 = vector.broadcast %cst_14 : f32 to vector<128x128xf32>
      %17 = arith.maximumf %15, %16 : vector<128x128xf32>
      %18 = arith.truncf %17 : vector<128x128xf32> to vector<128x128xbf16>
      %c0_15 = arith.constant 0 : index
      %c0_16 = arith.constant 0 : index
      %19 = vector.load %arg6[%c0_15, %c0_16] : memref<128x128xbf16, #tpu.memory_space<vmem>>, vector<128x128xbf16>
      tpu.vector_store %arg6[%c0_15, %c0_16], %18 {strides = array<i32>} : memref<128x128xbf16, #tpu.memory_space<vmem>>, vector<128x128xbf16>,
    } else {
    }
    return
  }
  func.func @transform_0(%arg0: i32, %arg1: i32, %arg2: i32) -> (i32, i32) {
    %c0_i32 = arith.constant 0 : i32
    return %arg0, %arg2 : i32, i32
  }
  func.func @transform_1(%arg0: i32, %arg1: i32, %arg2: i32) -> (i32, i32) {
    %c0_i32 = arith.constant 0 : i32
    return %arg2, %arg1 : i32, i32
  }
  func.func @transform_2(%arg0: i32, %arg1: i32, %arg2: i32) -> (i32, i32) {
    %c0_i32 = arith.constant 0 : i32
    %c0_i32_0 = arith.constant 0 : i32
    return %c0_i32, %arg1 : i32, i32
  }
  func.func @transform_3(%arg0: i32, %arg1: i32, %arg2: i32) -> (i32, i32) {
    %c0_i32 = arith.constant 0 : i32
    return %arg0, %arg1 : i32, i32
  }
}

module attributes {stable_mosaic.version = 11 : i64} {
  func.func @_linear_kernel(%arg0: i32, %arg1: i32, %arg2: i32, %arg3: memref<32x384xbf16, #tpu.memory_space<vmem>>, %arg4: memref<384x128xbf16, #tpu.memory_space<vmem>>, %arg5: memref<1x128xf32, #tpu.memory_space<vmem>>, %arg6: memref<32x128xbf16, #tpu.memory_space<vmem>>, %arg7: memref<32x128xf32, #tpu.memory_space<vmem>>) attributes {dimension_semantics = [#tpu.dimension_semantics<parallel>, #tpu.dimension_semantics<parallel>, #tpu.dimension_semantics<arbitrary>], iteration_bounds = array<i64: 1, 1, 1>, scalar_prefetch = 0 : i64, scratch_operands = 1 : i64, tpu.core_type = #tpu.core_type<tc>, window_params = [{transform_indices = @transform_0, window_bounds = array<i64: 32, 384>}, {transform_indices = @transform_1, window_bounds = array<i64: 384, 128>}, {transform_indices = @transform_2, window_bounds = array<i64: 1, 128>}, {transform_indices = @transform_3, window_bounds = array<i64: 32, 128>}]} {
    %c0 = arith.constant 0 : index
    %c0_0 = arith.constant 0 : index
    %0 = vector.load %arg3[%c0, %c0_0] : memref<32x384xbf16, #tpu.memory_space<vmem>>, vector<32x384xbf16>
    %c0_i32 = arith.constant 0 : i32
    %1 = arith.cmpi eq, %arg2, %c0_i32 : i32
    %2 = arith.extui %1 : i1 to i32
    %c0_i32_1 = arith.constant 0 : i32
    %3 = arith.cmpi ne, %2, %c0_i32_1 : i32
    scf.if %3 {
      %cst_10 = arith.constant 0.000000e+00 : f32
      %12 = vector.broadcast %cst_10 : f32 to vector<32x128xf32>
      %c0_11 = arith.constant 0 : index
      %c0_12 = arith.constant 0 : index
      %13 = vector.load %arg7[%c0_11, %c0_12] : memref<32x128xf32, #tpu.memory_space<vmem>>, vector<32x128xf32>
      tpu.vector_store %arg7[%c0_11, %c0_12], %12 {strides = array<i32>} : memref<32x128xf32, #tpu.memory_space<vmem>>, vector<32x128xf32>,
    } else {
    }
    %c0_2 = arith.constant 0 : index
    %c0_3 = arith.constant 0 : index
    %4 = vector.load %arg7[%c0_2, %c0_3] : memref<32x128xf32, #tpu.memory_space<vmem>>, vector<32x128xf32>
    %c0_4 = arith.constant 0 : index
    %c0_5 = arith.constant 0 : index
    %5 = vector.load %arg4[%c0_4, %c0_5] : memref<384x128xbf16, #tpu.memory_space<vmem>>, vector<384x128xbf16>
    %cst = arith.constant dense<0.000000e+00> : vector<32x128xf32>
    %6 = tpu.matmul %0, %5, %cst {dimension_numbers = #tpu.dot_dimension_numbers<[1], [0], [0], [1], [0, 0, 1, 1], [], []>} : vector<32x384xbf16>, vector<384x128xbf16>, vector<32x128xf32> -> vector<32x128xf32>
    %7 = arith.addf %4, %6 : vector<32x128xf32>
    %c0_6 = arith.constant 0 : index
    %c0_7 = arith.constant 0 : index
    %8 = vector.load %arg7[%c0_6, %c0_7] : memref<32x128xf32, #tpu.memory_space<vmem>>, vector<32x128xf32>
    tpu.vector_store %arg7[%c0_6, %c0_7], %7 {strides = array<i32>} : memref<32x128xf32, #tpu.memory_space<vmem>>, vector<32x128xf32>,
    %c0_i32_8 = arith.constant 0 : i32
    %9 = arith.cmpi eq, %arg2, %c0_i32_8 : i32
    %10 = arith.extui %9 : i1 to i32
    %c0_i32_9 = arith.constant 0 : i32
    %11 = arith.cmpi ne, %10, %c0_i32_9 : i32
    scf.if %11 {
      %c0_10 = arith.constant 0 : index
      %c0_11 = arith.constant 0 : index
      %12 = vector.load %arg7[%c0_10, %c0_11] : memref<32x128xf32, #tpu.memory_space<vmem>>, vector<32x128xf32>
      %c0_12 = arith.constant 0 : index
      %c0_13 = arith.constant 0 : index
      %13 = vector.load %arg5[%c0_12, %c0_13] : memref<1x128xf32, #tpu.memory_space<vmem>>, vector<1x128xf32>
      %14 = vector.broadcast %13 : vector<1x128xf32> to vector<32x128xf32>
      %15 = arith.addf %12, %14 : vector<32x128xf32>
      %cst_14 = arith.constant 0.000000e+00 : f32
      %16 = vector.broadcast %cst_14 : f32 to vector<32x128xf32>
      %17 = arith.maximumf %15, %16 : vector<32x128xf32>
      %18 = arith.truncf %17 : vector<32x128xf32> to vector<32x128xbf16>
      %c0_15 = arith.constant 0 : index
      %c0_16 = arith.constant 0 : index
      %19 = vector.load %arg6[%c0_15, %c0_16] : memref<32x128xbf16, #tpu.memory_space<vmem>>, vector<32x128xbf16>
      tpu.vector_store %arg6[%c0_15, %c0_16], %18 {strides = array<i32>} : memref<32x128xbf16, #tpu.memory_space<vmem>>, vector<32x128xbf16>,
    } else {
    }
    return
  }
  func.func @transform_0(%arg0: i32, %arg1: i32, %arg2: i32) -> (i32, i32) {
    %c0_i32 = arith.constant 0 : i32
    return %arg0, %arg2 : i32, i32
  }
  func.func @transform_1(%arg0: i32, %arg1: i32, %arg2: i32) -> (i32, i32) {
    %c0_i32 = arith.constant 0 : i32
    return %arg2, %arg1 : i32, i32
  }
  func.func @transform_2(%arg0: i32, %arg1: i32, %arg2: i32) -> (i32, i32) {
    %c0_i32 = arith.constant 0 : i32
    %c0_i32_0 = arith.constant 0 : i32
    return %c0_i32, %arg1 : i32, i32
  }
  func.func @transform_3(%arg0: i32, %arg1: i32, %arg2: i32) -> (i32, i32) {
    %c0_i32 = arith.constant 0 : i32
    return %arg0, %arg1 : i32, i32
  }
}

module attributes {stable_mosaic.version = 11 : i64} {
  func.func @_linear_kernel(%arg0: i32, %arg1: i32, %arg2: i32, %arg3: memref<16x128xbf16, #tpu.memory_space<vmem>>, %arg4: memref<128x128xbf16, #tpu.memory_space<vmem>>, %arg5: memref<1x128xf32, #tpu.memory_space<vmem>>, %arg6: memref<1x128xf32, #tpu.memory_space<vmem>>, %arg7: memref<1x128xf32, #tpu.memory_space<vmem>>, %arg8: memref<16x128xbf16, #tpu.memory_space<vmem>>, %arg9: memref<16x128xf32, #tpu.memory_space<vmem>>) attributes {dimension_semantics = [#tpu.dimension_semantics<parallel>, #tpu.dimension_semantics<parallel>, #tpu.dimension_semantics<arbitrary>], iteration_bounds = array<i64: 1, 1, 1>, scalar_prefetch = 0 : i64, scratch_operands = 1 : i64, tpu.core_type = #tpu.core_type<tc>, window_params = [{transform_indices = @transform_0, window_bounds = array<i64: 16, 128>}, {transform_indices = @transform_1, window_bounds = array<i64: 128, 128>}, {transform_indices = @transform_2, window_bounds = array<i64: 1, 128>}, {transform_indices = @transform_3, window_bounds = array<i64: 1, 128>}, {transform_indices = @transform_4, window_bounds = array<i64: 1, 128>}, {transform_indices = @transform_5, window_bounds = array<i64: 16, 128>}]} {
    %c0 = arith.constant 0 : index
    %c0_0 = arith.constant 0 : index
    %0 = vector.load %arg3[%c0, %c0_0] : memref<16x128xbf16, #tpu.memory_space<vmem>>, vector<16x128xbf16>
    %1 = arith.extf %0 : vector<16x128xbf16> to vector<16x128xf32>
    %cst = arith.constant dense<0.000000e+00> : vector<16xf32>
    %2 = vector.multi_reduction <add>, %1, %cst [1] : vector<16x128xf32> to vector<16xf32>
    %3 = vector.shape_cast %2 : vector<16xf32> to vector<16x1xf32>
    %cst_1 = arith.constant 3.125000e-02 : f32
    %4 = vector.broadcast %cst_1 : f32 to vector<16x1xf32>
    %5 = arith.mulf %3, %4 : vector<16x1xf32>
    %6 = arith.mulf %1, %1 : vector<16x128xf32>
    %cst_2 = arith.constant dense<0.000000e+00> : vector<16xf32>
    %7 = vector.multi_reduction <add>, %6, %cst_2 [1] : vector<16x128xf32> to vector<16xf32>
    %8 = vector.shape_cast %7 : vector<16xf32> to vector<16x1xf32>
    %cst_3 = arith.constant 3.125000e-02 : f32
    %9 = vector.broadcast %cst_3 : f32 to vector<16x1xf32>
    %10 = arith.mulf %8, %9 : vector<16x1xf32>
    %11 = arith.mulf %5, %5 : vector<16x1xf32>
    %12 = arith.subf %10, %11 : vector<16x1xf32>
    %13 = vector.broadcast %5 : vector<16x1xf32> to vector<16x128xf32>
    %14 = arith.subf %1, %13 : vector<16x128xf32>
    %cst_4 = arith.constant 9.99999974E-6 : f32
    %15 = vector.broadcast %cst_4 : f32 to vector<16x1xf32>
    %16 = arith.addf %12, %15 : vector<16x1xf32>
    %17 = math.rsqrt %16 : vector<16x1xf32>
    %18 = vector.broadcast %17 : vector<16x1xf32> to vector<16x128xf32>
    %19 = arith.mulf %14, %18 : vector<16x128xf32>
    %c0_5 = arith.constant 0 : index
    %c0_6 = arith.constant 0 : index
    %20 = vector.load %arg6[%c0_5, %c0_6] : memref<1x128xf32, #tpu.memory_space<vmem>>, vector<1x128xf32>
    %21 = vector.broadcast %20 : vector<1x128xf32> to vector<16x128xf32>
    %22 = arith.mulf %19, %21 : vector<16x128xf32>
    %c0_7 = arith.constant 0 : index
    %c0_8 = arith.constant 0 : index
    %23 = vector.load %arg7[%c0_7, %c0_8] : memref<1x128xf32, #tpu.memory_space<vmem>>, vector<1x128xf32>
    %24 = vector.broadcast %23 : vector<1x128xf32> to vector<16x128xf32>
    %25 = arith.addf %22, %24 : vector<16x128xf32>
    %26 = arith.truncf %25 : vector<16x128xf32> to vector<16x128xbf16>
    %c0_i32 = arith.constant 0 : i32
    %27 = arith.cmpi eq, %arg2, %c0_i32 : i32
    %28 = arith.extui %27 : i1 to i32
    %c0_i32_9 = arith.constant 0 : i32
    %29 = arith.cmpi ne, %28, %c0_i32_9 : i32
    scf.if %29 {
      %cst_19 = arith.constant 0.000000e+00 : f32
      %38 = vector.broadcast %cst_19 : f32 to vector<16x128xf32>
      %c0_20 = arith.constant 0 : index
      %c0_21 = arith.constant 0 : index
      %39 = vector.load %arg9[%c0_20, %c0_21] : memref<16x128xf32, #tpu.memory_space<vmem>>, vector<16x128xf32>
      tpu.vector_store %arg9[%c0_20, %c0_21], %38 {strides = array<i32>} : memref<16x128xf32, #tpu.memory_space<vmem>>, vector<16x128xf32>,
    } else {
    }
    %c0_10 = arith.constant 0 : index
    %c0_11 = arith.constant 0 : index
    %30 = vector.load %arg9[%c0_10, %c0_11] : memref<16x128xf32, #tpu.memory_space<vmem>>, vector<16x128xf32>
    %c0_12 = arith.constant 0 : index
    %c0_13 = arith.constant 0 : index
    %31 = vector.load %arg4[%c0_12, %c0_13] : memref<128x128xbf16, #tpu.memory_space<vmem>>, vector<128x128xbf16>
    %cst_14 = arith.constant dense<0.000000e+00> : vector<16x128xf32>
    %32 = tpu.matmul %26, %31, %cst_14 {dimension_numbers = #tpu.dot_dimension_numbers<[1], [0], [0], [1], [0, 0, 1, 1], [], []>} : vector<16x128xbf16>, vector<128x128xbf16>, vector<16x128xf32> -> vector<16x128xf32>
    %33 = arith.addf %30, %32 : vector<16x128xf32>
    %c0_15 = arith.constant 0 : index
    %c0_16 = arith.constant 0 : index
    %34 = vector.load %arg9[%c0_15, %c0_16] : memref<16x128xf32, #tpu.memory_space<vmem>>, vector<16x128xf32>
    tpu.vector_store %arg9[%c0_15, %c0_16], %33 {strides = array<i32>} : memref<16x128xf32, #tpu.memory_space<vmem>>, vector<16x128xf32>,
    %c0_i32_17 = arith.constant 0 : i32
    %35 = arith.cmpi eq, %arg2, %c0_i32_17 : i32
    %36 = arith.extui %35 : i1 to i32
    %c0_i32_18 = arith.constant 0 : i32
    %37 = arith.cmpi ne, %36, %c0_i32_18 : i32
    scf.if %37 {
      %c0_19 = arith.constant 0 : index
      %c0_20 = arith.constant 0 : index
      %38 = vector.load %arg9[%c0_19, %c0_20] : memref<16x128xf32, #tpu.memory_space<vmem>>, vector<16x128xf32>
      %c0_21 = arith.constant 0 : index
      %c0_22 = arith.constant 0 : index
      %39 = vector.load %arg5[%c0_21, %c0_22] : memref<1x128xf32, #tpu.memory_space<vmem>>, vector<1x128xf32>
      %40 = vector.broadcast %39 : vector<1x128xf32> to vector<16x128xf32>
      %41 = arith.addf %38, %40 : vector<16x128xf32>
      %42 = arith.negf %41 : vector<16x128xf32>
      %43 = math.exp %42 : vector<16x128xf32>
      %cst_23 = arith.constant 1.000000e+00 : f32
      %44 = vector.broadcast %cst_23 : f32 to vector<16x128xf32>
      %45 = arith.addf %44, %43 : vector<16x128xf32>
      %46 = arith.divf %44, %45 : vector<16x128xf32>
      %47 = arith.mulf %41, %46 : vector<16x128xf32>
      %48 = arith.truncf %47 : vector<16x128xf32> to vector<16x128xbf16>
      %c0_24 = arith.constant 0 : index
      %c0_25 = arith.constant 0 : index
      %49 = vector.load %arg8[%c0_24, %c0_25] : memref<16x128xbf16, #tpu.memory_space<vmem>>, vector<16x128xbf16>
      tpu.vector_store %arg8[%c0_24, %c0_25], %48 {strides = array<i32>} : memref<16x128xbf16, #tpu.memory_space<vmem>>, vector<16x128xbf16>,
    } else {
    }
    return
  }
  func.func @transform_0(%arg0: i32, %arg1: i32, %arg2: i32) -> (i32, i32) {
    %c0_i32 = arith.constant 0 : i32
    return %arg0, %arg2 : i32, i32
  }
  func.func @transform_1(%arg0: i32, %arg1: i32, %arg2: i32) -> (i32, i32) {
    %c0_i32 = arith.constant 0 : i32
    return %arg2, %arg1 : i32, i32
  }
  func.func @transform_2(%arg0: i32, %arg1: i32, %arg2: i32) -> (i32, i32) {
    %c0_i32 = arith.constant 0 : i32
    %c0_i32_0 = arith.constant 0 : i32
    return %c0_i32, %arg1 : i32, i32
  }
  func.func @transform_3(%arg0: i32, %arg1: i32, %arg2: i32) -> (i32, i32) {
    %c0_i32 = arith.constant 0 : i32
    %c0_i32_0 = arith.constant 0 : i32
    return %c0_i32, %arg2 : i32, i32
  }
  func.func @transform_4(%arg0: i32, %arg1: i32, %arg2: i32) -> (i32, i32) {
    %c0_i32 = arith.constant 0 : i32
    %c0_i32_0 = arith.constant 0 : i32
    return %c0_i32, %arg2 : i32, i32
  }
  func.func @transform_5(%arg0: i32, %arg1: i32, %arg2: i32) -> (i32, i32) {
    %c0_i32 = arith.constant 0 : i32
    return %arg0, %arg1 : i32, i32
  }
}

module attributes {stable_mosaic.version = 11 : i64} {
  func.func @_linear_kernel(%arg0: i32, %arg1: i32, %arg2: i32, %arg3: memref<16x128xbf16, #tpu.memory_space<vmem>>, %arg4: memref<128x128xbf16, #tpu.memory_space<vmem>>, %arg5: memref<1x128xf32, #tpu.memory_space<vmem>>, %arg6: memref<16x128xbf16, #tpu.memory_space<vmem>>, %arg7: memref<16x128xf32, #tpu.memory_space<vmem>>) attributes {dimension_semantics = [#tpu.dimension_semantics<parallel>, #tpu.dimension_semantics<parallel>, #tpu.dimension_semantics<arbitrary>], iteration_bounds = array<i64: 1, 1, 1>, scalar_prefetch = 0 : i64, scratch_operands = 1 : i64, tpu.core_type = #tpu.core_type<tc>, window_params = [{transform_indices = @transform_0, window_bounds = array<i64: 16, 128>}, {transform_indices = @transform_1, window_bounds = array<i64: 128, 128>}, {transform_indices = @transform_2, window_bounds = array<i64: 1, 128>}, {transform_indices = @transform_3, window_bounds = array<i64: 16, 128>}]} {
    %c0 = arith.constant 0 : index
    %c0_0 = arith.constant 0 : index
    %0 = vector.load %arg3[%c0, %c0_0] : memref<16x128xbf16, #tpu.memory_space<vmem>>, vector<16x128xbf16>
    %c0_i32 = arith.constant 0 : i32
    %1 = arith.cmpi eq, %arg2, %c0_i32 : i32
    %2 = arith.extui %1 : i1 to i32
    %c0_i32_1 = arith.constant 0 : i32
    %3 = arith.cmpi ne, %2, %c0_i32_1 : i32
    scf.if %3 {
      %cst_10 = arith.constant 0.000000e+00 : f32
      %12 = vector.broadcast %cst_10 : f32 to vector<16x128xf32>
      %c0_11 = arith.constant 0 : index
      %c0_12 = arith.constant 0 : index
      %13 = vector.load %arg7[%c0_11, %c0_12] : memref<16x128xf32, #tpu.memory_space<vmem>>, vector<16x128xf32>
      tpu.vector_store %arg7[%c0_11, %c0_12], %12 {strides = array<i32>} : memref<16x128xf32, #tpu.memory_space<vmem>>, vector<16x128xf32>,
    } else {
    }
    %c0_2 = arith.constant 0 : index
    %c0_3 = arith.constant 0 : index
    %4 = vector.load %arg7[%c0_2, %c0_3] : memref<16x128xf32, #tpu.memory_space<vmem>>, vector<16x128xf32>
    %c0_4 = arith.constant 0 : index
    %c0_5 = arith.constant 0 : index
    %5 = vector.load %arg4[%c0_4, %c0_5] : memref<128x128xbf16, #tpu.memory_space<vmem>>, vector<128x128xbf16>
    %cst = arith.constant dense<0.000000e+00> : vector<16x128xf32>
    %6 = tpu.matmul %0, %5, %cst {dimension_numbers = #tpu.dot_dimension_numbers<[1], [0], [0], [1], [0, 0, 1, 1], [], []>} : vector<16x128xbf16>, vector<128x128xbf16>, vector<16x128xf32> -> vector<16x128xf32>
    %7 = arith.addf %4, %6 : vector<16x128xf32>
    %c0_6 = arith.constant 0 : index
    %c0_7 = arith.constant 0 : index
    %8 = vector.load %arg7[%c0_6, %c0_7] : memref<16x128xf32, #tpu.memory_space<vmem>>, vector<16x128xf32>
    tpu.vector_store %arg7[%c0_6, %c0_7], %7 {strides = array<i32>} : memref<16x128xf32, #tpu.memory_space<vmem>>, vector<16x128xf32>,
    %c0_i32_8 = arith.constant 0 : i32
    %9 = arith.cmpi eq, %arg2, %c0_i32_8 : i32
    %10 = arith.extui %9 : i1 to i32
    %c0_i32_9 = arith.constant 0 : i32
    %11 = arith.cmpi ne, %10, %c0_i32_9 : i32
    scf.if %11 {
      %c0_10 = arith.constant 0 : index
      %c0_11 = arith.constant 0 : index
      %12 = vector.load %arg7[%c0_10, %c0_11] : memref<16x128xf32, #tpu.memory_space<vmem>>, vector<16x128xf32>
      %c0_12 = arith.constant 0 : index
      %c0_13 = arith.constant 0 : index
      %13 = vector.load %arg5[%c0_12, %c0_13] : memref<1x128xf32, #tpu.memory_space<vmem>>, vector<1x128xf32>
      %14 = vector.broadcast %13 : vector<1x128xf32> to vector<16x128xf32>
      %15 = arith.addf %12, %14 : vector<16x128xf32>
      %16 = arith.truncf %15 : vector<16x128xf32> to vector<16x128xbf16>
      %c0_14 = arith.constant 0 : index
      %c0_15 = arith.constant 0 : index
      %17 = vector.load %arg6[%c0_14, %c0_15] : memref<16x128xbf16, #tpu.memory_space<vmem>>, vector<16x128xbf16>
      tpu.vector_store %arg6[%c0_14, %c0_15], %16 {strides = array<i32>} : memref<16x128xbf16, #tpu.memory_space<vmem>>, vector<16x128xbf16>,
    } else {
    }
    return
  }
  func.func @transform_0(%arg0: i32, %arg1: i32, %arg2: i32) -> (i32, i32) {
    %c0_i32 = arith.constant 0 : i32
    return %arg0, %arg2 : i32, i32
  }
  func.func @transform_1(%arg0: i32, %arg1: i32, %arg2: i32) -> (i32, i32) {
    %c0_i32 = arith.constant 0 : i32
    return %arg2, %arg1 : i32, i32
  }
  func.func @transform_2(%arg0: i32, %arg1: i32, %arg2: i32) -> (i32, i32) {
    %c0_i32 = arith.constant 0 : i32
    %c0_i32_0 = arith.constant 0 : i32
    return %c0_i32, %arg1 : i32, i32
  }
  func.func @transform_3(%arg0: i32, %arg1: i32, %arg2: i32) -> (i32, i32) {
    %c0_i32 = arith.constant 0 : i32
    return %arg0, %arg1 : i32, i32
  }
}

module attributes {stable_mosaic.version = 11 : i64} {
  func.func @_linear_kernel(%arg0: i32, %arg1: i32, %arg2: i32, %arg3: memref<16x128xbf16, #tpu.memory_space<vmem>>, %arg4: memref<128x128xbf16, #tpu.memory_space<vmem>>, %arg5: memref<1x128xf32, #tpu.memory_space<vmem>>, %arg6: memref<16x128xbf16, #tpu.memory_space<vmem>>, %arg7: memref<16x128xbf16, #tpu.memory_space<vmem>>, %arg8: memref<16x128xf32, #tpu.memory_space<vmem>>) attributes {dimension_semantics = [#tpu.dimension_semantics<parallel>, #tpu.dimension_semantics<parallel>, #tpu.dimension_semantics<arbitrary>], iteration_bounds = array<i64: 1, 1, 1>, scalar_prefetch = 0 : i64, scratch_operands = 1 : i64, tpu.core_type = #tpu.core_type<tc>, window_params = [{transform_indices = @transform_0, window_bounds = array<i64: 16, 128>}, {transform_indices = @transform_1, window_bounds = array<i64: 128, 128>}, {transform_indices = @transform_2, window_bounds = array<i64: 1, 128>}, {transform_indices = @transform_3, window_bounds = array<i64: 16, 128>}, {transform_indices = @transform_4, window_bounds = array<i64: 16, 128>}]} {
    %c0 = arith.constant 0 : index
    %c0_0 = arith.constant 0 : index
    %0 = vector.load %arg3[%c0, %c0_0] : memref<16x128xbf16, #tpu.memory_space<vmem>>, vector<16x128xbf16>
    %c0_i32 = arith.constant 0 : i32
    %1 = arith.cmpi eq, %arg2, %c0_i32 : i32
    %2 = arith.extui %1 : i1 to i32
    %c0_i32_1 = arith.constant 0 : i32
    %3 = arith.cmpi ne, %2, %c0_i32_1 : i32
    scf.if %3 {
      %cst_10 = arith.constant 0.000000e+00 : f32
      %12 = vector.broadcast %cst_10 : f32 to vector<16x128xf32>
      %c0_11 = arith.constant 0 : index
      %c0_12 = arith.constant 0 : index
      %13 = vector.load %arg8[%c0_11, %c0_12] : memref<16x128xf32, #tpu.memory_space<vmem>>, vector<16x128xf32>
      tpu.vector_store %arg8[%c0_11, %c0_12], %12 {strides = array<i32>} : memref<16x128xf32, #tpu.memory_space<vmem>>, vector<16x128xf32>,
    } else {
    }
    %c0_2 = arith.constant 0 : index
    %c0_3 = arith.constant 0 : index
    %4 = vector.load %arg8[%c0_2, %c0_3] : memref<16x128xf32, #tpu.memory_space<vmem>>, vector<16x128xf32>
    %c0_4 = arith.constant 0 : index
    %c0_5 = arith.constant 0 : index
    %5 = vector.load %arg4[%c0_4, %c0_5] : memref<128x128xbf16, #tpu.memory_space<vmem>>, vector<128x128xbf16>
    %cst = arith.constant dense<0.000000e+00> : vector<16x128xf32>
    %6 = tpu.matmul %0, %5, %cst {dimension_numbers = #tpu.dot_dimension_numbers<[1], [0], [0], [1], [0, 0, 1, 1], [], []>} : vector<16x128xbf16>, vector<128x128xbf16>, vector<16x128xf32> -> vector<16x128xf32>
    %7 = arith.addf %4, %6 : vector<16x128xf32>
    %c0_6 = arith.constant 0 : index
    %c0_7 = arith.constant 0 : index
    %8 = vector.load %arg8[%c0_6, %c0_7] : memref<16x128xf32, #tpu.memory_space<vmem>>, vector<16x128xf32>
    tpu.vector_store %arg8[%c0_6, %c0_7], %7 {strides = array<i32>} : memref<16x128xf32, #tpu.memory_space<vmem>>, vector<16x128xf32>,
    %c0_i32_8 = arith.constant 0 : i32
    %9 = arith.cmpi eq, %arg2, %c0_i32_8 : i32
    %10 = arith.extui %9 : i1 to i32
    %c0_i32_9 = arith.constant 0 : i32
    %11 = arith.cmpi ne, %10, %c0_i32_9 : i32
    scf.if %11 {
      %c0_10 = arith.constant 0 : index
      %c0_11 = arith.constant 0 : index
      %12 = vector.load %arg8[%c0_10, %c0_11] : memref<16x128xf32, #tpu.memory_space<vmem>>, vector<16x128xf32>
      %c0_12 = arith.constant 0 : index
      %c0_13 = arith.constant 0 : index
      %13 = vector.load %arg5[%c0_12, %c0_13] : memref<1x128xf32, #tpu.memory_space<vmem>>, vector<1x128xf32>
      %14 = vector.broadcast %13 : vector<1x128xf32> to vector<16x128xf32>
      %15 = arith.addf %12, %14 : vector<16x128xf32>
      %cst_14 = arith.constant 5.000000e-01 : f32
      %16 = vector.broadcast %cst_14 : f32 to vector<16x128xf32>
      %17 = arith.mulf %15, %16 : vector<16x128xf32>
      %c0_15 = arith.constant 0 : index
      %c0_16 = arith.constant 0 : index
      %18 = vector.load %arg6[%c0_15, %c0_16] : memref<16x128xbf16, #tpu.memory_space<vmem>>, vector<16x128xbf16>
      %19 = arith.extf %18 : vector<16x128xbf16> to vector<16x128xf32>
      %20 = arith.addf %17, %19 : vector<16x128xf32>
      %21 = arith.truncf %20 : vector<16x128xf32> to vector<16x128xbf16>
      %c0_17 = arith.constant 0 : index
      %c0_18 = arith.constant 0 : index
      %22 = vector.load %arg7[%c0_17, %c0_18] : memref<16x128xbf16, #tpu.memory_space<vmem>>, vector<16x128xbf16>
      tpu.vector_store %arg7[%c0_17, %c0_18], %21 {strides = array<i32>} : memref<16x128xbf16, #tpu.memory_space<vmem>>, vector<16x128xbf16>,
    } else {
    }
    return
  }
  func.func @transform_0(%arg0: i32, %arg1: i32, %arg2: i32) -> (i32, i32) {
    %c0_i32 = arith.constant 0 : i32
    return %arg0, %arg2 : i32, i32
  }
  func.func @transform_1(%arg0: i32, %arg1: i32, %arg2: i32) -> (i32, i32) {
    %c0_i32 = arith.constant 0 : i32
    return %arg2, %arg1 : i32, i32
  }
  func.func @transform_2(%arg0: i32, %arg1: i32, %arg2: i32) -> (i32, i32) {
    %c0_i32 = arith.constant 0 : i32
    %c0_i32_0 = arith.constant 0 : i32
    return %c0_i32, %arg1 : i32, i32
  }
  func.func @transform_3(%arg0: i32, %arg1: i32, %arg2: i32) -> (i32, i32) {
    %c0_i32 = arith.constant 0 : i32
    return %arg0, %arg1 : i32, i32
  }
  func.func @transform_4(%arg0: i32, %arg1: i32, %arg2: i32) -> (i32, i32) {
    %c0_i32 = arith.constant 0 : i32
    return %arg0, %arg1 : i32, i32
  }
}

module attributes {stable_mosaic.version = 11 : i64} {
  func.func @_linear_kernel(%arg0: i32, %arg1: i32, %arg2: i32, %arg3: memref<8x128xbf16, #tpu.memory_space<vmem>>, %arg4: memref<128x128xbf16, #tpu.memory_space<vmem>>, %arg5: memref<1x128xf32, #tpu.memory_space<vmem>>, %arg6: memref<8x128xbf16, #tpu.memory_space<vmem>>, %arg7: memref<8x128xf32, #tpu.memory_space<vmem>>) attributes {dimension_semantics = [#tpu.dimension_semantics<parallel>, #tpu.dimension_semantics<parallel>, #tpu.dimension_semantics<arbitrary>], iteration_bounds = array<i64: 1, 1, 1>, scalar_prefetch = 0 : i64, scratch_operands = 1 : i64, tpu.core_type = #tpu.core_type<tc>, window_params = [{transform_indices = @transform_0, window_bounds = array<i64: 8, 128>}, {transform_indices = @transform_1, window_bounds = array<i64: 128, 128>}, {transform_indices = @transform_2, window_bounds = array<i64: 1, 128>}, {transform_indices = @transform_3, window_bounds = array<i64: 8, 128>}]} {
    %c0 = arith.constant 0 : index
    %c0_0 = arith.constant 0 : index
    %0 = vector.load %arg3[%c0, %c0_0] : memref<8x128xbf16, #tpu.memory_space<vmem>>, vector<8x128xbf16>
    %c0_i32 = arith.constant 0 : i32
    %1 = arith.cmpi eq, %arg2, %c0_i32 : i32
    %2 = arith.extui %1 : i1 to i32
    %c0_i32_1 = arith.constant 0 : i32
    %3 = arith.cmpi ne, %2, %c0_i32_1 : i32
    scf.if %3 {
      %cst_10 = arith.constant 0.000000e+00 : f32
      %12 = vector.broadcast %cst_10 : f32 to vector<8x128xf32>
      %c0_11 = arith.constant 0 : index
      %c0_12 = arith.constant 0 : index
      %13 = vector.load %arg7[%c0_11, %c0_12] : memref<8x128xf32, #tpu.memory_space<vmem>>, vector<8x128xf32>
      tpu.vector_store %arg7[%c0_11, %c0_12], %12 {strides = array<i32>} : memref<8x128xf32, #tpu.memory_space<vmem>>, vector<8x128xf32>,
    } else {
    }
    %c0_2 = arith.constant 0 : index
    %c0_3 = arith.constant 0 : index
    %4 = vector.load %arg7[%c0_2, %c0_3] : memref<8x128xf32, #tpu.memory_space<vmem>>, vector<8x128xf32>
    %c0_4 = arith.constant 0 : index
    %c0_5 = arith.constant 0 : index
    %5 = vector.load %arg4[%c0_4, %c0_5] : memref<128x128xbf16, #tpu.memory_space<vmem>>, vector<128x128xbf16>
    %cst = arith.constant dense<0.000000e+00> : vector<8x128xf32>
    %6 = tpu.matmul %0, %5, %cst {dimension_numbers = #tpu.dot_dimension_numbers<[1], [0], [0], [1], [0, 0, 1, 1], [], []>} : vector<8x128xbf16>, vector<128x128xbf16>, vector<8x128xf32> -> vector<8x128xf32>
    %7 = arith.addf %4, %6 : vector<8x128xf32>
    %c0_6 = arith.constant 0 : index
    %c0_7 = arith.constant 0 : index
    %8 = vector.load %arg7[%c0_6, %c0_7] : memref<8x128xf32, #tpu.memory_space<vmem>>, vector<8x128xf32>
    tpu.vector_store %arg7[%c0_6, %c0_7], %7 {strides = array<i32>} : memref<8x128xf32, #tpu.memory_space<vmem>>, vector<8x128xf32>,
    %c0_i32_8 = arith.constant 0 : i32
    %9 = arith.cmpi eq, %arg2, %c0_i32_8 : i32
    %10 = arith.extui %9 : i1 to i32
    %c0_i32_9 = arith.constant 0 : i32
    %11 = arith.cmpi ne, %10, %c0_i32_9 : i32
    scf.if %11 {
      %c0_10 = arith.constant 0 : index
      %c0_11 = arith.constant 0 : index
      %12 = vector.load %arg7[%c0_10, %c0_11] : memref<8x128xf32, #tpu.memory_space<vmem>>, vector<8x128xf32>
      %c0_12 = arith.constant 0 : index
      %c0_13 = arith.constant 0 : index
      %13 = vector.load %arg5[%c0_12, %c0_13] : memref<1x128xf32, #tpu.memory_space<vmem>>, vector<1x128xf32>
      %14 = vector.broadcast %13 : vector<1x128xf32> to vector<8x128xf32>
      %15 = arith.addf %12, %14 : vector<8x128xf32>
      %16 = arith.truncf %15 : vector<8x128xf32> to vector<8x128xbf16>
      %c0_14 = arith.constant 0 : index
      %c0_15 = arith.constant 0 : index
      %17 = vector.load %arg6[%c0_14, %c0_15] : memref<8x128xbf16, #tpu.memory_space<vmem>>, vector<8x128xbf16>
      tpu.vector_store %arg6[%c0_14, %c0_15], %16 {strides = array<i32>} : memref<8x128xbf16, #tpu.memory_space<vmem>>, vector<8x128xbf16>,
    } else {
    }
    return
  }
  func.func @transform_0(%arg0: i32, %arg1: i32, %arg2: i32) -> (i32, i32) {
    %c0_i32 = arith.constant 0 : i32
    return %arg0, %arg2 : i32, i32
  }
  func.func @transform_1(%arg0: i32, %arg1: i32, %arg2: i32) -> (i32, i32) {
    %c0_i32 = arith.constant 0 : i32
    return %arg2, %arg1 : i32, i32
  }
  func.func @transform_2(%arg0: i32, %arg1: i32, %arg2: i32) -> (i32, i32) {
    %c0_i32 = arith.constant 0 : i32
    %c0_i32_0 = arith.constant 0 : i32
    return %c0_i32, %arg1 : i32, i32
  }
  func.func @transform_3(%arg0: i32, %arg1: i32, %arg2: i32) -> (i32, i32) {
    %c0_i32 = arith.constant 0 : i32
    return %arg0, %arg1 : i32, i32
  }
}

module attributes {stable_mosaic.version = 11 : i64} {
  func.func @_linear_kernel(%arg0: i32, %arg1: i32, %arg2: i32, %arg3: memref<16x128xbf16, #tpu.memory_space<vmem>>, %arg4: memref<128x128xbf16, #tpu.memory_space<vmem>>, %arg5: memref<1x128xf32, #tpu.memory_space<vmem>>, %arg6: memref<1x128xf32, #tpu.memory_space<vmem>>, %arg7: memref<1x128xf32, #tpu.memory_space<vmem>>, %arg8: memref<16x128xbf16, #tpu.memory_space<vmem>>, %arg9: memref<16x128xf32, #tpu.memory_space<vmem>>) attributes {dimension_semantics = [#tpu.dimension_semantics<parallel>, #tpu.dimension_semantics<parallel>, #tpu.dimension_semantics<arbitrary>], iteration_bounds = array<i64: 1, 1, 1>, scalar_prefetch = 0 : i64, scratch_operands = 1 : i64, tpu.core_type = #tpu.core_type<tc>, window_params = [{transform_indices = @transform_0, window_bounds = array<i64: 16, 128>}, {transform_indices = @transform_1, window_bounds = array<i64: 128, 128>}, {transform_indices = @transform_2, window_bounds = array<i64: 1, 128>}, {transform_indices = @transform_3, window_bounds = array<i64: 1, 128>}, {transform_indices = @transform_4, window_bounds = array<i64: 1, 128>}, {transform_indices = @transform_5, window_bounds = array<i64: 16, 128>}]} {
    %c0 = arith.constant 0 : index
    %c0_0 = arith.constant 0 : index
    %0 = vector.load %arg3[%c0, %c0_0] : memref<16x128xbf16, #tpu.memory_space<vmem>>, vector<16x128xbf16>
    %1 = arith.extf %0 : vector<16x128xbf16> to vector<16x128xf32>
    %cst = arith.constant dense<0.000000e+00> : vector<16xf32>
    %2 = vector.multi_reduction <add>, %1, %cst [1] : vector<16x128xf32> to vector<16xf32>
    %3 = vector.shape_cast %2 : vector<16xf32> to vector<16x1xf32>
    %cst_1 = arith.constant 3.125000e-02 : f32
    %4 = vector.broadcast %cst_1 : f32 to vector<16x1xf32>
    %5 = arith.mulf %3, %4 : vector<16x1xf32>
    %6 = arith.mulf %1, %1 : vector<16x128xf32>
    %cst_2 = arith.constant dense<0.000000e+00> : vector<16xf32>
    %7 = vector.multi_reduction <add>, %6, %cst_2 [1] : vector<16x128xf32> to vector<16xf32>
    %8 = vector.shape_cast %7 : vector<16xf32> to vector<16x1xf32>
    %cst_3 = arith.constant 3.125000e-02 : f32
    %9 = vector.broadcast %cst_3 : f32 to vector<16x1xf32>
    %10 = arith.mulf %8, %9 : vector<16x1xf32>
    %11 = arith.mulf %5, %5 : vector<16x1xf32>
    %12 = arith.subf %10, %11 : vector<16x1xf32>
    %13 = vector.broadcast %5 : vector<16x1xf32> to vector<16x128xf32>
    %14 = arith.subf %1, %13 : vector<16x128xf32>
    %cst_4 = arith.constant 9.99999974E-6 : f32
    %15 = vector.broadcast %cst_4 : f32 to vector<16x1xf32>
    %16 = arith.addf %12, %15 : vector<16x1xf32>
    %17 = math.rsqrt %16 : vector<16x1xf32>
    %18 = vector.broadcast %17 : vector<16x1xf32> to vector<16x128xf32>
    %19 = arith.mulf %14, %18 : vector<16x128xf32>
    %c0_5 = arith.constant 0 : index
    %c0_6 = arith.constant 0 : index
    %20 = vector.load %arg6[%c0_5, %c0_6] : memref<1x128xf32, #tpu.memory_space<vmem>>, vector<1x128xf32>
    %21 = vector.broadcast %20 : vector<1x128xf32> to vector<16x128xf32>
    %22 = arith.mulf %19, %21 : vector<16x128xf32>
    %c0_7 = arith.constant 0 : index
    %c0_8 = arith.constant 0 : index
    %23 = vector.load %arg7[%c0_7, %c0_8] : memref<1x128xf32, #tpu.memory_space<vmem>>, vector<1x128xf32>
    %24 = vector.broadcast %23 : vector<1x128xf32> to vector<16x128xf32>
    %25 = arith.addf %22, %24 : vector<16x128xf32>
    %26 = arith.truncf %25 : vector<16x128xf32> to vector<16x128xbf16>
    %c0_i32 = arith.constant 0 : i32
    %27 = arith.cmpi eq, %arg2, %c0_i32 : i32
    %28 = arith.extui %27 : i1 to i32
    %c0_i32_9 = arith.constant 0 : i32
    %29 = arith.cmpi ne, %28, %c0_i32_9 : i32
    scf.if %29 {
      %cst_19 = arith.constant 0.000000e+00 : f32
      %38 = vector.broadcast %cst_19 : f32 to vector<16x128xf32>
      %c0_20 = arith.constant 0 : index
      %c0_21 = arith.constant 0 : index
      %39 = vector.load %arg9[%c0_20, %c0_21] : memref<16x128xf32, #tpu.memory_space<vmem>>, vector<16x128xf32>
      tpu.vector_store %arg9[%c0_20, %c0_21], %38 {strides = array<i32>} : memref<16x128xf32, #tpu.memory_space<vmem>>, vector<16x128xf32>,
    } else {
    }
    %c0_10 = arith.constant 0 : index
    %c0_11 = arith.constant 0 : index
    %30 = vector.load %arg9[%c0_10, %c0_11] : memref<16x128xf32, #tpu.memory_space<vmem>>, vector<16x128xf32>
    %c0_12 = arith.constant 0 : index
    %c0_13 = arith.constant 0 : index
    %31 = vector.load %arg4[%c0_12, %c0_13] : memref<128x128xbf16, #tpu.memory_space<vmem>>, vector<128x128xbf16>
    %cst_14 = arith.constant dense<0.000000e+00> : vector<16x128xf32>
    %32 = tpu.matmul %26, %31, %cst_14 {dimension_numbers = #tpu.dot_dimension_numbers<[1], [0], [0], [1], [0, 0, 1, 1], [], []>} : vector<16x128xbf16>, vector<128x128xbf16>, vector<16x128xf32> -> vector<16x128xf32>
    %33 = arith.addf %30, %32 : vector<16x128xf32>
    %c0_15 = arith.constant 0 : index
    %c0_16 = arith.constant 0 : index
    %34 = vector.load %arg9[%c0_15, %c0_16] : memref<16x128xf32, #tpu.memory_space<vmem>>, vector<16x128xf32>
    tpu.vector_store %arg9[%c0_15, %c0_16], %33 {strides = array<i32>} : memref<16x128xf32, #tpu.memory_space<vmem>>, vector<16x128xf32>,
    %c0_i32_17 = arith.constant 0 : i32
    %35 = arith.cmpi eq, %arg2, %c0_i32_17 : i32
    %36 = arith.extui %35 : i1 to i32
    %c0_i32_18 = arith.constant 0 : i32
    %37 = arith.cmpi ne, %36, %c0_i32_18 : i32
    scf.if %37 {
      %c0_19 = arith.constant 0 : index
      %c0_20 = arith.constant 0 : index
      %38 = vector.load %arg9[%c0_19, %c0_20] : memref<16x128xf32, #tpu.memory_space<vmem>>, vector<16x128xf32>
      %c0_21 = arith.constant 0 : index
      %c0_22 = arith.constant 0 : index
      %39 = vector.load %arg5[%c0_21, %c0_22] : memref<1x128xf32, #tpu.memory_space<vmem>>, vector<1x128xf32>
      %40 = vector.broadcast %39 : vector<1x128xf32> to vector<16x128xf32>
      %41 = arith.addf %38, %40 : vector<16x128xf32>
      %42 = arith.truncf %41 : vector<16x128xf32> to vector<16x128xbf16>
      %c0_23 = arith.constant 0 : index
      %c0_24 = arith.constant 0 : index
      %43 = vector.load %arg8[%c0_23, %c0_24] : memref<16x128xbf16, #tpu.memory_space<vmem>>, vector<16x128xbf16>
      tpu.vector_store %arg8[%c0_23, %c0_24], %42 {strides = array<i32>} : memref<16x128xbf16, #tpu.memory_space<vmem>>, vector<16x128xbf16>,
    } else {
    }
    return
  }
  func.func @transform_0(%arg0: i32, %arg1: i32, %arg2: i32) -> (i32, i32) {
    %c0_i32 = arith.constant 0 : i32
    return %arg0, %arg2 : i32, i32
  }
  func.func @transform_1(%arg0: i32, %arg1: i32, %arg2: i32) -> (i32, i32) {
    %c0_i32 = arith.constant 0 : i32
    return %arg2, %arg1 : i32, i32
  }
  func.func @transform_2(%arg0: i32, %arg1: i32, %arg2: i32) -> (i32, i32) {
    %c0_i32 = arith.constant 0 : i32
    %c0_i32_0 = arith.constant 0 : i32
    return %c0_i32, %arg1 : i32, i32
  }
  func.func @transform_3(%arg0: i32, %arg1: i32, %arg2: i32) -> (i32, i32) {
    %c0_i32 = arith.constant 0 : i32
    %c0_i32_0 = arith.constant 0 : i32
    return %c0_i32, %arg2 : i32, i32
  }
  func.func @transform_4(%arg0: i32, %arg1: i32, %arg2: i32) -> (i32, i32) {
    %c0_i32 = arith.constant 0 : i32
    %c0_i32_0 = arith.constant 0 : i32
    return %c0_i32, %arg2 : i32, i32
  }
  func.func @transform_5(%arg0: i32, %arg1: i32, %arg2: i32) -> (i32, i32) {
    %c0_i32 = arith.constant 0 : i32
    return %arg0, %arg1 : i32, i32
  }
}

module attributes {stable_mosaic.version = 11 : i64} {
  func.func @_relattn_kernel(%arg0: i32, %arg1: i32, %arg2: memref<1x8x32xbf16, #tpu.memory_space<vmem>>, %arg3: memref<1x8x32xbf16, #tpu.memory_space<vmem>>, %arg4: memref<1x8x32xbf16, #tpu.memory_space<vmem>>, %arg5: memref<1x4x8x128xf32, #tpu.memory_space<vmem>>, %arg6: memref<1x32xf32, #tpu.memory_space<vmem>>, %arg7: memref<1x32xf32, #tpu.memory_space<vmem>>, %arg8: memref<1x8x32xbf16, #tpu.memory_space<vmem>>) attributes {dimension_semantics = [#tpu.dimension_semantics<parallel>, #tpu.dimension_semantics<parallel>], iteration_bounds = array<i64: 2, 1>, scalar_prefetch = 0 : i64, scratch_operands = 0 : i64, tpu.core_type = #tpu.core_type<tc>, window_params = [{transform_indices = @transform_0, window_bounds = array<i64: 1, 8, 32>}, {transform_indices = @transform_1, window_bounds = array<i64: 1, 8, 32>}, {transform_indices = @transform_2, window_bounds = array<i64: 1, 8, 32>}, {transform_indices = @transform_3, window_bounds = array<i64: 1, 4, 8, 128>}, {transform_indices = @transform_4, window_bounds = array<i64: 1, 32>}, {transform_indices = @transform_5, window_bounds = array<i64: 1, 32>}, {transform_indices = @transform_6, window_bounds = array<i64: 1, 8, 32>}]} {
    %0 = tpu.iota {dimensions = array<i32: 1>} : vector<8x128xi32>
    %c8_i32 = arith.constant 8 : i32
    %1 = vector.broadcast %c8_i32 : i32 to vector<8x128xi32>
    %2 = arith.cmpi slt, %0, %1 : vector<8x128xi32>
    %c0 = arith.constant 0 : index
    %c0_0 = arith.constant 0 : index
    %c0_1 = arith.constant 0 : index
    %3 = vector.load %arg2[%c0, %c0_0, %c0_1] : memref<1x8x32xbf16, #tpu.memory_space<vmem>>, vector<1x8x32xbf16>
    %4 = vector.shape_cast %3 : vector<1x8x32xbf16> to vector<8x32xbf16>
    %c0_2 = arith.constant 0 : index
    %c0_3 = arith.constant 0 : index
    %c0_4 = arith.constant 0 : index
    %5 = vector.load %arg3[%c0_2, %c0_3, %c0_4] : memref<1x8x32xbf16, #tpu.memory_space<vmem>>, vector<1x8x32xbf16>
    %6 = vector.shape_cast %5 : vector<1x8x32xbf16> to vector<8x32xbf16>
    %c0_5 = arith.constant 0 : index
    %c0_6 = arith.constant 0 : index
    %c0_7 = arith.constant 0 : index
    %7 = vector.load %arg4[%c0_5, %c0_6, %c0_7] : memref<1x8x32xbf16, #tpu.memory_space<vmem>>, vector<1x8x32xbf16>
    %8 = vector.shape_cast %7 : vector<1x8x32xbf16> to vector<8x32xbf16>
    %c0_8 = arith.constant 0 : index
    %c0_9 = arith.constant 0 : index
    %9 = vector.load %arg6[%c0_8, %c0_9] : memref<1x32xf32, #tpu.memory_space<vmem>>, vector<1x32xf32>
    %c0_10 = arith.constant 0 : index
    %c0_11 = arith.constant 0 : index
    %c0_12 = arith.constant 0 : index
    %c0_13 = arith.constant 0 : index
    %10 = vector.load %arg5[%c0_10, %c0_11, %c0_12, %c0_13] : memref<1x4x8x128xf32, #tpu.memory_space<vmem>>, vector<1x4x8x128xf32>
    %11 = vector.shape_cast %10 : vector<1x4x8x128xf32> to vector<4x8x128xf32>
    %12 = vector.extract_strided_slice %4 {offsets = [0, 0], sizes = [8, 8], strides = [1, 1]} : vector<8x32xbf16> to vector<8x8xbf16>
    %13 = arith.extf %12 : vector<8x8xbf16> to vector<8x8xf32>
    %14 = vector.extract_strided_slice %9 {offsets = [0, 0], sizes = [1, 8], strides = [1, 1]} : vector<1x32xf32> to vector<1x8xf32>
    %15 = vector.broadcast %14 : vector<1x8xf32> to vector<8x8xf32>
    %16 = arith.addf %13, %15 : vector<8x8xf32>
    %17 = arith.truncf %16 : vector<8x8xf32> to vector<8x8xbf16>
    %18 = vector.extract_strided_slice %6 {offsets = [0, 0], sizes = [8, 8], strides = [1, 1]} : vector<8x32xbf16> to vector<8x8xbf16>
    %cst = arith.constant 0.000000e+00 : bf16
    %19 = vector.broadcast %cst : bf16 to vector<120x8xbf16>
    %20 = tpu.concatenate %18, %19 in 0 : vector<8x8xbf16>, vector<120x8xbf16> -> vector<128x8xbf16>
    %21 = vector.extract_strided_slice %8 {offsets = [0, 0], sizes = [8, 8], strides = [1, 1]} : vector<8x32xbf16> to vector<8x8xbf16>
    %cst_14 = arith.constant 0.000000e+00 : bf16
    %22 = vector.broadcast %cst_14 : bf16 to vector<120x8xbf16>
    %23 = tpu.concatenate %21, %22 in 0 : vector<8x8xbf16>, vector<120x8xbf16> -> vector<128x8xbf16>
    %cst_15 = arith.constant dense<0.000000e+00> : vector<8x128xf32>
    %24 = tpu.matmul %17, %20, %cst_15 {dimension_numbers = #tpu.dot_dimension_numbers<[1], [1], [0], [0], [0, 0, 1, 0], [], []>} : vector<8x8xbf16>, vector<128x8xbf16>, vector<8x128xf32> -> vector<8x128xf32>
    %25 = vector.extract_strided_slice %11 {offsets = [0, 0, 0], sizes = [1, 8, 128], strides = [1, 1, 1]} : vector<4x8x128xf32> to vector<1x8x128xf32>
    %26 = vector.shape_cast %25 : vector<1x8x128xf32> to vector<8x128xf32>
    %27 = arith.addf %24, %26 : vector<8x128xf32>
    %cst_16 = arith.constant 0.176776692 : f32
    %28 = vector.broadcast %cst_16 : f32 to vector<8x128xf32>
    %29 = arith.mulf %27, %28 : vector<8x128xf32>
    %cst_17 = arith.constant -1.000000e+30 : f32
    %30 = vector.broadcast %cst_17 : f32 to vector<8x128xf32>
    %31 = arith.select %2, %29, %30 : vector<8x128xi1>, vector<8x128xf32>
    %cst_18 = arith.constant dense<0xFF800000> : vector<8xf32>
    %32 = vector.multi_reduction <maximumf>, %31, %cst_18 [1] : vector<8x128xf32> to vector<8xf32>
    %33 = vector.shape_cast %32 : vector<8xf32> to vector<8x1xf32>
    %34 = vector.broadcast %33 : vector<8x1xf32> to vector<8x128xf32>
    %35 = arith.subf %31, %34 : vector<8x128xf32>
    %36 = math.exp %35 : vector<8x128xf32>
    %cst_19 = arith.constant dense<0.000000e+00> : vector<8xf32>
    %37 = vector.multi_reduction <add>, %36, %cst_19 [1] : vector<8x128xf32> to vector<8xf32>
    %38 = vector.shape_cast %37 : vector<8xf32> to vector<8x1xf32>
    %39 = vector.broadcast %38 : vector<8x1xf32> to vector<8x128xf32>
    %40 = arith.divf %36, %39 : vector<8x128xf32>
    %41 = arith.truncf %40 : vector<8x128xf32> to vector<8x128xbf16>
    %cst_20 = arith.constant dense<0.000000e+00> : vector<8x8xf32>
    %42 = tpu.matmul %41, %23, %cst_20 {dimension_numbers = #tpu.dot_dimension_numbers<[1], [0], [0], [1], [0, 0, 1, 1], [], []>} : vector<8x128xbf16>, vector<128x8xbf16>, vector<8x8xf32> -> vector<8x8xf32>
    %43 = vector.extract_strided_slice %4 {offsets = [0, 8], sizes = [8, 8], strides = [1, 1]} : vector<8x32xbf16> to vector<8x8xbf16>
    %44 = arith.extf %43 : vector<8x8xbf16> to vector<8x8xf32>
    %45 = vector.extract_strided_slice %9 {offsets = [0, 8], sizes = [1, 8], strides = [1, 1]} : vector<1x32xf32> to vector<1x8xf32>
    %46 = vector.broadcast %45 : vector<1x8xf32> to vector<8x8xf32>
    %47 = arith.addf %44, %46 : vector<8x8xf32>
    %48 = arith.truncf %47 : vector<8x8xf32> to vector<8x8xbf16>
    %49 = vector.extract_strided_slice %6 {offsets = [0, 8], sizes = [8, 8], strides = [1, 1]} : vector<8x32xbf16> to vector<8x8xbf16>
    %cst_21 = arith.constant 0.000000e+00 : bf16
    %50 = vector.broadcast %cst_21 : bf16 to vector<120x8xbf16>
    %51 = tpu.concatenate %49, %50 in 0 : vector<8x8xbf16>, vector<120x8xbf16> -> vector<128x8xbf16>
    %52 = vector.extract_strided_slice %8 {offsets = [0, 8], sizes = [8, 8], strides = [1, 1]} : vector<8x32xbf16> to vector<8x8xbf16>
    %cst_22 = arith.constant 0.000000e+00 : bf16
    %53 = vector.broadcast %cst_22 : bf16 to vector<120x8xbf16>
    %54 = tpu.concatenate %52, %53 in 0 : vector<8x8xbf16>, vector<120x8xbf16> -> vector<128x8xbf16>
    %cst_23 = arith.constant dense<0.000000e+00> : vector<8x128xf32>
    %55 = tpu.matmul %48, %51, %cst_23 {dimension_numbers = #tpu.dot_dimension_numbers<[1], [1], [0], [0], [0, 0, 1, 0], [], []>} : vector<8x8xbf16>, vector<128x8xbf16>, vector<8x128xf32> -> vector<8x128xf32>
    %56 = vector.extract_strided_slice %11 {offsets = [1, 0, 0], sizes = [1, 8, 128], strides = [1, 1, 1]} : vector<4x8x128xf32> to vector<1x8x128xf32>
    %57 = vector.shape_cast %56 : vector<1x8x128xf32> to vector<8x128xf32>
    %58 = arith.addf %55, %57 : vector<8x128xf32>
    %cst_24 = arith.constant 0.176776692 : f32
    %59 = vector.broadcast %cst_24 : f32 to vector<8x128xf32>
    %60 = arith.mulf %58, %59 : vector<8x128xf32>
    %cst_25 = arith.constant -1.000000e+30 : f32
    %61 = vector.broadcast %cst_25 : f32 to vector<8x128xf32>
    %62 = arith.select %2, %60, %61 : vector<8x128xi1>, vector<8x128xf32>
    %cst_26 = arith.constant dense<0xFF800000> : vector<8xf32>
    %63 = vector.multi_reduction <maximumf>, %62, %cst_26 [1] : vector<8x128xf32> to vector<8xf32>
    %64 = vector.shape_cast %63 : vector<8xf32> to vector<8x1xf32>
    %65 = vector.broadcast %64 : vector<8x1xf32> to vector<8x128xf32>
    %66 = arith.subf %62, %65 : vector<8x128xf32>
    %67 = math.exp %66 : vector<8x128xf32>
    %cst_27 = arith.constant dense<0.000000e+00> : vector<8xf32>
    %68 = vector.multi_reduction <add>, %67, %cst_27 [1] : vector<8x128xf32> to vector<8xf32>
    %69 = vector.shape_cast %68 : vector<8xf32> to vector<8x1xf32>
    %70 = vector.broadcast %69 : vector<8x1xf32> to vector<8x128xf32>
    %71 = arith.divf %67, %70 : vector<8x128xf32>
    %72 = arith.truncf %71 : vector<8x128xf32> to vector<8x128xbf16>
    %cst_28 = arith.constant dense<0.000000e+00> : vector<8x8xf32>
    %73 = tpu.matmul %72, %54, %cst_28 {dimension_numbers = #tpu.dot_dimension_numbers<[1], [0], [0], [1], [0, 0, 1, 1], [], []>} : vector<8x128xbf16>, vector<128x8xbf16>, vector<8x8xf32> -> vector<8x8xf32>
    %74 = vector.extract_strided_slice %4 {offsets = [0, 16], sizes = [8, 8], strides = [1, 1]} : vector<8x32xbf16> to vector<8x8xbf16>
    %75 = arith.extf %74 : vector<8x8xbf16> to vector<8x8xf32>
    %76 = vector.extract_strided_slice %9 {offsets = [0, 16], sizes = [1, 8], strides = [1, 1]} : vector<1x32xf32> to vector<1x8xf32>
    %77 = vector.broadcast %76 : vector<1x8xf32> to vector<8x8xf32>
    %78 = arith.addf %75, %77 : vector<8x8xf32>
    %79 = arith.truncf %78 : vector<8x8xf32> to vector<8x8xbf16>
    %80 = vector.extract_strided_slice %6 {offsets = [0, 16], sizes = [8, 8], strides = [1, 1]} : vector<8x32xbf16> to vector<8x8xbf16>
    %cst_29 = arith.constant 0.000000e+00 : bf16
    %81 = vector.broadcast %cst_29 : bf16 to vector<120x8xbf16>
    %82 = tpu.concatenate %80, %81 in 0 : vector<8x8xbf16>, vector<120x8xbf16> -> vector<128x8xbf16>
    %83 = vector.extract_strided_slice %8 {offsets = [0, 16], sizes = [8, 8], strides = [1, 1]} : vector<8x32xbf16> to vector<8x8xbf16>
    %cst_30 = arith.constant 0.000000e+00 : bf16
    %84 = vector.broadcast %cst_30 : bf16 to vector<120x8xbf16>
    %85 = tpu.concatenate %83, %84 in 0 : vector<8x8xbf16>, vector<120x8xbf16> -> vector<128x8xbf16>
    %cst_31 = arith.constant dense<0.000000e+00> : vector<8x128xf32>
    %86 = tpu.matmul %79, %82, %cst_31 {dimension_numbers = #tpu.dot_dimension_numbers<[1], [1], [0], [0], [0, 0, 1, 0], [], []>} : vector<8x8xbf16>, vector<128x8xbf16>, vector<8x128xf32> -> vector<8x128xf32>
    %87 = vector.extract_strided_slice %11 {offsets = [2, 0, 0], sizes = [1, 8, 128], strides = [1, 1, 1]} : vector<4x8x128xf32> to vector<1x8x128xf32>
    %88 = vector.shape_cast %87 : vector<1x8x128xf32> to vector<8x128xf32>
    %89 = arith.addf %86, %88 : vector<8x128xf32>
    %cst_32 = arith.constant 0.176776692 : f32
    %90 = vector.broadcast %cst_32 : f32 to vector<8x128xf32>
    %91 = arith.mulf %89, %90 : vector<8x128xf32>
    %cst_33 = arith.constant -1.000000e+30 : f32
    %92 = vector.broadcast %cst_33 : f32 to vector<8x128xf32>
    %93 = arith.select %2, %91, %92 : vector<8x128xi1>, vector<8x128xf32>
    %cst_34 = arith.constant dense<0xFF800000> : vector<8xf32>
    %94 = vector.multi_reduction <maximumf>, %93, %cst_34 [1] : vector<8x128xf32> to vector<8xf32>
    %95 = vector.shape_cast %94 : vector<8xf32> to vector<8x1xf32>
    %96 = vector.broadcast %95 : vector<8x1xf32> to vector<8x128xf32>
    %97 = arith.subf %93, %96 : vector<8x128xf32>
    %98 = math.exp %97 : vector<8x128xf32>
    %cst_35 = arith.constant dense<0.000000e+00> : vector<8xf32>
    %99 = vector.multi_reduction <add>, %98, %cst_35 [1] : vector<8x128xf32> to vector<8xf32>
    %100 = vector.shape_cast %99 : vector<8xf32> to vector<8x1xf32>
    %101 = vector.broadcast %100 : vector<8x1xf32> to vector<8x128xf32>
    %102 = arith.divf %98, %101 : vector<8x128xf32>
    %103 = arith.truncf %102 : vector<8x128xf32> to vector<8x128xbf16>
    %cst_36 = arith.constant dense<0.000000e+00> : vector<8x8xf32>
    %104 = tpu.matmul %103, %85, %cst_36 {dimension_numbers = #tpu.dot_dimension_numbers<[1], [0], [0], [1], [0, 0, 1, 1], [], []>} : vector<8x128xbf16>, vector<128x8xbf16>, vector<8x8xf32> -> vector<8x8xf32>
    %105 = vector.extract_strided_slice %4 {offsets = [0, 24], sizes = [8, 8], strides = [1, 1]} : vector<8x32xbf16> to vector<8x8xbf16>
    %106 = arith.extf %105 : vector<8x8xbf16> to vector<8x8xf32>
    %107 = vector.extract_strided_slice %9 {offsets = [0, 24], sizes = [1, 8], strides = [1, 1]} : vector<1x32xf32> to vector<1x8xf32>
    %108 = vector.broadcast %107 : vector<1x8xf32> to vector<8x8xf32>
    %109 = arith.addf %106, %108 : vector<8x8xf32>
    %110 = arith.truncf %109 : vector<8x8xf32> to vector<8x8xbf16>
    %111 = vector.extract_strided_slice %6 {offsets = [0, 24], sizes = [8, 8], strides = [1, 1]} : vector<8x32xbf16> to vector<8x8xbf16>
    %cst_37 = arith.constant 0.000000e+00 : bf16
    %112 = vector.broadcast %cst_37 : bf16 to vector<120x8xbf16>
    %113 = tpu.concatenate %111, %112 in 0 : vector<8x8xbf16>, vector<120x8xbf16> -> vector<128x8xbf16>
    %114 = vector.extract_strided_slice %8 {offsets = [0, 24], sizes = [8, 8], strides = [1, 1]} : vector<8x32xbf16> to vector<8x8xbf16>
    %cst_38 = arith.constant 0.000000e+00 : bf16
    %115 = vector.broadcast %cst_38 : bf16 to vector<120x8xbf16>
    %116 = tpu.concatenate %114, %115 in 0 : vector<8x8xbf16>, vector<120x8xbf16> -> vector<128x8xbf16>
    %cst_39 = arith.constant dense<0.000000e+00> : vector<8x128xf32>
    %117 = tpu.matmul %110, %113, %cst_39 {dimension_numbers = #tpu.dot_dimension_numbers<[1], [1], [0], [0], [0, 0, 1, 0], [], []>} : vector<8x8xbf16>, vector<128x8xbf16>, vector<8x128xf32> -> vector<8x128xf32>
    %118 = vector.extract_strided_slice %11 {offsets = [3, 0, 0], sizes = [1, 8, 128], strides = [1, 1, 1]} : vector<4x8x128xf32> to vector<1x8x128xf32>
    %119 = vector.shape_cast %118 : vector<1x8x128xf32> to vector<8x128xf32>
    %120 = arith.addf %117, %119 : vector<8x128xf32>
    %cst_40 = arith.constant 0.176776692 : f32
    %121 = vector.broadcast %cst_40 : f32 to vector<8x128xf32>
    %122 = arith.mulf %120, %121 : vector<8x128xf32>
    %cst_41 = arith.constant -1.000000e+30 : f32
    %123 = vector.broadcast %cst_41 : f32 to vector<8x128xf32>
    %124 = arith.select %2, %122, %123 : vector<8x128xi1>, vector<8x128xf32>
    %cst_42 = arith.constant dense<0xFF800000> : vector<8xf32>
    %125 = vector.multi_reduction <maximumf>, %124, %cst_42 [1] : vector<8x128xf32> to vector<8xf32>
    %126 = vector.shape_cast %125 : vector<8xf32> to vector<8x1xf32>
    %127 = vector.broadcast %126 : vector<8x1xf32> to vector<8x128xf32>
    %128 = arith.subf %124, %127 : vector<8x128xf32>
    %129 = math.exp %128 : vector<8x128xf32>
    %cst_43 = arith.constant dense<0.000000e+00> : vector<8xf32>
    %130 = vector.multi_reduction <add>, %129, %cst_43 [1] : vector<8x128xf32> to vector<8xf32>
    %131 = vector.shape_cast %130 : vector<8xf32> to vector<8x1xf32>
    %132 = vector.broadcast %131 : vector<8x1xf32> to vector<8x128xf32>
    %133 = arith.divf %129, %132 : vector<8x128xf32>
    %134 = arith.truncf %133 : vector<8x128xf32> to vector<8x128xbf16>
    %cst_44 = arith.constant dense<0.000000e+00> : vector<8x8xf32>
    %135 = tpu.matmul %134, %116, %cst_44 {dimension_numbers = #tpu.dot_dimension_numbers<[1], [0], [0], [1], [0, 0, 1, 1], [], []>} : vector<8x128xbf16>, vector<128x8xbf16>, vector<8x8xf32> -> vector<8x8xf32>
    %136 = tpu.concatenate %42, %73, %104, %135 in 1 : vector<8x8xf32>, vector<8x8xf32>, vector<8x8xf32>, vector<8x8xf32> -> vector<8x32xf32>
    %137 = arith.truncf %136 : vector<8x32xf32> to vector<8x32xbf16>
    %c0_45 = arith.constant 0 : index
    %c0_46 = arith.constant 0 : index
    %c0_47 = arith.constant 0 : index
    %138 = vector.load %arg8[%c0_45, %c0_46, %c0_47] : memref<1x8x32xbf16, #tpu.memory_space<vmem>>, vector<1x8x32xbf16>
    %139 = vector.shape_cast %138 : vector<1x8x32xbf16> to vector<8x32xbf16>
    %140 = vector.shape_cast %137 : vector<8x32xbf16> to vector<1x8x32xbf16>
    tpu.vector_store %arg8[%c0_45, %c0_46, %c0_47], %140 {strides = array<i32>} : memref<1x8x32xbf16, #tpu.memory_space<vmem>>, vector<1x8x32xbf16>,
    return
  }
  func.func @transform_0(%arg0: i32, %arg1: i32) -> (i32, i32, i32) {
    %c0_i32 = arith.constant 0 : i32
    %c0_i32_0 = arith.constant 0 : i32
    return %arg0, %c0_i32, %arg1 : i32, i32, i32
  }
  func.func @transform_1(%arg0: i32, %arg1: i32) -> (i32, i32, i32) {
    %c0_i32 = arith.constant 0 : i32
    %c0_i32_0 = arith.constant 0 : i32
    return %arg0, %c0_i32, %arg1 : i32, i32, i32
  }
  func.func @transform_2(%arg0: i32, %arg1: i32) -> (i32, i32, i32) {
    %c0_i32 = arith.constant 0 : i32
    %c0_i32_0 = arith.constant 0 : i32
    return %arg0, %c0_i32, %arg1 : i32, i32, i32
  }
  func.func @transform_3(%arg0: i32, %arg1: i32) -> (i32, i32, i32, i32) {
    %c0_i32 = arith.constant 0 : i32
    %c0_i32_0 = arith.constant 0 : i32
    %c0_i32_1 = arith.constant 0 : i32
    return %arg0, %arg1, %c0_i32, %c0_i32_0 : i32, i32, i32, i32
  }
  func.func @transform_4(%arg0: i32, %arg1: i32) -> (i32, i32) {
    %c0_i32 = arith.constant 0 : i32
    %c0_i32_0 = arith.constant 0 : i32
    return %c0_i32, %arg1 : i32, i32
  }
  func.func @transform_5(%arg0: i32, %arg1: i32) -> (i32, i32) {
    %c0_i32 = arith.constant 0 : i32
    %c0_i32_0 = arith.constant 0 : i32
    return %c0_i32, %arg1 : i32, i32
  }
  func.func @transform_6(%arg0: i32, %arg1: i32) -> (i32, i32, i32) {
    %c0_i32 = arith.constant 0 : i32
    %c0_i32_0 = arith.constant 0 : i32
    return %arg0, %c0_i32, %arg1 : i32, i32, i32
  }
}

module attributes {stable_mosaic.version = 11 : i64} {
  func.func @_linear_kernel(%arg0: i32, %arg1: i32, %arg2: i32, %arg3: memref<16x128xbf16, #tpu.memory_space<vmem>>, %arg4: memref<128x128xbf16, #tpu.memory_space<vmem>>, %arg5: memref<1x128xf32, #tpu.memory_space<vmem>>, %arg6: memref<16x128xbf16, #tpu.memory_space<vmem>>, %arg7: memref<16x128xbf16, #tpu.memory_space<vmem>>, %arg8: memref<16x128xf32, #tpu.memory_space<vmem>>) attributes {dimension_semantics = [#tpu.dimension_semantics<parallel>, #tpu.dimension_semantics<parallel>, #tpu.dimension_semantics<arbitrary>], iteration_bounds = array<i64: 1, 1, 1>, scalar_prefetch = 0 : i64, scratch_operands = 1 : i64, tpu.core_type = #tpu.core_type<tc>, window_params = [{transform_indices = @transform_0, window_bounds = array<i64: 16, 128>}, {transform_indices = @transform_1, window_bounds = array<i64: 128, 128>}, {transform_indices = @transform_2, window_bounds = array<i64: 1, 128>}, {transform_indices = @transform_3, window_bounds = array<i64: 16, 128>}, {transform_indices = @transform_4, window_bounds = array<i64: 16, 128>}]} {
    %c0 = arith.constant 0 : index
    %c0_0 = arith.constant 0 : index
    %0 = vector.load %arg3[%c0, %c0_0] : memref<16x128xbf16, #tpu.memory_space<vmem>>, vector<16x128xbf16>
    %c0_i32 = arith.constant 0 : i32
    %1 = arith.cmpi eq, %arg2, %c0_i32 : i32
    %2 = arith.extui %1 : i1 to i32
    %c0_i32_1 = arith.constant 0 : i32
    %3 = arith.cmpi ne, %2, %c0_i32_1 : i32
    scf.if %3 {
      %cst_10 = arith.constant 0.000000e+00 : f32
      %12 = vector.broadcast %cst_10 : f32 to vector<16x128xf32>
      %c0_11 = arith.constant 0 : index
      %c0_12 = arith.constant 0 : index
      %13 = vector.load %arg8[%c0_11, %c0_12] : memref<16x128xf32, #tpu.memory_space<vmem>>, vector<16x128xf32>
      tpu.vector_store %arg8[%c0_11, %c0_12], %12 {strides = array<i32>} : memref<16x128xf32, #tpu.memory_space<vmem>>, vector<16x128xf32>,
    } else {
    }
    %c0_2 = arith.constant 0 : index
    %c0_3 = arith.constant 0 : index
    %4 = vector.load %arg8[%c0_2, %c0_3] : memref<16x128xf32, #tpu.memory_space<vmem>>, vector<16x128xf32>
    %c0_4 = arith.constant 0 : index
    %c0_5 = arith.constant 0 : index
    %5 = vector.load %arg4[%c0_4, %c0_5] : memref<128x128xbf16, #tpu.memory_space<vmem>>, vector<128x128xbf16>
    %cst = arith.constant dense<0.000000e+00> : vector<16x128xf32>
    %6 = tpu.matmul %0, %5, %cst {dimension_numbers = #tpu.dot_dimension_numbers<[1], [0], [0], [1], [0, 0, 1, 1], [], []>} : vector<16x128xbf16>, vector<128x128xbf16>, vector<16x128xf32> -> vector<16x128xf32>
    %7 = arith.addf %4, %6 : vector<16x128xf32>
    %c0_6 = arith.constant 0 : index
    %c0_7 = arith.constant 0 : index
    %8 = vector.load %arg8[%c0_6, %c0_7] : memref<16x128xf32, #tpu.memory_space<vmem>>, vector<16x128xf32>
    tpu.vector_store %arg8[%c0_6, %c0_7], %7 {strides = array<i32>} : memref<16x128xf32, #tpu.memory_space<vmem>>, vector<16x128xf32>,
    %c0_i32_8 = arith.constant 0 : i32
    %9 = arith.cmpi eq, %arg2, %c0_i32_8 : i32
    %10 = arith.extui %9 : i1 to i32
    %c0_i32_9 = arith.constant 0 : i32
    %11 = arith.cmpi ne, %10, %c0_i32_9 : i32
    scf.if %11 {
      %c0_10 = arith.constant 0 : index
      %c0_11 = arith.constant 0 : index
      %12 = vector.load %arg8[%c0_10, %c0_11] : memref<16x128xf32, #tpu.memory_space<vmem>>, vector<16x128xf32>
      %c0_12 = arith.constant 0 : index
      %c0_13 = arith.constant 0 : index
      %13 = vector.load %arg5[%c0_12, %c0_13] : memref<1x128xf32, #tpu.memory_space<vmem>>, vector<1x128xf32>
      %14 = vector.broadcast %13 : vector<1x128xf32> to vector<16x128xf32>
      %15 = arith.addf %12, %14 : vector<16x128xf32>
      %c0_14 = arith.constant 0 : index
      %c0_15 = arith.constant 0 : index
      %16 = vector.load %arg6[%c0_14, %c0_15] : memref<16x128xbf16, #tpu.memory_space<vmem>>, vector<16x128xbf16>
      %17 = arith.extf %16 : vector<16x128xbf16> to vector<16x128xf32>
      %18 = arith.addf %15, %17 : vector<16x128xf32>
      %19 = arith.truncf %18 : vector<16x128xf32> to vector<16x128xbf16>
      %c0_16 = arith.constant 0 : index
      %c0_17 = arith.constant 0 : index
      %20 = vector.load %arg7[%c0_16, %c0_17] : memref<16x128xbf16, #tpu.memory_space<vmem>>, vector<16x128xbf16>
      tpu.vector_store %arg7[%c0_16, %c0_17], %19 {strides = array<i32>} : memref<16x128xbf16, #tpu.memory_space<vmem>>, vector<16x128xbf16>,
    } else {
    }
    return
  }
  func.func @transform_0(%arg0: i32, %arg1: i32, %arg2: i32) -> (i32, i32) {
    %c0_i32 = arith.constant 0 : i32
    return %arg0, %arg2 : i32, i32
  }
  func.func @transform_1(%arg0: i32, %arg1: i32, %arg2: i32) -> (i32, i32) {
    %c0_i32 = arith.constant 0 : i32
    return %arg2, %arg1 : i32, i32
  }
  func.func @transform_2(%arg0: i32, %arg1: i32, %arg2: i32) -> (i32, i32) {
    %c0_i32 = arith.constant 0 : i32
    %c0_i32_0 = arith.constant 0 : i32
    return %c0_i32, %arg1 : i32, i32
  }
  func.func @transform_3(%arg0: i32, %arg1: i32, %arg2: i32) -> (i32, i32) {
    %c0_i32 = arith.constant 0 : i32
    return %arg0, %arg1 : i32, i32
  }
  func.func @transform_4(%arg0: i32, %arg1: i32, %arg2: i32) -> (i32, i32) {
    %c0_i32 = arith.constant 0 : i32
    return %arg0, %arg1 : i32, i32
  }
}

module attributes {stable_mosaic.version = 11 : i64} {
  func.func @_linear_kernel(%arg0: i32, %arg1: i32, %arg2: i32, %arg3: memref<16x128xbf16, #tpu.memory_space<vmem>>, %arg4: memref<128x128xbf16, #tpu.memory_space<vmem>>, %arg5: memref<1x128xf32, #tpu.memory_space<vmem>>, %arg6: memref<1x128xf32, #tpu.memory_space<vmem>>, %arg7: memref<1x128xf32, #tpu.memory_space<vmem>>, %arg8: memref<16x128xbf16, #tpu.memory_space<vmem>>, %arg9: memref<16x128xf32, #tpu.memory_space<vmem>>) attributes {dimension_semantics = [#tpu.dimension_semantics<parallel>, #tpu.dimension_semantics<parallel>, #tpu.dimension_semantics<arbitrary>], iteration_bounds = array<i64: 1, 1, 1>, scalar_prefetch = 0 : i64, scratch_operands = 1 : i64, tpu.core_type = #tpu.core_type<tc>, window_params = [{transform_indices = @transform_0, window_bounds = array<i64: 16, 128>}, {transform_indices = @transform_1, window_bounds = array<i64: 128, 128>}, {transform_indices = @transform_2, window_bounds = array<i64: 1, 128>}, {transform_indices = @transform_3, window_bounds = array<i64: 1, 128>}, {transform_indices = @transform_4, window_bounds = array<i64: 1, 128>}, {transform_indices = @transform_5, window_bounds = array<i64: 16, 128>}]} {
    %c0 = arith.constant 0 : index
    %c0_0 = arith.constant 0 : index
    %0 = vector.load %arg3[%c0, %c0_0] : memref<16x128xbf16, #tpu.memory_space<vmem>>, vector<16x128xbf16>
    %1 = arith.extf %0 : vector<16x128xbf16> to vector<16x128xf32>
    %cst = arith.constant dense<0.000000e+00> : vector<16xf32>
    %2 = vector.multi_reduction <add>, %1, %cst [1] : vector<16x128xf32> to vector<16xf32>
    %3 = vector.shape_cast %2 : vector<16xf32> to vector<16x1xf32>
    %cst_1 = arith.constant 3.125000e-02 : f32
    %4 = vector.broadcast %cst_1 : f32 to vector<16x1xf32>
    %5 = arith.mulf %3, %4 : vector<16x1xf32>
    %6 = arith.mulf %1, %1 : vector<16x128xf32>
    %cst_2 = arith.constant dense<0.000000e+00> : vector<16xf32>
    %7 = vector.multi_reduction <add>, %6, %cst_2 [1] : vector<16x128xf32> to vector<16xf32>
    %8 = vector.shape_cast %7 : vector<16xf32> to vector<16x1xf32>
    %cst_3 = arith.constant 3.125000e-02 : f32
    %9 = vector.broadcast %cst_3 : f32 to vector<16x1xf32>
    %10 = arith.mulf %8, %9 : vector<16x1xf32>
    %11 = arith.mulf %5, %5 : vector<16x1xf32>
    %12 = arith.subf %10, %11 : vector<16x1xf32>
    %13 = vector.broadcast %5 : vector<16x1xf32> to vector<16x128xf32>
    %14 = arith.subf %1, %13 : vector<16x128xf32>
    %cst_4 = arith.constant 9.99999974E-6 : f32
    %15 = vector.broadcast %cst_4 : f32 to vector<16x1xf32>
    %16 = arith.addf %12, %15 : vector<16x1xf32>
    %17 = math.rsqrt %16 : vector<16x1xf32>
    %18 = vector.broadcast %17 : vector<16x1xf32> to vector<16x128xf32>
    %19 = arith.mulf %14, %18 : vector<16x128xf32>
    %c0_5 = arith.constant 0 : index
    %c0_6 = arith.constant 0 : index
    %20 = vector.load %arg6[%c0_5, %c0_6] : memref<1x128xf32, #tpu.memory_space<vmem>>, vector<1x128xf32>
    %21 = vector.broadcast %20 : vector<1x128xf32> to vector<16x128xf32>
    %22 = arith.mulf %19, %21 : vector<16x128xf32>
    %c0_7 = arith.constant 0 : index
    %c0_8 = arith.constant 0 : index
    %23 = vector.load %arg7[%c0_7, %c0_8] : memref<1x128xf32, #tpu.memory_space<vmem>>, vector<1x128xf32>
    %24 = vector.broadcast %23 : vector<1x128xf32> to vector<16x128xf32>
    %25 = arith.addf %22, %24 : vector<16x128xf32>
    %26 = arith.truncf %25 : vector<16x128xf32> to vector<16x128xbf16>
    %c0_i32 = arith.constant 0 : i32
    %27 = arith.cmpi eq, %arg2, %c0_i32 : i32
    %28 = arith.extui %27 : i1 to i32
    %c0_i32_9 = arith.constant 0 : i32
    %29 = arith.cmpi ne, %28, %c0_i32_9 : i32
    scf.if %29 {
      %cst_19 = arith.constant 0.000000e+00 : f32
      %38 = vector.broadcast %cst_19 : f32 to vector<16x128xf32>
      %c0_20 = arith.constant 0 : index
      %c0_21 = arith.constant 0 : index
      %39 = vector.load %arg9[%c0_20, %c0_21] : memref<16x128xf32, #tpu.memory_space<vmem>>, vector<16x128xf32>
      tpu.vector_store %arg9[%c0_20, %c0_21], %38 {strides = array<i32>} : memref<16x128xf32, #tpu.memory_space<vmem>>, vector<16x128xf32>,
    } else {
    }
    %c0_10 = arith.constant 0 : index
    %c0_11 = arith.constant 0 : index
    %30 = vector.load %arg9[%c0_10, %c0_11] : memref<16x128xf32, #tpu.memory_space<vmem>>, vector<16x128xf32>
    %c0_12 = arith.constant 0 : index
    %c0_13 = arith.constant 0 : index
    %31 = vector.load %arg4[%c0_12, %c0_13] : memref<128x128xbf16, #tpu.memory_space<vmem>>, vector<128x128xbf16>
    %cst_14 = arith.constant dense<0.000000e+00> : vector<16x128xf32>
    %32 = tpu.matmul %26, %31, %cst_14 {dimension_numbers = #tpu.dot_dimension_numbers<[1], [0], [0], [1], [0, 0, 1, 1], [], []>} : vector<16x128xbf16>, vector<128x128xbf16>, vector<16x128xf32> -> vector<16x128xf32>
    %33 = arith.addf %30, %32 : vector<16x128xf32>
    %c0_15 = arith.constant 0 : index
    %c0_16 = arith.constant 0 : index
    %34 = vector.load %arg9[%c0_15, %c0_16] : memref<16x128xf32, #tpu.memory_space<vmem>>, vector<16x128xf32>
    tpu.vector_store %arg9[%c0_15, %c0_16], %33 {strides = array<i32>} : memref<16x128xf32, #tpu.memory_space<vmem>>, vector<16x128xf32>,
    %c0_i32_17 = arith.constant 0 : i32
    %35 = arith.cmpi eq, %arg2, %c0_i32_17 : i32
    %36 = arith.extui %35 : i1 to i32
    %c0_i32_18 = arith.constant 0 : i32
    %37 = arith.cmpi ne, %36, %c0_i32_18 : i32
    scf.if %37 {
      %c0_19 = arith.constant 0 : index
      %c0_20 = arith.constant 0 : index
      %38 = vector.load %arg9[%c0_19, %c0_20] : memref<16x128xf32, #tpu.memory_space<vmem>>, vector<16x128xf32>
      %c0_21 = arith.constant 0 : index
      %c0_22 = arith.constant 0 : index
      %39 = vector.load %arg5[%c0_21, %c0_22] : memref<1x128xf32, #tpu.memory_space<vmem>>, vector<1x128xf32>
      %40 = vector.broadcast %39 : vector<1x128xf32> to vector<16x128xf32>
      %41 = arith.addf %38, %40 : vector<16x128xf32>
      %42 = vector.extract_strided_slice %41 {offsets = [0, 0], sizes = [16, 32], strides = [1, 1]} : vector<16x128xf32> to vector<16x32xf32>
      %43 = vector.extract_strided_slice %41 {offsets = [0, 32], sizes = [16, 32], strides = [1, 1]} : vector<16x128xf32> to vector<16x32xf32>
      %44 = arith.negf %43 : vector<16x32xf32>
      %45 = math.exp %44 : vector<16x32xf32>
      %cst_23 = arith.constant 1.000000e+00 : f32
      %46 = vector.broadcast %cst_23 : f32 to vector<16x32xf32>
      %47 = arith.addf %46, %45 : vector<16x32xf32>
      %48 = arith.divf %46, %47 : vector<16x32xf32>
      %49 = arith.mulf %42, %48 : vector<16x32xf32>
      %cst_24 = arith.constant 0.000000e+00 : f32
      %50 = vector.broadcast %cst_24 : f32 to vector<16x96xf32>
      %51 = tpu.concatenate %49, %50 in 1 : vector<16x32xf32>, vector<16x96xf32> -> vector<16x128xf32>
      %52 = arith.truncf %51 : vector<16x128xf32> to vector<16x128xbf16>
      %c0_25 = arith.constant 0 : index
      %c0_26 = arith.constant 0 : index
      %53 = vector.load %arg8[%c0_25, %c0_26] : memref<16x128xbf16, #tpu.memory_space<vmem>>, vector<16x128xbf16>
      tpu.vector_store %arg8[%c0_25, %c0_26], %52 {strides = array<i32>} : memref<16x128xbf16, #tpu.memory_space<vmem>>, vector<16x128xbf16>,
    } else {
    }
    return
  }
  func.func @transform_0(%arg0: i32, %arg1: i32, %arg2: i32) -> (i32, i32) {
    %c0_i32 = arith.constant 0 : i32
    return %arg0, %arg2 : i32, i32
  }
  func.func @transform_1(%arg0: i32, %arg1: i32, %arg2: i32) -> (i32, i32) {
    %c0_i32 = arith.constant 0 : i32
    return %arg2, %arg1 : i32, i32
  }
  func.func @transform_2(%arg0: i32, %arg1: i32, %arg2: i32) -> (i32, i32) {
    %c0_i32 = arith.constant 0 : i32
    %c0_i32_0 = arith.constant 0 : i32
    return %c0_i32, %arg1 : i32, i32
  }
  func.func @transform_3(%arg0: i32, %arg1: i32, %arg2: i32) -> (i32, i32) {
    %c0_i32 = arith.constant 0 : i32
    %c0_i32_0 = arith.constant 0 : i32
    return %c0_i32, %arg2 : i32, i32
  }
  func.func @transform_4(%arg0: i32, %arg1: i32, %arg2: i32) -> (i32, i32) {
    %c0_i32 = arith.constant 0 : i32
    %c0_i32_0 = arith.constant 0 : i32
    return %c0_i32, %arg2 : i32, i32
  }
  func.func @transform_5(%arg0: i32, %arg1: i32, %arg2: i32) -> (i32, i32) {
    %c0_i32 = arith.constant 0 : i32
    return %arg0, %arg1 : i32, i32
  }
}

module attributes {stable_mosaic.version = 11 : i64} {
  func.func @_dwconv_bn_swish_kernel(%arg0: i32, %arg1: i32, %arg2: memref<1x16x32xbf16, #tpu.memory_space<vmem>>, %arg3: memref<9x32xf32, #tpu.memory_space<vmem>>, %arg4: memref<1x32xf32, #tpu.memory_space<vmem>>, %arg5: memref<1x32xf32, #tpu.memory_space<vmem>>, %arg6: memref<1x32xf32, #tpu.memory_space<vmem>>, %arg7: memref<1x32xf32, #tpu.memory_space<vmem>>, %arg8: memref<1x8x32xbf16, #tpu.memory_space<vmem>>) attributes {dimension_semantics = [#tpu.dimension_semantics<parallel>, #tpu.dimension_semantics<arbitrary>], iteration_bounds = array<i64: 2, 1>, scalar_prefetch = 0 : i64, scratch_operands = 0 : i64, tpu.core_type = #tpu.core_type<tc>, window_params = [{transform_indices = @transform_0, window_bounds = array<i64: 1, 16, 32>}, {pipeline_mode = #tpu.pipeline_mode<synchronous>, transform_indices = @transform_1, window_bounds = array<i64: 9, 32>}, {pipeline_mode = #tpu.pipeline_mode<synchronous>, transform_indices = @transform_2, window_bounds = array<i64: 1, 32>}, {pipeline_mode = #tpu.pipeline_mode<synchronous>, transform_indices = @transform_3, window_bounds = array<i64: 1, 32>}, {pipeline_mode = #tpu.pipeline_mode<synchronous>, transform_indices = @transform_4, window_bounds = array<i64: 1, 32>}, {pipeline_mode = #tpu.pipeline_mode<synchronous>, transform_indices = @transform_5, window_bounds = array<i64: 1, 32>}, {transform_indices = @transform_6, window_bounds = array<i64: 1, 8, 32>}]} {
    %c8_i32 = arith.constant 8 : i32
    %0 = arith.muli %arg1, %c8_i32 : i32
    %1 = tpu.assume_multiple %0, 8 : i32
    %c0 = arith.constant 0 : index
    %2 = arith.index_cast %1 : i32 to index
    %c0_0 = arith.constant 0 : index
    %3 = vector.load %arg2[%c0, %2, %c0_0] : memref<1x16x32xbf16, #tpu.memory_space<vmem>>, vector<1x16x32xbf16>
    %4 = vector.shape_cast %3 : vector<1x16x32xbf16> to vector<16x32xbf16>
    %5 = arith.extf %4 : vector<16x32xbf16> to vector<16x32xf32>
    %c0_1 = arith.constant 0 : index
    %c0_2 = arith.constant 0 : index
    %6 = vector.load %arg3[%c0_1, %c0_2] : memref<9x32xf32, #tpu.memory_space<vmem>>, vector<9x32xf32>
    %cst = arith.constant 0.000000e+00 : f32
    %7 = vector.broadcast %cst : f32 to vector<8x32xf32>
    %8 = vector.extract_strided_slice %5 {offsets = [0, 0], sizes = [8, 32], strides = [1, 1]} : vector<16x32xf32> to vector<8x32xf32>
    %9 = vector.extract_strided_slice %6 {offsets = [0, 0], sizes = [1, 32], strides = [1, 1]} : vector<9x32xf32> to vector<1x32xf32>
    %10 = vector.broadcast %9 : vector<1x32xf32> to vector<8x32xf32>
    %11 = arith.mulf %8, %10 : vector<8x32xf32>
    %12 = arith.addf %7, %11 : vector<8x32xf32>
    %13 = vector.extract_strided_slice %5 {offsets = [1, 0], sizes = [8, 32], strides = [1, 1]} : vector<16x32xf32> to vector<8x32xf32>
    %14 = vector.extract_strided_slice %6 {offsets = [1, 0], sizes = [1, 32], strides = [1, 1]} : vector<9x32xf32> to vector<1x32xf32>
    %15 = vector.broadcast %14 : vector<1x32xf32> to vector<8x32xf32>
    %16 = arith.mulf %13, %15 : vector<8x32xf32>
    %17 = arith.addf %12, %16 : vector<8x32xf32>
    %18 = vector.extract_strided_slice %5 {offsets = [2, 0], sizes = [8, 32], strides = [1, 1]} : vector<16x32xf32> to vector<8x32xf32>
    %19 = vector.extract_strided_slice %6 {offsets = [2, 0], sizes = [1, 32], strides = [1, 1]} : vector<9x32xf32> to vector<1x32xf32>
    %20 = vector.broadcast %19 : vector<1x32xf32> to vector<8x32xf32>
    %21 = arith.mulf %18, %20 : vector<8x32xf32>
    %22 = arith.addf %17, %21 : vector<8x32xf32>
    %23 = vector.extract_strided_slice %5 {offsets = [3, 0], sizes = [8, 32], strides = [1, 1]} : vector<16x32xf32> to vector<8x32xf32>
    %24 = vector.extract_strided_slice %6 {offsets = [3, 0], sizes = [1, 32], strides = [1, 1]} : vector<9x32xf32> to vector<1x32xf32>
    %25 = vector.broadcast %24 : vector<1x32xf32> to vector<8x32xf32>
    %26 = arith.mulf %23, %25 : vector<8x32xf32>
    %27 = arith.addf %22, %26 : vector<8x32xf32>
    %28 = vector.extract_strided_slice %5 {offsets = [4, 0], sizes = [8, 32], strides = [1, 1]} : vector<16x32xf32> to vector<8x32xf32>
    %29 = vector.extract_strided_slice %6 {offsets = [4, 0], sizes = [1, 32], strides = [1, 1]} : vector<9x32xf32> to vector<1x32xf32>
    %30 = vector.broadcast %29 : vector<1x32xf32> to vector<8x32xf32>
    %31 = arith.mulf %28, %30 : vector<8x32xf32>
    %32 = arith.addf %27, %31 : vector<8x32xf32>
    %33 = vector.extract_strided_slice %5 {offsets = [5, 0], sizes = [8, 32], strides = [1, 1]} : vector<16x32xf32> to vector<8x32xf32>
    %34 = vector.extract_strided_slice %6 {offsets = [5, 0], sizes = [1, 32], strides = [1, 1]} : vector<9x32xf32> to vector<1x32xf32>
    %35 = vector.broadcast %34 : vector<1x32xf32> to vector<8x32xf32>
    %36 = arith.mulf %33, %35 : vector<8x32xf32>
    %37 = arith.addf %32, %36 : vector<8x32xf32>
    %38 = vector.extract_strided_slice %5 {offsets = [6, 0], sizes = [8, 32], strides = [1, 1]} : vector<16x32xf32> to vector<8x32xf32>
    %39 = vector.extract_strided_slice %6 {offsets = [6, 0], sizes = [1, 32], strides = [1, 1]} : vector<9x32xf32> to vector<1x32xf32>
    %40 = vector.broadcast %39 : vector<1x32xf32> to vector<8x32xf32>
    %41 = arith.mulf %38, %40 : vector<8x32xf32>
    %42 = arith.addf %37, %41 : vector<8x32xf32>
    %43 = vector.extract_strided_slice %5 {offsets = [7, 0], sizes = [8, 32], strides = [1, 1]} : vector<16x32xf32> to vector<8x32xf32>
    %44 = vector.extract_strided_slice %6 {offsets = [7, 0], sizes = [1, 32], strides = [1, 1]} : vector<9x32xf32> to vector<1x32xf32>
    %45 = vector.broadcast %44 : vector<1x32xf32> to vector<8x32xf32>
    %46 = arith.mulf %43, %45 : vector<8x32xf32>
    %47 = arith.addf %42, %46 : vector<8x32xf32>
    %48 = vector.extract_strided_slice %5 {offsets = [8, 0], sizes = [8, 32], strides = [1, 1]} : vector<16x32xf32> to vector<8x32xf32>
    %49 = vector.extract_strided_slice %6 {offsets = [8, 0], sizes = [1, 32], strides = [1, 1]} : vector<9x32xf32> to vector<1x32xf32>
    %50 = vector.broadcast %49 : vector<1x32xf32> to vector<8x32xf32>
    %51 = arith.mulf %48, %50 : vector<8x32xf32>
    %52 = arith.addf %47, %51 : vector<8x32xf32>
    %c0_3 = arith.constant 0 : index
    %c0_4 = arith.constant 0 : index
    %53 = vector.load %arg6[%c0_3, %c0_4] : memref<1x32xf32, #tpu.memory_space<vmem>>, vector<1x32xf32>
    %54 = vector.broadcast %53 : vector<1x32xf32> to vector<8x32xf32>
    %55 = arith.subf %52, %54 : vector<8x32xf32>
    %c0_5 = arith.constant 0 : index
    %c0_6 = arith.constant 0 : index
    %56 = vector.load %arg7[%c0_5, %c0_6] : memref<1x32xf32, #tpu.memory_space<vmem>>, vector<1x32xf32>
    %cst_7 = arith.constant 9.99999974E-6 : f32
    %57 = vector.broadcast %cst_7 : f32 to vector<1x32xf32>
    %58 = arith.addf %56, %57 : vector<1x32xf32>
    %59 = math.rsqrt %58 : vector<1x32xf32>
    %60 = vector.broadcast %59 : vector<1x32xf32> to vector<8x32xf32>
    %61 = arith.mulf %55, %60 : vector<8x32xf32>
    %c0_8 = arith.constant 0 : index
    %c0_9 = arith.constant 0 : index
    %62 = vector.load %arg4[%c0_8, %c0_9] : memref<1x32xf32, #tpu.memory_space<vmem>>, vector<1x32xf32>
    %63 = vector.broadcast %62 : vector<1x32xf32> to vector<8x32xf32>
    %64 = arith.mulf %61, %63 : vector<8x32xf32>
    %c0_10 = arith.constant 0 : index
    %c0_11 = arith.constant 0 : index
    %65 = vector.load %arg5[%c0_10, %c0_11] : memref<1x32xf32, #tpu.memory_space<vmem>>, vector<1x32xf32>
    %66 = vector.broadcast %65 : vector<1x32xf32> to vector<8x32xf32>
    %67 = arith.addf %64, %66 : vector<8x32xf32>
    %68 = arith.negf %67 : vector<8x32xf32>
    %69 = math.exp %68 : vector<8x32xf32>
    %cst_12 = arith.constant 1.000000e+00 : f32
    %70 = vector.broadcast %cst_12 : f32 to vector<8x32xf32>
    %71 = arith.addf %70, %69 : vector<8x32xf32>
    %72 = arith.divf %70, %71 : vector<8x32xf32>
    %73 = arith.mulf %67, %72 : vector<8x32xf32>
    %74 = arith.truncf %73 : vector<8x32xf32> to vector<8x32xbf16>
    %c0_13 = arith.constant 0 : index
    %c0_14 = arith.constant 0 : index
    %c0_15 = arith.constant 0 : index
    %75 = vector.load %arg8[%c0_13, %c0_14, %c0_15] : memref<1x8x32xbf16, #tpu.memory_space<vmem>>, vector<1x8x32xbf16>
    %76 = vector.shape_cast %75 : vector<1x8x32xbf16> to vector<8x32xbf16>
    %77 = vector.shape_cast %74 : vector<8x32xbf16> to vector<1x8x32xbf16>
    tpu.vector_store %arg8[%c0_13, %c0_14, %c0_15], %77 {strides = array<i32>} : memref<1x8x32xbf16, #tpu.memory_space<vmem>>, vector<1x8x32xbf16>,
    return
  }
  func.func @transform_0(%arg0: i32, %arg1: i32) -> (i32, i32, i32) {
    %c0_i32 = arith.constant 0 : i32
    %c0_i32_0 = arith.constant 0 : i32
    %c0_i32_1 = arith.constant 0 : i32
    return %arg0, %c0_i32, %c0_i32_0 : i32, i32, i32
  }
  func.func @transform_1(%arg0: i32, %arg1: i32) -> (i32, i32) {
    %c0_i32 = arith.constant 0 : i32
    %c0_i32_0 = arith.constant 0 : i32
    %c0_i32_1 = arith.constant 0 : i32
    return %c0_i32, %c0_i32_0 : i32, i32
  }
  func.func @transform_2(%arg0: i32, %arg1: i32) -> (i32, i32) {
    %c0_i32 = arith.constant 0 : i32
    %c0_i32_0 = arith.constant 0 : i32
    %c0_i32_1 = arith.constant 0 : i32
    return %c0_i32, %c0_i32_0 : i32, i32
  }
  func.func @transform_3(%arg0: i32, %arg1: i32) -> (i32, i32) {
    %c0_i32 = arith.constant 0 : i32
    %c0_i32_0 = arith.constant 0 : i32
    %c0_i32_1 = arith.constant 0 : i32
    return %c0_i32, %c0_i32_0 : i32, i32
  }
  func.func @transform_4(%arg0: i32, %arg1: i32) -> (i32, i32) {
    %c0_i32 = arith.constant 0 : i32
    %c0_i32_0 = arith.constant 0 : i32
    %c0_i32_1 = arith.constant 0 : i32
    return %c0_i32, %c0_i32_0 : i32, i32
  }
  func.func @transform_5(%arg0: i32, %arg1: i32) -> (i32, i32) {
    %c0_i32 = arith.constant 0 : i32
    %c0_i32_0 = arith.constant 0 : i32
    %c0_i32_1 = arith.constant 0 : i32
    return %c0_i32, %c0_i32_0 : i32, i32
  }
  func.func @transform_6(%arg0: i32, %arg1: i32) -> (i32, i32, i32) {
    %c0_i32 = arith.constant 0 : i32
    %c0_i32_0 = arith.constant 0 : i32
    return %arg0, %arg1, %c0_i32 : i32, i32, i32
  }
}

module attributes {stable_mosaic.version = 11 : i64} {
  func.func @_layernorm_kernel(%arg0: i32, %arg1: memref<16x32xbf16, #tpu.memory_space<vmem>>, %arg2: memref<1x32xf32, #tpu.memory_space<vmem>>, %arg3: memref<1x32xf32, #tpu.memory_space<vmem>>, %arg4: memref<16x32xbf16, #tpu.memory_space<vmem>>) attributes {dimension_semantics = [#tpu.dimension_semantics<parallel>], iteration_bounds = array<i64: 1>, scalar_prefetch = 0 : i64, scratch_operands = 0 : i64, tpu.core_type = #tpu.core_type<tc>, window_params = [{transform_indices = @transform_0, window_bounds = array<i64: 16, 32>}, {pipeline_mode = #tpu.pipeline_mode<synchronous>, transform_indices = @transform_1, window_bounds = array<i64: 1, 32>}, {pipeline_mode = #tpu.pipeline_mode<synchronous>, transform_indices = @transform_2, window_bounds = array<i64: 1, 32>}, {transform_indices = @transform_3, window_bounds = array<i64: 16, 32>}]} {
    %c0 = arith.constant 0 : index
    %c0_0 = arith.constant 0 : index
    %0 = vector.load %arg1[%c0, %c0_0] : memref<16x32xbf16, #tpu.memory_space<vmem>>, vector<16x32xbf16>
    %1 = arith.extf %0 : vector<16x32xbf16> to vector<16x32xf32>
    %cst = arith.constant dense<0.000000e+00> : vector<16xf32>
    %2 = vector.multi_reduction <add>, %1, %cst [1] : vector<16x32xf32> to vector<16xf32>
    %3 = vector.shape_cast %2 : vector<16xf32> to vector<16x1xf32>
    %cst_1 = arith.constant 3.200000e+01 : f32
    %4 = vector.broadcast %cst_1 : f32 to vector<16x1xf32>
    %5 = arith.divf %3, %4 : vector<16x1xf32>
    %6 = vector.broadcast %5 : vector<16x1xf32> to vector<16x32xf32>
    %7 = arith.subf %1, %6 : vector<16x32xf32>
    %8 = arith.mulf %7, %7 : vector<16x32xf32>
    %cst_2 = arith.constant dense<0.000000e+00> : vector<16xf32>
    %9 = vector.multi_reduction <add>, %8, %cst_2 [1] : vector<16x32xf32> to vector<16xf32>
    %10 = vector.shape_cast %9 : vector<16xf32> to vector<16x1xf32>
    %cst_3 = arith.constant 3.200000e+01 : f32
    %11 = vector.broadcast %cst_3 : f32 to vector<16x1xf32>
    %12 = arith.divf %10, %11 : vector<16x1xf32>
    %13 = vector.broadcast %5 : vector<16x1xf32> to vector<16x32xf32>
    %14 = arith.subf %1, %13 : vector<16x32xf32>
    %cst_4 = arith.constant 9.99999974E-6 : f32
    %15 = vector.broadcast %cst_4 : f32 to vector<16x1xf32>
    %16 = arith.addf %12, %15 : vector<16x1xf32>
    %17 = math.rsqrt %16 : vector<16x1xf32>
    %18 = vector.broadcast %17 : vector<16x1xf32> to vector<16x32xf32>
    %19 = arith.mulf %14, %18 : vector<16x32xf32>
    %c0_5 = arith.constant 0 : index
    %c0_6 = arith.constant 0 : index
    %20 = vector.load %arg2[%c0_5, %c0_6] : memref<1x32xf32, #tpu.memory_space<vmem>>, vector<1x32xf32>
    %21 = vector.broadcast %20 : vector<1x32xf32> to vector<16x32xf32>
    %22 = arith.mulf %19, %21 : vector<16x32xf32>
    %c0_7 = arith.constant 0 : index
    %c0_8 = arith.constant 0 : index
    %23 = vector.load %arg3[%c0_7, %c0_8] : memref<1x32xf32, #tpu.memory_space<vmem>>, vector<1x32xf32>
    %24 = vector.broadcast %23 : vector<1x32xf32> to vector<16x32xf32>
    %25 = arith.addf %22, %24 : vector<16x32xf32>
    %26 = arith.truncf %25 : vector<16x32xf32> to vector<16x32xbf16>
    %c0_9 = arith.constant 0 : index
    %c0_10 = arith.constant 0 : index
    %27 = vector.load %arg4[%c0_9, %c0_10] : memref<16x32xbf16, #tpu.memory_space<vmem>>, vector<16x32xbf16>
    tpu.vector_store %arg4[%c0_9, %c0_10], %26 {strides = array<i32>} : memref<16x32xbf16, #tpu.memory_space<vmem>>, vector<16x32xbf16>,
    return
  }
  func.func @transform_0(%arg0: i32) -> (i32, i32) {
    %c0_i32 = arith.constant 0 : i32
    %c0_i32_0 = arith.constant 0 : i32
    return %arg0, %c0_i32 : i32, i32
  }
  func.func @transform_1(%arg0: i32) -> (i32, i32) {
    %c0_i32 = arith.constant 0 : i32
    %c0_i32_0 = arith.constant 0 : i32
    %c0_i32_1 = arith.constant 0 : i32
    return %c0_i32, %c0_i32_0 : i32, i32
  }
  func.func @transform_2(%arg0: i32) -> (i32, i32) {
    %c0_i32 = arith.constant 0 : i32
    %c0_i32_0 = arith.constant 0 : i32
    %c0_i32_1 = arith.constant 0 : i32
    return %c0_i32, %c0_i32_0 : i32, i32
  }
  func.func @transform_3(%arg0: i32) -> (i32, i32) {
    %c0_i32 = arith.constant 0 : i32
    %c0_i32_0 = arith.constant 0 : i32
    return %arg0, %c0_i32 : i32, i32
  }
}

</mosaic_0001>

<llo_original>
// kernel: tpu_custom_call.1
$region0: #{tpu_custom_call.1}
  #allocation0 [shape = 'u32[]', space=smem, size = 0x4, offset = 0x4, fixed_abs, tag = 'smem constant byte address 0x4 - core index']
  #allocation1 [shape = 'u32[144,128]{1,0:T(1,128)}', space=vmem, size = 0x12000, scoped, tag = 'internal scratch']
  %s0 = inlined_call_operand.hbm [shape: f32[8,128], index: 0, kind: input, shape index: {}]
  %s1 = inlined_call_operand.hbm [shape: f32[8,128], index: 1, kind: output, shape index: {}]
  %s2 = sld [smem:[#allocation0]]
  $region18: #{tpu_custom_call.1} parent=0
    _
  %s4 = ssub.s32 1, %s2
  %s5 = scalar_select 0, %s4, %s2
  $region1: #{tpu_custom_call.1} parent=0
    #allocation2 [shape = 'u8[4096]{0}', space=vmem, size = 0x1000, scoped, tag = 'input window, operand 0, single buffered']
    #allocation3 [shape = 's32[1]{0}', space=sflag, size = 0x4, scoped, tag = 'scoped memory for tpu_custom_call.1']
    #allocation4 [shape = 's32[1]{0}', space=sflag, size = 0x4, scoped, tag = 'scoped memory for tpu_custom_call.1']
    #allocation5 [shape = 'u8[4096]{0}', space=vmem, size = 0x1000, scoped, tag = 'output window, operand 0, single buffered']
    %6 = vsyncpa [#allocation3], 0
    %7 = vsyncpa [#allocation4], 0
    // Predicated region
    $region2: #{tpu_custom_call.1} parent=1 // pred_check
      _
    $region3: #{tpu_custom_call.1} parent=1 // pred_check_branch
      %9 = sbr.rel (0) target = $region5
    $region4: #{tpu_custom_call.1} parent=1 // pred_region
      %s11 = ssub.s32 128, 128
      %12 = vsyncadd [#allocation3], %s11
      %s14 = sshll.u32 [#allocation2], 4
      %s15 = int_to_ptr.vmem [resolvable:$true] %s14
      %17 = dma.hbm_to_vmem [thread:$0]  %s0, 128, %s15, [#allocation3]
    $region5: #{tpu_custom_call.1} parent=1 // pred_fallthru
      _
    // Predicated region
    $region6: #{tpu_custom_call.1} parent=1 // pred_check
      _
    $region7: #{tpu_custom_call.1} parent=1 // pred_check_branch
      %19 = sbr.rel (0) target = $region9
    $region8: #{tpu_custom_call.1} parent=1 // pred_region
      %20 = dma.done [#allocation3], 128
    $region9: #{tpu_custom_call.1} parent=1 // pred_fallthru
      _
    %v21 = vld [vmem:[#allocation2] sm:$0xff]
    %s23 = sor.u32 256, 1
    %24 = vrot.lane.b32.xlu0 %v21, %s23
    %v25 = vpop.permute.xlu0 %24
    %26 = vst [vmem:[#allocation5] sm:$0xff] %v25
    // Predicated region
    $region10: #{tpu_custom_call.1} parent=1 // pred_check
      _
    $region11: #{tpu_custom_call.1} parent=1 // pred_check_branch
      %28 = sbr.rel (0) target = $region13
    $region12: #{tpu_custom_call.1} parent=1 // pred_region
      %s30 = ssub.s32 128, 128
      %31 = vsyncadd [#allocation4], %s30
      %s33 = sshll.u32 [#allocation5], 4
      %s34 = int_to_ptr.vmem [resolvable:$true] %s33
      %36 = dma.vmem_to_hbm [thread:$0]  %s34, 128, %s1, [#allocation4]
    $region13: #{tpu_custom_call.1} parent=1 // pred_fallthru
      _
    // Predicated region
    $region14: #{tpu_custom_call.1} parent=1 // pred_check
      _
    $region15: #{tpu_custom_call.1} parent=1 // pred_check_branch
      %38 = sbr.rel (0) target = $region17
    $region16: #{tpu_custom_call.1} parent=1 // pred_region
      %39 = dma.done [#allocation4], 128
    $region17: #{tpu_custom_call.1} parent=1 // pred_fallthru
      _
    %40 = vsyncpa [#allocation3], 1
    %41 = vsyncpa [#allocation4], 1

// kernel: fast_conformer_encoder.33
$region0: #{fast_conformer_encoder.33}
  #allocation0 [shape = 'u32[]', space=smem, size = 0x4, offset = 0x4, fixed_abs, tag = 'smem constant byte address 0x4 - core index']
  #allocation1 [shape = 'u32[144,128]{1,0:T(1,128)}', space=vmem, size = 0x12000, scoped, tag = 'internal scratch']
  #allocation2 [shape = 'f32[128,128]{1,0:T(8,128)}', space=vmem, size = 0x10000, scoped, tag = 'scratch operand']
  %s0 = inlined_call_operand.vmem [shape: bf16[128,384], index: 0, kind: input, shape index: {}]
  %s1 = inlined_call_operand.vmem [shape: bf16[384,128], index: 1, kind: input, shape index: {}]
  %s2 = inlined_call_operand.vmem [shape: f32[1,128], index: 2, kind: input, shape index: {}]
  %s3 = inlined_call_operand.vmem [shape: bf16[128,128], index: 3, kind: output, shape index: {}]
  %s4 = sld [smem:[#allocation0]]
  $region30: #{fast_conformer_encoder.33} parent=0
    _
  %s6 = ssub.s32 1, %s4
  %s7 = scalar_select 0, %s6, %s4
  // Predicated region
  $region2: #{fast_conformer_encoder.33} parent=0 // pred_check
    _
  $region3: #{fast_conformer_encoder.33} parent=0 // pred_check_branch
    %9 = sbr.rel (0) target = $region5
  $region4: #{fast_conformer_encoder.33} parent=0 // pred_region
    _
  $region5: #{fast_conformer_encoder.33} parent=0 // pred_fallthru
    _
  // Predicated region
  $region6: #{fast_conformer_encoder.33} parent=0 // pred_check
    _
  $region7: #{fast_conformer_encoder.33} parent=0 // pred_check_branch
    %11 = sbr.rel (0) target = $region9
  $region8: #{fast_conformer_encoder.33} parent=0 // pred_region
    _
  $region9: #{fast_conformer_encoder.33} parent=0 // pred_fallthru
    _
  // Predicated region
  $region10: #{fast_conformer_encoder.33} parent=0 // pred_check
    _
  $region11: #{fast_conformer_encoder.33} parent=0 // pred_check_branch
    %13 = sbr.rel (0) target = $region13
  $region12: #{fast_conformer_encoder.33} parent=0 // pred_region
    _
  $region13: #{fast_conformer_encoder.33} parent=0 // pred_fallthru
    _
  %v15 = vld [vmem:[%s0] sm:$0xff]
  %v16 = vld [vmem:[%s0 + $0x8] sm:$0xf]
  %v17 = vld [vmem:[%s0 + $0xc] sm:$0xff]
  %v18 = vld [vmem:[%s0 + $0x14] sm:$0xf]
  %v19 = vld [vmem:[%s0 + $0x18] sm:$0xff]
  %v20 = vld [vmem:[%s0 + $0x20] sm:$0xf]
  %v21 = vld [vmem:[%s0 + $0x24] sm:$0xff]
  %v22 = vld [vmem:[%s0 + $0x2c] sm:$0xf]
  %v23 = vld [vmem:[%s0 + $0x30] sm:$0xff]
  %v24 = vld [vmem:[%s0 + $0x38] sm:$0xf]
  %v25 = vld [vmem:[%s0 + $0x3c] sm:$0xff]
  %v26 = vld [vmem:[%s0 + $0x44] sm:$0xf]
  %v27 = vld [vmem:[%s0 + $0x48] sm:$0xff]
  %v28 = vld [vmem:[%s0 + $0x50] sm:$0xf]
  %v29 = vld [vmem:[%s0 + $0x54] sm:$0xff]
  %v30 = vld [vmem:[%s0 + $0x5c] sm:$0xf]
  %v31 = vld [vmem:[%s0 + $0x60] sm:$0xff]
  %v32 = vld [vmem:[%s0 + $0x68] sm:$0xf]
  %v33 = vld [vmem:[%s0 + $0x6c] sm:$0xff]
  %v34 = vld [vmem:[%s0 + $0x74] sm:$0xf]
  %v35 = vld [vmem:[%s0 + $0x78] sm:$0xff]
  %v36 = vld [vmem:[%s0 + $0x80] sm:$0xf]
  %v37 = vld [vmem:[%s0 + $0x84] sm:$0xff]
  %v38 = vld [vmem:[%s0 + $0x8c] sm:$0xf]
  %v39 = vld [vmem:[%s0 + $0x90] sm:$0xff]
  %v40 = vld [vmem:[%s0 + $0x98] sm:$0xf]
  %v41 = vld [vmem:[%s0 + $0x9c] sm:$0xff]
  %v42 = vld [vmem:[%s0 + $0xa4] sm:$0xf]
  %v43 = vld [vmem:[%s0 + $0xa8] sm:$0xff]
  %v44 = vld [vmem:[%s0 + $0xb0] sm:$0xf]
  %v45 = vld [vmem:[%s0 + $0xb4] sm:$0xff]
  %v46 = vld [vmem:[%s0 + $0xbc] sm:$0xf]
  %p47 = scmp.eq.s32.totalorder 0, 0
  // Predicated region
  $region14: #{fast_conformer_encoder.33} parent=0 // pred_check
    %p48 = pneg %p47
  $region15: #{fast_conformer_encoder.33} parent=0 // pred_check_branch
    %50 = sbr.rel (%p48) target = $region17
  $region16: #{fast_conformer_encoder.33} parent=0 // pred_region
    %51 = vst [vmem:[#allocation2] sm:$0xff] 0.0
    %52 = vst [vmem:[#allocation2 + $0x8] sm:$0xff] 0.0
    %53 = vst [vmem:[#allocation2 + $0x10] sm:$0xff] 0.0
    %54 = vst [vmem:[#allocation2 + $0x18] sm:$0xff] 0.0
    %55 = vst [vmem:[#allocation2 + $0x20] sm:$0xff] 0.0
    %56 = vst [vmem:[#allocation2 + $0x28] sm:$0xff] 0.0
    %57 = vst [vmem:[#allocation2 + $0x30] sm:$0xff] 0.0
    %58 = vst [vmem:[#allocation2 + $0x38] sm:$0xff] 0.0
    %59 = vst [vmem:[#allocation2 + $0x40] sm:$0xff] 0.0
    %60 = vst [vmem:[#allocation2 + $0x48] sm:$0xff] 0.0
    %61 = vst [vmem:[#allocation2 + $0x50] sm:$0xff] 0.0
    %62 = vst [vmem:[#allocation2 + $0x58] sm:$0xff] 0.0
    %63 = vst [vmem:[#allocation2 + $0x60] sm:$0xff] 0.0
    %64 = vst [vmem:[#allocation2 + $0x68] sm:$0xff] 0.0
    %65 = vst [vmem:[#allocation2 + $0x70] sm:$0xff] 0.0
    %66 = vst [vmem:[#allocation2 + $0x78] sm:$0xff] 0.0
  $region17: #{fast_conformer_encoder.33} parent=0 // pred_fallthru
    _
  %v67 = vld [vmem:[#allocation2] sm:$0xff]
  %v68 = vld [vmem:[#allocation2 + $0x8] sm:$0xff]
  %v69 = vld [vmem:[#allocation2 + $0x10] sm:$0xff]
  %v70 = vld [vmem:[#allocation2 + $0x18] sm:$0xff]
  %v71 = vld [vmem:[#allocation2 + $0x20] sm:$0xff]
  %v72 = vld [vmem:[#allocation2 + $0x28] sm:$0xff]
  %v73 = vld [vmem:[#allocation2 + $0x30] sm:$0xff]
  %v74 = vld [vmem:[#allocation2 + $0x38] sm:$0xff]
  %v75 = vld [vmem:[#allocation2 + $0x40] sm:$0xff]
  %v76 = vld [vmem:[#allocation2 + $0x48] sm:$0xff]
  %v77 = vld [vmem:[#allocation2 + $0x50] sm:$0xff]
  %v78 = vld [vmem:[#allocation2 + $0x58] sm:$0xff]
  %v79 = vld [vmem:[#allocation2 + $0x60] sm:$0xff]
  %v80 = vld [vmem:[#allocation2 + $0x68] sm:$0xff]
  %v81 = vld [vmem:[#allocation2 + $0x70] sm:$0xff]
  %v82 = vld [vmem:[#allocation2 + $0x78] sm:$0xff]
  %v83 = vld [vmem:[%s1] sm:$0xf]
  %v84 = vld [vmem:[%s1 + $0x4] sm:$0xf]
  %v85 = vld [vmem:[%s1 + $0x8] sm:$0xf]
  %v86 = vld [vmem:[%s1 + $0xc] sm:$0xf]
  %v87 = vld [vmem:[%s1 + $0x10] sm:$0xf]
  %v88 = vld [vmem:[%s1 + $0x14] sm:$0xf]
  %v89 = vld [vmem:[%s1 + $0x18] sm:$0xf]
  %v90 = vld [vmem:[%s1 + $0x1c] sm:$0xf]
  %v91 = vld [vmem:[%s1 + $0x20] sm:$0xf]
  %v92 = vld [vmem:[%s1 + $0x24] sm:$0xf]
  %v93 = vld [vmem:[%s1 + $0x28] sm:$0xf]
  %v94 = vld [vmem:[%s1 + $0x2c] sm:$0xf]
  %v95 = vld [vmem:[%s1 + $0x30] sm:$0xf]
  %v96 = vld [vmem:[%s1 + $0x34] sm:$0xf]
  %v97 = vld [vmem:[%s1 + $0x38] sm:$0xf]
  %v98 = vld [vmem:[%s1 + $0x3c] sm:$0xf]
  %v99 = vld [vmem:[%s1 + $0x40] sm:$0xf]
  %v100 = vld [vmem:[%s1 + $0x44] sm:$0xf]
  %v101 = vld [vmem:[%s1 + $0x48] sm:$0xf]
  %v102 = vld [vmem:[%s1 + $0x4c] sm:$0xf]
  %v103 = vld [vmem:[%s1 + $0x50] sm:$0xf]
  %v104 = vld [vmem:[%s1 + $0x54] sm:$0xf]
  %v105 = vld [vmem:[%s1 + $0x58] sm:$0xf]
  %v106 = vld [vmem:[%s1 + $0x5c] sm:$0xf]
  %v107 = vld [vmem:[%s1 + $0x60] sm:$0xf]
  %v108 = vld [vmem:[%s1 + $0x64] sm:$0xf]
  %v109 = vld [vmem:[%s1 + $0x68] sm:$0xf]
  %v110 = vld [vmem:[%s1 + $0x6c] sm:$0xf]
  %v111 = vld [vmem:[%s1 + $0x70] sm:$0xf]
  %v112 = vld [vmem:[%s1 + $0x74] sm:$0xf]
  %v113 = vld [vmem:[%s1 + $0x78] sm:$0xf]
  %v114 = vld [vmem:[%s1 + $0x7c] sm:$0xf]
  %v115 = vld [vmem:[%s1 + $0x80] sm:$0xf]
  %v116 = vld [vmem:[%s1 + $0x84] sm:$0xf]
  %v117 = vld [vmem:[%s1 + $0x88] sm:$0xf]
  %v118 = vld [vmem:[%s1 + $0x8c] sm:$0xf]
  %v119 = vld [vmem:[%s1 + $0x90] sm:$0xf]
  %v120 = vld [vmem:[%s1 + $0x94] sm:$0xf]
  %v121 = vld [vmem:[%s1 + $0x98] sm:$0xf]
  %v122 = vld [vmem:[%s1 + $0x9c] sm:$0xf]
  %v123 = vld [vmem:[%s1 + $0xa0] sm:$0xf]
  %v124 = vld [vmem:[%s1 + $0xa4] sm:$0xf]
  %v125 = vld [vmem:[%s1 + $0xa8] sm:$0xf]
  %v126 = vld [vmem:[%s1 + $0xac] sm:$0xf]
  %v127 = vld [vmem:[%s1 + $0xb0] sm:$0xf]
  %v128 = vld [vmem:[%s1 + $0xb4] sm:$0xf]
  %v129 = vld [vmem:[%s1 + $0xb8] sm:$0xf]
  %v130 = vld [vmem:[%s1 + $0xbc] sm:$0xf]
  %v163 = vunpack.c.l.b16 %v15
  %v164 = vunpack.c.h.b16 %v15
  %v165 = vunpack.c.l.b16 %v16
  %v166 = vunpack.c.l.b16 %v17
  %v167 = vunpack.c.h.b16 %v17
  %v168 = vunpack.c.l.b16 %v18
  %v169 = vunpack.c.l.b16 %v19
  %v170 = vunpack.c.h.b16 %v19
  %v171 = vunpack.c.l.b16 %v20
  %v172 = vunpack.c.l.b16 %v21
  %v173 = vunpack.c.h.b16 %v21
  %v174 = vunpack.c.l.b16 %v22
  %v175 = vunpack.c.l.b16 %v23
  %v176 = vunpack.c.h.b16 %v23
  %v177 = vunpack.c.l.b16 %v24
  %v178 = vunpack.c.l.b16 %v25
  %v179 = vunpack.c.h.b16 %v25
  %v180 = vunpack.c.l.b16 %v26
  %v181 = vunpack.c.l.b16 %v27
  %v182 = vunpack.c.h.b16 %v27
  %v183 = vunpack.c.l.b16 %v28
  %v184 = vunpack.c.l.b16 %v29
  %v185 = vunpack.c.h.b16 %v29
  %v186 = vunpack.c.l.b16 %v30
  %v187 = vunpack.c.l.b16 %v31
  %v188 = vunpack.c.h.b16 %v31
  %v189 = vunpack.c.l.b16 %v32
  %v190 = vunpack.c.l.b16 %v33
  %v191 = vunpack.c.h.b16 %v33
  %v192 = vunpack.c.l.b16 %v34
  %v193 = vunpack.c.l.b16 %v35
  %v194 = vunpack.c.h.b16 %v35
  %v195 = vunpack.c.l.b16 %v36
  %v196 = vunpack.c.l.b16 %v37
  %v197 = vunpack.c.h.b16 %v37
  %v198 = vunpack.c.l.b16 %v38
  %v199 = vunpack.c.l.b16 %v39
  %v200 = vunpack.c.h.b16 %v39
  %v201 = vunpack.c.l.b16 %v40
  %v202 = vunpack.c.l.b16 %v41
  %v203 = vunpack.c.h.b16 %v41
  %v204 = vunpack.c.l.b16 %v42
  %v205 = vunpack.c.l.b16 %v43
  %v206 = vunpack.c.h.b16 %v43
  %v207 = vunpack.c.l.b16 %v44
  %v208 = vunpack.c.l.b16 %v45
  %v209 = vunpack.c.h.b16 %v45
  %v210 = vunpack.c.l.b16 %v46
  %v211 = vpack.c.b16 %v166, %v163
  %v212 = vpack.c.b16 %v167, %v164
  %v213 = vpack.c.b16 %v168, %v165
  %v214 = vpack.c.b16 %v172, %v169
  %v215 = vpack.c.b16 %v173, %v170
  %v216 = vpack.c.b16 %v174, %v171
  %v217 = vpack.c.b16 %v178, %v175
  %v218 = vpack.c.b16 %v179, %v176
  %v219 = vpack.c.b16 %v180, %v177
  %v220 = vpack.c.b16 %v184, %v181
  %v221 = vpack.c.b16 %v185, %v182
  %v222 = vpack.c.b16 %v186, %v183
  %v223 = vpack.c.b16 %v190, %v187
  %v224 = vpack.c.b16 %v191, %v188
  %v225 = vpack.c.b16 %v192, %v189
  %v226 = vpack.c.b16 %v196, %v193
  %v227 = vpack.c.b16 %v197, %v194
  %v228 = vpack.c.b16 %v198, %v195
  %v229 = vpack.c.b16 %v202, %v199
  %v230 = vpack.c.b16 %v203, %v200
  %v231 = vpack.c.b16 %v204, %v201
  %v232 = vpack.c.b16 %v208, %v205
  %v233 = vpack.c.b16 %v209, %v206
  %v234 = vpack.c.b16 %v210, %v207
  %v307 = vunpack.c.l.b16 %v83
  %v308 = vunpack.c.l.b16 %v84
  %v309 = vunpack.c.l.b16 %v85
  %v310 = vunpack.c.l.b16 %v86
  %v311 = vunpack.c.l.b16 %v87
  %v312 = vunpack.c.l.b16 %v88
  %v313 = vunpack.c.l.b16 %v89
  %v314 = vunpack.c.l.b16 %v90
  %v315 = vunpack.c.l.b16 %v91
  %v316 = vunpack.c.l.b16 %v92
  %v317 = vunpack.c.l.b16 %v93
  %v318 = vunpack.c.l.b16 %v94
  %v319 = vunpack.c.l.b16 %v95
  %v320 = vunpack.c.l.b16 %v96
  %v321 = vunpack.c.l.b16 %v97
  %v322 = vunpack.c.l.b16 %v98
  %v323 = vunpack.c.l.b16 %v99
  %v324 = vunpack.c.l.b16 %v100
  %v325 = vunpack.c.l.b16 %v101
  %v326 = vunpack.c.l.b16 %v102
  %v327 = vunpack.c.l.b16 %v103
  %v328 = vunpack.c.l.b16 %v104
  %v329 = vunpack.c.l.b16 %v105
  %v330 = vunpack.c.l.b16 %v106
  %v331 = vunpack.c.l.b16 %v107
  %v332 = vunpack.c.l.b16 %v108
  %v333 = vunpack.c.l.b16 %v109
  %v334 = vunpack.c.l.b16 %v110
  %v335 = vunpack.c.l.b16 %v111
  %v336 = vunpack.c.l.b16 %v112
  %v337 = vunpack.c.l.b16 %v113
  %v338 = vunpack.c.l.b16 %v114
  %v339 = vunpack.c.l.b16 %v115
  %v340 = vunpack.c.l.b16 %v116
  %v341 = vunpack.c.l.b16 %v117
  %v342 = vunpack.c.l.b16 %v118
  %v343 = vunpack.c.l.b16 %v119
  %v344 = vunpack.c.l.b16 %v120
  %v345 = vunpack.c.l.b16 %v121
  %v346 = vunpack.c.l.b16 %v122
  %v347 = vunpack.c.l.b16 %v123
  %v348 = vunpack.c.l.b16 %v124
  %v349 = vunpack.c.l.b16 %v125
  %v350 = vunpack.c.l.b16 %v126
  %v351 = vunpack.c.l.b16 %v127
  %v352 = vunpack.c.l.b16 %v128
  %v353 = vunpack.c.l.b16 %v129
  %v354 = vunpack.c.l.b16 %v130
  %v355 = vpack.c.b16 %v308, %v307
  %v356 = vpack.c.b16 %v310, %v309
  %v357 = vpack.c.b16 %v312, %v311
  %v358 = vpack.c.b16 %v314, %v313
  %v359 = vpack.c.b16 %v316, %v315
  %v360 = vpack.c.b16 %v318, %v317
  %v361 = vpack.c.b16 %v320, %v319
  %v362 = vpack.c.b16 %v322, %v321
  %v363 = vpack.c.b16 %v324, %v323
  %v364 = vpack.c.b16 %v326, %v325
  %v365 = vpack.c.b16 %v328, %v327
  %v366 = vpack.c.b16 %v330, %v329
  %v367 = vpack.c.b16 %v332, %v331
  %v368 = vpack.c.b16 %v334, %v333
  %v369 = vpack.c.b16 %v336, %v335
  %v370 = vpack.c.b16 %v338, %v337
  %v371 = vpack.c.b16 %v340, %v339
  %v372 = vpack.c.b16 %v342, %v341
  %v373 = vpack.c.b16 %v344, %v343
  %v374 = vpack.c.b16 %v346, %v345
  %v375 = vpack.c.b16 %v348, %v347
  %v376 = vpack.c.b16 %v350, %v349
  %v377 = vpack.c.b16 %v352, %v351
  %v378 = vpack.c.b16 %v354, %v353
  %403 = vmatprep.subr.bf16.mxu0 0
  %404 = vmatpush1.bf16.msra.mxu0 %v355
  %405 = vmatprep.subr.bf16.mxu0 0
  %406 = vmatpush1.bf16.msra.mxu0 %v356
  %407 = vmatprep.subr.bf16.mxu0 0
  %408 = vmatpush1.bf16.msra.mxu0 %v357
  %409 = vmatprep.subr.bf16.mxu0 0
  %410 = vmatpush1.bf16.msra.mxu0 %v358
  %411 = vmatprep.subr.bf16.mxu0 0
  %412 = vmatpush1.bf16.msra.mxu0 %v359
  %413 = vmatprep.subr.bf16.mxu0 0
  %414 = vmatpush1.bf16.msra.mxu0 %v360
  %415 = vmatprep.subr.bf16.mxu0 0
  %416 = vmatpush1.bf16.msra.mxu0 %v361
  %417 = vmatprep.subr.bf16.mxu0 0
  %418 = vmatpush1.bf16.msra.mxu0 %v362
  %419 = vmatprep.subr.bf16.mxu0 0
  %420 = vmatpush1.bf16.msra.mxu0 %v363
  %421 = vmatprep.subr.bf16.mxu0 0
  %422 = vmatpush1.bf16.msra.mxu0 %v364
  %423 = vmatprep.subr.bf16.mxu0 0
  %424 = vmatpush1.bf16.msra.mxu0 %v365
  %425 = vmatprep.subr.bf16.mxu0 0
  %426 = vmatpush1.bf16.msra.mxu0 %v366
  %427 = vmatprep.subr.bf16.mxu0 0
  %428 = vmatpush1.bf16.msra.mxu0 %v367
  %429 = vmatprep.subr.bf16.mxu0 0
  %430 = vmatpush1.bf16.msra.mxu0 %v368
  %431 = vmatprep.subr.bf16.mxu0 0
  %432 = vmatpush1.bf16.msra.mxu0 %v369
  %433 = vmatprep.subr.bf16.mxu0 0
  %434 = vmatpush1.bf16.msra.mxu0 %v370
  %435 = vmatprep.mubr.bf16.mxu0 %v212
  %436 = vmatmul.mubr.bf16.gmra.mrb[0].mxu0 %v211
  %v437 = vpop.f32.mrb[0].mxu0
  %v438 = vadd.f32 0.0, %v437
  %v439 = vpop.f32.mrb[0].mxu0
  %v440 = vpop.f32.mrb[0].mxu0
  %v441 = vadd.f32 0.0, %v440
  %v442 = vpop.f32.mrb[0].mxu0
  %443 = vmatprep.mubr.bf16.mxu0 %v215
  %444 = vmatmul.mubr.bf16.gmra.mrb[0].mxu0 %v214
  %v445 = vpop.f32.mrb[0].mxu0
  %v446 = vadd.f32 0.0, %v445
  %v447 = vpop.f32.mrb[0].mxu0
  %v448 = vpop.f32.mrb[0].mxu0
  %v449 = vadd.f32 0.0, %v448
  %v450 = vpop.f32.mrb[0].mxu0
  %451 = vmatprep.mubr.bf16.mxu0 %v218
  %452 = vmatmul.mubr.bf16.gmra.mrb[0].mxu0 %v217
  %v453 = vpop.f32.mrb[0].mxu0
  %v454 = vadd.f32 0.0, %v453
  %v455 = vpop.f32.mrb[0].mxu0
  %v456 = vpop.f32.mrb[0].mxu0
  %v457 = vadd.f32 0.0, %v456
  %v458 = vpop.f32.mrb[0].mxu0
  %459 = vmatprep.mubr.bf16.mxu0 %v221
  %460 = vmatmul.mubr.bf16.gmra.mrb[0].mxu0 %v220
  %v461 = vpop.f32.mrb[0].mxu0
  %v462 = vadd.f32 0.0, %v461
  %v463 = vpop.f32.mrb[0].mxu0
  %v464 = vpop.f32.mrb[0].mxu0
  %v465 = vadd.f32 0.0, %v464
  %v466 = vpop.f32.mrb[0].mxu0
  %467 = vmatprep.mubr.bf16.mxu0 %v224
  %468 = vmatmul.mubr.bf16.gmra.mrb[0].mxu0 %v223
  %v469 = vpop.f32.mrb[0].mxu0
  %v470 = vadd.f32 0.0, %v469
  %v471 = vpop.f32.mrb[0].mxu0
  %v472 = vpop.f32.mrb[0].mxu0
  %v473 = vadd.f32 0.0, %v472
  %v474 = vpop.f32.mrb[0].mxu0
  %475 = vmatprep.mubr.bf16.mxu0 %v227
  %476 = vmatmul.mubr.bf16.gmra.mrb[0].mxu0 %v226
  %v477 = vpop.f32.mrb[0].mxu0
  %v478 = vadd.f32 0.0, %v477
  %v479 = vpop.f32.mrb[0].mxu0
  %v480 = vpop.f32.mrb[0].mxu0
  %v481 = vadd.f32 0.0, %v480
  %v482 = vpop.f32.mrb[0].mxu0
  %483 = vmatprep.mubr.bf16.mxu0 %v230
  %484 = vmatmul.mubr.bf16.gmra.mrb[0].mxu0 %v229
  %v485 = vpop.f32.mrb[0].mxu0
  %v486 = vadd.f32 0.0, %v485
  %v487 = vpop.f32.mrb[0].mxu0
  %v488 = vpop.f32.mrb[0].mxu0
  %v489 = vadd.f32 0.0, %v488
  %v490 = vpop.f32.mrb[0].mxu0
  %491 = vmatprep.mubr.bf16.mxu0 %v233
  %492 = vmatmul.mubr.bf16.gmra.mrb[0].mxu0 %v232
  %v493 = vpop.f32.mrb[0].mxu0
  %v494 = vadd.f32 0.0, %v493
  %v495 = vpop.f32.mrb[0].mxu0
  %v496 = vpop.f32.mrb[0].mxu0
  %v497 = vadd.f32 0.0, %v496
  %v498 = vpop.f32.mrb[0].mxu0
  %499 = vdwg.mxu0
  %500 = vmatprep.subr.bf16.mxu0 0
  %501 = vmatpush1.bf16.msra.mxu0 %v371
  %502 = vmatprep.subr.bf16.mxu0 0
  %503 = vmatpush1.bf16.msra.mxu0 %v372
  %504 = vmatprep.subr.bf16.mxu0 0
  %505 = vmatpush1.bf16.msra.mxu0 %v373
  %506 = vmatprep.subr.bf16.mxu0 0
  %507 = vmatpush1.bf16.msra.mxu0 %v374
  %508 = vmatprep.subr.bf16.mxu0 0
  %509 = vmatpush1.bf16.msra.mxu0 %v375
  %510 = vmatprep.subr.bf16.mxu0 0
  %511 = vmatpush1.bf16.msra.mxu0 %v376
  %512 = vmatprep.subr.bf16.mxu0 0
  %513 = vmatpush1.bf16.msra.mxu0 %v377
  %514 = vmatprep.subr.bf16.mxu0 0
  %515 = vmatpush1.bf16.msra.mxu0 %v378
  %516 = vmatprep.subr.bf16.mxu0 0
  %517 = vmatpush1.bf16.msra.mxu0 0
  %518 = vmatprep.subr.bf16.mxu0 0
  %519 = vmatpush1.bf16.msra.mxu0 0
  %520 = vmatprep.subr.bf16.mxu0 0
  %521 = vmatpush1.bf16.msra.mxu0 0
  %522 = vmatprep.subr.bf16.mxu0 0
  %523 = vmatpush1.bf16.msra.mxu0 0
  %524 = vmatprep.subr.bf16.mxu0 0
  %525 = vmatpush1.bf16.msra.mxu0 0
  %526 = vmatprep.subr.bf16.mxu0 0
  %527 = vmatpush1.bf16.msra.mxu0 0
  %528 = vmatprep.subr.bf16.mxu0 0
  %529 = vmatpush1.bf16.msra.mxu0 0
  %530 = vmatprep.subr.bf16.mxu0 0
  %531 = vmatpush1.bf16.msra.mxu0 0
  %532 = vmatprep.mubr.bf16.mxu0 0
  %533 = vmatmul.mubr.bf16.gmra.mrb[0].mxu0 %v213
  %v534 = vpop.f32.mrb[0].mxu0
  %v535 = vadd.f32 %v438, %v534
  %v536 = vpop.f32.mrb[0].mxu0
  %v537 = vpop.f32.mrb[0].mxu0
  %v538 = vadd.f32 %v441, %v537
  %v539 = vpop.f32.mrb[0].mxu0
  %540 = vmatprep.mubr.bf16.mxu0 0
  %541 = vmatmul.mubr.bf16.gmra.mrb[0].mxu0 %v216
  %v542 = vpop.f32.mrb[0].mxu0
  %v543 = vadd.f32 %v446, %v542
  %v544 = vpop.f32.mrb[0].mxu0
  %v545 = vpop.f32.mrb[0].mxu0
  %v546 = vadd.f32 %v449, %v545
  %v547 = vpop.f32.mrb[0].mxu0
  %548 = vmatprep.mubr.bf16.mxu0 0
  %549 = vmatmul.mubr.bf16.gmra.mrb[0].mxu0 %v219
  %v550 = vpop.f32.mrb[0].mxu0
  %v551 = vadd.f32 %v454, %v550
  %v552 = vpop.f32.mrb[0].mxu0
  %v553 = vpop.f32.mrb[0].mxu0
  %v554 = vadd.f32 %v457, %v553
  %v555 = vpop.f32.mrb[0].mxu0
  %556 = vmatprep.mubr.bf16.mxu0 0
  %557 = vmatmul.mubr.bf16.gmra.mrb[0].mxu0 %v222
  %v558 = vpop.f32.mrb[0].mxu0
  %v559 = vadd.f32 %v462, %v558
  %v560 = vpop.f32.mrb[0].mxu0
  %v561 = vpop.f32.mrb[0].mxu0
  %v562 = vadd.f32 %v465, %v561
  %v563 = vpop.f32.mrb[0].mxu0
  %564 = vmatprep.mubr.bf16.mxu0 0
  %565 = vmatmul.mubr.bf16.gmra.mrb[0].mxu0 %v225
  %v566 = vpop.f32.mrb[0].mxu0
  %v567 = vadd.f32 %v470, %v566
  %v568 = vpop.f32.mrb[0].mxu0
  %v569 = vpop.f32.mrb[0].mxu0
  %v570 = vadd.f32 %v473, %v569
  %v571 = vpop.f32.mrb[0].mxu0
  %572 = vmatprep.mubr.bf16.mxu0 0
  %573 = vmatmul.mubr.bf16.gmra.mrb[0].mxu0 %v228
  %v574 = vpop.f32.mrb[0].mxu0
  %v575 = vadd.f32 %v478, %v574
  %v576 = vpop.f32.mrb[0].mxu0
  %v577 = vpop.f32.mrb[0].mxu0
  %v578 = vadd.f32 %v481, %v577
  %v579 = vpop.f32.mrb[0].mxu0
  %580 = vmatprep.mubr.bf16.mxu0 0
  %581 = vmatmul.mubr.bf16.gmra.mrb[0].mxu0 %v231
  %v582 = vpop.f32.mrb[0].mxu0
  %v583 = vadd.f32 %v486, %v582
  %v584 = vpop.f32.mrb[0].mxu0
  %v585 = vpop.f32.mrb[0].mxu0
  %v586 = vadd.f32 %v489, %v585
  %v587 = vpop.f32.mrb[0].mxu0
  %588 = vmatprep.mubr.bf16.mxu0 0
  %589 = vmatmul.mubr.bf16.gmra.mrb[0].mxu0 %v234
  %v590 = vpop.f32.mrb[0].mxu0
  %v591 = vadd.f32 %v494, %v590
  %v592 = vpop.f32.mrb[0].mxu0
  %v593 = vpop.f32.mrb[0].mxu0
  %v594 = vadd.f32 %v497, %v593
  %v595 = vpop.f32.mrb[0].mxu0
  %596 = vdwg.mxu0
  %v597 = vadd.f32 %v67, %v535
  %v598 = vadd.f32 %v68, %v538
  %v599 = vadd.f32 %v69, %v543
  %v600 = vadd.f32 %v70, %v546
  %v601 = vadd.f32 %v71, %v551
  %v602 = vadd.f32 %v72, %v554
  %v603 = vadd.f32 %v73, %v559
  %v604 = vadd.f32 %v74, %v562
  %v605 = vadd.f32 %v75, %v567
  %v606 = vadd.f32 %v76, %v570
  %v607 = vadd.f32 %v77, %v575
  %v608 = vadd.f32 %v78, %v578
  %v609 = vadd.f32 %v79, %v583
  %v610 = vadd.f32 %v80, %v586
  %v611 = vadd.f32 %v81, %v591
  %v612 = vadd.f32 %v82, %v594
  %613 = vst [vmem:[#allocation2] sm:$0xff] %v597
  %614 = vst [vmem:[#allocation2 + $0x8] sm:$0xff] %v598
  %615 = vst [vmem:[#allocation2 + $0x10] sm:$0xff] %v599
  %616 = vst [vmem:[#allocation2 + $0x18] sm:$0xff] %v600
  %617 = vst [vmem:[#allocation2 + $0x20] sm:$0xff] %v601
  %618 = vst [vmem:[#allocation2 + $0x28] sm:$0xff] %v602
  %619 = vst [vmem:[#allocation2 + $0x30] sm:$0xff] %v603
  %620 = vst [vmem:[#allocation2 + $0x38] sm:$0xff] %v604
  %621 = vst [vmem:[#allocation2 + $0x40] sm:$0xff] %v605
  %622 = vst [vmem:[#allocation2 + $0x48] sm:$0xff] %v606
  %623 = vst [vmem:[#allocation2 + $0x50] sm:$0xff] %v607
  %624 = vst [vmem:[#allocation2 + $0x58] sm:$0xff] %v608
  %625 = vst [vmem:[#allocation2 + $0x60] sm:$0xff] %v609
  %626 = vst [vmem:[#allocation2 + $0x68] sm:$0xff] %v610
  %627 = vst [vmem:[#allocation2 + $0x70] sm:$0xff] %v611
  %628 = vst [vmem:[#allocation2 + $0x78] sm:$0xff] %v612
  // Predicated region
  $region18: #{fast_conformer_encoder.33} parent=0 // pred_check
    %p629 = pneg %p47
  $region19: #{fast_conformer_encoder.33} parent=0 // pred_check_branch
    %631 = sbr.rel (%p629) target = $region21
  $region20: #{fast_conformer_encoder.33} parent=0 // pred_region
    %v632 = vld [vmem:[#allocation2] sm:$0xff]
    %v633 = vld [vmem:[#allocation2 + $0x8] sm:$0xff]
    %v634 = vld [vmem:[#allocation2 + $0x10] sm:$0xff]
    %v635 = vld [vmem:[#allocation2 + $0x18] sm:$0xff]
    %v636 = vld [vmem:[#allocation2 + $0x20] sm:$0xff]
    %v637 = vld [vmem:[#allocation2 + $0x28] sm:$0xff]
    %v638 = vld [vmem:[#allocation2 + $0x30] sm:$0xff]
    %v639 = vld [vmem:[#allocation2 + $0x38] sm:$0xff]
    %v640 = vld [vmem:[#allocation2 + $0x40] sm:$0xff]
    %v641 = vld [vmem:[#allocation2 + $0x48] sm:$0xff]
    %v642 = vld [vmem:[#allocation2 + $0x50] sm:$0xff]
    %v643 = vld [vmem:[#allocation2 + $0x58] sm:$0xff]
    %v644 = vld [vmem:[#allocation2 + $0x60] sm:$0xff]
    %v645 = vld [vmem:[#allocation2 + $0x68] sm:$0xff]
    %v646 = vld [vmem:[#allocation2 + $0x70] sm:$0xff]
    %v647 = vld [vmem:[#allocation2 + $0x78] sm:$0xff]
    %v648 = vld [vmem:[%s2] sm:$0x1]
    %v650 = vlaneseq
    %v651 = vshrl.u32 %v650, 7
    %v652 = vsub.s32 0, %v651
    %v653 = vrot.slane %v648, %v652
    %v655 = vadd.f32 %v632, %v653
    %v656 = vadd.f32 %v633, %v653
    %v657 = vadd.f32 %v634, %v653
    %v658 = vadd.f32 %v635, %v653
    %v659 = vadd.f32 %v636, %v653
    %v660 = vadd.f32 %v637, %v653
    %v661 = vadd.f32 %v638, %v653
    %v662 = vadd.f32 %v639, %v653
    %v663 = vadd.f32 %v640, %v653
    %v664 = vadd.f32 %v641, %v653
    %v665 = vadd.f32 %v642, %v653
    %v666 = vadd.f32 %v643, %v653
    %v667 = vadd.f32 %v644, %v653
    %v668 = vadd.f32 %v645, %v653
    %v669 = vadd.f32 %v646, %v653
    %v670 = vadd.f32 %v647, %v653
    %v671 = vmax.f32 %v655, 0.0
    %v672 = vmax.f32 %v656, 0.0
    %v673 = vmax.f32 %v657, 0.0
    %v674 = vmax.f32 %v658, 0.0
    %v675 = vmax.f32 %v659, 0.0
    %v676 = vmax.f32 %v660, 0.0
    %v677 = vmax.f32 %v661, 0.0
    %v678 = vmax.f32 %v662, 0.0
    %v679 = vmax.f32 %v663, 0.0
    %v680 = vmax.f32 %v664, 0.0
    %v681 = vmax.f32 %v665, 0.0
    %v682 = vmax.f32 %v666, 0.0
    %v683 = vmax.f32 %v667, 0.0
    %v684 = vmax.f32 %v668, 0.0
    %v685 = vmax.f32 %v669, 0.0
    %v686 = vmax.f32 %v670, 0.0
    %v687 = vpack.c.bf16 %v672, %v671
    %v688 = vpack.c.bf16 %v674, %v673
    %v689 = vpack.c.bf16 %v676, %v675
    %v690 = vpack.c.bf16 %v678, %v677
    %v691 = vpack.c.bf16 %v680, %v679
    %v692 = vpack.c.bf16 %v682, %v681
    %v693 = vpack.c.bf16 %v684, %v683
    %v694 = vpack.c.bf16 %v686, %v685
    %v703 = vunpack.c.l.b16 %v687
    %v704 = vunpack.c.h.b16 %v687
    %v705 = vunpack.c.l.b16 %v688
    %v706 = vunpack.c.h.b16 %v688
    %v707 = vunpack.c.l.b16 %v689
    %v708 = vunpack.c.h.b16 %v689
    %v709 = vunpack.c.l.b16 %v690
    %v710 = vunpack.c.h.b16 %v690
    %v711 = vunpack.c.l.b16 %v691
    %v712 = vunpack.c.h.b16 %v691
    %v713 = vunpack.c.l.b16 %v692
    %v714 = vunpack.c.h.b16 %v692
    %v715 = vunpack.c.l.b16 %v693
    %v716 = vunpack.c.h.b16 %v693
    %v717 = vunpack.c.l.b16 %v694
    %v718 = vunpack.c.h.b16 %v694
    %v719 = vpack.c.b16 %v703, %v703
    %v720 = vpack.c.b16 %v704, %v704
    %v721 = vpack.c.b16 %v705, %v705
    %v722 = vpack.c.b16 %v706, %v706
    %v723 = vpack.c.b16 %v707, %v707
    %v724 = vpack.c.b16 %v708, %v708
    %v725 = vpack.c.b16 %v709, %v709
    %v726 = vpack.c.b16 %v710, %v710
    %v727 = vpack.c.b16 %v711, %v711
    %v728 = vpack.c.b16 %v712, %v712
    %v729 = vpack.c.b16 %v713, %v713
    %v730 = vpack.c.b16 %v714, %v714
    %v731 = vpack.c.b16 %v715, %v715
    %v732 = vpack.c.b16 %v716, %v716
    %v733 = vpack.c.b16 %v717, %v717
    %v734 = vpack.c.b16 %v718, %v718
    %751 = vst [vmem:[%s3] sm:$0xf] %v719
    %752 = vst [vmem:[%s3 + $0x4] sm:$0xf] %v720
    %753 = vst [vmem:[%s3 + $0x8] sm:$0xf] %v721
    %754 = vst [vmem:[%s3 + $0xc] sm:$0xf] %v722
    %755 = vst [vmem:[%s3 + $0x10] sm:$0xf] %v723
    %756 = vst [vmem:[%s3 + $0x14] sm:$0xf] %v724
    %757 = vst [vmem:[%s3 + $0x18] sm:$0xf] %v725
    %758 = vst [vmem:[%s3 + $0x1c] sm:$0xf] %v726
    %759 = vst [vmem:[%s3 + $0x20] sm:$0xf] %v727
    %760 = vst [vmem:[%s3 + $0x24] sm:$0xf] %v728
    %761 = vst [vmem:[%s3 + $0x28] sm:$0xf] %v729
    %762 = vst [vmem:[%s3 + $0x2c] sm:$0xf] %v730
    %763 = vst [vmem:[%s3 + $0x30] sm:$0xf] %v731
    %764 = vst [vmem:[%s3 + $0x34] sm:$0xf] %v732
    %765 = vst [vmem:[%s3 + $0x38] sm:$0xf] %v733
    %766 = vst [vmem:[%s3 + $0x3c] sm:$0xf] %v734
  $region21: #{fast_conformer_encoder.33} parent=0 // pred_fallthru
    _
  // Predicated region
  $region22: #{fast_conformer_encoder.33} parent=0 // pred_check
    _
  $region23: #{fast_conformer_encoder.33} parent=0 // pred_check_branch
    %768 = sbr.rel (0) target = $region25
  $region24: #{fast_conformer_encoder.33} parent=0 // pred_region
    _
  $region25: #{fast_conformer_encoder.33} parent=0 // pred_fallthru
    _
  // Predicated region
  $region26: #{fast_conformer_encoder.33} parent=0 // pred_check
    _
  $region27: #{fast_conformer_encoder.33} parent=0 // pred_check_branch
    %770 = sbr.rel (0) target = $region29
  $region28: #{fast_conformer_encoder.33} parent=0 // pred_region
    _
  $region29: #{fast_conformer_encoder.33} parent=0 // pred_fallthru
    _

// kernel: fast_conformer_encoder.32
$region0: #{fast_conformer_encoder.32}
  #allocation0 [shape = 'u32[]', space=smem, size = 0x4, offset = 0x4, fixed_abs, tag = 'smem constant byte address 0x4 - core index']
  #allocation1 [shape = 'u32[144,128]{1,0:T(1,128)}', space=vmem, size = 0x12000, scoped, tag = 'internal scratch']
  #allocation2 [shape = 'f32[512,128]{1,0:T(8,128)}', space=vmem, size = 0x40000, scoped, tag = 'scratch operand']
  %s0 = inlined_call_operand.vmem [shape: bf16[512,128], index: 0, kind: input, shape index: {}]
  %s1 = inlined_call_operand.vmem [shape: bf16[128,128], index: 1, kind: input, shape index: {}]
  %s2 = inlined_call_operand.vmem [shape: f32[1,128], index: 2, kind: input, shape index: {}]
  %s3 = inlined_call_operand.vmem [shape: bf16[512,128], index: 3, kind: output, shape index: {}]
  %s4 = sld [smem:[#allocation0]]
  $region30: #{fast_conformer_encoder.32} parent=0
    _
  %s6 = ssub.s32 1, %s4
  %s7 = scalar_select 0, %s6, %s4
  // Predicated region
  $region2: #{fast_conformer_encoder.32} parent=0 // pred_check
    _
  $region3: #{fast_conformer_encoder.32} parent=0 // pred_check_branch
    %9 = sbr.rel (0) target = $region5
  $region4: #{fast_conformer_encoder.32} parent=0 // pred_region
    _
  $region5: #{fast_conformer_encoder.32} parent=0 // pred_fallthru
    _
  // Predicated region
  $region6: #{fast_conformer_encoder.32} parent=0 // pred_check
    _
  $region7: #{fast_conformer_encoder.32} parent=0 // pred_check_branch
    %11 = sbr.rel (0) target = $region9
  $region8: #{fast_conformer_encoder.32} parent=0 // pred_region
    _
  $region9: #{fast_conformer_encoder.32} parent=0 // pred_fallthru
    _
  // Predicated region
  $region10: #{fast_conformer_encoder.32} parent=0 // pred_check
    _
  $region11: #{fast_conformer_encoder.32} parent=0 // pred_check_branch
    %13 = sbr.rel (0) target = $region13
  $region12: #{fast_conformer_encoder.32} parent=0 // pred_region
    _
  $region13: #{fast_conformer_encoder.32} parent=0 // pred_fallthru
    _
  %v15 = vld [vmem:[%s0] sm:$0xf]
  %v16 = vld [vmem:[%s0 + $0x4] sm:$0xf]
  %v17 = vld [vmem:[%s0 + $0x8] sm:$0xf]
  %v18 = vld [vmem:[%s0 + $0xc] sm:$0xf]
  %v19 = vld [vmem:[%s0 + $0x10] sm:$0xf]
  %v20 = vld [vmem:[%s0 + $0x14] sm:$0xf]
  %v21 = vld [vmem:[%s0 + $0x18] sm:$0xf]
  %v22 = vld [vmem:[%s0 + $0x1c] sm:$0xf]
  %v23 = vld [vmem:[%s0 + $0x20] sm:$0xf]
  %v24 = vld [vmem:[%s0 + $0x24] sm:$0xf]
  %v25 = vld [vmem:[%s0 + $0x28] sm:$0xf]
  %v26 = vld [vmem:[%s0 + $0x2c] sm:$0xf]
  %v27 = vld [vmem:[%s0 + $0x30] sm:$0xf]
  %v28 = vld [vmem:[%s0 + $0x34] sm:$0xf]
  %v29 = vld [vmem:[%s0 + $0x38] sm:$0xf]
  %v30 = vld [vmem:[%s0 + $0x3c] sm:$0xf]
  %v31 = vld [vmem:[%s0 + $0x40] sm:$0xf]
  %v32 = vld [vmem:[%s0 + $0x44] sm:$0xf]
  %v33 = vld [vmem:[%s0 + $0x48] sm:$0xf]
  %v34 = vld [vmem:[%s0 + $0x4c] sm:$0xf]
  %v35 = vld [vmem:[%s0 + $0x50] sm:$0xf]
  %v36 = vld [vmem:[%s0 + $0x54] sm:$0xf]
  %v37 = vld [vmem:[%s0 + $0x58] sm:$0xf]
  %v38 = vld [vmem:[%s0 + $0x5c] sm:$0xf]
  %v39 = vld [vmem:[%s0 + $0x60] sm:$0xf]
  %v40 = vld [vmem:[%s0 + $0x64] sm:$0xf]
  %v41 = vld [vmem:[%s0 + $0x68] sm:$0xf]
  %v42 = vld [vmem:[%s0 + $0x6c] sm:$0xf]
  %v43 = vld [vmem:[%s0 + $0x70] sm:$0xf]
  %v44 = vld [vmem:[%s0 + $0x74] sm:$0xf]
  %v45 = vld [vmem:[%s0 + $0x78] sm:$0xf]
  %v46 = vld [vmem:[%s0 + $0x7c] sm:$0xf]
  %v47 = vld [vmem:[%s0 + $0x80] sm:$0xf]
  %v48 = vld [vmem:[%s0 + $0x84] sm:$0xf]
  %v49 = vld [vmem:[%s0 + $0x88] sm:$0xf]
  %v50 = vld [vmem:[%s0 + $0x8c] sm:$0xf]
  %v51 = vld [vmem:[%s0 + $0x90] sm:$0xf]
  %v52 = vld [vmem:[%s0 + $0x94] sm:$0xf]
  %v53 = vld [vmem:[%s0 + $0x98] sm:$0xf]
  %v54 = vld [vmem:[%s0 + $0x9c] sm:$0xf]
  %v55 = vld [vmem:[%s0 + $0xa0] sm:$0xf]
  %v56 = vld [vmem:[%s0 + $0xa4] sm:$0xf]
  %v57 = vld [vmem:[%s0 + $0xa8] sm:$0xf]
  %v58 = vld [vmem:[%s0 + $0xac] sm:$0xf]
  %v59 = vld [vmem:[%s0 + $0xb0] sm:$0xf]
  %v60 = vld [vmem:[%s0 + $0xb4] sm:$0xf]
  %v61 = vld [vmem:[%s0 + $0xb8] sm:$0xf]
  %v62 = vld [vmem:[%s0 + $0xbc] sm:$0xf]
  %v63 = vld [vmem:[%s0 + $0xc0] sm:$0xf]
  %v64 = vld [vmem:[%s0 + $0xc4] sm:$0xf]
  %v65 = vld [vmem:[%s0 + $0xc8] sm:$0xf]
  %v66 = vld [vmem:[%s0 + $0xcc] sm:$0xf]
  %v67 = vld [vmem:[%s0 + $0xd0] sm:$0xf]
  %v68 = vld [vmem:[%s0 + $0xd4] sm:$0xf]
  %v69 = vld [vmem:[%s0 + $0xd8] sm:$0xf]
  %v70 = vld [vmem:[%s0 + $0xdc] sm:$0xf]
  %v71 = vld [vmem:[%s0 + $0xe0] sm:$0xf]
  %v72 = vld [vmem:[%s0 + $0xe4] sm:$0xf]
  %v73 = vld [vmem:[%s0 + $0xe8] sm:$0xf]
  %v74 = vld [vmem:[%s0 + $0xec] sm:$0xf]
  %v75 = vld [vmem:[%s0 + $0xf0] sm:$0xf]
  %v76 = vld [vmem:[%s0 + $0xf4] sm:$0xf]
  %v77 = vld [vmem:[%s0 + $0xf8] sm:$0xf]
  %v78 = vld [vmem:[%s0 + $0xfc] sm:$0xf]
  %p79 = scmp.eq.s32.totalorder 0, 0
  // Predicated region
  $region14: #{fast_conformer_encoder.32} parent=0 // pred_check
    %p80 = pneg %p79
  $region15: #{fast_conformer_encoder.32} parent=0 // pred_check_branch
    %82 = sbr.rel (%p80) target = $region17
  $region16: #{fast_conformer_encoder.32} parent=0 // pred_region
    %83 = vst [vmem:[#allocation2] sm:$0xff] 0.0
    %84 = vst [vmem:[#allocation2 + $0x8] sm:$0xff] 0.0
    %85 = vst [vmem:[#allocation2 + $0x10] sm:$0xff] 0.0
    %86 = vst [vmem:[#allocation2 + $0x18] sm:$0xff] 0.0
    %87 = vst [vmem:[#allocation2 + $0x20] sm:$0xff] 0.0
    %88 = vst [vmem:[#allocation2 + $0x28] sm:$0xff] 0.0
    %89 = vst [vmem:[#allocation2 + $0x30] sm:$0xff] 0.0
    %90 = vst [vmem:[#allocation2 + $0x38] sm:$0xff] 0.0
    %91 = vst [vmem:[#allocation2 + $0x40] sm:$0xff] 0.0
    %92 = vst [vmem:[#allocation2 + $0x48] sm:$0xff] 0.0
    %93 = vst [vmem:[#allocation2 + $0x50] sm:$0xff] 0.0
    %94 = vst [vmem:[#allocation2 + $0x58] sm:$0xff] 0.0
    %95 = vst [vmem:[#allocation2 + $0x60] sm:$0xff] 0.0
    %96 = vst [vmem:[#allocation2 + $0x68] sm:$0xff] 0.0
    %97 = vst [vmem:[#allocation2 + $0x70] sm:$0xff] 0.0
    %98 = vst [vmem:[#allocation2 + $0x78] sm:$0xff] 0.0
    %99 = vst [vmem:[#allocation2 + $0x80] sm:$0xff] 0.0
    %100 = vst [vmem:[#allocation2 + $0x88] sm:$0xff] 0.0
    %101 = vst [vmem:[#allocation2 + $0x90] sm:$0xff] 0.0
    %102 = vst [vmem:[#allocation2 + $0x98] sm:$0xff] 0.0
    %103 = vst [vmem:[#allocation2 + $0xa0] sm:$0xff] 0.0
    %104 = vst [vmem:[#allocation2 + $0xa8] sm:$0xff] 0.0
    %105 = vst [vmem:[#allocation2 + $0xb0] sm:$0xff] 0.0
    %106 = vst [vmem:[#allocation2 + $0xb8] sm:$0xff] 0.0
    %107 = vst [vmem:[#allocation2 + $0xc0] sm:$0xff] 0.0
    %108 = vst [vmem:[#allocation2 + $0xc8] sm:$0xff] 0.0
    %109 = vst [vmem:[#allocation2 + $0xd0] sm:$0xff] 0.0
    %110 = vst [vmem:[#allocation2 + $0xd8] sm:$0xff] 0.0
    %111 = vst [vmem:[#allocation2 + $0xe0] sm:$0xff] 0.0
    %112 = vst [vmem:[#allocation2 + $0xe8] sm:$0xff] 0.0
    %113 = vst [vmem:[#allocation2 + $0xf0] sm:$0xff] 0.0
    %114 = vst [vmem:[#allocation2 + $0xf8] sm:$0xff] 0.0
    %115 = vst [vmem:[#allocation2 + $0x100] sm:$0xff] 0.0
    %116 = vst [vmem:[#allocation2 + $0x108] sm:$0xff] 0.0
    %117 = vst [vmem:[#allocation2 + $0x110] sm:$0xff] 0.0
    %118 = vst [vmem:[#allocation2 + $0x118] sm:$0xff] 0.0
    %119 = vst [vmem:[#allocation2 + $0x120] sm:$0xff] 0.0
    %120 = vst [vmem:[#allocation2 + $0x128] sm:$0xff] 0.0
    %121 = vst [vmem:[#allocation2 + $0x130] sm:$0xff] 0.0
    %122 = vst [vmem:[#allocation2 + $0x138] sm:$0xff] 0.0
    %123 = vst [vmem:[#allocation2 + $0x140] sm:$0xff] 0.0
    %124 = vst [vmem:[#allocation2 + $0x148] sm:$0xff] 0.0
    %125 = vst [vmem:[#allocation2 + $0x150] sm:$0xff] 0.0
    %126 = vst [vmem:[#allocation2 + $0x158] sm:$0xff] 0.0
    %127 = vst [vmem:[#allocation2 + $0x160] sm:$0xff] 0.0
    %128 = vst [vmem:[#allocation2 + $0x168] sm:$0xff] 0.0
    %129 = vst [vmem:[#allocation2 + $0x170] sm:$0xff] 0.0
    %130 = vst [vmem:[#allocation2 + $0x178] sm:$0xff] 0.0
    %131 = vst [vmem:[#allocation2 + $0x180] sm:$0xff] 0.0
    %132 = vst [vmem:[#allocation2 + $0x188] sm:$0xff] 0.0
    %133 = vst [vmem:[#allocation2 + $0x190] sm:$0xff] 0.0
    %134 = vst [vmem:[#allocation2 + $0x198] sm:$0xff] 0.0
    %135 = vst [vmem:[#allocation2 + $0x1a0] sm:$0xff] 0.0
    %136 = vst [vmem:[#allocation2 + $0x1a8] sm:$0xff] 0.0
    %137 = vst [vmem:[#allocation2 + $0x1b0] sm:$0xff] 0.0
    %138 = vst [vmem:[#allocation2 + $0x1b8] sm:$0xff] 0.0
    %139 = vst [vmem:[#allocation2 + $0x1c0] sm:$0xff] 0.0
    %140 = vst [vmem:[#allocation2 + $0x1c8] sm:$0xff] 0.0
    %141 = vst [vmem:[#allocation2 + $0x1d0] sm:$0xff] 0.0
    %142 = vst [vmem:[#allocation2 + $0x1d8] sm:$0xff] 0.0
    %143 = vst [vmem:[#allocation2 + $0x1e0] sm:$0xff] 0.0
    %144 = vst [vmem:[#allocation2 + $0x1e8] sm:$0xff] 0.0
    %145 = vst [vmem:[#allocation2 + $0x1f0] sm:$0xff] 0.0
    %146 = vst [vmem:[#allocation2 + $0x1f8] sm:$0xff] 0.0
  $region17: #{fast_conformer_encoder.32} parent=0 // pred_fallthru
    _
  %v147 = vld [vmem:[#allocation2] sm:$0xff]
  %v148 = vld [vmem:[#allocation2 + $0x8] sm:$0xff]
  %v149 = vld [vmem:[#allocation2 + $0x10] sm:$0xff]
  %v150 = vld [vmem:[#allocation2 + $0x18] sm:$0xff]
  %v151 = vld [vmem:[#allocation2 + $0x20] sm:$0xff]
  %v152 = vld [vmem:[#allocation2 + $0x28] sm:$0xff]
  %v153 = vld [vmem:[#allocation2 + $0x30] sm:$0xff]
  %v154 = vld [vmem:[#allocation2 + $0x38] sm:$0xff]
  %v155 = vld [vmem:[#allocation2 + $0x40] sm:$0xff]
  %v156 = vld [vmem:[#allocation2 + $0x48] sm:$0xff]
  %v157 = vld [vmem:[#allocation2 + $0x50] sm:$0xff]
  %v158 = vld [vmem:[#allocation2 + $0x58] sm:$0xff]
  %v159 = vld [vmem:[#allocation2 + $0x60] sm:$0xff]
  %v160 = vld [vmem:[#allocation2 + $0x68] sm:$0xff]
  %v161 = vld [vmem:[#allocation2 + $0x70] sm:$0xff]
  %v162 = vld [vmem:[#allocation2 + $0x78] sm:$0xff]
  %v163 = vld [vmem:[#allocation2 + $0x80] sm:$0xff]
  %v164 = vld [vmem:[#allocation2 + $0x88] sm:$0xff]
  %v165 = vld [vmem:[#allocation2 + $0x90] sm:$0xff]
  %v166 = vld [vmem:[#allocation2 + $0x98] sm:$0xff]
  %v167 = vld [vmem:[#allocation2 + $0xa0] sm:$0xff]
  %v168 = vld [vmem:[#allocation2 + $0xa8] sm:$0xff]
  %v169 = vld [vmem:[#allocation2 + $0xb0] sm:$0xff]
  %v170 = vld [vmem:[#allocation2 + $0xb8] sm:$0xff]
  %v171 = vld [vmem:[#allocation2 + $0xc0] sm:$0xff]
  %v172 = vld [vmem:[#allocation2 + $0xc8] sm:$0xff]
  %v173 = vld [vmem:[#allocation2 + $0xd0] sm:$0xff]
  %v174 = vld [vmem:[#allocation2 + $0xd8] sm:$0xff]
  %v175 = vld [vmem:[#allocation2 + $0xe0] sm:$0xff]
  %v176 = vld [vmem:[#allocation2 + $0xe8] sm:$0xff]
  %v177 = vld [vmem:[#allocation2 + $0xf0] sm:$0xff]
  %v178 = vld [vmem:[#allocation2 + $0xf8] sm:$0xff]
  %v179 = vld [vmem:[#allocation2 + $0x100] sm:$0xff]
  %v180 = vld [vmem:[#allocation2 + $0x108] sm:$0xff]
  %v181 = vld [vmem:[#allocation2 + $0x110] sm:$0xff]
  %v182 = vld [vmem:[#allocation2 + $0x118] sm:$0xff]
  %v183 = vld [vmem:[#allocation2 + $0x120] sm:$0xff]
  %v184 = vld [vmem:[#allocation2 + $0x128] sm:$0xff]
  %v185 = vld [vmem:[#allocation2 + $0x130] sm:$0xff]
  %v186 = vld [vmem:[#allocation2 + $0x138] sm:$0xff]
  %v187 = vld [vmem:[#allocation2 + $0x140] sm:$0xff]
  %v188 = vld [vmem:[#allocation2 + $0x148] sm:$0xff]
  %v189 = vld [vmem:[#allocation2 + $0x150] sm:$0xff]
  %v190 = vld [vmem:[#allocation2 + $0x158] sm:$0xff]
  %v191 = vld [vmem:[#allocation2 + $0x160] sm:$0xff]
  %v192 = vld [vmem:[#allocation2 + $0x168] sm:$0xff]
  %v193 = vld [vmem:[#allocation2 + $0x170] sm:$0xff]
  %v194 = vld [vmem:[#allocation2 + $0x178] sm:$0xff]
  %v195 = vld [vmem:[#allocation2 + $0x180] sm:$0xff]
  %v196 = vld [vmem:[#allocation2 + $0x188] sm:$0xff]
  %v197 = vld [vmem:[#allocation2 + $0x190] sm:$0xff]
  %v198 = vld [vmem:[#allocation2 + $0x198] sm:$0xff]
  %v199 = vld [vmem:[#allocation2 + $0x1a0] sm:$0xff]
  %v200 = vld [vmem:[#allocation2 + $0x1a8] sm:$0xff]
  %v201 = vld [vmem:[#allocation2 + $0x1b0] sm:$0xff]
  %v202 = vld [vmem:[#allocation2 + $0x1b8] sm:$0xff]
  %v203 = vld [vmem:[#allocation2 + $0x1c0] sm:$0xff]
  %v204 = vld [vmem:[#allocation2 + $0x1c8] sm:$0xff]
  %v205 = vld [vmem:[#allocation2 + $0x1d0] sm:$0xff]
  %v206 = vld [vmem:[#allocation2 + $0x1d8] sm:$0xff]
  %v207 = vld [vmem:[#allocation2 + $0x1e0] sm:$0xff]
  %v208 = vld [vmem:[#allocation2 + $0x1e8] sm:$0xff]
  %v209 = vld [vmem:[#allocation2 + $0x1f0] sm:$0xff]
  %v210 = vld [vmem:[#allocation2 + $0x1f8] sm:$0xff]
  %v211 = vld [vmem:[%s1] sm:$0xf]
  %v212 = vld [vmem:[%s1 + $0x4] sm:$0xf]
  %v213 = vld [vmem:[%s1 + $0x8] sm:$0xf]
  %v214 = vld [vmem:[%s1 + $0xc] sm:$0xf]
  %v215 = vld [vmem:[%s1 + $0x10] sm:$0xf]
  %v216 = vld [vmem:[%s1 + $0x14] sm:$0xf]
  %v217 = vld [vmem:[%s1 + $0x18] sm:$0xf]
  %v218 = vld [vmem:[%s1 + $0x1c] sm:$0xf]
  %v219 = vld [vmem:[%s1 + $0x20] sm:$0xf]
  %v220 = vld [vmem:[%s1 + $0x24] sm:$0xf]
  %v221 = vld [vmem:[%s1 + $0x28] sm:$0xf]
  %v222 = vld [vmem:[%s1 + $0x2c] sm:$0xf]
  %v223 = vld [vmem:[%s1 + $0x30] sm:$0xf]
  %v224 = vld [vmem:[%s1 + $0x34] sm:$0xf]
  %v225 = vld [vmem:[%s1 + $0x38] sm:$0xf]
  %v226 = vld [vmem:[%s1 + $0x3c] sm:$0xf]
  %v291 = vunpack.c.l.b16 %v15
  %v292 = vunpack.c.l.b16 %v16
  %v293 = vunpack.c.l.b16 %v17
  %v294 = vunpack.c.l.b16 %v18
  %v295 = vunpack.c.l.b16 %v19
  %v296 = vunpack.c.l.b16 %v20
  %v297 = vunpack.c.l.b16 %v21
  %v298 = vunpack.c.l.b16 %v22
  %v299 = vunpack.c.l.b16 %v23
  %v300 = vunpack.c.l.b16 %v24
  %v301 = vunpack.c.l.b16 %v25
  %v302 = vunpack.c.l.b16 %v26
  %v303 = vunpack.c.l.b16 %v27
  %v304 = vunpack.c.l.b16 %v28
  %v305 = vunpack.c.l.b16 %v29
  %v306 = vunpack.c.l.b16 %v30
  %v307 = vunpack.c.l.b16 %v31
  %v308 = vunpack.c.l.b16 %v32
  %v309 = vunpack.c.l.b16 %v33
  %v310 = vunpack.c.l.b16 %v34
  %v311 = vunpack.c.l.b16 %v35
  %v312 = vunpack.c.l.b16 %v36
  %v313 = vunpack.c.l.b16 %v37
  %v314 = vunpack.c.l.b16 %v38
  %v315 = vunpack.c.l.b16 %v39
  %v316 = vunpack.c.l.b16 %v40
  %v317 = vunpack.c.l.b16 %v41
  %v318 = vunpack.c.l.b16 %v42
  %v319 = vunpack.c.l.b16 %v43
  %v320 = vunpack.c.l.b16 %v44
  %v321 = vunpack.c.l.b16 %v45
  %v322 = vunpack.c.l.b16 %v46
  %v323 = vunpack.c.l.b16 %v47
  %v324 = vunpack.c.l.b16 %v48
  %v325 = vunpack.c.l.b16 %v49
  %v326 = vunpack.c.l.b16 %v50
  %v327 = vunpack.c.l.b16 %v51
  %v328 = vunpack.c.l.b16 %v52
  %v329 = vunpack.c.l.b16 %v53
  %v330 = vunpack.c.l.b16 %v54
  %v331 = vunpack.c.l.b16 %v55
  %v332 = vunpack.c.l.b16 %v56
  %v333 = vunpack.c.l.b16 %v57
  %v334 = vunpack.c.l.b16 %v58
  %v335 = vunpack.c.l.b16 %v59
  %v336 = vunpack.c.l.b16 %v60
  %v337 = vunpack.c.l.b16 %v61
  %v338 = vunpack.c.l.b16 %v62
  %v339 = vunpack.c.l.b16 %v63
  %v340 = vunpack.c.l.b16 %v64
  %v341 = vunpack.c.l.b16 %v65
  %v342 = vunpack.c.l.b16 %v66
  %v343 = vunpack.c.l.b16 %v67
  %v344 = vunpack.c.l.b16 %v68
  %v345 = vunpack.c.l.b16 %v69
  %v346 = vunpack.c.l.b16 %v70
  %v347 = vunpack.c.l.b16 %v71
  %v348 = vunpack.c.l.b16 %v72
  %v349 = vunpack.c.l.b16 %v73
  %v350 = vunpack.c.l.b16 %v74
  %v351 = vunpack.c.l.b16 %v75
  %v352 = vunpack.c.l.b16 %v76
  %v353 = vunpack.c.l.b16 %v77
  %v354 = vunpack.c.l.b16 %v78
  %v355 = vpack.c.b16 %v292, %v291
  %v356 = vpack.c.b16 %v294, %v293
  %v357 = vpack.c.b16 %v296, %v295
  %v358 = vpack.c.b16 %v298, %v297
  %v359 = vpack.c.b16 %v300, %v299
  %v360 = vpack.c.b16 %v302, %v301
  %v361 = vpack.c.b16 %v304, %v303
  %v362 = vpack.c.b16 %v306, %v305
  %v363 = vpack.c.b16 %v308, %v307
  %v364 = vpack.c.b16 %v310, %v309
  %v365 = vpack.c.b16 %v312, %v311
  %v366 = vpack.c.b16 %v314, %v313
  %v367 = vpack.c.b16 %v316, %v315
  %v368 = vpack.c.b16 %v318, %v317
  %v369 = vpack.c.b16 %v320, %v319
  %v370 = vpack.c.b16 %v322, %v321
  %v371 = vpack.c.b16 %v324, %v323
  %v372 = vpack.c.b16 %v326, %v325
  %v373 = vpack.c.b16 %v328, %v327
  %v374 = vpack.c.b16 %v330, %v329
  %v375 = vpack.c.b16 %v332, %v331
  %v376 = vpack.c.b16 %v334, %v333
  %v377 = vpack.c.b16 %v336, %v335
  %v378 = vpack.c.b16 %v338, %v337
  %v379 = vpack.c.b16 %v340, %v339
  %v380 = vpack.c.b16 %v342, %v341
  %v381 = vpack.c.b16 %v344, %v343
  %v382 = vpack.c.b16 %v346, %v345
  %v383 = vpack.c.b16 %v348, %v347
  %v384 = vpack.c.b16 %v350, %v349
  %v385 = vpack.c.b16 %v352, %v351
  %v386 = vpack.c.b16 %v354, %v353
  %v435 = vunpack.c.l.b16 %v211
  %v436 = vunpack.c.l.b16 %v212
  %v437 = vunpack.c.l.b16 %v213
  %v438 = vunpack.c.l.b16 %v214
  %v439 = vunpack.c.l.b16 %v215
  %v440 = vunpack.c.l.b16 %v216
  %v441 = vunpack.c.l.b16 %v217
  %v442 = vunpack.c.l.b16 %v218
  %v443 = vunpack.c.l.b16 %v219
  %v444 = vunpack.c.l.b16 %v220
  %v445 = vunpack.c.l.b16 %v221
  %v446 = vunpack.c.l.b16 %v222
  %v447 = vunpack.c.l.b16 %v223
  %v448 = vunpack.c.l.b16 %v224
  %v449 = vunpack.c.l.b16 %v225
  %v450 = vunpack.c.l.b16 %v226
  %v451 = vpack.c.b16 %v436, %v435
  %v452 = vpack.c.b16 %v438, %v437
  %v453 = vpack.c.b16 %v440, %v439
  %v454 = vpack.c.b16 %v442, %v441
  %v455 = vpack.c.b16 %v444, %v443
  %v456 = vpack.c.b16 %v446, %v445
  %v457 = vpack.c.b16 %v448, %v447
  %v458 = vpack.c.b16 %v450, %v449
  %467 = vmatprep.subr.bf16.mxu0 0
  %468 = vmatpush1.bf16.msra.mxu0 %v451
  %469 = vmatprep.subr.bf16.mxu0 0
  %470 = vmatpush1.bf16.msra.mxu0 %v452
  %471 = vmatprep.subr.bf16.mxu0 0
  %472 = vmatpush1.bf16.msra.mxu0 %v453
  %473 = vmatprep.subr.bf16.mxu0 0
  %474 = vmatpush1.bf16.msra.mxu0 %v454
  %475 = vmatprep.subr.bf16.mxu0 0
  %476 = vmatpush1.bf16.msra.mxu0 %v455
  %477 = vmatprep.subr.bf16.mxu0 0
  %478 = vmatpush1.bf16.msra.mxu0 %v456
  %479 = vmatprep.subr.bf16.mxu0 0
  %480 = vmatpush1.bf16.msra.mxu0 %v457
  %481 = vmatprep.subr.bf16.mxu0 0
  %482 = vmatpush1.bf16.msra.mxu0 %v458
  %483 = vmatprep.subr.bf16.mxu0 0
  %484 = vmatpush1.bf16.msra.mxu0 0
  %485 = vmatprep.subr.bf16.mxu0 0
  %486 = vmatpush1.bf16.msra.mxu0 0
  %487 = vmatprep.subr.bf16.mxu0 0
  %488 = vmatpush1.bf16.msra.mxu0 0
  %489 = vmatprep.subr.bf16.mxu0 0
  %490 = vmatpush1.bf16.msra.mxu0 0
  %491 = vmatprep.subr.bf16.mxu0 0
  %492 = vmatpush1.bf16.msra.mxu0 0
  %493 = vmatprep.subr.bf16.mxu0 0
  %494 = vmatpush1.bf16.msra.mxu0 0
  %495 = vmatprep.subr.bf16.mxu0 0
  %496 = vmatpush1.bf16.msra.mxu0 0
  %497 = vmatprep.subr.bf16.mxu0 0
  %498 = vmatpush1.bf16.msra.mxu0 0
  %499 = vmatprep.mubr.bf16.mxu0 0
  %500 = vmatmul.mubr.bf16.gmra.mrb[0].mxu0 %v355
  %v501 = vpop.f32.mrb[0].mxu0
  %v502 = vadd.f32 0.0, %v501
  %v503 = vpop.f32.mrb[0].mxu0
  %v504 = vpop.f32.mrb[0].mxu0
  %v505 = vadd.f32 0.0, %v504
  %v506 = vpop.f32.mrb[0].mxu0
  %507 = vmatprep.mubr.bf16.mxu0 0
  %508 = vmatmul.mubr.bf16.gmra.mrb[0].mxu0 %v356
  %v509 = vpop.f32.mrb[0].mxu0
  %v510 = vadd.f32 0.0, %v509
  %v511 = vpop.f32.mrb[0].mxu0
  %v512 = vpop.f32.mrb[0].mxu0
  %v513 = vadd.f32 0.0, %v512
  %v514 = vpop.f32.mrb[0].mxu0
  %515 = vmatprep.mubr.bf16.mxu0 0
  %516 = vmatmul.mubr.bf16.gmra.mrb[0].mxu0 %v357
  %v517 = vpop.f32.mrb[0].mxu0
  %v518 = vadd.f32 0.0, %v517
  %v519 = vpop.f32.mrb[0].mxu0
  %v520 = vpop.f32.mrb[0].mxu0
  %v521 = vadd.f32 0.0, %v520
  %v522 = vpop.f32.mrb[0].mxu0
  %523 = vmatprep.mubr.bf16.mxu0 0
  %524 = vmatmul.mubr.bf16.gmra.mrb[0].mxu0 %v358
  %v525 = vpop.f32.mrb[0].mxu0
  %v526 = vadd.f32 0.0, %v525
  %v527 = vpop.f32.mrb[0].mxu0
  %v528 = vpop.f32.mrb[0].mxu0
  %v529 = vadd.f32 0.0, %v528
  %v530 = vpop.f32.mrb[0].mxu0
  %531 = vmatprep.mubr.bf16.mxu0 0
  %532 = vmatmul.mubr.bf16.gmra.mrb[0].mxu0 %v359
  %v533 = vpop.f32.mrb[0].mxu0
  %v534 = vadd.f32 0.0, %v533
  %v535 = vpop.f32.mrb[0].mxu0
  %v536 = vpop.f32.mrb[0].mxu0
  %v537 = vadd.f32 0.0, %v536
  %v538 = vpop.f32.mrb[0].mxu0
  %539 = vmatprep.mubr.bf16.mxu0 0
  %540 = vmatmul.mubr.bf16.gmra.mrb[0].mxu0 %v360
  %v541 = vpop.f32.mrb[0].mxu0
  %v542 = vadd.f32 0.0, %v541
  %v543 = vpop.f32.mrb[0].mxu0
  %v544 = vpop.f32.mrb[0].mxu0
  %v545 = vadd.f32 0.0, %v544
  %v546 = vpop.f32.mrb[0].mxu0
  %547 = vmatprep.mubr.bf16.mxu0 0
  %548 = vmatmul.mubr.bf16.gmra.mrb[0].mxu0 %v361
  %v549 = vpop.f32.mrb[0].mxu0
  %v550 = vadd.f32 0.0, %v549
  %v551 = vpop.f32.mrb[0].mxu0
  %v552 = vpop.f32.mrb[0].mxu0
  %v553 = vadd.f32 0.0, %v552
  %v554 = vpop.f32.mrb[0].mxu0
  %555 = vmatprep.mubr.bf16.mxu0 0
  %556 = vmatmul.mubr.bf16.gmra.mrb[0].mxu0 %v362
  %v557 = vpop.f32.mrb[0].mxu0
  %v558 = vadd.f32 0.0, %v557
  %v559 = vpop.f32.mrb[0].mxu0
  %v560 = vpop.f32.mrb[0].mxu0
  %v561 = vadd.f32 0.0, %v560
  %v562 = vpop.f32.mrb[0].mxu0
  %563 = vmatprep.mubr.bf16.mxu0 0
  %564 = vmatmul.mubr.bf16.gmra.mrb[0].mxu0 %v363
  %v565 = vpop.f32.mrb[0].mxu0
  %v566 = vadd.f32 0.0, %v565
  %v567 = vpop.f32.mrb[0].mxu0
  %v568 = vpop.f32.mrb[0].mxu0
  %v569 = vadd.f32 0.0, %v568
  %v570 = vpop.f32.mrb[0].mxu0
  %571 = vmatprep.mubr.bf16.mxu0 0
  %572 = vmatmul.mubr.bf16.gmra.mrb[0].mxu0 %v364
  %v573 = vpop.f32.mrb[0].mxu0
  %v574 = vadd.f32 0.0, %v573
  %v575 = vpop.f32.mrb[0].mxu0
  %v576 = vpop.f32.mrb[0].mxu0
  %v577 = vadd.f32 0.0, %v576
  %v578 = vpop.f32.mrb[0].mxu0
  %579 = vmatprep.mubr.bf16.mxu0 0
  %580 = vmatmul.mubr.bf16.gmra.mrb[0].mxu0 %v365
  %v581 = vpop.f32.mrb[0].mxu0
  %v582 = vadd.f32 0.0, %v581
  %v583 = vpop.f32.mrb[0].mxu0
  %v584 = vpop.f32.mrb[0].mxu0
  %v585 = vadd.f32 0.0, %v584
  %v586 = vpop.f32.mrb[0].mxu0
  %587 = vmatprep.mubr.bf16.mxu0 0
  %588 = vmatmul.mubr.bf16.gmra.mrb[0].mxu0 %v366
  %v589 = vpop.f32.mrb[0].mxu0
  %v590 = vadd.f32 0.0, %v589
  %v591 = vpop.f32.mrb[0].mxu0
  %v592 = vpop.f32.mrb[0].mxu0
  %v593 = vadd.f32 0.0, %v592
  %v594 = vpop.f32.mrb[0].mxu0
  %595 = vmatprep.mubr.bf16.mxu0 0
  %596 = vmatmul.mubr.bf16.gmra.mrb[0].mxu0 %v367
  %v597 = vpop.f32.mrb[0].mxu0
  %v598 = vadd.f32 0.0, %v597
  %v599 = vpop.f32.mrb[0].mxu0
  %v600 = vpop.f32.mrb[0].mxu0
  %v601 = vadd.f32 0.0, %v600
  %v602 = vpop.f32.mrb[0].mxu0
  %603 = vmatprep.mubr.bf16.mxu0 0
  %604 = vmatmul.mubr.bf16.gmra.mrb[0].mxu0 %v368
  %v605 = vpop.f32.mrb[0].mxu0
  %v606 = vadd.f32 0.0, %v605
  %v607 = vpop.f32.mrb[0].mxu0
  %v608 = vpop.f32.mrb[0].mxu0
  %v609 = vadd.f32 0.0, %v608
  %v610 = vpop.f32.mrb[0].mxu0
  %611 = vmatprep.mubr.bf16.mxu0 0
  %612 = vmatmul.mubr.bf16.gmra.mrb[0].mxu0 %v369
  %v613 = vpop.f32.mrb[0].mxu0
  %v614 = vadd.f32 0.0, %v613
  %v615 = vpop.f32.mrb[0].mxu0
  %v616 = vpop.f32.mrb[0].mxu0
  %v617 = vadd.f32 0.0, %v616
  %v618 = vpop.f32.mrb[0].mxu0
  %619 = vmatprep.mubr.bf16.mxu0 0
  %620 = vmatmul.mubr.bf16.gmra.mrb[0].mxu0 %v370
  %v621 = vpop.f32.mrb[0].mxu0
  %v622 = vadd.f32 0.0, %v621
  %v623 = vpop.f32.mrb[0].mxu0
  %v624 = vpop.f32.mrb[0].mxu0
  %v625 = vadd.f32 0.0, %v624
  %v626 = vpop.f32.mrb[0].mxu0
  %627 = vmatprep.mubr.bf16.mxu0 0
  %628 = vmatmul.mubr.bf16.gmra.mrb[0].mxu0 %v371
  %v629 = vpop.f32.mrb[0].mxu0
  %v630 = vadd.f32 0.0, %v629
  %v631 = vpop.f32.mrb[0].mxu0
  %v632 = vpop.f32.mrb[0].mxu0
  %v633 = vadd.f32 0.0, %v632
  %v634 = vpop.f32.mrb[0].mxu0
  %635 = vmatprep.mubr.bf16.mxu0 0
  %636 = vmatmul.mubr.bf16.gmra.mrb[0].mxu0 %v372
  %v637 = vpop.f32.mrb[0].mxu0
  %v638 = vadd.f32 0.0, %v637
  %v639 = vpop.f32.mrb[0].mxu0
  %v640 = vpop.f32.mrb[0].mxu0
  %v641 = vadd.f32 0.0, %v640
  %v642 = vpop.f32.mrb[0].mxu0
  %643 = vmatprep.mubr.bf16.mxu0 0
  %644 = vmatmul.mubr.bf16.gmra.mrb[0].mxu0 %v373
  %v645 = vpop.f32.mrb[0].mxu0
  %v646 = vadd.f32 0.0, %v645
  %v647 = vpop.f32.mrb[0].mxu0
  %v648 = vpop.f32.mrb[0].mxu0
  %v649 = vadd.f32 0.0, %v648
  %v650 = vpop.f32.mrb[0].mxu0
  %651 = vmatprep.mubr.bf16.mxu0 0
  %652 = vmatmul.mubr.bf16.gmra.mrb[0].mxu0 %v374
  %v653 = vpop.f32.mrb[0].mxu0
  %v654 = vadd.f32 0.0, %v653
  %v655 = vpop.f32.mrb[0].mxu0
  %v656 = vpop.f32.mrb[0].mxu0
  %v657 = vadd.f32 0.0, %v656
  %v658 = vpop.f32.mrb[0].mxu0
  %659 = vmatprep.mubr.bf16.mxu0 0
  %660 = vmatmul.mubr.bf16.gmra.mrb[0].mxu0 %v375
  %v661 = vpop.f32.mrb[0].mxu0
  %v662 = vadd.f32 0.0, %v661
  %v663 = vpop.f32.mrb[0].mxu0
  %v664 = vpop.f32.mrb[0].mxu0
  %v665 = vadd.f32 0.0, %v664
  %v666 = vpop.f32.mrb[0].mxu0
  %667 = vmatprep.mubr.bf16.mxu0 0
  %668 = vmatmul.mubr.bf16.gmra.mrb[0].mxu0 %v376
  %v669 = vpop.f32.mrb[0].mxu0
  %v670 = vadd.f32 0.0, %v669
  %v671 = vpop.f32.mrb[0].mxu0
  %v672 = vpop.f32.mrb[0].mxu0
  %v673 = vadd.f32 0.0, %v672
  %v674 = vpop.f32.mrb[0].mxu0
  %675 = vmatprep.mubr.bf16.mxu0 0
  %676 = vmatmul.mubr.bf16.gmra.mrb[0].mxu0 %v377
  %v677 = vpop.f32.mrb[0].mxu0
  %v678 = vadd.f32 0.0, %v677
  %v679 = vpop.f32.mrb[0].mxu0
  %v680 = vpop.f32.mrb[0].mxu0
  %v681 = vadd.f32 0.0, %v680
  %v682 = vpop.f32.mrb[0].mxu0
  %683 = vmatprep.mubr.bf16.mxu0 0
  %684 = vmatmul.mubr.bf16.gmra.mrb[0].mxu0 %v378
  %v685 = vpop.f32.mrb[0].mxu0
  %v686 = vadd.f32 0.0, %v685
  %v687 = vpop.f32.mrb[0].mxu0
  %v688 = vpop.f32.mrb[0].mxu0
  %v689 = vadd.f32 0.0, %v688
  %v690 = vpop.f32.mrb[0].mxu0
  %691 = vmatprep.mubr.bf16.mxu0 0
  %692 = vmatmul.mubr.bf16.gmra.mrb[0].mxu0 %v379
  %v693 = vpop.f32.mrb[0].mxu0
  %v694 = vadd.f32 0.0, %v693
  %v695 = vpop.f32.mrb[0].mxu0
  %v696 = vpop.f32.mrb[0].mxu0
  %v697 = vadd.f32 0.0, %v696
  %v698 = vpop.f32.mrb[0].mxu0
  %699 = vmatprep.mubr.bf16.mxu0 0
  %700 = vmatmul.mubr.bf16.gmra.mrb[0].mxu0 %v380
  %v701 = vpop.f32.mrb[0].mxu0
  %v702 = vadd.f32 0.0, %v701
  %v703 = vpop.f32.mrb[0].mxu0
  %v704 = vpop.f32.mrb[0].mxu0
  %v705 = vadd.f32 0.0, %v704
  %v706 = vpop.f32.mrb[0].mxu0
  %707 = vmatprep.mubr.bf16.mxu0 0
  %708 = vmatmul.mubr.bf16.gmra.mrb[0].mxu0 %v381
  %v709 = vpop.f32.mrb[0].mxu0
  %v710 = vadd.f32 0.0, %v709
  %v711 = vpop.f32.mrb[0].mxu0
  %v712 = vpop.f32.mrb[0].mxu0
  %v713 = vadd.f32 0.0, %v712
  %v714 = vpop.f32.mrb[0].mxu0
  %715 = vmatprep.mubr.bf16.mxu0 0
  %716 = vmatmul.mubr.bf16.gmra.mrb[0].mxu0 %v382
  %v717 = vpop.f32.mrb[0].mxu0
  %v718 = vadd.f32 0.0, %v717
  %v719 = vpop.f32.mrb[0].mxu0
  %v720 = vpop.f32.mrb[0].mxu0
  %v721 = vadd.f32 0.0, %v720
  %v722 = vpop.f32.mrb[0].mxu0
  %723 = vmatprep.mubr.bf16.mxu0 0
  %724 = vmatmul.mubr.bf16.gmra.mrb[0].mxu0 %v383
  %v725 = vpop.f32.mrb[0].mxu0
  %v726 = vadd.f32 0.0, %v725
  %v727 = vpop.f32.mrb[0].mxu0
  %v728 = vpop.f32.mrb[0].mxu0
  %v729 = vadd.f32 0.0, %v728
  %v730 = vpop.f32.mrb[0].mxu0
  %731 = vmatprep.mubr.bf16.mxu0 0
  %732 = vmatmul.mubr.bf16.gmra.mrb[0].mxu0 %v384
  %v733 = vpop.f32.mrb[0].mxu0
  %v734 = vadd.f32 0.0, %v733
  %v735 = vpop.f32.mrb[0].mxu0
  %v736 = vpop.f32.mrb[0].mxu0
  %v737 = vadd.f32 0.0, %v736
  %v738 = vpop.f32.mrb[0].mxu0
  %739 = vmatprep.mubr.bf16.mxu0 0
  %740 = vmatmul.mubr.bf16.gmra.mrb[0].mxu0 %v385
  %v741 = vpop.f32.mrb[0].mxu0
  %v742 = vadd.f32 0.0, %v741
  %v743 = vpop.f32.mrb[0].mxu0
  %v744 = vpop.f32.mrb[0].mxu0
  %v745 = vadd.f32 0.0, %v744
  %v746 = vpop.f32.mrb[0].mxu0
  %747 = vmatprep.mubr.bf16.mxu0 0
  %748 = vmatmul.mubr.bf16.gmra.mrb[0].mxu0 %v386
  %v749 = vpop.f32.mrb[0].mxu0
  %v750 = vadd.f32 0.0, %v749
  %v751 = vpop.f32.mrb[0].mxu0
  %v752 = vpop.f32.mrb[0].mxu0
  %v753 = vadd.f32 0.0, %v752
  %v754 = vpop.f32.mrb[0].mxu0
  %755 = vdwg.mxu0
  %v756 = vadd.f32 %v147, %v502
  %v757 = vadd.f32 %v148, %v505
  %v758 = vadd.f32 %v149, %v510
  %v759 = vadd.f32 %v150, %v513
  %v760 = vadd.f32 %v151, %v518
  %v761 = vadd.f32 %v152, %v521
  %v762 = vadd.f32 %v153, %v526
  %v763 = vadd.f32 %v154, %v529
  %v764 = vadd.f32 %v155, %v534
  %v765 = vadd.f32 %v156, %v537
  %v766 = vadd.f32 %v157, %v542
  %v767 = vadd.f32 %v158, %v545
  %v768 = vadd.f32 %v159, %v550
  %v769 = vadd.f32 %v160, %v553
  %v770 = vadd.f32 %v161, %v558
  %v771 = vadd.f32 %v162, %v561
  %v772 = vadd.f32 %v163, %v566
  %v773 = vadd.f32 %v164, %v569
  %v774 = vadd.f32 %v165, %v574
  %v775 = vadd.f32 %v166, %v577
  %v776 = vadd.f32 %v167, %v582
  %v777 = vadd.f32 %v168, %v585
  %v778 = vadd.f32 %v169, %v590
  %v779 = vadd.f32 %v170, %v593
  %v780 = vadd.f32 %v171, %v598
  %v781 = vadd.f32 %v172, %v601
  %v782 = vadd.f32 %v173, %v606
  %v783 = vadd.f32 %v174, %v609
  %v784 = vadd.f32 %v175, %v614
  %v785 = vadd.f32 %v176, %v617
  %v786 = vadd.f32 %v177, %v622
  %v787 = vadd.f32 %v178, %v625
  %v788 = vadd.f32 %v179, %v630
  %v789 = vadd.f32 %v180, %v633
  %v790 = vadd.f32 %v181, %v638
  %v791 = vadd.f32 %v182, %v641
  %v792 = vadd.f32 %v183, %v646
  %v793 = vadd.f32 %v184, %v649
  %v794 = vadd.f32 %v185, %v654
  %v795 = vadd.f32 %v186, %v657
  %v796 = vadd.f32 %v187, %v662
  %v797 = vadd.f32 %v188, %v665
  %v798 = vadd.f32 %v189, %v670
  %v799 = vadd.f32 %v190, %v673
  %v800 = vadd.f32 %v191, %v678
  %v801 = vadd.f32 %v192, %v681
  %v802 = vadd.f32 %v193, %v686
  %v803 = vadd.f32 %v194, %v689
  %v804 = vadd.f32 %v195, %v694
  %v805 = vadd.f32 %v196, %v697
  %v806 = vadd.f32 %v197, %v702
  %v807 = vadd.f32 %v198, %v705
  %v808 = vadd.f32 %v199, %v710
  %v809 = vadd.f32 %v200, %v713
  %v810 = vadd.f32 %v201, %v718
  %v811 = vadd.f32 %v202, %v721
  %v812 = vadd.f32 %v203, %v726
  %v813 = vadd.f32 %v204, %v729
  %v814 = vadd.f32 %v205, %v734
  %v815 = vadd.f32 %v206, %v737
  %v816 = vadd.f32 %v207, %v742
  %v817 = vadd.f32 %v208, %v745
  %v818 = vadd.f32 %v209, %v750
  %v819 = vadd.f32 %v210, %v753
  %820 = vst [vmem:[#allocation2] sm:$0xff] %v756
  %821 = vst [vmem:[#allocation2 + $0x8] sm:$0xff] %v757
  %822 = vst [vmem:[#allocation2 + $0x10] sm:$0xff] %v758
  %823 = vst [vmem:[#allocation2 + $0x18] sm:$0xff] %v759
  %824 = vst [vmem:[#allocation2 + $0x20] sm:$0xff] %v760
  %825 = vst [vmem:[#allocation2 + $0x28] sm:$0xff] %v761
  %826 = vst [vmem:[#allocation2 + $0x30] sm:$0xff] %v762
  %827 = vst [vmem:[#allocation2 + $0x38] sm:$0xff] %v763
  %828 = vst [vmem:[#allocation2 + $0x40] sm:$0xff] %v764
  %829 = vst [vmem:[#allocation2 + $0x48] sm:$0xff] %v765
  %830 = vst [vmem:[#allocation2 + $0x50] sm:$0xff] %v766
  %831 = vst [vmem:[#allocation2 + $0x58] sm:$0xff] %v767
  %832 = vst [vmem:[#allocation2 + $0x60] sm:$0xff] %v768
  %833 = vst [vmem:[#allocation2 + $0x68] sm:$0xff] %v769
  %834 = vst [vmem:[#allocation2 + $0x70] sm:$0xff] %v770
  %835 = vst [vmem:[#allocation2 + $0x78] sm:$0xff] %v771
  %836 = vst [vmem:[#allocation2 + $0x80] sm:$0xff] %v772
  %837 = vst [vmem:[#allocation2 + $0x88] sm:$0xff] %v773
  %838 = vst [vmem:[#allocation2 + $0x90] sm:$0xff] %v774
  %839 = vst [vmem:[#allocation2 + $0x98] sm:$0xff] %v775
  %840 = vst [vmem:[#allocation2 + $0xa0] sm:$0xff] %v776
  %841 = vst [vmem:[#allocation2 + $0xa8] sm:$0xff] %v777
  %842 = vst [vmem:[#allocation2 + $0xb0] sm:$0xff] %v778
  %843 = vst [vmem:[#allocation2 + $0xb8] sm:$0xff] %v779
  %844 = vst [vmem:[#allocation2 + $0xc0] sm:$0xff] %v780
  %845 = vst [vmem:[#allocation2 + $0xc8] sm:$0xff] %v781
  %846 = vst [vmem:[#allocation2 + $0xd0] sm:$0xff] %v782
  %847 = vst [vmem:[#allocation2 + $0xd8] sm:$0xff] %v783
  %848 = vst [vmem:[#allocation2 + $0xe0] sm:$0xff] %v784
  %849 = vst [vmem:[#allocation2 + $0xe8] sm:$0xff] %v785
  %850 = vst [vmem:[#allocation2 + $0xf0] sm:$0xff] %v786
  %851 = vst [vmem:[#allocation2 + $0xf8] sm:$0xff] %v787
  %852 = vst [vmem:[#allocation2 + $0x100] sm:$0xff] %v788
  %853 = vst [vmem:[#allocation2 + $0x108] sm:$0xff] %v789
  %854 = vst [vmem:[#allocation2 + $0x110] sm:$0xff] %v790
  %855 = vst [vmem:[#allocation2 + $0x118] sm:$0xff] %v791
  %856 = vst [vmem:[#allocation2 + $0x120] sm:$0xff] %v792
  %857 = vst [vmem:[#allocation2 + $0x128] sm:$0xff] %v793
  %858 = vst [vmem:[#allocation2 + $0x130] sm:$0xff] %v794
  %859 = vst [vmem:[#allocation2 + $0x138] sm:$0xff] %v795
  %860 = vst [vmem:[#allocation2 + $0x140] sm:$0xff] %v796
  %861 = vst [vmem:[#allocation2 + $0x148] sm:$0xff] %v797
  %862 = vst [vmem:[#allocation2 + $0x150] sm:$0xff] %v798
  %863 = vst [vmem:[#allocation2 + $0x158] sm:$0xff] %v799
  %864 = vst [vmem:[#allocation2 + $0x160] sm:$0xff] %v800
  %865 = vst [vmem:[#allocation2 + $0x168] sm:$0xff] %v801
  %866 = vst [vmem:[#allocation2 + $0x170] sm:$0xff] %v802
  %867 = vst [vmem:[#allocation2 + $0x178] sm:$0xff] %v803
  %868 = vst [vmem:[#allocation2 + $0x180] sm:$0xff] %v804
  %869 = vst [vmem:[#allocation2 + $0x188] sm:$0xff] %v805
  %870 = vst [vmem:[#allocation2 + $0x190] sm:$0xff] %v806
  %871 = vst [vmem:[#allocation2 + $0x198] sm:$0xff] %v807
  %872 = vst [vmem:[#allocation2 + $0x1a0] sm:$0xff] %v808
  %873 = vst [vmem:[#allocation2 + $0x1a8] sm:$0xff] %v809
  %874 = vst [vmem:[#allocation2 + $0x1b0] sm:$0xff] %v810
  %875 = vst [vmem:[#allocation2 + $0x1b8] sm:$0xff] %v811
  %876 = vst [vmem:[#allocation2 + $0x1c0] sm:$0xff] %v812
  %877 = vst [vmem:[#allocation2 + $0x1c8] sm:$0xff] %v813
  %878 = vst [vmem:[#allocation2 + $0x1d0] sm:$0xff] %v814
  %879 = vst [vmem:[#allocation2 + $0x1d8] sm:$0xff] %v815
  %880 = vst [vmem:[#allocation2 + $0x1e0] sm:$0xff] %v816
  %881 = vst [vmem:[#allocation2 + $0x1e8] sm:$0xff] %v817
  %882 = vst [vmem:[#allocation2 + $0x1f0] sm:$0xff] %v818
  %883 = vst [vmem:[#allocation2 + $0x1f8] sm:$0xff] %v819
  // Predicated region
  $region18: #{fast_conformer_encoder.32} parent=0 // pred_check
    %p884 = pneg %p79
  $region19: #{fast_conformer_encoder.32} parent=0 // pred_check_branch
    %886 = sbr.rel (%p884) target = $region21
  $region20: #{fast_conformer_encoder.32} parent=0 // pred_region
    %v887 = vld [vmem:[#allocation2] sm:$0xff]
    %v888 = vld [vmem:[#allocation2 + $0x8] sm:$0xff]
    %v889 = vld [vmem:[#allocation2 + $0x10] sm:$0xff]
    %v890 = vld [vmem:[#allocation2 + $0x18] sm:$0xff]
    %v891 = vld [vmem:[#allocation2 + $0x20] sm:$0xff]
    %v892 = vld [vmem:[#allocation2 + $0x28] sm:$0xff]
    %v893 = vld [vmem:[#allocation2 + $0x30] sm:$0xff]
    %v894 = vld [vmem:[#allocation2 + $0x38] sm:$0xff]
    %v895 = vld [vmem:[#allocation2 + $0x40] sm:$0xff]
    %v896 = vld [vmem:[#allocation2 + $0x48] sm:$0xff]
    %v897 = vld [vmem:[#allocation2 + $0x50] sm:$0xff]
    %v898 = vld [vmem:[#allocation2 + $0x58] sm:$0xff]
    %v899 = vld [vmem:[#allocation2 + $0x60] sm:$0xff]
    %v900 = vld [vmem:[#allocation2 + $0x68] sm:$0xff]
    %v901 = vld [vmem:[#allocation2 + $0x70] sm:$0xff]
    %v902 = vld [vmem:[#allocation2 + $0x78] sm:$0xff]
    %v903 = vld [vmem:[#allocation2 + $0x80] sm:$0xff]
    %v904 = vld [vmem:[#allocation2 + $0x88] sm:$0xff]
    %v905 = vld [vmem:[#allocation2 + $0x90] sm:$0xff]
    %v906 = vld [vmem:[#allocation2 + $0x98] sm:$0xff]
    %v907 = vld [vmem:[#allocation2 + $0xa0] sm:$0xff]
    %v908 = vld [vmem:[#allocation2 + $0xa8] sm:$0xff]
    %v909 = vld [vmem:[#allocation2 + $0xb0] sm:$0xff]
    %v910 = vld [vmem:[#allocation2 + $0xb8] sm:$0xff]
    %v911 = vld [vmem:[#allocation2 + $0xc0] sm:$0xff]
    %v912 = vld [vmem:[#allocation2 + $0xc8] sm:$0xff]
    %v913 = vld [vmem:[#allocation2 + $0xd0] sm:$0xff]
    %v914 = vld [vmem:[#allocation2 + $0xd8] sm:$0xff]
    %v915 = vld [vmem:[#allocation2 + $0xe0] sm:$0xff]
    %v916 = vld [vmem:[#allocation2 + $0xe8] sm:$0xff]
    %v917 = vld [vmem:[#allocation2 + $0xf0] sm:$0xff]
    %v918 = vld [vmem:[#allocation2 + $0xf8] sm:$0xff]
    %v919 = vld [vmem:[#allocation2 + $0x100] sm:$0xff]
    %v920 = vld [vmem:[#allocation2 + $0x108] sm:$0xff]
    %v921 = vld [vmem:[#allocation2 + $0x110] sm:$0xff]
    %v922 = vld [vmem:[#allocation2 + $0x118] sm:$0xff]
    %v923 = vld [vmem:[#allocation2 + $0x120] sm:$0xff]
    %v924 = vld [vmem:[#allocation2 + $0x128] sm:$0xff]
    %v925 = vld [vmem:[#allocation2 + $0x130] sm:$0xff]
    %v926 = vld [vmem:[#allocation2 + $0x138] sm:$0xff]
    %v927 = vld [vmem:[#allocation2 + $0x140] sm:$0xff]
    %v928 = vld [vmem:[#allocation2 + $0x148] sm:$0xff]
    %v929 = vld [vmem:[#allocation2 + $0x150] sm:$0xff]
    %v930 = vld [vmem:[#allocation2 + $0x158] sm:$0xff]
    %v931 = vld [vmem:[#allocation2 + $0x160] sm:$0xff]
    %v932 = vld [vmem:[#allocation2 + $0x168] sm:$0xff]
    %v933 = vld [vmem:[#allocation2 + $0x170] sm:$0xff]
    %v934 = vld [vmem:[#allocation2 + $0x178] sm:$0xff]
    %v935 = vld [vmem:[#allocation2 + $0x180] sm:$0xff]
    %v936 = vld [vmem:[#allocation2 + $0x188] sm:$0xff]
    %v937 = vld [vmem:[#allocation2 + $0x190] sm:$0xff]
    %v938 = vld [vmem:[#allocation2 + $0x198] sm:$0xff]
    %v939 = vld [vmem:[#allocation2 + $0x1a0] sm:$0xff]
    %v940 = vld [vmem:[#allocation2 + $0x1a8] sm:$0xff]
    %v941 = vld [vmem:[#allocation2 + $0x1b0] sm:$0xff]
    %v942 = vld [vmem:[#allocation2 + $0x1b8] sm:$0xff]
    %v943 = vld [vmem:[#allocation2 + $0x1c0] sm:$0xff]
    %v944 = vld [vmem:[#allocation2 + $0x1c8] sm:$0xff]
    %v945 = vld [vmem:[#allocation2 + $0x1d0] sm:$0xff]
    %v946 = vld [vmem:[#allocation2 + $0x1d8] sm:$0xff]
    %v947 = vld [vmem:[#allocation2 + $0x1e0] sm:$0xff]
    %v948 = vld [vmem:[#allocation2 + $0x1e8] sm:$0xff]
    %v949 = vld [vmem:[#allocation2 + $0x1f0] sm:$0xff]
    %v950 = vld [vmem:[#allocation2 + $0x1f8] sm:$0xff]
    %v951 = vld [vmem:[%s2] sm:$0x1]
    %v953 = vlaneseq
    %v954 = vshrl.u32 %v953, 7
    %v955 = vsub.s32 0, %v954
    %v956 = vrot.slane %v951, %v955
    %v958 = vadd.f32 %v887, %v956
    %v959 = vadd.f32 %v888, %v956
    %v960 = vadd.f32 %v889, %v956
    %v961 = vadd.f32 %v890, %v956
    %v962 = vadd.f32 %v891, %v956
    %v963 = vadd.f32 %v892, %v956
    %v964 = vadd.f32 %v893, %v956
    %v965 = vadd.f32 %v894, %v956
    %v966 = vadd.f32 %v895, %v956
    %v967 = vadd.f32 %v896, %v956
    %v968 = vadd.f32 %v897, %v956
    %v969 = vadd.f32 %v898, %v956
    %v970 = vadd.f32 %v899, %v956
    %v971 = vadd.f32 %v900, %v956
    %v972 = vadd.f32 %v901, %v956
    %v973 = vadd.f32 %v902, %v956
    %v974 = vadd.f32 %v903, %v956
    %v975 = vadd.f32 %v904, %v956
    %v976 = vadd.f32 %v905, %v956
    %v977 = vadd.f32 %v906, %v956
    %v978 = vadd.f32 %v907, %v956
    %v979 = vadd.f32 %v908, %v956
    %v980 = vadd.f32 %v909, %v956
    %v981 = vadd.f32 %v910, %v956
    %v982 = vadd.f32 %v911, %v956
    %v983 = vadd.f32 %v912, %v956
    %v984 = vadd.f32 %v913, %v956
    %v985 = vadd.f32 %v914, %v956
    %v986 = vadd.f32 %v915, %v956
    %v987 = vadd.f32 %v916, %v956
    %v988 = vadd.f32 %v917, %v956
    %v989 = vadd.f32 %v918, %v956
    %v990 = vadd.f32 %v919, %v956
    %v991 = vadd.f32 %v920, %v956
    %v992 = vadd.f32 %v921, %v956
    %v993 = vadd.f32 %v922, %v956
    %v994 = vadd.f32 %v923, %v956
    %v995 = vadd.f32 %v924, %v956
    %v996 = vadd.f32 %v925, %v956
    %v997 = vadd.f32 %v926, %v956
    %v998 = vadd.f32 %v927, %v956
    %v999 = vadd.f32 %v928, %v956
    %v1000 = vadd.f32 %v929, %v956
    %v1001 = vadd.f32 %v930, %v956
    %v1002 = vadd.f32 %v931, %v956
    %v1003 = vadd.f32 %v932, %v956
    %v1004 = vadd.f32 %v933, %v956
    %v1005 = vadd.f32 %v934, %v956
    %v1006 = vadd.f32 %v935, %v956
    %v1007 = vadd.f32 %v936, %v956
    %v1008 = vadd.f32 %v937, %v956
    %v1009 = vadd.f32 %v938, %v956
    %v1010 = vadd.f32 %v939, %v956
    %v1011 = vadd.f32 %v940, %v956
    %v1012 = vadd.f32 %v941, %v956
    %v1013 = vadd.f32 %v942, %v956
    %v1014 = vadd.f32 %v943, %v956
    %v1015 = vadd.f32 %v944, %v956
    %v1016 = vadd.f32 %v945, %v956
    %v1017 = vadd.f32 %v946, %v956
    %v1018 = vadd.f32 %v947, %v956
    %v1019 = vadd.f32 %v948, %v956
    %v1020 = vadd.f32 %v949, %v956
    %v1021 = vadd.f32 %v950, %v956
    %v1022 = vmax.f32 %v958, 0.0
    %v1023 = vmax.f32 %v959, 0.0
    %v1024 = vmax.f32 %v960, 0.0
    %v1025 = vmax.f32 %v961, 0.0
    %v1026 = vmax.f32 %v962, 0.0
    %v1027 = vmax.f32 %v963, 0.0
    %v1028 = vmax.f32 %v964, 0.0
    %v1029 = vmax.f32 %v965, 0.0
    %v1030 = vmax.f32 %v966, 0.0
    %v1031 = vmax.f32 %v967, 0.0
    %v1032 = vmax.f32 %v968, 0.0
    %v1033 = vmax.f32 %v969, 0.0
    %v1034 = vmax.f32 %v970, 0.0
    %v1035 = vmax.f32 %v971, 0.0
    %v1036 = vmax.f32 %v972, 0.0
    %v1037 = vmax.f32 %v973, 0.0
    %v1038 = vmax.f32 %v974, 0.0
    %v1039 = vmax.f32 %v975, 0.0
    %v1040 = vmax.f32 %v976, 0.0
    %v1041 = vmax.f32 %v977, 0.0
    %v1042 = vmax.f32 %v978, 0.0
    %v1043 = vmax.f32 %v979, 0.0
    %v1044 = vmax.f32 %v980, 0.0
    %v1045 = vmax.f32 %v981, 0.0
    %v1046 = vmax.f32 %v982, 0.0
    %v1047 = vmax.f32 %v983, 0.0
    %v1048 = vmax.f32 %v984, 0.0
    %v1049 = vmax.f32 %v985, 0.0
    %v1050 = vmax.f32 %v986, 0.0
    %v1051 = vmax.f32 %v987, 0.0
    %v1052 = vmax.f32 %v988, 0.0
    %v1053 = vmax.f32 %v989, 0.0
    %v1054 = vmax.f32 %v990, 0.0
    %v1055 = vmax.f32 %v991, 0.0
    %v1056 = vmax.f32 %v992, 0.0
    %v1057 = vmax.f32 %v993, 0.0
    %v1058 = vmax.f32 %v994, 0.0
    %v1059 = vmax.f32 %v995, 0.0
    %v1060 = vmax.f32 %v996, 0.0
    %v1061 = vmax.f32 %v997, 0.0
    %v1062 = vmax.f32 %v998, 0.0
    %v1063 = vmax.f32 %v999, 0.0
    %v1064 = vmax.f32 %v1000, 0.0
    %v1065 = vmax.f32 %v1001, 0.0
    %v1066 = vmax.f32 %v1002, 0.0
    %v1067 = vmax.f32 %v1003, 0.0
    %v1068 = vmax.f32 %v1004, 0.0
    %v1069 = vmax.f32 %v1005, 0.0
    %v1070 = vmax.f32 %v1006, 0.0
    %v1071 = vmax.f32 %v1007, 0.0
    %v1072 = vmax.f32 %v1008, 0.0
    %v1073 = vmax.f32 %v1009, 0.0
    %v1074 = vmax.f32 %v1010, 0.0
    %v1075 = vmax.f32 %v1011, 0.0
    %v1076 = vmax.f32 %v1012, 0.0
    %v1077 = vmax.f32 %v1013, 0.0
    %v1078 = vmax.f32 %v1014, 0.0
    %v1079 = vmax.f32 %v1015, 0.0
    %v1080 = vmax.f32 %v1016, 0.0
    %v1081 = vmax.f32 %v1017, 0.0
    %v1082 = vmax.f32 %v1018, 0.0
    %v1083 = vmax.f32 %v1019, 0.0
    %v1084 = vmax.f32 %v1020, 0.0
    %v1085 = vmax.f32 %v1021, 0.0
    %v1086 = vpack.c.bf16 %v1023, %v1022
    %v1087 = vpack.c.bf16 %v1025, %v1024
    %v1088 = vpack.c.bf16 %v1027, %v1026
    %v1089 = vpack.c.bf16 %v1029, %v1028
    %v1090 = vpack.c.bf16 %v1031, %v1030
    %v1091 = vpack.c.bf16 %v1033, %v1032
    %v1092 = vpack.c.bf16 %v1035, %v1034
    %v1093 = vpack.c.bf16 %v1037, %v1036
    %v1094 = vpack.c.bf16 %v1039, %v1038
    %v1095 = vpack.c.bf16 %v1041, %v1040
    %v1096 = vpack.c.bf16 %v1043, %v1042
    %v1097 = vpack.c.bf16 %v1045, %v1044
    %v1098 = vpack.c.bf16 %v1047, %v1046
    %v1099 = vpack.c.bf16 %v1049, %v1048
    %v1100 = vpack.c.bf16 %v1051, %v1050
    %v1101 = vpack.c.bf16 %v1053, %v1052
    %v1102 = vpack.c.bf16 %v1055, %v1054
    %v1103 = vpack.c.bf16 %v1057, %v1056
    %v1104 = vpack.c.bf16 %v1059, %v1058
    %v1105 = vpack.c.bf16 %v1061, %v1060
    %v1106 = vpack.c.bf16 %v1063, %v1062
    %v1107 = vpack.c.bf16 %v1065, %v1064
    %v1108 = vpack.c.bf16 %v1067, %v1066
    %v1109 = vpack.c.bf16 %v1069, %v1068
    %v1110 = vpack.c.bf16 %v1071, %v1070
    %v1111 = vpack.c.bf16 %v1073, %v1072
    %v1112 = vpack.c.bf16 %v1075, %v1074
    %v1113 = vpack.c.bf16 %v1077, %v1076
    %v1114 = vpack.c.bf16 %v1079, %v1078
    %v1115 = vpack.c.bf16 %v1081, %v1080
    %v1116 = vpack.c.bf16 %v1083, %v1082
    %v1117 = vpack.c.bf16 %v1085, %v1084
    %v1150 = vunpack.c.l.b16 %v1086
    %v1151 = vunpack.c.h.b16 %v1086
    %v1152 = vunpack.c.l.b16 %v1087
    %v1153 = vunpack.c.h.b16 %v1087
    %v1154 = vunpack.c.l.b16 %v1088
    %v1155 = vunpack.c.h.b16 %v1088
    %v1156 = vunpack.c.l.b16 %v1089
    %v1157 = vunpack.c.h.b16 %v1089
    %v1158 = vunpack.c.l.b16 %v1090
    %v1159 = vunpack.c.h.b16 %v1090
    %v1160 = vunpack.c.l.b16 %v1091
    %v1161 = vunpack.c.h.b16 %v1091
    %v1162 = vunpack.c.l.b16 %v1092
    %v1163 = vunpack.c.h.b16 %v1092
    %v1164 = vunpack.c.l.b16 %v1093
    %v1165 = vunpack.c.h.b16 %v1093
    %v1166 = vunpack.c.l.b16 %v1094
    %v1167 = vunpack.c.h.b16 %v1094
    %v1168 = vunpack.c.l.b16 %v1095
    %v1169 = vunpack.c.h.b16 %v1095
    %v1170 = vunpack.c.l.b16 %v1096
    %v1171 = vunpack.c.h.b16 %v1096
    %v1172 = vunpack.c.l.b16 %v1097
    %v1173 = vunpack.c.h.b16 %v1097
    %v1174 = vunpack.c.l.b16 %v1098
    %v1175 = vunpack.c.h.b16 %v1098
    %v1176 = vunpack.c.l.b16 %v1099
    %v1177 = vunpack.c.h.b16 %v1099
    %v1178 = vunpack.c.l.b16 %v1100
    %v1179 = vunpack.c.h.b16 %v1100
    %v1180 = vunpack.c.l.b16 %v1101
    %v1181 = vunpack.c.h.b16 %v1101
    %v1182 = vunpack.c.l.b16 %v1102
    %v1183 = vunpack.c.h.b16 %v1102
    %v1184 = vunpack.c.l.b16 %v1103
    %v1185 = vunpack.c.h.b16 %v1103
    %v1186 = vunpack.c.l.b16 %v1104
    %v1187 = vunpack.c.h.b16 %v1104
    %v1188 = vunpack.c.l.b16 %v1105
    %v1189 = vunpack.c.h.b16 %v1105
    %v1190 = vunpack.c.l.b16 %v1106
    %v1191 = vunpack.c.h.b16 %v1106
    %v1192 = vunpack.c.l.b16 %v1107
    %v1193 = vunpack.c.h.b16 %v1107
    %v1194 = vunpack.c.l.b16 %v1108
    %v1195 = vunpack.c.h.b16 %v1108
    %v1196 = vunpack.c.l.b16 %v1109
    %v1197 = vunpack.c.h.b16 %v1109
    %v1198 = vunpack.c.l.b16 %v1110
    %v1199 = vunpack.c.h.b16 %v1110
    %v1200 = vunpack.c.l.b16 %v1111
    %v1201 = vunpack.c.h.b16 %v1111
    %v1202 = vunpack.c.l.b16 %v1112
    %v1203 = vunpack.c.h.b16 %v1112
    %v1204 = vunpack.c.l.b16 %v1113
    %v1205 = vunpack.c.h.b16 %v1113
    %v1206 = vunpack.c.l.b16 %v1114
    %v1207 = vunpack.c.h.b16 %v1114
    %v1208 = vunpack.c.l.b16 %v1115
    %v1209 = vunpack.c.h.b16 %v1115
    %v1210 = vunpack.c.l.b16 %v1116
    %v1211 = vunpack.c.h.b16 %v1116
    %v1212 = vunpack.c.l.b16 %v1117
    %v1213 = vunpack.c.h.b16 %v1117
    %v1214 = vpack.c.b16 %v1150, %v1150
    %v1215 = vpack.c.b16 %v1151, %v1151
    %v1216 = vpack.c.b16 %v1152, %v1152
    %v1217 = vpack.c.b16 %v1153, %v1153
    %v1218 = vpack.c.b16 %v1154, %v1154
    %v1219 = vpack.c.b16 %v1155, %v1155
    %v1220 = vpack.c.b16 %v1156, %v1156
    %v1221 = vpack.c.b16 %v1157, %v1157
    %v1222 = vpack.c.b16 %v1158, %v1158
    %v1223 = vpack.c.b16 %v1159, %v1159
    %v1224 = vpack.c.b16 %v1160, %v1160
    %v1225 = vpack.c.b16 %v1161, %v1161
    %v1226 = vpack.c.b16 %v1162, %v1162
    %v1227 = vpack.c.b16 %v1163, %v1163
    %v1228 = vpack.c.b16 %v1164, %v1164
    %v1229 = vpack.c.b16 %v1165, %v1165
    %v1230 = vpack.c.b16 %v1166, %v1166
    %v1231 = vpack.c.b16 %v1167, %v1167
    %v1232 = vpack.c.b16 %v1168, %v1168
    %v1233 = vpack.c.b16 %v1169, %v1169
    %v1234 = vpack.c.b16 %v1170, %v1170
    %v1235 = vpack.c.b16 %v1171, %v1171
    %v1236 = vpack.c.b16 %v1172, %v1172
    %v1237 = vpack.c.b16 %v1173, %v1173
    %v1238 = vpack.c.b16 %v1174, %v1174
    %v1239 = vpack.c.b16 %v1175, %v1175
    %v1240 = vpack.c.b16 %v1176, %v1176
    %v1241 = vpack.c.b16 %v1177, %v1177
    %v1242 = vpack.c.b16 %v1178, %v1178
    %v1243 = vpack.c.b16 %v1179, %v1179
    %v1244 = vpack.c.b16 %v1180, %v1180
    %v1245 = vpack.c.b16 %v1181, %v1181
    %v1246 = vpack.c.b16 %v1182, %v1182
    %v1247 = vpack.c.b16 %v1183, %v1183
    %v1248 = vpack.c.b16 %v1184, %v1184
    %v1249 = vpack.c.b16 %v1185, %v1185
    %v1250 = vpack.c.b16 %v1186, %v1186
    %v1251 = vpack.c.b16 %v1187, %v1187
    %v1252 = vpack.c.b16 %v1188, %v1188
    %v1253 = vpack.c.b16 %v1189, %v1189
    %v1254 = vpack.c.b16 %v1190, %v1190
    %v1255 = vpack.c.b16 %v1191, %v1191
    %v1256 = vpack.c.b16 %v1192, %v1192
    %v1257 = vpack.c.b16 %v1193, %v1193
    %v1258 = vpack.c.b16 %v1194, %v1194
    %v1259 = vpack.c.b16 %v1195, %v1195
    %v1260 = vpack.c.b16 %v1196, %v1196
    %v1261 = vpack.c.b16 %v1197, %v1197
    %v1262 = vpack.c.b16 %v1198, %v1198
    %v1263 = vpack.c.b16 %v1199, %v1199
    %v1264 = vpack.c.b16 %v1200, %v1200
    %v1265 = vpack.c.b16 %v1201, %v1201
    %v1266 = vpack.c.b16 %v1202, %v1202
    %v1267 = vpack.c.b16 %v1203, %v1203
    %v1268 = vpack.c.b16 %v1204, %v1204
    %v1269 = vpack.c.b16 %v1205, %v1205
    %v1270 = vpack.c.b16 %v1206, %v1206
    %v1271 = vpack.c.b16 %v1207, %v1207
    %v1272 = vpack.c.b16 %v1208, %v1208
    %v1273 = vpack.c.b16 %v1209, %v1209
    %v1274 = vpack.c.b16 %v1210, %v1210
    %v1275 = vpack.c.b16 %v1211, %v1211
    %v1276 = vpack.c.b16 %v1212, %v1212
    %v1277 = vpack.c.b16 %v1213, %v1213
    %1342 = vst [vmem:[%s3] sm:$0xf] %v1214
    %1343 = vst [vmem:[%s3 + $0x4] sm:$0xf] %v1215
    %1344 = vst [vmem:[%s3 + $0x8] sm:$0xf] %v1216
    %1345 = vst [vmem:[%s3 + $0xc] sm:$0xf] %v1217
    %1346 = vst [vmem:[%s3 + $0x10] sm:$0xf] %v1218
    %1347 = vst [vmem:[%s3 + $0x14] sm:$0xf] %v1219
    %1348 = vst [vmem:[%s3 + $0x18] sm:$0xf] %v1220
    %1349 = vst [vmem:[%s3 + $0x1c] sm:$0xf] %v1221
    %1350 = vst [vmem:[%s3 + $0x20] sm:$0xf] %v1222
    %1351 = vst [vmem:[%s3 + $0x24] sm:$0xf] %v1223
    %1352 = vst [vmem:[%s3 + $0x28] sm:$0xf] %v1224
    %1353 = vst [vmem:[%s3 + $0x2c] sm:$0xf] %v1225
    %1354 = vst [vmem:[%s3 + $0x30] sm:$0xf] %v1226
    %1355 = vst [vmem:[%s3 + $0x34] sm:$0xf] %v1227
    %1356 = vst [vmem:[%s3 + $0x38] sm:$0xf] %v1228
    %1357 = vst [vmem:[%s3 + $0x3c] sm:$0xf] %v1229
    %1358 = vst [vmem:[%s3 + $0x40] sm:$0xf] %v1230
    %1359 = vst [vmem:[%s3 + $0x44] sm:$0xf] %v1231
    %1360 = vst [vmem:[%s3 + $0x48] sm:$0xf] %v1232
    %1361 = vst [vmem:[%s3 + $0x4c] sm:$0xf] %v1233
    %1362 = vst [vmem:[%s3 + $0x50] sm:$0xf] %v1234
    %1363 = vst [vmem:[%s3 + $0x54] sm:$0xf] %v1235
    %1364 = vst [vmem:[%s3 + $0x58] sm:$0xf] %v1236
    %1365 = vst [vmem:[%s3 + $0x5c] sm:$0xf] %v1237
    %1366 = vst [vmem:[%s3 + $0x60] sm:$0xf] %v1238
    %1367 = vst [vmem:[%s3 + $0x64] sm:$0xf] %v1239
    %1368 = vst [vmem:[%s3 + $0x68] sm:$0xf] %v1240
    %1369 = vst [vmem:[%s3 + $0x6c] sm:$0xf] %v1241
    %1370 = vst [vmem:[%s3 + $0x70] sm:$0xf] %v1242
    %1371 = vst [vmem:[%s3 + $0x74] sm:$0xf] %v1243
    %1372 = vst [vmem:[%s3 + $0x78] sm:$0xf] %v1244
    %1373 = vst [vmem:[%s3 + $0x7c] sm:$0xf] %v1245
    %1374 = vst [vmem:[%s3 + $0x80] sm:$0xf] %v1246
    %1375 = vst [vmem:[%s3 + $0x84] sm:$0xf] %v1247
    %1376 = vst [vmem:[%s3 + $0x88] sm:$0xf] %v1248
    %1377 = vst [vmem:[%s3 + $0x8c] sm:$0xf] %v1249
    %1378 = vst [vmem:[%s3 + $0x90] sm:$0xf] %v1250
    %1379 = vst [vmem:[%s3 + $0x94] sm:$0xf] %v1251
    %1380 = vst [vmem:[%s3 + $0x98] sm:$0xf] %v1252
    %1381 = vst [vmem:[%s3 + $0x9c] sm:$0xf] %v1253
    %1382 = vst [vmem:[%s3 + $0xa0] sm:$0xf] %v1254
    %1383 = vst [vmem:[%s3 + $0xa4] sm:$0xf] %v1255
    %1384 = vst [vmem:[%s3 + $0xa8] sm:$0xf] %v1256
    %1385 = vst [vmem:[%s3 + $0xac] sm:$0xf] %v1257
    %1386 = vst [vmem:[%s3 + $0xb0] sm:$0xf] %v1258
    %1387 = vst [vmem:[%s3 + $0xb4] sm:$0xf] %v1259
    %1388 = vst [vmem:[%s3 + $0xb8] sm:$0xf] %v1260
    %1389 = vst [vmem:[%s3 + $0xbc] sm:$0xf] %v1261
    %1390 = vst [vmem:[%s3 + $0xc0] sm:$0xf] %v1262
    %1391 = vst [vmem:[%s3 + $0xc4] sm:$0xf] %v1263
    %1392 = vst [vmem:[%s3 + $0xc8] sm:$0xf] %v1264
    %1393 = vst [vmem:[%s3 + $0xcc] sm:$0xf] %v1265
    %1394 = vst [vmem:[%s3 + $0xd0] sm:$0xf] %v1266
    %1395 = vst [vmem:[%s3 + $0xd4] sm:$0xf] %v1267
    %1396 = vst [vmem:[%s3 + $0xd8] sm:$0xf] %v1268
    %1397 = vst [vmem:[%s3 + $0xdc] sm:$0xf] %v1269
    %1398 = vst [vmem:[%s3 + $0xe0] sm:$0xf] %v1270
    %1399 = vst [vmem:[%s3 + $0xe4] sm:$0xf] %v1271
    %1400 = vst [vmem:[%s3 + $0xe8] sm:$0xf] %v1272
    %1401 = vst [vmem:[%s3 + $0xec] sm:$0xf] %v1273
    %1402 = vst [vmem:[%s3 + $0xf0] sm:$0xf] %v1274
    %1403 = vst [vmem:[%s3 + $0xf4] sm:$0xf] %v1275
    %1404 = vst [vmem:[%s3 + $0xf8] sm:$0xf] %v1276
    %1405 = vst [vmem:[%s3 + $0xfc] sm:$0xf] %v1277
  $region21: #{fast_conformer_encoder.32} parent=0 // pred_fallthru
    _
  // Predicated region
  $region22: #{fast_conformer_encoder.32} parent=0 // pred_check
    _
  $region23: #{fast_conformer_encoder.32} parent=0 // pred_check_branch
    %1407 = sbr.rel (0) target = $region25
  $region24: #{fast_conformer_encoder.32} parent=0 // pred_region
    _
  $region25: #{fast_conformer_encoder.32} parent=0 // pred_fallthru
    _
  // Predicated region
  $region26: #{fast_conformer_encoder.32} parent=0 // pred_check
    _
  $region27: #{fast_conformer_encoder.32} parent=0 // pred_check_branch
    %1409 = sbr.rel (0) target = $region29
  $region28: #{fast_conformer_encoder.32} parent=0 // pred_region
    _
  $region29: #{fast_conformer_encoder.32} parent=0 // pred_fallthru
    _

// kernel: fast_conformer_encoder.34
$region0: #{fast_conformer_encoder.34}
  #allocation0 [shape = 'u32[]', space=smem, size = 0x4, offset = 0x4, fixed_abs, tag = 'smem constant byte address 0x4 - core index']
  #allocation1 [shape = 'u32[144,128]{1,0:T(1,128)}', space=vmem, size = 0x12000, scoped, tag = 'internal scratch']
  #allocation2 [shape = 'f32[32,128]{1,0:T(8,128)}', space=vmem, size = 0x4000, scoped, tag = 'scratch operand']
  %s0 = inlined_call_operand.vmem [shape: bf16[32,384], index: 0, kind: input, shape index: {}]
  %s1 = inlined_call_operand.vmem [shape: bf16[384,128], index: 1, kind: input, shape index: {}]
  %s2 = inlined_call_operand.vmem [shape: f32[1,128], index: 2, kind: input, shape index: {}]
  %s3 = inlined_call_operand.vmem [shape: bf16[32,128], index: 3, kind: output, shape index: {}]
  %s4 = sld [smem:[#allocation0]]
  $region30: #{fast_conformer_encoder.34} parent=0
    _
  %s6 = ssub.s32 1, %s4
  %s7 = scalar_select 0, %s6, %s4
  // Predicated region
  $region2: #{fast_conformer_encoder.34} parent=0 // pred_check
    _
  $region3: #{fast_conformer_encoder.34} parent=0 // pred_check_branch
    %9 = sbr.rel (0) target = $region5
  $region4: #{fast_conformer_encoder.34} parent=0 // pred_region
    _
  $region5: #{fast_conformer_encoder.34} parent=0 // pred_fallthru
    _
  // Predicated region
  $region6: #{fast_conformer_encoder.34} parent=0 // pred_check
    _
  $region7: #{fast_conformer_encoder.34} parent=0 // pred_check_branch
    %11 = sbr.rel (0) target = $region9
  $region8: #{fast_conformer_encoder.34} parent=0 // pred_region
    _
  $region9: #{fast_conformer_encoder.34} parent=0 // pred_fallthru
    _
  // Predicated region
  $region10: #{fast_conformer_encoder.34} parent=0 // pred_check
    _
  $region11: #{fast_conformer_encoder.34} parent=0 // pred_check_branch
    %13 = sbr.rel (0) target = $region13
  $region12: #{fast_conformer_encoder.34} parent=0 // pred_region
    _
  $region13: #{fast_conformer_encoder.34} parent=0 // pred_fallthru
    _
  %v15 = vld [vmem:[%s0] sm:$0xff]
  %v16 = vld [vmem:[%s0 + $0x8] sm:$0xf]
  %v17 = vld [vmem:[%s0 + $0xc] sm:$0xff]
  %v18 = vld [vmem:[%s0 + $0x14] sm:$0xf]
  %v19 = vld [vmem:[%s0 + $0x18] sm:$0xff]
  %v20 = vld [vmem:[%s0 + $0x20] sm:$0xf]
  %v21 = vld [vmem:[%s0 + $0x24] sm:$0xff]
  %v22 = vld [vmem:[%s0 + $0x2c] sm:$0xf]
  %p23 = scmp.eq.s32.totalorder 0, 0
  // Predicated region
  $region14: #{fast_conformer_encoder.34} parent=0 // pred_check
    %p24 = pneg %p23
  $region15: #{fast_conformer_encoder.34} parent=0 // pred_check_branch
    %26 = sbr.rel (%p24) target = $region17
  $region16: #{fast_conformer_encoder.34} parent=0 // pred_region
    %27 = vst [vmem:[#allocation2] sm:$0xff] 0.0
    %28 = vst [vmem:[#allocation2 + $0x8] sm:$0xff] 0.0
    %29 = vst [vmem:[#allocation2 + $0x10] sm:$0xff] 0.0
    %30 = vst [vmem:[#allocation2 + $0x18] sm:$0xff] 0.0
  $region17: #{fast_conformer_encoder.34} parent=0 // pred_fallthru
    _
  %v31 = vld [vmem:[#allocation2] sm:$0xff]
  %v32 = vld [vmem:[#allocation2 + $0x8] sm:$0xff]
  %v33 = vld [vmem:[#allocation2 + $0x10] sm:$0xff]
  %v34 = vld [vmem:[#allocation2 + $0x18] sm:$0xff]
  %v35 = vld [vmem:[%s1] sm:$0xf]
  %v36 = vld [vmem:[%s1 + $0x4] sm:$0xf]
  %v37 = vld [vmem:[%s1 + $0x8] sm:$0xf]
  %v38 = vld [vmem:[%s1 + $0xc] sm:$0xf]
  %v39 = vld [vmem:[%s1 + $0x10] sm:$0xf]
  %v40 = vld [vmem:[%s1 + $0x14] sm:$0xf]
  %v41 = vld [vmem:[%s1 + $0x18] sm:$0xf]
  %v42 = vld [vmem:[%s1 + $0x1c] sm:$0xf]
  %v43 = vld [vmem:[%s1 + $0x20] sm:$0xf]
  %v44 = vld [vmem:[%s1 + $0x24] sm:$0xf]
  %v45 = vld [vmem:[%s1 + $0x28] sm:$0xf]
  %v46 = vld [vmem:[%s1 + $0x2c] sm:$0xf]
  %v47 = vld [vmem:[%s1 + $0x30] sm:$0xf]
  %v48 = vld [vmem:[%s1 + $0x34] sm:$0xf]
  %v49 = vld [vmem:[%s1 + $0x38] sm:$0xf]
  %v50 = vld [vmem:[%s1 + $0x3c] sm:$0xf]
  %v51 = vld [vmem:[%s1 + $0x40] sm:$0xf]
  %v52 = vld [vmem:[%s1 + $0x44] sm:$0xf]
  %v53 = vld [vmem:[%s1 + $0x48] sm:$0xf]
  %v54 = vld [vmem:[%s1 + $0x4c] sm:$0xf]
  %v55 = vld [vmem:[%s1 + $0x50] sm:$0xf]
  %v56 = vld [vmem:[%s1 + $0x54] sm:$0xf]
  %v57 = vld [vmem:[%s1 + $0x58] sm:$0xf]
  %v58 = vld [vmem:[%s1 + $0x5c] sm:$0xf]
  %v59 = vld [vmem:[%s1 + $0x60] sm:$0xf]
  %v60 = vld [vmem:[%s1 + $0x64] sm:$0xf]
  %v61 = vld [vmem:[%s1 + $0x68] sm:$0xf]
  %v62 = vld [vmem:[%s1 + $0x6c] sm:$0xf]
  %v63 = vld [vmem:[%s1 + $0x70] sm:$0xf]
  %v64 = vld [vmem:[%s1 + $0x74] sm:$0xf]
  %v65 = vld [vmem:[%s1 + $0x78] sm:$0xf]
  %v66 = vld [vmem:[%s1 + $0x7c] sm:$0xf]
  %v67 = vld [vmem:[%s1 + $0x80] sm:$0xf]
  %v68 = vld [vmem:[%s1 + $0x84] sm:$0xf]
  %v69 = vld [vmem:[%s1 + $0x88] sm:$0xf]
  %v70 = vld [vmem:[%s1 + $0x8c] sm:$0xf]
  %v71 = vld [vmem:[%s1 + $0x90] sm:$0xf]
  %v72 = vld [vmem:[%s1 + $0x94] sm:$0xf]
  %v73 = vld [vmem:[%s1 + $0x98] sm:$0xf]
  %v74 = vld [vmem:[%s1 + $0x9c] sm:$0xf]
  %v75 = vld [vmem:[%s1 + $0xa0] sm:$0xf]
  %v76 = vld [vmem:[%s1 + $0xa4] sm:$0xf]
  %v77 = vld [vmem:[%s1 + $0xa8] sm:$0xf]
  %v78 = vld [vmem:[%s1 + $0xac] sm:$0xf]
  %v79 = vld [vmem:[%s1 + $0xb0] sm:$0xf]
  %v80 = vld [vmem:[%s1 + $0xb4] sm:$0xf]
  %v81 = vld [vmem:[%s1 + $0xb8] sm:$0xf]
  %v82 = vld [vmem:[%s1 + $0xbc] sm:$0xf]
  %v91 = vunpack.c.l.b16 %v15
  %v92 = vunpack.c.h.b16 %v15
  %v93 = vunpack.c.l.b16 %v16
  %v94 = vunpack.c.l.b16 %v17
  %v95 = vunpack.c.h.b16 %v17
  %v96 = vunpack.c.l.b16 %v18
  %v97 = vunpack.c.l.b16 %v19
  %v98 = vunpack.c.h.b16 %v19
  %v99 = vunpack.c.l.b16 %v20
  %v100 = vunpack.c.l.b16 %v21
  %v101 = vunpack.c.h.b16 %v21
  %v102 = vunpack.c.l.b16 %v22
  %v103 = vpack.c.b16 %v94, %v91
  %v104 = vpack.c.b16 %v95, %v92
  %v105 = vpack.c.b16 %v96, %v93
  %v106 = vpack.c.b16 %v100, %v97
  %v107 = vpack.c.b16 %v101, %v98
  %v108 = vpack.c.b16 %v102, %v99
  %v163 = vunpack.c.l.b16 %v35
  %v164 = vunpack.c.l.b16 %v36
  %v165 = vunpack.c.l.b16 %v37
  %v166 = vunpack.c.l.b16 %v38
  %v167 = vunpack.c.l.b16 %v39
  %v168 = vunpack.c.l.b16 %v40
  %v169 = vunpack.c.l.b16 %v41
  %v170 = vunpack.c.l.b16 %v42
  %v171 = vunpack.c.l.b16 %v43
  %v172 = vunpack.c.l.b16 %v44
  %v173 = vunpack.c.l.b16 %v45
  %v174 = vunpack.c.l.b16 %v46
  %v175 = vunpack.c.l.b16 %v47
  %v176 = vunpack.c.l.b16 %v48
  %v177 = vunpack.c.l.b16 %v49
  %v178 = vunpack.c.l.b16 %v50
  %v179 = vunpack.c.l.b16 %v51
  %v180 = vunpack.c.l.b16 %v52
  %v181 = vunpack.c.l.b16 %v53
  %v182 = vunpack.c.l.b16 %v54
  %v183 = vunpack.c.l.b16 %v55
  %v184 = vunpack.c.l.b16 %v56
  %v185 = vunpack.c.l.b16 %v57
  %v186 = vunpack.c.l.b16 %v58
  %v187 = vunpack.c.l.b16 %v59
  %v188 = vunpack.c.l.b16 %v60
  %v189 = vunpack.c.l.b16 %v61
  %v190 = vunpack.c.l.b16 %v62
  %v191 = vunpack.c.l.b16 %v63
  %v192 = vunpack.c.l.b16 %v64
  %v193 = vunpack.c.l.b16 %v65
  %v194 = vunpack.c.l.b16 %v66
  %v195 = vunpack.c.l.b16 %v67
  %v196 = vunpack.c.l.b16 %v68
  %v197 = vunpack.c.l.b16 %v69
  %v198 = vunpack.c.l.b16 %v70
  %v199 = vunpack.c.l.b16 %v71
  %v200 = vunpack.c.l.b16 %v72
  %v201 = vunpack.c.l.b16 %v73
  %v202 = vunpack.c.l.b16 %v74
  %v203 = vunpack.c.l.b16 %v75
  %v204 = vunpack.c.l.b16 %v76
  %v205 = vunpack.c.l.b16 %v77
  %v206 = vunpack.c.l.b16 %v78
  %v207 = vunpack.c.l.b16 %v79
  %v208 = vunpack.c.l.b16 %v80
  %v209 = vunpack.c.l.b16 %v81
  %v210 = vunpack.c.l.b16 %v82
  %v211 = vpack.c.b16 %v164, %v163
  %v212 = vpack.c.b16 %v166, %v165
  %v213 = vpack.c.b16 %v168, %v167
  %v214 = vpack.c.b16 %v170, %v169
  %v215 = vpack.c.b16 %v172, %v171
  %v216 = vpack.c.b16 %v174, %v173
  %v217 = vpack.c.b16 %v176, %v175
  %v218 = vpack.c.b16 %v178, %v177
  %v219 = vpack.c.b16 %v180, %v179
  %v220 = vpack.c.b16 %v182, %v181
  %v221 = vpack.c.b16 %v184, %v183
  %v222 = vpack.c.b16 %v186, %v185
  %v223 = vpack.c.b16 %v188, %v187
  %v224 = vpack.c.b16 %v190, %v189
  %v225 = vpack.c.b16 %v192, %v191
  %v226 = vpack.c.b16 %v194, %v193
  %v227 = vpack.c.b16 %v196, %v195
  %v228 = vpack.c.b16 %v198, %v197
  %v229 = vpack.c.b16 %v200, %v199
  %v230 = vpack.c.b16 %v202, %v201
  %v231 = vpack.c.b16 %v204, %v203
  %v232 = vpack.c.b16 %v206, %v205
  %v233 = vpack.c.b16 %v208, %v207
  %v234 = vpack.c.b16 %v210, %v209
  %259 = vmatprep.subr.bf16.mxu0 0
  %260 = vmatpush1.bf16.msra.mxu0 %v211
  %261 = vmatprep.subr.bf16.mxu0 0
  %262 = vmatpush1.bf16.msra.mxu0 %v212
  %263 = vmatprep.subr.bf16.mxu0 0
  %264 = vmatpush1.bf16.msra.mxu0 %v213
  %265 = vmatprep.subr.bf16.mxu0 0
  %266 = vmatpush1.bf16.msra.mxu0 %v214
  %267 = vmatprep.subr.bf16.mxu0 0
  %268 = vmatpush1.bf16.msra.mxu0 %v215
  %269 = vmatprep.subr.bf16.mxu0 0
  %270 = vmatpush1.bf16.msra.mxu0 %v216
  %271 = vmatprep.subr.bf16.mxu0 0
  %272 = vmatpush1.bf16.msra.mxu0 %v217
  %273 = vmatprep.subr.bf16.mxu0 0
  %274 = vmatpush1.bf16.msra.mxu0 %v218
  %275 = vmatprep.subr.bf16.mxu0 0
  %276 = vmatpush1.bf16.msra.mxu0 %v219
  %277 = vmatprep.subr.bf16.mxu0 0
  %278 = vmatpush1.bf16.msra.mxu0 %v220
  %279 = vmatprep.subr.bf16.mxu0 0
  %280 = vmatpush1.bf16.msra.mxu0 %v221
  %281 = vmatprep.subr.bf16.mxu0 0
  %282 = vmatpush1.bf16.msra.mxu0 %v222
  %283 = vmatprep.subr.bf16.mxu0 0
  %284 = vmatpush1.bf16.msra.mxu0 %v223
  %285 = vmatprep.subr.bf16.mxu0 0
  %286 = vmatpush1.bf16.msra.mxu0 %v224
  %287 = vmatprep.subr.bf16.mxu0 0
  %288 = vmatpush1.bf16.msra.mxu0 %v225
  %289 = vmatprep.subr.bf16.mxu0 0
  %290 = vmatpush1.bf16.msra.mxu0 %v226
  %291 = vmatprep.mubr.bf16.mxu0 %v104
  %292 = vmatmul.mubr.bf16.gmra.mrb[0].mxu0 %v103
  %v293 = vpop.f32.mrb[0].mxu0
  %v294 = vadd.f32 0.0, %v293
  %v295 = vpop.f32.mrb[0].mxu0
  %v296 = vpop.f32.mrb[0].mxu0
  %v297 = vadd.f32 0.0, %v296
  %v298 = vpop.f32.mrb[0].mxu0
  %299 = vmatprep.mubr.bf16.mxu0 %v107
  %300 = vmatmul.mubr.bf16.gmra.mrb[0].mxu0 %v106
  %v301 = vpop.f32.mrb[0].mxu0
  %v302 = vadd.f32 0.0, %v301
  %v303 = vpop.f32.mrb[0].mxu0
  %v304 = vpop.f32.mrb[0].mxu0
  %v305 = vadd.f32 0.0, %v304
  %v306 = vpop.f32.mrb[0].mxu0
  %307 = vdwg.mxu0
  %308 = vmatprep.subr.bf16.mxu0 0
  %309 = vmatpush1.bf16.msra.mxu0 %v227
  %310 = vmatprep.subr.bf16.mxu0 0
  %311 = vmatpush1.bf16.msra.mxu0 %v228
  %312 = vmatprep.subr.bf16.mxu0 0
  %313 = vmatpush1.bf16.msra.mxu0 %v229
  %314 = vmatprep.subr.bf16.mxu0 0
  %315 = vmatpush1.bf16.msra.mxu0 %v230
  %316 = vmatprep.subr.bf16.mxu0 0
  %317 = vmatpush1.bf16.msra.mxu0 %v231
  %318 = vmatprep.subr.bf16.mxu0 0
  %319 = vmatpush1.bf16.msra.mxu0 %v232
  %320 = vmatprep.subr.bf16.mxu0 0
  %321 = vmatpush1.bf16.msra.mxu0 %v233
  %322 = vmatprep.subr.bf16.mxu0 0
  %323 = vmatpush1.bf16.msra.mxu0 %v234
  %324 = vmatprep.subr.bf16.mxu0 0
  %325 = vmatpush1.bf16.msra.mxu0 0
  %326 = vmatprep.subr.bf16.mxu0 0
  %327 = vmatpush1.bf16.msra.mxu0 0
  %328 = vmatprep.subr.bf16.mxu0 0
  %329 = vmatpush1.bf16.msra.mxu0 0
  %330 = vmatprep.subr.bf16.mxu0 0
  %331 = vmatpush1.bf16.msra.mxu0 0
  %332 = vmatprep.subr.bf16.mxu0 0
  %333 = vmatpush1.bf16.msra.mxu0 0
  %334 = vmatprep.subr.bf16.mxu0 0
  %335 = vmatpush1.bf16.msra.mxu0 0
  %336 = vmatprep.subr.bf16.mxu0 0
  %337 = vmatpush1.bf16.msra.mxu0 0
  %338 = vmatprep.subr.bf16.mxu0 0
  %339 = vmatpush1.bf16.msra.mxu0 0
  %340 = vmatprep.mubr.bf16.mxu0 0
  %341 = vmatmul.mubr.bf16.gmra.mrb[0].mxu0 %v105
  %v342 = vpop.f32.mrb[0].mxu0
  %v343 = vadd.f32 %v294, %v342
  %v344 = vpop.f32.mrb[0].mxu0
  %v345 = vpop.f32.mrb[0].mxu0
  %v346 = vadd.f32 %v297, %v345
  %v347 = vpop.f32.mrb[0].mxu0
  %348 = vmatprep.mubr.bf16.mxu0 0
  %349 = vmatmul.mubr.bf16.gmra.mrb[0].mxu0 %v108
  %v350 = vpop.f32.mrb[0].mxu0
  %v351 = vadd.f32 %v302, %v350
  %v352 = vpop.f32.mrb[0].mxu0
  %v353 = vpop.f32.mrb[0].mxu0
  %v354 = vadd.f32 %v305, %v353
  %v355 = vpop.f32.mrb[0].mxu0
  %356 = vdwg.mxu0
  %v357 = vadd.f32 %v31, %v343
  %v358 = vadd.f32 %v32, %v346
  %v359 = vadd.f32 %v33, %v351
  %v360 = vadd.f32 %v34, %v354
  %361 = vst [vmem:[#allocation2] sm:$0xff] %v357
  %362 = vst [vmem:[#allocation2 + $0x8] sm:$0xff] %v358
  %363 = vst [vmem:[#allocation2 + $0x10] sm:$0xff] %v359
  %364 = vst [vmem:[#allocation2 + $0x18] sm:$0xff] %v360
  // Predicated region
  $region18: #{fast_conformer_encoder.34} parent=0 // pred_check
    %p365 = pneg %p23
  $region19: #{fast_conformer_encoder.34} parent=0 // pred_check_branch
    %367 = sbr.rel (%p365) target = $region21
  $region20: #{fast_conformer_encoder.34} parent=0 // pred_region
    %v368 = vld [vmem:[#allocation2] sm:$0xff]
    %v369 = vld [vmem:[#allocation2 + $0x8] sm:$0xff]
    %v370 = vld [vmem:[#allocation2 + $0x10] sm:$0xff]
    %v371 = vld [vmem:[#allocation2 + $0x18] sm:$0xff]
    %v372 = vld [vmem:[%s2] sm:$0x1]
    %v374 = vlaneseq
    %v375 = vshrl.u32 %v374, 7
    %v376 = vsub.s32 0, %v375
    %v377 = vrot.slane %v372, %v376
    %v379 = vadd.f32 %v368, %v377
    %v380 = vadd.f32 %v369, %v377
    %v381 = vadd.f32 %v370, %v377
    %v382 = vadd.f32 %v371, %v377
    %v383 = vmax.f32 %v379, 0.0
    %v384 = vmax.f32 %v380, 0.0
    %v385 = vmax.f32 %v381, 0.0
    %v386 = vmax.f32 %v382, 0.0
    %v387 = vpack.c.bf16 %v384, %v383
    %v388 = vpack.c.bf16 %v386, %v385
    %v391 = vunpack.c.l.b16 %v387
    %v392 = vunpack.c.h.b16 %v387
    %v393 = vunpack.c.l.b16 %v388
    %v394 = vunpack.c.h.b16 %v388
    %v395 = vpack.c.b16 %v391, %v391
    %v396 = vpack.c.b16 %v392, %v392
    %v397 = vpack.c.b16 %v393, %v393
    %v398 = vpack.c.b16 %v394, %v394
    %403 = vst [vmem:[%s3] sm:$0xf] %v395
    %404 = vst [vmem:[%s3 + $0x4] sm:$0xf] %v396
    %405 = vst [vmem:[%s3 + $0x8] sm:$0xf] %v397
    %406 = vst [vmem:[%s3 + $0xc] sm:$0xf] %v398
  $region21: #{fast_conformer_encoder.34} parent=0 // pred_fallthru
    _
  // Predicated region
  $region22: #{fast_conformer_encoder.34} parent=0 // pred_check
    _
  $region23: #{fast_conformer_encoder.34} parent=0 // pred_check_branch
    %408 = sbr.rel (0) target = $region25
  $region24: #{fast_conformer_encoder.34} parent=0 // pred_region
    _
  $region25: #{fast_conformer_encoder.34} parent=0 // pred_fallthru
    _
  // Predicated region
  $region26: #{fast_conformer_encoder.34} parent=0 // pred_check
    _
  $region27: #{fast_conformer_encoder.34} parent=0 // pred_check_branch
    %410 = sbr.rel (0) target = $region29
  $region28: #{fast_conformer_encoder.34} parent=0 // pred_region
    _
  $region29: #{fast_conformer_encoder.34} parent=0 // pred_fallthru
    _

// kernel: fast_conformer_encoder.36
$region0: #{fast_conformer_encoder.36}
  #allocation0 [shape = 'u32[]', space=smem, size = 0x4, offset = 0x4, fixed_abs, tag = 'smem constant byte address 0x4 - core index']
  #allocation1 [shape = 'u32[144,128]{1,0:T(1,128)}', space=vmem, size = 0x12000, scoped, tag = 'internal scratch']
  #allocation2 [shape = 'f32[16,128]{1,0:T(8,128)}', space=vmem, size = 0x2000, scoped, tag = 'scratch operand']
  %s0 = inlined_call_operand.vmem [shape: bf16[16,128], index: 0, kind: input, shape index: {}]
  %s1 = inlined_call_operand.vmem [shape: bf16[128,128], index: 1, kind: input, shape index: {}]
  %s2 = inlined_call_operand.vmem [shape: f32[1,128], index: 2, kind: input, shape index: {}]
  %s3 = inlined_call_operand.vmem [shape: f32[1,128], index: 3, kind: input, shape index: {}]
  %s4 = inlined_call_operand.vmem [shape: f32[1,128], index: 4, kind: input, shape index: {}]
  %s5 = inlined_call_operand.vmem [shape: bf16[16,128], index: 5, kind: output, shape index: {}]
  %s6 = sld [smem:[#allocation0]]
  $region38: #{fast_conformer_encoder.36} parent=0
    _
  %s8 = ssub.s32 1, %s6
  %s9 = scalar_select 0, %s8, %s6
  // Predicated region
  $region2: #{fast_conformer_encoder.36} parent=0 // pred_check
    _
  $region3: #{fast_conformer_encoder.36} parent=0 // pred_check_branch
    %11 = sbr.rel (0) target = $region5
  $region4: #{fast_conformer_encoder.36} parent=0 // pred_region
    _
  $region5: #{fast_conformer_encoder.36} parent=0 // pred_fallthru
    _
  // Predicated region
  $region6: #{fast_conformer_encoder.36} parent=0 // pred_check
    _
  $region7: #{fast_conformer_encoder.36} parent=0 // pred_check_branch
    %13 = sbr.rel (0) target = $region9
  $region8: #{fast_conformer_encoder.36} parent=0 // pred_region
    _
  $region9: #{fast_conformer_encoder.36} parent=0 // pred_fallthru
    _
  // Predicated region
  $region10: #{fast_conformer_encoder.36} parent=0 // pred_check
    _
  $region11: #{fast_conformer_encoder.36} parent=0 // pred_check_branch
    %15 = sbr.rel (0) target = $region13
  $region12: #{fast_conformer_encoder.36} parent=0 // pred_region
    _
  $region13: #{fast_conformer_encoder.36} parent=0 // pred_fallthru
    _
  // Predicated region
  $region14: #{fast_conformer_encoder.36} parent=0 // pred_check
    _
  $region15: #{fast_conformer_encoder.36} parent=0 // pred_check_branch
    %17 = sbr.rel (0) target = $region17
  $region16: #{fast_conformer_encoder.36} parent=0 // pred_region
    _
  $region17: #{fast_conformer_encoder.36} parent=0 // pred_fallthru
    _
  // Predicated region
  $region18: #{fast_conformer_encoder.36} parent=0 // pred_check
    _
  $region19: #{fast_conformer_encoder.36} parent=0 // pred_check_branch
    %19 = sbr.rel (0) target = $region21
  $region20: #{fast_conformer_encoder.36} parent=0 // pred_region
    _
  $region21: #{fast_conformer_encoder.36} parent=0 // pred_fallthru
    _
  %v21 = vld [vmem:[%s0] sm:$0xf]
  %v22 = vld [vmem:[%s0 + $0x4] sm:$0xf]
  %v23 = vunpack.c.l.bf16 %v21
  %v24 = vunpack.c.l.bf16 %v22
  %25 = vadd.xlane.f32.xlu0 %v23
  %v26 = vpop.xlane.xlu0 %25
  %27 = vadd.xlane.f32.xlu0 %v24
  %v28 = vpop.xlane.xlu0 %27
  %v29 = vmul.f32 %v26, 0.03125
  %v30 = vmul.f32 %v28, 0.03125
  %v31 = vmul.f32 %v23, %v23
  %v32 = vmul.f32 %v24, %v24
  %33 = vadd.xlane.f32.xlu0 %v31
  %v34 = vpop.xlane.xlu0 %33
  %35 = vadd.xlane.f32.xlu0 %v32
  %v36 = vpop.xlane.xlu0 %35
  %v37 = vmul.f32 %v34, 0.03125
  %v38 = vmul.f32 %v36, 0.03125
  %v39 = vmul.f32 %v29, %v29
  %v40 = vmul.f32 %v30, %v30
  %v41 = vsub.f32 %v37, %v39
  %v42 = vsub.f32 %v38, %v40
  %v43 = vsub.f32 %v23, %v29
  %v44 = vsub.f32 %v24, %v30
  %v45 = vadd.f32 %v41, 1e-05
  %v46 = vadd.f32 %v42, 1e-05
  %v47 = vrsqrt.pop %v45
  %v48 = vrsqrt.pop %v46
  %v49 = vmul.f32 %v43, %v47
  %v50 = vmul.f32 %v44, %v48
  %v51 = vld [vmem:[%s3] sm:$0x1]
  %v53 = vlaneseq
  %v54 = vshrl.u32 %v53, 7
  %v55 = vsub.s32 0, %v54
  %v56 = vrot.slane %v51, %v55
  %v58 = vmul.f32 %v49, %v56
  %v59 = vmul.f32 %v50, %v56
  %v60 = vld [vmem:[%s4] sm:$0x1]
  %v62 = vlaneseq
  %v63 = vshrl.u32 %v62, 7
  %v64 = vsub.s32 0, %v63
  %v65 = vrot.slane %v60, %v64
  %v67 = vadd.f32 %v58, %v65
  %v68 = vadd.f32 %v59, %v65
  %v69 = vpack.c.bf16 %v68, %v67
  %p70 = scmp.eq.s32.totalorder 0, 0
  // Predicated region
  $region22: #{fast_conformer_encoder.36} parent=0 // pred_check
    %p71 = pneg %p70
  $region23: #{fast_conformer_encoder.36} parent=0 // pred_check_branch
    %73 = sbr.rel (%p71) target = $region25
  $region24: #{fast_conformer_encoder.36} parent=0 // pred_region
    %74 = vst [vmem:[#allocation2] sm:$0xff] 0.0
    %75 = vst [vmem:[#allocation2 + $0x8] sm:$0xff] 0.0
  $region25: #{fast_conformer_encoder.36} parent=0 // pred_fallthru
    _
  %v76 = vld [vmem:[#allocation2] sm:$0xff]
  %v77 = vld [vmem:[#allocation2 + $0x8] sm:$0xff]
  %v78 = vld [vmem:[%s1] sm:$0xf]
  %v79 = vld [vmem:[%s1 + $0x4] sm:$0xf]
  %v80 = vld [vmem:[%s1 + $0x8] sm:$0xf]
  %v81 = vld [vmem:[%s1 + $0xc] sm:$0xf]
  %v82 = vld [vmem:[%s1 + $0x10] sm:$0xf]
  %v83 = vld [vmem:[%s1 + $0x14] sm:$0xf]
  %v84 = vld [vmem:[%s1 + $0x18] sm:$0xf]
  %v85 = vld [vmem:[%s1 + $0x1c] sm:$0xf]
  %v86 = vld [vmem:[%s1 + $0x20] sm:$0xf]
  %v87 = vld [vmem:[%s1 + $0x24] sm:$0xf]
  %v88 = vld [vmem:[%s1 + $0x28] sm:$0xf]
  %v89 = vld [vmem:[%s1 + $0x2c] sm:$0xf]
  %v90 = vld [vmem:[%s1 + $0x30] sm:$0xf]
  %v91 = vld [vmem:[%s1 + $0x34] sm:$0xf]
  %v92 = vld [vmem:[%s1 + $0x38] sm:$0xf]
  %v93 = vld [vmem:[%s1 + $0x3c] sm:$0xf]
  %v110 = vunpack.c.l.b16 %v78
  %v111 = vunpack.c.l.b16 %v79
  %v112 = vunpack.c.l.b16 %v80
  %v113 = vunpack.c.l.b16 %v81
  %v114 = vunpack.c.l.b16 %v82
  %v115 = vunpack.c.l.b16 %v83
  %v116 = vunpack.c.l.b16 %v84
  %v117 = vunpack.c.l.b16 %v85
  %v118 = vunpack.c.l.b16 %v86
  %v119 = vunpack.c.l.b16 %v87
  %v120 = vunpack.c.l.b16 %v88
  %v121 = vunpack.c.l.b16 %v89
  %v122 = vunpack.c.l.b16 %v90
  %v123 = vunpack.c.l.b16 %v91
  %v124 = vunpack.c.l.b16 %v92
  %v125 = vunpack.c.l.b16 %v93
  %v126 = vpack.c.b16 %v111, %v110
  %v127 = vpack.c.b16 %v113, %v112
  %v128 = vpack.c.b16 %v115, %v114
  %v129 = vpack.c.b16 %v117, %v116
  %v130 = vpack.c.b16 %v119, %v118
  %v131 = vpack.c.b16 %v121, %v120
  %v132 = vpack.c.b16 %v123, %v122
  %v133 = vpack.c.b16 %v125, %v124
  %142 = vmatprep.subr.bf16.mxu0 0
  %143 = vmatpush1.bf16.msra.mxu0 %v126
  %144 = vmatprep.subr.bf16.mxu0 0
  %145 = vmatpush1.bf16.msra.mxu0 %v127
  %146 = vmatprep.subr.bf16.mxu0 0
  %147 = vmatpush1.bf16.msra.mxu0 %v128
  %148 = vmatprep.subr.bf16.mxu0 0
  %149 = vmatpush1.bf16.msra.mxu0 %v129
  %150 = vmatprep.subr.bf16.mxu0 0
  %151 = vmatpush1.bf16.msra.mxu0 %v130
  %152 = vmatprep.subr.bf16.mxu0 0
  %153 = vmatpush1.bf16.msra.mxu0 %v131
  %154 = vmatprep.subr.bf16.mxu0 0
  %155 = vmatpush1.bf16.msra.mxu0 %v132
  %156 = vmatprep.subr.bf16.mxu0 0
  %157 = vmatpush1.bf16.msra.mxu0 %v133
  %158 = vmatprep.subr.bf16.mxu0 0
  %159 = vmatpush1.bf16.msra.mxu0 0
  %160 = vmatprep.subr.bf16.mxu0 0
  %161 = vmatpush1.bf16.msra.mxu0 0
  %162 = vmatprep.subr.bf16.mxu0 0
  %163 = vmatpush1.bf16.msra.mxu0 0
  %164 = vmatprep.subr.bf16.mxu0 0
  %165 = vmatpush1.bf16.msra.mxu0 0
  %166 = vmatprep.subr.bf16.mxu0 0
  %167 = vmatpush1.bf16.msra.mxu0 0
  %168 = vmatprep.subr.bf16.mxu0 0
  %169 = vmatpush1.bf16.msra.mxu0 0
  %170 = vmatprep.subr.bf16.mxu0 0
  %171 = vmatpush1.bf16.msra.mxu0 0
  %172 = vmatprep.subr.bf16.mxu0 0
  %173 = vmatpush1.bf16.msra.mxu0 0
  %174 = vmatprep.mubr.bf16.mxu0 0
  %175 = vmatmul.mubr.bf16.gmra.mrb[0].mxu0 %v69
  %v176 = vpop.f32.mrb[0].mxu0
  %v177 = vadd.f32 0.0, %v176
  %v178 = vpop.f32.mrb[0].mxu0
  %v179 = vpop.f32.mrb[0].mxu0
  %v180 = vadd.f32 0.0, %v179
  %v181 = vpop.f32.mrb[0].mxu0
  %182 = vdwg.mxu0
  %v183 = vadd.f32 %v76, %v177
  %v184 = vadd.f32 %v77, %v180
  %185 = vst [vmem:[#allocation2] sm:$0xff] %v183
  %186 = vst [vmem:[#allocation2 + $0x8] sm:$0xff] %v184
  // Predicated region
  $region26: #{fast_conformer_encoder.36} parent=0 // pred_check
    %p187 = pneg %p70
  $region27: #{fast_conformer_encoder.36} parent=0 // pred_check_branch
    %189 = sbr.rel (%p187) target = $region29
  $region28: #{fast_conformer_encoder.36} parent=0 // pred_region
    %v190 = vld [vmem:[#allocation2] sm:$0xff]
    %v191 = vld [vmem:[#allocation2 + $0x8] sm:$0xff]
    %v192 = vld [vmem:[%s2] sm:$0x1]
    %v194 = vlaneseq
    %v195 = vshrl.u32 %v194, 7
    %v196 = vsub.s32 0, %v195
    %v197 = vrot.slane %v192, %v196
    %v199 = vadd.f32 %v190, %v197
    %v200 = vadd.f32 %v191, %v197
    %v201 = vxor.u32 %v199, 2147483648
    %v202 = vxor.u32 %v200, 2147483648
    %v203 = vmul.f32 %v201, 1.442695
    %v204 = vpow.pop %v203
    %v205 = vmul.f32 %v202, 1.442695
    %v206 = vpow.pop %v205
    %v207 = vadd.f32 %v204, 1.0
    %v208 = vadd.f32 %v206, 1.0
    %v209 = vrcp.pop %v207
    %v210 = vmul.f32 1.0, %v209
    %v211 = vrcp.pop %v208
    %v212 = vmul.f32 1.0, %v211
    %v213 = vmul.f32 %v199, %v210
    %v214 = vmul.f32 %v200, %v212
    %v215 = vpack.c.bf16 %v214, %v213
    %v217 = vunpack.c.l.b16 %v215
    %v218 = vunpack.c.h.b16 %v215
    %v219 = vpack.c.b16 %v217, %v217
    %v220 = vpack.c.b16 %v218, %v218
    %223 = vst [vmem:[%s5] sm:$0xf] %v219
    %224 = vst [vmem:[%s5 + $0x4] sm:$0xf] %v220
  $region29: #{fast_conformer_encoder.36} parent=0 // pred_fallthru
    _
  // Predicated region
  $region30: #{fast_conformer_encoder.36} parent=0 // pred_check
    _
  $region31: #{fast_conformer_encoder.36} parent=0 // pred_check_branch
    %226 = sbr.rel (0) target = $region33
  $region32: #{fast_conformer_encoder.36} parent=0 // pred_region
    _
  $region33: #{fast_conformer_encoder.36} parent=0 // pred_fallthru
    _
  // Predicated region
  $region34: #{fast_conformer_encoder.36} parent=0 // pred_check
    _
  $region35: #{fast_conformer_encoder.36} parent=0 // pred_check_branch
    %228 = sbr.rel (0) target = $region37
  $region36: #{fast_conformer_encoder.36} parent=0 // pred_region
    _
  $region37: #{fast_conformer_encoder.36} parent=0 // pred_fallthru
    _

// kernel: fast_conformer_encoder.35
$region0: #{fast_conformer_encoder.35}
  #allocation0 [shape = 'u32[]', space=smem, size = 0x4, offset = 0x4, fixed_abs, tag = 'smem constant byte address 0x4 - core index']
  #allocation1 [shape = 'u32[144,128]{1,0:T(1,128)}', space=vmem, size = 0x12000, scoped, tag = 'internal scratch']
  #allocation2 [shape = 'f32[16,128]{1,0:T(8,128)}', space=vmem, size = 0x2000, scoped, tag = 'scratch operand']
  %s0 = inlined_call_operand.vmem [shape: bf16[16,128], index: 0, kind: input, shape index: {}]
  %s1 = inlined_call_operand.vmem [shape: bf16[128,128], index: 1, kind: input, shape index: {}]
  %s2 = inlined_call_operand.vmem [shape: f32[1,128], index: 2, kind: input, shape index: {}]
  %s3 = inlined_call_operand.vmem [shape: bf16[16,128], index: 3, kind: output, shape index: {}]
  %s4 = sld [smem:[#allocation0]]
  $region30: #{fast_conformer_encoder.35} parent=0
    _
  %s6 = ssub.s32 1, %s4
  %s7 = scalar_select 0, %s6, %s4
  // Predicated region
  $region2: #{fast_conformer_encoder.35} parent=0 // pred_check
    _
  $region3: #{fast_conformer_encoder.35} parent=0 // pred_check_branch
    %9 = sbr.rel (0) target = $region5
  $region4: #{fast_conformer_encoder.35} parent=0 // pred_region
    _
  $region5: #{fast_conformer_encoder.35} parent=0 // pred_fallthru
    _
  // Predicated region
  $region6: #{fast_conformer_encoder.35} parent=0 // pred_check
    _
  $region7: #{fast_conformer_encoder.35} parent=0 // pred_check_branch
    %11 = sbr.rel (0) target = $region9
  $region8: #{fast_conformer_encoder.35} parent=0 // pred_region
    _
  $region9: #{fast_conformer_encoder.35} parent=0 // pred_fallthru
    _
  // Predicated region
  $region10: #{fast_conformer_encoder.35} parent=0 // pred_check
    _
  $region11: #{fast_conformer_encoder.35} parent=0 // pred_check_branch
    %13 = sbr.rel (0) target = $region13
  $region12: #{fast_conformer_encoder.35} parent=0 // pred_region
    _
  $region13: #{fast_conformer_encoder.35} parent=0 // pred_fallthru
    _
  %v15 = vld [vmem:[%s0] sm:$0xf]
  %v16 = vld [vmem:[%s0 + $0x4] sm:$0xf]
  %p17 = scmp.eq.s32.totalorder 0, 0
  // Predicated region
  $region14: #{fast_conformer_encoder.35} parent=0 // pred_check
    %p18 = pneg %p17
  $region15: #{fast_conformer_encoder.35} parent=0 // pred_check_branch
    %20 = sbr.rel (%p18) target = $region17
  $region16: #{fast_conformer_encoder.35} parent=0 // pred_region
    %21 = vst [vmem:[#allocation2] sm:$0xff] 0.0
    %22 = vst [vmem:[#allocation2 + $0x8] sm:$0xff] 0.0
  $region17: #{fast_conformer_encoder.35} parent=0 // pred_fallthru
    _
  %v23 = vld [vmem:[#allocation2] sm:$0xff]
  %v24 = vld [vmem:[#allocation2 + $0x8] sm:$0xff]
  %v25 = vld [vmem:[%s1] sm:$0xf]
  %v26 = vld [vmem:[%s1 + $0x4] sm:$0xf]
  %v27 = vld [vmem:[%s1 + $0x8] sm:$0xf]
  %v28 = vld [vmem:[%s1 + $0xc] sm:$0xf]
  %v29 = vld [vmem:[%s1 + $0x10] sm:$0xf]
  %v30 = vld [vmem:[%s1 + $0x14] sm:$0xf]
  %v31 = vld [vmem:[%s1 + $0x18] sm:$0xf]
  %v32 = vld [vmem:[%s1 + $0x1c] sm:$0xf]
  %v33 = vld [vmem:[%s1 + $0x20] sm:$0xf]
  %v34 = vld [vmem:[%s1 + $0x24] sm:$0xf]
  %v35 = vld [vmem:[%s1 + $0x28] sm:$0xf]
  %v36 = vld [vmem:[%s1 + $0x2c] sm:$0xf]
  %v37 = vld [vmem:[%s1 + $0x30] sm:$0xf]
  %v38 = vld [vmem:[%s1 + $0x34] sm:$0xf]
  %v39 = vld [vmem:[%s1 + $0x38] sm:$0xf]
  %v40 = vld [vmem:[%s1 + $0x3c] sm:$0xf]
  %v43 = vunpack.c.l.b16 %v15
  %v44 = vunpack.c.l.b16 %v16
  %v45 = vpack.c.b16 %v44, %v43
  %v63 = vunpack.c.l.b16 %v25
  %v64 = vunpack.c.l.b16 %v26
  %v65 = vunpack.c.l.b16 %v27
  %v66 = vunpack.c.l.b16 %v28
  %v67 = vunpack.c.l.b16 %v29
  %v68 = vunpack.c.l.b16 %v30
  %v69 = vunpack.c.l.b16 %v31
  %v70 = vunpack.c.l.b16 %v32
  %v71 = vunpack.c.l.b16 %v33
  %v72 = vunpack.c.l.b16 %v34
  %v73 = vunpack.c.l.b16 %v35
  %v74 = vunpack.c.l.b16 %v36
  %v75 = vunpack.c.l.b16 %v37
  %v76 = vunpack.c.l.b16 %v38
  %v77 = vunpack.c.l.b16 %v39
  %v78 = vunpack.c.l.b16 %v40
  %v79 = vpack.c.b16 %v64, %v63
  %v80 = vpack.c.b16 %v66, %v65
  %v81 = vpack.c.b16 %v68, %v67
  %v82 = vpack.c.b16 %v70, %v69
  %v83 = vpack.c.b16 %v72, %v71
  %v84 = vpack.c.b16 %v74, %v73
  %v85 = vpack.c.b16 %v76, %v75
  %v86 = vpack.c.b16 %v78, %v77
  %95 = vmatprep.subr.bf16.mxu0 0
  %96 = vmatpush1.bf16.msra.mxu0 %v79
  %97 = vmatprep.subr.bf16.mxu0 0
  %98 = vmatpush1.bf16.msra.mxu0 %v80
  %99 = vmatprep.subr.bf16.mxu0 0
  %100 = vmatpush1.bf16.msra.mxu0 %v81
  %101 = vmatprep.subr.bf16.mxu0 0
  %102 = vmatpush1.bf16.msra.mxu0 %v82
  %103 = vmatprep.subr.bf16.mxu0 0
  %104 = vmatpush1.bf16.msra.mxu0 %v83
  %105 = vmatprep.subr.bf16.mxu0 0
  %106 = vmatpush1.bf16.msra.mxu0 %v84
  %107 = vmatprep.subr.bf16.mxu0 0
  %108 = vmatpush1.bf16.msra.mxu0 %v85
  %109 = vmatprep.subr.bf16.mxu0 0
  %110 = vmatpush1.bf16.msra.mxu0 %v86
  %111 = vmatprep.subr.bf16.mxu0 0
  %112 = vmatpush1.bf16.msra.mxu0 0
  %113 = vmatprep.subr.bf16.mxu0 0
  %114 = vmatpush1.bf16.msra.mxu0 0
  %115 = vmatprep.subr.bf16.mxu0 0
  %116 = vmatpush1.bf16.msra.mxu0 0
  %117 = vmatprep.subr.bf16.mxu0 0
  %118 = vmatpush1.bf16.msra.mxu0 0
  %119 = vmatprep.subr.bf16.mxu0 0
  %120 = vmatpush1.bf16.msra.mxu0 0
  %121 = vmatprep.subr.bf16.mxu0 0
  %122 = vmatpush1.bf16.msra.mxu0 0
  %123 = vmatprep.subr.bf16.mxu0 0
  %124 = vmatpush1.bf16.msra.mxu0 0
  %125 = vmatprep.subr.bf16.mxu0 0
  %126 = vmatpush1.bf16.msra.mxu0 0
  %127 = vmatprep.mubr.bf16.mxu0 0
  %128 = vmatmul.mubr.bf16.gmra.mrb[0].mxu0 %v45
  %v129 = vpop.f32.mrb[0].mxu0
  %v130 = vadd.f32 0.0, %v129
  %v131 = vpop.f32.mrb[0].mxu0
  %v132 = vpop.f32.mrb[0].mxu0
  %v133 = vadd.f32 0.0, %v132
  %v134 = vpop.f32.mrb[0].mxu0
  %135 = vdwg.mxu0
  %v136 = vadd.f32 %v23, %v130
  %v137 = vadd.f32 %v24, %v133
  %138 = vst [vmem:[#allocation2] sm:$0xff] %v136
  %139 = vst [vmem:[#allocation2 + $0x8] sm:$0xff] %v137
  // Predicated region
  $region18: #{fast_conformer_encoder.35} parent=0 // pred_check
    %p140 = pneg %p17
  $region19: #{fast_conformer_encoder.35} parent=0 // pred_check_branch
    %142 = sbr.rel (%p140) target = $region21
  $region20: #{fast_conformer_encoder.35} parent=0 // pred_region
    %v143 = vld [vmem:[#allocation2] sm:$0xff]
    %v144 = vld [vmem:[#allocation2 + $0x8] sm:$0xff]
    %v145 = vld [vmem:[%s2] sm:$0x1]
    %v147 = vlaneseq
    %v148 = vshrl.u32 %v147, 7
    %v149 = vsub.s32 0, %v148
    %v150 = vrot.slane %v145, %v149
    %v152 = vadd.f32 %v143, %v150
    %v153 = vadd.f32 %v144, %v150
    %v154 = vpack.c.bf16 %v153, %v152
    %v156 = vunpack.c.l.b16 %v154
    %v157 = vunpack.c.h.b16 %v154
    %v158 = vpack.c.b16 %v156, %v156
    %v159 = vpack.c.b16 %v157, %v157
    %162 = vst [vmem:[%s3] sm:$0xf] %v158
    %163 = vst [vmem:[%s3 + $0x4] sm:$0xf] %v159
  $region21: #{fast_conformer_encoder.35} parent=0 // pred_fallthru
    _
  // Predicated region
  $region22: #{fast_conformer_encoder.35} parent=0 // pred_check
    _
  $region23: #{fast_conformer_encoder.35} parent=0 // pred_check_branch
    %165 = sbr.rel (0) target = $region25
  $region24: #{fast_conformer_encoder.35} parent=0 // pred_region
    _
  $region25: #{fast_conformer_encoder.35} parent=0 // pred_fallthru
    _
  // Predicated region
  $region26: #{fast_conformer_encoder.35} parent=0 // pred_check
    _
  $region27: #{fast_conformer_encoder.35} parent=0 // pred_check_branch
    %167 = sbr.rel (0) target = $region29
  $region28: #{fast_conformer_encoder.35} parent=0 // pred_region
    _
  $region29: #{fast_conformer_encoder.35} parent=0 // pred_fallthru
    _

// kernel: fast_conformer_encoder.37
$region0: #{fast_conformer_encoder.37}
  #allocation0 [shape = 'u32[]', space=smem, size = 0x4, offset = 0x4, fixed_abs, tag = 'smem constant byte address 0x4 - core index']
  #allocation1 [shape = 'u32[144,128]{1,0:T(1,128)}', space=vmem, size = 0x12000, scoped, tag = 'internal scratch']
  #allocation2 [shape = 'f32[16,128]{1,0:T(8,128)}', space=vmem, size = 0x2000, scoped, tag = 'scratch operand']
  %s0 = inlined_call_operand.vmem [shape: bf16[16,128], index: 0, kind: input, shape index: {}]
  %s1 = inlined_call_operand.vmem [shape: bf16[128,128], index: 1, kind: input, shape index: {}]
  %s2 = inlined_call_operand.vmem [shape: f32[1,128], index: 2, kind: input, shape index: {}]
  %s3 = inlined_call_operand.vmem [shape: bf16[16,128], index: 3, kind: input, shape index: {}]
  %s4 = inlined_call_operand.vmem [shape: bf16[16,128], index: 4, kind: output, shape index: {}]
  %s5 = sld [smem:[#allocation0]]
  $region34: #{fast_conformer_encoder.37} parent=0
    _
  %s7 = ssub.s32 1, %s5
  %s8 = scalar_select 0, %s7, %s5
  // Predicated region
  $region2: #{fast_conformer_encoder.37} parent=0 // pred_check
    _
  $region3: #{fast_conformer_encoder.37} parent=0 // pred_check_branch
    %10 = sbr.rel (0) target = $region5
  $region4: #{fast_conformer_encoder.37} parent=0 // pred_region
    _
  $region5: #{fast_conformer_encoder.37} parent=0 // pred_fallthru
    _
  // Predicated region
  $region6: #{fast_conformer_encoder.37} parent=0 // pred_check
    _
  $region7: #{fast_conformer_encoder.37} parent=0 // pred_check_branch
    %12 = sbr.rel (0) target = $region9
  $region8: #{fast_conformer_encoder.37} parent=0 // pred_region
    _
  $region9: #{fast_conformer_encoder.37} parent=0 // pred_fallthru
    _
  // Predicated region
  $region10: #{fast_conformer_encoder.37} parent=0 // pred_check
    _
  $region11: #{fast_conformer_encoder.37} parent=0 // pred_check_branch
    %14 = sbr.rel (0) target = $region13
  $region12: #{fast_conformer_encoder.37} parent=0 // pred_region
    _
  $region13: #{fast_conformer_encoder.37} parent=0 // pred_fallthru
    _
  // Predicated region
  $region14: #{fast_conformer_encoder.37} parent=0 // pred_check
    _
  $region15: #{fast_conformer_encoder.37} parent=0 // pred_check_branch
    %16 = sbr.rel (0) target = $region17
  $region16: #{fast_conformer_encoder.37} parent=0 // pred_region
    _
  $region17: #{fast_conformer_encoder.37} parent=0 // pred_fallthru
    _
  %v18 = vld [vmem:[%s0] sm:$0xf]
  %v19 = vld [vmem:[%s0 + $0x4] sm:$0xf]
  %p20 = scmp.eq.s32.totalorder 0, 0
  // Predicated region
  $region18: #{fast_conformer_encoder.37} parent=0 // pred_check
    %p21 = pneg %p20
  $region19: #{fast_conformer_encoder.37} parent=0 // pred_check_branch
    %23 = sbr.rel (%p21) target = $region21
  $region20: #{fast_conformer_encoder.37} parent=0 // pred_region
    %24 = vst [vmem:[#allocation2] sm:$0xff] 0.0
    %25 = vst [vmem:[#allocation2 + $0x8] sm:$0xff] 0.0
  $region21: #{fast_conformer_encoder.37} parent=0 // pred_fallthru
    _
  %v26 = vld [vmem:[#allocation2] sm:$0xff]
  %v27 = vld [vmem:[#allocation2 + $0x8] sm:$0xff]
  %v28 = vld [vmem:[%s1] sm:$0xf]
  %v29 = vld [vmem:[%s1 + $0x4] sm:$0xf]
  %v30 = vld [vmem:[%s1 + $0x8] sm:$0xf]
  %v31 = vld [vmem:[%s1 + $0xc] sm:$0xf]
  %v32 = vld [vmem:[%s1 + $0x10] sm:$0xf]
  %v33 = vld [vmem:[%s1 + $0x14] sm:$0xf]
  %v34 = vld [vmem:[%s1 + $0x18] sm:$0xf]
  %v35 = vld [vmem:[%s1 + $0x1c] sm:$0xf]
  %v36 = vld [vmem:[%s1 + $0x20] sm:$0xf]
  %v37 = vld [vmem:[%s1 + $0x24] sm:$0xf]
  %v38 = vld [vmem:[%s1 + $0x28] sm:$0xf]
  %v39 = vld [vmem:[%s1 + $0x2c] sm:$0xf]
  %v40 = vld [vmem:[%s1 + $0x30] sm:$0xf]
  %v41 = vld [vmem:[%s1 + $0x34] sm:$0xf]
  %v42 = vld [vmem:[%s1 + $0x38] sm:$0xf]
  %v43 = vld [vmem:[%s1 + $0x3c] sm:$0xf]
  %v46 = vunpack.c.l.b16 %v18
  %v47 = vunpack.c.l.b16 %v19
  %v48 = vpack.c.b16 %v47, %v46
  %v66 = vunpack.c.l.b16 %v28
  %v67 = vunpack.c.l.b16 %v29
  %v68 = vunpack.c.l.b16 %v30
  %v69 = vunpack.c.l.b16 %v31
  %v70 = vunpack.c.l.b16 %v32
  %v71 = vunpack.c.l.b16 %v33
  %v72 = vunpack.c.l.b16 %v34
  %v73 = vunpack.c.l.b16 %v35
  %v74 = vunpack.c.l.b16 %v36
  %v75 = vunpack.c.l.b16 %v37
  %v76 = vunpack.c.l.b16 %v38
  %v77 = vunpack.c.l.b16 %v39
  %v78 = vunpack.c.l.b16 %v40
  %v79 = vunpack.c.l.b16 %v41
  %v80 = vunpack.c.l.b16 %v42
  %v81 = vunpack.c.l.b16 %v43
  %v82 = vpack.c.b16 %v67, %v66
  %v83 = vpack.c.b16 %v69, %v68
  %v84 = vpack.c.b16 %v71, %v70
  %v85 = vpack.c.b16 %v73, %v72
  %v86 = vpack.c.b16 %v75, %v74
  %v87 = vpack.c.b16 %v77, %v76
  %v88 = vpack.c.b16 %v79, %v78
  %v89 = vpack.c.b16 %v81, %v80
  %98 = vmatprep.subr.bf16.mxu0 0
  %99 = vmatpush1.bf16.msra.mxu0 %v82
  %100 = vmatprep.subr.bf16.mxu0 0
  %101 = vmatpush1.bf16.msra.mxu0 %v83
  %102 = vmatprep.subr.bf16.mxu0 0
  %103 = vmatpush1.bf16.msra.mxu0 %v84
  %104 = vmatprep.subr.bf16.mxu0 0
  %105 = vmatpush1.bf16.msra.mxu0 %v85
  %106 = vmatprep.subr.bf16.mxu0 0
  %107 = vmatpush1.bf16.msra.mxu0 %v86
  %108 = vmatprep.subr.bf16.mxu0 0
  %109 = vmatpush1.bf16.msra.mxu0 %v87
  %110 = vmatprep.subr.bf16.mxu0 0
  %111 = vmatpush1.bf16.msra.mxu0 %v88
  %112 = vmatprep.subr.bf16.mxu0 0
  %113 = vmatpush1.bf16.msra.mxu0 %v89
  %114 = vmatprep.subr.bf16.mxu0 0
  %115 = vmatpush1.bf16.msra.mxu0 0
  %116 = vmatprep.subr.bf16.mxu0 0
  %117 = vmatpush1.bf16.msra.mxu0 0
  %118 = vmatprep.subr.bf16.mxu0 0
  %119 = vmatpush1.bf16.msra.mxu0 0
  %120 = vmatprep.subr.bf16.mxu0 0
  %121 = vmatpush1.bf16.msra.mxu0 0
  %122 = vmatprep.subr.bf16.mxu0 0
  %123 = vmatpush1.bf16.msra.mxu0 0
  %124 = vmatprep.subr.bf16.mxu0 0
  %125 = vmatpush1.bf16.msra.mxu0 0
  %126 = vmatprep.subr.bf16.mxu0 0
  %127 = vmatpush1.bf16.msra.mxu0 0
  %128 = vmatprep.subr.bf16.mxu0 0
  %129 = vmatpush1.bf16.msra.mxu0 0
  %130 = vmatprep.mubr.bf16.mxu0 0
  %131 = vmatmul.mubr.bf16.gmra.mrb[0].mxu0 %v48
  %v132 = vpop.f32.mrb[0].mxu0
  %v133 = vadd.f32 0.0, %v132
  %v134 = vpop.f32.mrb[0].mxu0
  %v135 = vpop.f32.mrb[0].mxu0
  %v136 = vadd.f32 0.0, %v135
  %v137 = vpop.f32.mrb[0].mxu0
  %138 = vdwg.mxu0
  %v139 = vadd.f32 %v26, %v133
  %v140 = vadd.f32 %v27, %v136
  %141 = vst [vmem:[#allocation2] sm:$0xff] %v139
  %142 = vst [vmem:[#allocation2 + $0x8] sm:$0xff] %v140
  // Predicated region
  $region22: #{fast_conformer_encoder.37} parent=0 // pred_check
    %p143 = pneg %p20
  $region23: #{fast_conformer_encoder.37} parent=0 // pred_check_branch
    %145 = sbr.rel (%p143) target = $region25
  $region24: #{fast_conformer_encoder.37} parent=0 // pred_region
    %v146 = vld [vmem:[#allocation2] sm:$0xff]
    %v147 = vld [vmem:[#allocation2 + $0x8] sm:$0xff]
    %v148 = vld [vmem:[%s2] sm:$0x1]
    %v150 = vlaneseq
    %v151 = vshrl.u32 %v150, 7
    %v152 = vsub.s32 0, %v151
    %v153 = vrot.slane %v148, %v152
    %v155 = vadd.f32 %v146, %v153
    %v156 = vadd.f32 %v147, %v153
    %v157 = vmul.f32 %v155, 0.5
    %v158 = vmul.f32 %v156, 0.5
    %v159 = vld [vmem:[%s3] sm:$0xf]
    %v160 = vld [vmem:[%s3 + $0x4] sm:$0xf]
    %v161 = vunpack.c.l.bf16 %v159
    %v162 = vunpack.c.l.bf16 %v160
    %v163 = vadd.f32 %v157, %v161
    %v164 = vadd.f32 %v158, %v162
    %v165 = vpack.c.bf16 %v164, %v163
    %v167 = vunpack.c.l.b16 %v165
    %v168 = vunpack.c.h.b16 %v165
    %v169 = vpack.c.b16 %v167, %v167
    %v170 = vpack.c.b16 %v168, %v168
    %173 = vst [vmem:[%s4] sm:$0xf] %v169
    %174 = vst [vmem:[%s4 + $0x4] sm:$0xf] %v170
  $region25: #{fast_conformer_encoder.37} parent=0 // pred_fallthru
    _
  // Predicated region
  $region26: #{fast_conformer_encoder.37} parent=0 // pred_check
    _
  $region27: #{fast_conformer_encoder.37} parent=0 // pred_check_branch
    %176 = sbr.rel (0) target = $region29
  $region28: #{fast_conformer_encoder.37} parent=0 // pred_region
    _
  $region29: #{fast_conformer_encoder.37} parent=0 // pred_fallthru
    _
  // Predicated region
  $region30: #{fast_conformer_encoder.37} parent=0 // pred_check
    _
  $region31: #{fast_conformer_encoder.37} parent=0 // pred_check_branch
    %178 = sbr.rel (0) target = $region33
  $region32: #{fast_conformer_encoder.37} parent=0 // pred_region
    _
  $region33: #{fast_conformer_encoder.37} parent=0 // pred_fallthru
    _

// kernel: fast_conformer_encoder.41
$region0: #{fast_conformer_encoder.41}
  #allocation0 [shape = 'u32[]', space=smem, size = 0x4, offset = 0x4, fixed_abs, tag = 'smem constant byte address 0x4 - core index']
  #allocation1 [shape = 'u32[144,128]{1,0:T(1,128)}', space=vmem, size = 0x12000, scoped, tag = 'internal scratch']
  #allocation2 [shape = 'f32[8,128]{1,0:T(8,128)}', space=vmem, size = 0x1000, scoped, tag = 'scratch operand']
  %s0 = inlined_call_operand.vmem [shape: bf16[8,128], index: 0, kind: input, shape index: {}]
  %s1 = inlined_call_operand.vmem [shape: bf16[128,128], index: 1, kind: input, shape index: {}]
  %s2 = inlined_call_operand.vmem [shape: f32[1,128], index: 2, kind: input, shape index: {}]
  %s3 = inlined_call_operand.vmem [shape: bf16[8,128], index: 3, kind: output, shape index: {}]
  %s4 = sld [smem:[#allocation0]]
  $region30: #{fast_conformer_encoder.41} parent=0
    _
  %s6 = ssub.s32 1, %s4
  %s7 = scalar_select 0, %s6, %s4
  // Predicated region
  $region2: #{fast_conformer_encoder.41} parent=0 // pred_check
    _
  $region3: #{fast_conformer_encoder.41} parent=0 // pred_check_branch
    %9 = sbr.rel (0) target = $region5
  $region4: #{fast_conformer_encoder.41} parent=0 // pred_region
    _
  $region5: #{fast_conformer_encoder.41} parent=0 // pred_fallthru
    _
  // Predicated region
  $region6: #{fast_conformer_encoder.41} parent=0 // pred_check
    _
  $region7: #{fast_conformer_encoder.41} parent=0 // pred_check_branch
    %11 = sbr.rel (0) target = $region9
  $region8: #{fast_conformer_encoder.41} parent=0 // pred_region
    _
  $region9: #{fast_conformer_encoder.41} parent=0 // pred_fallthru
    _
  // Predicated region
  $region10: #{fast_conformer_encoder.41} parent=0 // pred_check
    _
  $region11: #{fast_conformer_encoder.41} parent=0 // pred_check_branch
    %13 = sbr.rel (0) target = $region13
  $region12: #{fast_conformer_encoder.41} parent=0 // pred_region
    _
  $region13: #{fast_conformer_encoder.41} parent=0 // pred_fallthru
    _
  %v15 = vld [vmem:[%s0] sm:$0xf]
  %p16 = scmp.eq.s32.totalorder 0, 0
  // Predicated region
  $region14: #{fast_conformer_encoder.41} parent=0 // pred_check
    %p17 = pneg %p16
  $region15: #{fast_conformer_encoder.41} parent=0 // pred_check_branch
    %19 = sbr.rel (%p17) target = $region17
  $region16: #{fast_conformer_encoder.41} parent=0 // pred_region
    %20 = vst [vmem:[#allocation2] sm:$0xff] 0.0
  $region17: #{fast_conformer_encoder.41} parent=0 // pred_fallthru
    _
  %v21 = vld [vmem:[#allocation2] sm:$0xff]
  %v22 = vld [vmem:[%s1] sm:$0xf]
  %v23 = vld [vmem:[%s1 + $0x4] sm:$0xf]
  %v24 = vld [vmem:[%s1 + $0x8] sm:$0xf]
  %v25 = vld [vmem:[%s1 + $0xc] sm:$0xf]
  %v26 = vld [vmem:[%s1 + $0x10] sm:$0xf]
  %v27 = vld [vmem:[%s1 + $0x14] sm:$0xf]
  %v28 = vld [vmem:[%s1 + $0x18] sm:$0xf]
  %v29 = vld [vmem:[%s1 + $0x1c] sm:$0xf]
  %v30 = vld [vmem:[%s1 + $0x20] sm:$0xf]
  %v31 = vld [vmem:[%s1 + $0x24] sm:$0xf]
  %v32 = vld [vmem:[%s1 + $0x28] sm:$0xf]
  %v33 = vld [vmem:[%s1 + $0x2c] sm:$0xf]
  %v34 = vld [vmem:[%s1 + $0x30] sm:$0xf]
  %v35 = vld [vmem:[%s1 + $0x34] sm:$0xf]
  %v36 = vld [vmem:[%s1 + $0x38] sm:$0xf]
  %v37 = vld [vmem:[%s1 + $0x3c] sm:$0xf]
  %v54 = vunpack.c.l.b16 %v22
  %v55 = vunpack.c.l.b16 %v23
  %v56 = vunpack.c.l.b16 %v24
  %v57 = vunpack.c.l.b16 %v25
  %v58 = vunpack.c.l.b16 %v26
  %v59 = vunpack.c.l.b16 %v27
  %v60 = vunpack.c.l.b16 %v28
  %v61 = vunpack.c.l.b16 %v29
  %v62 = vunpack.c.l.b16 %v30
  %v63 = vunpack.c.l.b16 %v31
  %v64 = vunpack.c.l.b16 %v32
  %v65 = vunpack.c.l.b16 %v33
  %v66 = vunpack.c.l.b16 %v34
  %v67 = vunpack.c.l.b16 %v35
  %v68 = vunpack.c.l.b16 %v36
  %v69 = vunpack.c.l.b16 %v37
  %v70 = vpack.c.b16 %v55, %v54
  %v71 = vpack.c.b16 %v57, %v56
  %v72 = vpack.c.b16 %v59, %v58
  %v73 = vpack.c.b16 %v61, %v60
  %v74 = vpack.c.b16 %v63, %v62
  %v75 = vpack.c.b16 %v65, %v64
  %v76 = vpack.c.b16 %v67, %v66
  %v77 = vpack.c.b16 %v69, %v68
  %86 = vmatprep.subr.bf16.mxu0 0
  %87 = vmatpush1.bf16.msra.mxu0 %v70
  %88 = vmatprep.subr.bf16.mxu0 0
  %89 = vmatpush1.bf16.msra.mxu0 %v71
  %90 = vmatprep.subr.bf16.mxu0 0
  %91 = vmatpush1.bf16.msra.mxu0 %v72
  %92 = vmatprep.subr.bf16.mxu0 0
  %93 = vmatpush1.bf16.msra.mxu0 %v73
  %94 = vmatprep.subr.bf16.mxu0 0
  %95 = vmatpush1.bf16.msra.mxu0 %v74
  %96 = vmatprep.subr.bf16.mxu0 0
  %97 = vmatpush1.bf16.msra.mxu0 %v75
  %98 = vmatprep.subr.bf16.mxu0 0
  %99 = vmatpush1.bf16.msra.mxu0 %v76
  %100 = vmatprep.subr.bf16.mxu0 0
  %101 = vmatpush1.bf16.msra.mxu0 %v77
  %102 = vmatprep.subr.bf16.mxu0 0
  %103 = vmatpush1.bf16.msra.mxu0 0
  %104 = vmatprep.subr.bf16.mxu0 0
  %105 = vmatpush1.bf16.msra.mxu0 0
  %106 = vmatprep.subr.bf16.mxu0 0
  %107 = vmatpush1.bf16.msra.mxu0 0
  %108 = vmatprep.subr.bf16.mxu0 0
  %109 = vmatpush1.bf16.msra.mxu0 0
  %110 = vmatprep.subr.bf16.mxu0 0
  %111 = vmatpush1.bf16.msra.mxu0 0
  %112 = vmatprep.subr.bf16.mxu0 0
  %113 = vmatpush1.bf16.msra.mxu0 0
  %114 = vmatprep.subr.bf16.mxu0 0
  %115 = vmatpush1.bf16.msra.mxu0 0
  %116 = vmatprep.subr.bf16.mxu0 0
  %117 = vmatpush1.bf16.msra.mxu0 0
  %118 = vmatprep.mubr.bf16.mxu0 0
  %119 = vmatmul.mubr.bf16.gmra.mrb[0].mxu0 %v15
  %v120 = vpop.f32.mrb[0].mxu0
  %v121 = vadd.f32 0.0, %v120
  %v122 = vpop.f32.mrb[0].mxu0
  %v123 = vpop.f32.mrb[0].mxu0
  %v124 = vpop.f32.mrb[0].mxu0
  %125 = vdwg.mxu0
  %v126 = vadd.f32 %v21, %v121
  %127 = vst [vmem:[#allocation2] sm:$0xff] %v126
  // Predicated region
  $region18: #{fast_conformer_encoder.41} parent=0 // pred_check
    %p128 = pneg %p16
  $region19: #{fast_conformer_encoder.41} parent=0 // pred_check_branch
    %130 = sbr.rel (%p128) target = $region21
  $region20: #{fast_conformer_encoder.41} parent=0 // pred_region
    %v131 = vld [vmem:[#allocation2] sm:$0xff]
    %v132 = vld [vmem:[%s2] sm:$0x1]
    %v134 = vlaneseq
    %v135 = vshrl.u32 %v134, 7
    %v136 = vsub.s32 0, %v135
    %v137 = vrot.slane %v132, %v136
    %v139 = vadd.f32 %v131, %v137
    %v140 = vpack.c.bf16 %v139, %v139
    %141 = vst [vmem:[%s3] sm:$0xf] %v140
  $region21: #{fast_conformer_encoder.41} parent=0 // pred_fallthru
    _
  // Predicated region
  $region22: #{fast_conformer_encoder.41} parent=0 // pred_check
    _
  $region23: #{fast_conformer_encoder.41} parent=0 // pred_check_branch
    %143 = sbr.rel (0) target = $region25
  $region24: #{fast_conformer_encoder.41} parent=0 // pred_region
    _
  $region25: #{fast_conformer_encoder.41} parent=0 // pred_fallthru
    _
  // Predicated region
  $region26: #{fast_conformer_encoder.41} parent=0 // pred_check
    _
  $region27: #{fast_conformer_encoder.41} parent=0 // pred_check_branch
    %145 = sbr.rel (0) target = $region29
  $region28: #{fast_conformer_encoder.41} parent=0 // pred_region
    _
  $region29: #{fast_conformer_encoder.41} parent=0 // pred_fallthru
    _

// kernel: fast_conformer_encoder.38
$region0: #{fast_conformer_encoder.38}
  #allocation0 [shape = 'u32[]', space=smem, size = 0x4, offset = 0x4, fixed_abs, tag = 'smem constant byte address 0x4 - core index']
  #allocation1 [shape = 'u32[144,128]{1,0:T(1,128)}', space=vmem, size = 0x12000, scoped, tag = 'internal scratch']
  #allocation2 [shape = 'f32[16,128]{1,0:T(8,128)}', space=vmem, size = 0x2000, scoped, tag = 'scratch operand']
  %s0 = inlined_call_operand.vmem [shape: bf16[16,128], index: 0, kind: input, shape index: {}]
  %s1 = inlined_call_operand.vmem [shape: bf16[128,128], index: 1, kind: input, shape index: {}]
  %s2 = inlined_call_operand.vmem [shape: f32[1,128], index: 2, kind: input, shape index: {}]
  %s3 = inlined_call_operand.vmem [shape: f32[1,128], index: 3, kind: input, shape index: {}]
  %s4 = inlined_call_operand.vmem [shape: f32[1,128], index: 4, kind: input, shape index: {}]
  %s5 = inlined_call_operand.vmem [shape: bf16[16,128], index: 5, kind: output, shape index: {}]
  %s6 = sld [smem:[#allocation0]]
  $region38: #{fast_conformer_encoder.38} parent=0
    _
  %s8 = ssub.s32 1, %s6
  %s9 = scalar_select 0, %s8, %s6
  // Predicated region
  $region2: #{fast_conformer_encoder.38} parent=0 // pred_check
    _
  $region3: #{fast_conformer_encoder.38} parent=0 // pred_check_branch
    %11 = sbr.rel (0) target = $region5
  $region4: #{fast_conformer_encoder.38} parent=0 // pred_region
    _
  $region5: #{fast_conformer_encoder.38} parent=0 // pred_fallthru
    _
  // Predicated region
  $region6: #{fast_conformer_encoder.38} parent=0 // pred_check
    _
  $region7: #{fast_conformer_encoder.38} parent=0 // pred_check_branch
    %13 = sbr.rel (0) target = $region9
  $region8: #{fast_conformer_encoder.38} parent=0 // pred_region
    _
  $region9: #{fast_conformer_encoder.38} parent=0 // pred_fallthru
    _
  // Predicated region
  $region10: #{fast_conformer_encoder.38} parent=0 // pred_check
    _
  $region11: #{fast_conformer_encoder.38} parent=0 // pred_check_branch
    %15 = sbr.rel (0) target = $region13
  $region12: #{fast_conformer_encoder.38} parent=0 // pred_region
    _
  $region13: #{fast_conformer_encoder.38} parent=0 // pred_fallthru
    _
  // Predicated region
  $region14: #{fast_conformer_encoder.38} parent=0 // pred_check
    _
  $region15: #{fast_conformer_encoder.38} parent=0 // pred_check_branch
    %17 = sbr.rel (0) target = $region17
  $region16: #{fast_conformer_encoder.38} parent=0 // pred_region
    _
  $region17: #{fast_conformer_encoder.38} parent=0 // pred_fallthru
    _
  // Predicated region
  $region18: #{fast_conformer_encoder.38} parent=0 // pred_check
    _
  $region19: #{fast_conformer_encoder.38} parent=0 // pred_check_branch
    %19 = sbr.rel (0) target = $region21
  $region20: #{fast_conformer_encoder.38} parent=0 // pred_region
    _
  $region21: #{fast_conformer_encoder.38} parent=0 // pred_fallthru
    _
  %v21 = vld [vmem:[%s0] sm:$0xf]
  %v22 = vld [vmem:[%s0 + $0x4] sm:$0xf]
  %v23 = vunpack.c.l.bf16 %v21
  %v24 = vunpack.c.l.bf16 %v22
  %25 = vadd.xlane.f32.xlu0 %v23
  %v26 = vpop.xlane.xlu0 %25
  %27 = vadd.xlane.f32.xlu0 %v24
  %v28 = vpop.xlane.xlu0 %27
  %v29 = vmul.f32 %v26, 0.03125
  %v30 = vmul.f32 %v28, 0.03125
  %v31 = vmul.f32 %v23, %v23
  %v32 = vmul.f32 %v24, %v24
  %33 = vadd.xlane.f32.xlu0 %v31
  %v34 = vpop.xlane.xlu0 %33
  %35 = vadd.xlane.f32.xlu0 %v32
  %v36 = vpop.xlane.xlu0 %35
  %v37 = vmul.f32 %v34, 0.03125
  %v38 = vmul.f32 %v36, 0.03125
  %v39 = vmul.f32 %v29, %v29
  %v40 = vmul.f32 %v30, %v30
  %v41 = vsub.f32 %v37, %v39
  %v42 = vsub.f32 %v38, %v40
  %v43 = vsub.f32 %v23, %v29
  %v44 = vsub.f32 %v24, %v30
  %v45 = vadd.f32 %v41, 1e-05
  %v46 = vadd.f32 %v42, 1e-05
  %v47 = vrsqrt.pop %v45
  %v48 = vrsqrt.pop %v46
  %v49 = vmul.f32 %v43, %v47
  %v50 = vmul.f32 %v44, %v48
  %v51 = vld [vmem:[%s3] sm:$0x1]
  %v53 = vlaneseq
  %v54 = vshrl.u32 %v53, 7
  %v55 = vsub.s32 0, %v54
  %v56 = vrot.slane %v51, %v55
  %v58 = vmul.f32 %v49, %v56
  %v59 = vmul.f32 %v50, %v56
  %v60 = vld [vmem:[%s4] sm:$0x1]
  %v62 = vlaneseq
  %v63 = vshrl.u32 %v62, 7
  %v64 = vsub.s32 0, %v63
  %v65 = vrot.slane %v60, %v64
  %v67 = vadd.f32 %v58, %v65
  %v68 = vadd.f32 %v59, %v65
  %v69 = vpack.c.bf16 %v68, %v67
  %p70 = scmp.eq.s32.totalorder 0, 0
  // Predicated region
  $region22: #{fast_conformer_encoder.38} parent=0 // pred_check
    %p71 = pneg %p70
  $region23: #{fast_conformer_encoder.38} parent=0 // pred_check_branch
    %73 = sbr.rel (%p71) target = $region25
  $region24: #{fast_conformer_encoder.38} parent=0 // pred_region
    %74 = vst [vmem:[#allocation2] sm:$0xff] 0.0
    %75 = vst [vmem:[#allocation2 + $0x8] sm:$0xff] 0.0
  $region25: #{fast_conformer_encoder.38} parent=0 // pred_fallthru
    _
  %v76 = vld [vmem:[#allocation2] sm:$0xff]
  %v77 = vld [vmem:[#allocation2 + $0x8] sm:$0xff]
  %v78 = vld [vmem:[%s1] sm:$0xf]
  %v79 = vld [vmem:[%s1 + $0x4] sm:$0xf]
  %v80 = vld [vmem:[%s1 + $0x8] sm:$0xf]
  %v81 = vld [vmem:[%s1 + $0xc] sm:$0xf]
  %v82 = vld [vmem:[%s1 + $0x10] sm:$0xf]
  %v83 = vld [vmem:[%s1 + $0x14] sm:$0xf]
  %v84 = vld [vmem:[%s1 + $0x18] sm:$0xf]
  %v85 = vld [vmem:[%s1 + $0x1c] sm:$0xf]
  %v86 = vld [vmem:[%s1 + $0x20] sm:$0xf]
  %v87 = vld [vmem:[%s1 + $0x24] sm:$0xf]
  %v88 = vld [vmem:[%s1 + $0x28] sm:$0xf]
  %v89 = vld [vmem:[%s1 + $0x2c] sm:$0xf]
  %v90 = vld [vmem:[%s1 + $0x30] sm:$0xf]
  %v91 = vld [vmem:[%s1 + $0x34] sm:$0xf]
  %v92 = vld [vmem:[%s1 + $0x38] sm:$0xf]
  %v93 = vld [vmem:[%s1 + $0x3c] sm:$0xf]
  %v110 = vunpack.c.l.b16 %v78
  %v111 = vunpack.c.l.b16 %v79
  %v112 = vunpack.c.l.b16 %v80
  %v113 = vunpack.c.l.b16 %v81
  %v114 = vunpack.c.l.b16 %v82
  %v115 = vunpack.c.l.b16 %v83
  %v116 = vunpack.c.l.b16 %v84
  %v117 = vunpack.c.l.b16 %v85
  %v118 = vunpack.c.l.b16 %v86
  %v119 = vunpack.c.l.b16 %v87
  %v120 = vunpack.c.l.b16 %v88
  %v121 = vunpack.c.l.b16 %v89
  %v122 = vunpack.c.l.b16 %v90
  %v123 = vunpack.c.l.b16 %v91
  %v124 = vunpack.c.l.b16 %v92
  %v125 = vunpack.c.l.b16 %v93
  %v126 = vpack.c.b16 %v111, %v110
  %v127 = vpack.c.b16 %v113, %v112
  %v128 = vpack.c.b16 %v115, %v114
  %v129 = vpack.c.b16 %v117, %v116
  %v130 = vpack.c.b16 %v119, %v118
  %v131 = vpack.c.b16 %v121, %v120
  %v132 = vpack.c.b16 %v123, %v122
  %v133 = vpack.c.b16 %v125, %v124
  %142 = vmatprep.subr.bf16.mxu0 0
  %143 = vmatpush1.bf16.msra.mxu0 %v126
  %144 = vmatprep.subr.bf16.mxu0 0
  %145 = vmatpush1.bf16.msra.mxu0 %v127
  %146 = vmatprep.subr.bf16.mxu0 0
  %147 = vmatpush1.bf16.msra.mxu0 %v128
  %148 = vmatprep.subr.bf16.mxu0 0
  %149 = vmatpush1.bf16.msra.mxu0 %v129
  %150 = vmatprep.subr.bf16.mxu0 0
  %151 = vmatpush1.bf16.msra.mxu0 %v130
  %152 = vmatprep.subr.bf16.mxu0 0
  %153 = vmatpush1.bf16.msra.mxu0 %v131
  %154 = vmatprep.subr.bf16.mxu0 0
  %155 = vmatpush1.bf16.msra.mxu0 %v132
  %156 = vmatprep.subr.bf16.mxu0 0
  %157 = vmatpush1.bf16.msra.mxu0 %v133
  %158 = vmatprep.subr.bf16.mxu0 0
  %159 = vmatpush1.bf16.msra.mxu0 0
  %160 = vmatprep.subr.bf16.mxu0 0
  %161 = vmatpush1.bf16.msra.mxu0 0
  %162 = vmatprep.subr.bf16.mxu0 0
  %163 = vmatpush1.bf16.msra.mxu0 0
  %164 = vmatprep.subr.bf16.mxu0 0
  %165 = vmatpush1.bf16.msra.mxu0 0
  %166 = vmatprep.subr.bf16.mxu0 0
  %167 = vmatpush1.bf16.msra.mxu0 0
  %168 = vmatprep.subr.bf16.mxu0 0
  %169 = vmatpush1.bf16.msra.mxu0 0
  %170 = vmatprep.subr.bf16.mxu0 0
  %171 = vmatpush1.bf16.msra.mxu0 0
  %172 = vmatprep.subr.bf16.mxu0 0
  %173 = vmatpush1.bf16.msra.mxu0 0
  %174 = vmatprep.mubr.bf16.mxu0 0
  %175 = vmatmul.mubr.bf16.gmra.mrb[0].mxu0 %v69
  %v176 = vpop.f32.mrb[0].mxu0
  %v177 = vadd.f32 0.0, %v176
  %v178 = vpop.f32.mrb[0].mxu0
  %v179 = vpop.f32.mrb[0].mxu0
  %v180 = vadd.f32 0.0, %v179
  %v181 = vpop.f32.mrb[0].mxu0
  %182 = vdwg.mxu0
  %v183 = vadd.f32 %v76, %v177
  %v184 = vadd.f32 %v77, %v180
  %185 = vst [vmem:[#allocation2] sm:$0xff] %v183
  %186 = vst [vmem:[#allocation2 + $0x8] sm:$0xff] %v184
  // Predicated region
  $region26: #{fast_conformer_encoder.38} parent=0 // pred_check
    %p187 = pneg %p70
  $region27: #{fast_conformer_encoder.38} parent=0 // pred_check_branch
    %189 = sbr.rel (%p187) target = $region29
  $region28: #{fast_conformer_encoder.38} parent=0 // pred_region
    %v190 = vld [vmem:[#allocation2] sm:$0xff]
    %v191 = vld [vmem:[#allocation2 + $0x8] sm:$0xff]
    %v192 = vld [vmem:[%s2] sm:$0x1]
    %v194 = vlaneseq
    %v195 = vshrl.u32 %v194, 7
    %v196 = vsub.s32 0, %v195
    %v197 = vrot.slane %v192, %v196
    %v199 = vadd.f32 %v190, %v197
    %v200 = vadd.f32 %v191, %v197
    %v201 = vpack.c.bf16 %v200, %v199
    %v203 = vunpack.c.l.b16 %v201
    %v204 = vunpack.c.h.b16 %v201
    %v205 = vpack.c.b16 %v203, %v203
    %v206 = vpack.c.b16 %v204, %v204
    %209 = vst [vmem:[%s5] sm:$0xf] %v205
    %210 = vst [vmem:[%s5 + $0x4] sm:$0xf] %v206
  $region29: #{fast_conformer_encoder.38} parent=0 // pred_fallthru
    _
  // Predicated region
  $region30: #{fast_conformer_encoder.38} parent=0 // pred_check
    _
  $region31: #{fast_conformer_encoder.38} parent=0 // pred_check_branch
    %212 = sbr.rel (0) target = $region33
  $region32: #{fast_conformer_encoder.38} parent=0 // pred_region
    _
  $region33: #{fast_conformer_encoder.38} parent=0 // pred_fallthru
    _
  // Predicated region
  $region34: #{fast_conformer_encoder.38} parent=0 // pred_check
    _
  $region35: #{fast_conformer_encoder.38} parent=0 // pred_check_branch
    %214 = sbr.rel (0) target = $region37
  $region36: #{fast_conformer_encoder.38} parent=0 // pred_region
    _
  $region37: #{fast_conformer_encoder.38} parent=0 // pred_fallthru
    _

// kernel: fast_conformer_encoder.43
$region0: #{fast_conformer_encoder.43}
  #allocation0 [shape = 'u32[]', space=smem, size = 0x4, offset = 0x4, fixed_abs, tag = 'smem constant byte address 0x4 - core index']
  #allocation1 [shape = 'u32[144,128]{1,0:T(1,128)}', space=vmem, size = 0x12000, scoped, tag = 'internal scratch']
  #allocation2 [shape = 'f32[16,128]{1,0:T(8,128)}', space=vmem, size = 0x2000, scoped, tag = 'scratch operand']
  %s0 = inlined_call_operand.vmem [shape: bf16[16,128], index: 0, kind: input, shape index: {}]
  %s1 = inlined_call_operand.vmem [shape: bf16[128,128], index: 1, kind: input, shape index: {}]
  %s2 = inlined_call_operand.vmem [shape: f32[1,128], index: 2, kind: input, shape index: {}]
  %s3 = inlined_call_operand.vmem [shape: bf16[16,128], index: 3, kind: input, shape index: {}]
  %s4 = inlined_call_operand.vmem [shape: bf16[16,128], index: 4, kind: output, shape index: {}]
  %s5 = sld [smem:[#allocation0]]
  $region34: #{fast_conformer_encoder.43} parent=0
    _
  %s7 = ssub.s32 1, %s5
  %s8 = scalar_select 0, %s7, %s5
  // Predicated region
  $region2: #{fast_conformer_encoder.43} parent=0 // pred_check
    _
  $region3: #{fast_conformer_encoder.43} parent=0 // pred_check_branch
    %10 = sbr.rel (0) target = $region5
  $region4: #{fast_conformer_encoder.43} parent=0 // pred_region
    _
  $region5: #{fast_conformer_encoder.43} parent=0 // pred_fallthru
    _
  // Predicated region
  $region6: #{fast_conformer_encoder.43} parent=0 // pred_check
    _
  $region7: #{fast_conformer_encoder.43} parent=0 // pred_check_branch
    %12 = sbr.rel (0) target = $region9
  $region8: #{fast_conformer_encoder.43} parent=0 // pred_region
    _
  $region9: #{fast_conformer_encoder.43} parent=0 // pred_fallthru
    _
  // Predicated region
  $region10: #{fast_conformer_encoder.43} parent=0 // pred_check
    _
  $region11: #{fast_conformer_encoder.43} parent=0 // pred_check_branch
    %14 = sbr.rel (0) target = $region13
  $region12: #{fast_conformer_encoder.43} parent=0 // pred_region
    _
  $region13: #{fast_conformer_encoder.43} parent=0 // pred_fallthru
    _
  // Predicated region
  $region14: #{fast_conformer_encoder.43} parent=0 // pred_check
    _
  $region15: #{fast_conformer_encoder.43} parent=0 // pred_check_branch
    %16 = sbr.rel (0) target = $region17
  $region16: #{fast_conformer_encoder.43} parent=0 // pred_region
    _
  $region17: #{fast_conformer_encoder.43} parent=0 // pred_fallthru
    _
  %v18 = vld [vmem:[%s0] sm:$0xf]
  %v19 = vld [vmem:[%s0 + $0x4] sm:$0xf]
  %p20 = scmp.eq.s32.totalorder 0, 0
  // Predicated region
  $region18: #{fast_conformer_encoder.43} parent=0 // pred_check
    %p21 = pneg %p20
  $region19: #{fast_conformer_encoder.43} parent=0 // pred_check_branch
    %23 = sbr.rel (%p21) target = $region21
  $region20: #{fast_conformer_encoder.43} parent=0 // pred_region
    %24 = vst [vmem:[#allocation2] sm:$0xff] 0.0
    %25 = vst [vmem:[#allocation2 + $0x8] sm:$0xff] 0.0
  $region21: #{fast_conformer_encoder.43} parent=0 // pred_fallthru
    _
  %v26 = vld [vmem:[#allocation2] sm:$0xff]
  %v27 = vld [vmem:[#allocation2 + $0x8] sm:$0xff]
  %v28 = vld [vmem:[%s1] sm:$0xf]
  %v29 = vld [vmem:[%s1 + $0x4] sm:$0xf]
  %v30 = vld [vmem:[%s1 + $0x8] sm:$0xf]
  %v31 = vld [vmem:[%s1 + $0xc] sm:$0xf]
  %v32 = vld [vmem:[%s1 + $0x10] sm:$0xf]
  %v33 = vld [vmem:[%s1 + $0x14] sm:$0xf]
  %v34 = vld [vmem:[%s1 + $0x18] sm:$0xf]
  %v35 = vld [vmem:[%s1 + $0x1c] sm:$0xf]
  %v36 = vld [vmem:[%s1 + $0x20] sm:$0xf]
  %v37 = vld [vmem:[%s1 + $0x24] sm:$0xf]
  %v38 = vld [vmem:[%s1 + $0x28] sm:$0xf]
  %v39 = vld [vmem:[%s1 + $0x2c] sm:$0xf]
  %v40 = vld [vmem:[%s1 + $0x30] sm:$0xf]
  %v41 = vld [vmem:[%s1 + $0x34] sm:$0xf]
  %v42 = vld [vmem:[%s1 + $0x38] sm:$0xf]
  %v43 = vld [vmem:[%s1 + $0x3c] sm:$0xf]
  %v46 = vunpack.c.l.b16 %v18
  %v47 = vunpack.c.l.b16 %v19
  %v48 = vpack.c.b16 %v47, %v46
  %v66 = vunpack.c.l.b16 %v28
  %v67 = vunpack.c.l.b16 %v29
  %v68 = vunpack.c.l.b16 %v30
  %v69 = vunpack.c.l.b16 %v31
  %v70 = vunpack.c.l.b16 %v32
  %v71 = vunpack.c.l.b16 %v33
  %v72 = vunpack.c.l.b16 %v34
  %v73 = vunpack.c.l.b16 %v35
  %v74 = vunpack.c.l.b16 %v36
  %v75 = vunpack.c.l.b16 %v37
  %v76 = vunpack.c.l.b16 %v38
  %v77 = vunpack.c.l.b16 %v39
  %v78 = vunpack.c.l.b16 %v40
  %v79 = vunpack.c.l.b16 %v41
  %v80 = vunpack.c.l.b16 %v42
  %v81 = vunpack.c.l.b16 %v43
  %v82 = vpack.c.b16 %v67, %v66
  %v83 = vpack.c.b16 %v69, %v68
  %v84 = vpack.c.b16 %v71, %v70
  %v85 = vpack.c.b16 %v73, %v72
  %v86 = vpack.c.b16 %v75, %v74
  %v87 = vpack.c.b16 %v77, %v76
  %v88 = vpack.c.b16 %v79, %v78
  %v89 = vpack.c.b16 %v81, %v80
  %98 = vmatprep.subr.bf16.mxu0 0
  %99 = vmatpush1.bf16.msra.mxu0 %v82
  %100 = vmatprep.subr.bf16.mxu0 0
  %101 = vmatpush1.bf16.msra.mxu0 %v83
  %102 = vmatprep.subr.bf16.mxu0 0
  %103 = vmatpush1.bf16.msra.mxu0 %v84
  %104 = vmatprep.subr.bf16.mxu0 0
  %105 = vmatpush1.bf16.msra.mxu0 %v85
  %106 = vmatprep.subr.bf16.mxu0 0
  %107 = vmatpush1.bf16.msra.mxu0 %v86
  %108 = vmatprep.subr.bf16.mxu0 0
  %109 = vmatpush1.bf16.msra.mxu0 %v87
  %110 = vmatprep.subr.bf16.mxu0 0
  %111 = vmatpush1.bf16.msra.mxu0 %v88
  %112 = vmatprep.subr.bf16.mxu0 0
  %113 = vmatpush1.bf16.msra.mxu0 %v89
  %114 = vmatprep.subr.bf16.mxu0 0
  %115 = vmatpush1.bf16.msra.mxu0 0
  %116 = vmatprep.subr.bf16.mxu0 0
  %117 = vmatpush1.bf16.msra.mxu0 0
  %118 = vmatprep.subr.bf16.mxu0 0
  %119 = vmatpush1.bf16.msra.mxu0 0
  %120 = vmatprep.subr.bf16.mxu0 0
  %121 = vmatpush1.bf16.msra.mxu0 0
  %122 = vmatprep.subr.bf16.mxu0 0
  %123 = vmatpush1.bf16.msra.mxu0 0
  %124 = vmatprep.subr.bf16.mxu0 0
  %125 = vmatpush1.bf16.msra.mxu0 0
  %126 = vmatprep.subr.bf16.mxu0 0
  %127 = vmatpush1.bf16.msra.mxu0 0
  %128 = vmatprep.subr.bf16.mxu0 0
  %129 = vmatpush1.bf16.msra.mxu0 0
  %130 = vmatprep.mubr.bf16.mxu0 0
  %131 = vmatmul.mubr.bf16.gmra.mrb[0].mxu0 %v48
  %v132 = vpop.f32.mrb[0].mxu0
  %v133 = vadd.f32 0.0, %v132
  %v134 = vpop.f32.mrb[0].mxu0
  %v135 = vpop.f32.mrb[0].mxu0
  %v136 = vadd.f32 0.0, %v135
  %v137 = vpop.f32.mrb[0].mxu0
  %138 = vdwg.mxu0
  %v139 = vadd.f32 %v26, %v133
  %v140 = vadd.f32 %v27, %v136
  %141 = vst [vmem:[#allocation2] sm:$0xff] %v139
  %142 = vst [vmem:[#allocation2 + $0x8] sm:$0xff] %v140
  // Predicated region
  $region22: #{fast_conformer_encoder.43} parent=0 // pred_check
    %p143 = pneg %p20
  $region23: #{fast_conformer_encoder.43} parent=0 // pred_check_branch
    %145 = sbr.rel (%p143) target = $region25
  $region24: #{fast_conformer_encoder.43} parent=0 // pred_region
    %v146 = vld [vmem:[#allocation2] sm:$0xff]
    %v147 = vld [vmem:[#allocation2 + $0x8] sm:$0xff]
    %v148 = vld [vmem:[%s2] sm:$0x1]
    %v150 = vlaneseq
    %v151 = vshrl.u32 %v150, 7
    %v152 = vsub.s32 0, %v151
    %v153 = vrot.slane %v148, %v152
    %v155 = vadd.f32 %v146, %v153
    %v156 = vadd.f32 %v147, %v153
    %v157 = vld [vmem:[%s3] sm:$0xf]
    %v158 = vld [vmem:[%s3 + $0x4] sm:$0xf]
    %v159 = vunpack.c.l.bf16 %v157
    %v160 = vunpack.c.l.bf16 %v158
    %v161 = vadd.f32 %v155, %v159
    %v162 = vadd.f32 %v156, %v160
    %v163 = vpack.c.bf16 %v162, %v161
    %v165 = vunpack.c.l.b16 %v163
    %v166 = vunpack.c.h.b16 %v163
    %v167 = vpack.c.b16 %v165, %v165
    %v168 = vpack.c.b16 %v166, %v166
    %171 = vst [vmem:[%s4] sm:$0xf] %v167
    %172 = vst [vmem:[%s4 + $0x4] sm:$0xf] %v168
  $region25: #{fast_conformer_encoder.43} parent=0 // pred_fallthru
    _
  // Predicated region
  $region26: #{fast_conformer_encoder.43} parent=0 // pred_check
    _
  $region27: #{fast_conformer_encoder.43} parent=0 // pred_check_branch
    %174 = sbr.rel (0) target = $region29
  $region28: #{fast_conformer_encoder.43} parent=0 // pred_region
    _
  $region29: #{fast_conformer_encoder.43} parent=0 // pred_fallthru
    _
  // Predicated region
  $region30: #{fast_conformer_encoder.43} parent=0 // pred_check
    _
  $region31: #{fast_conformer_encoder.43} parent=0 // pred_check_branch
    %176 = sbr.rel (0) target = $region33
  $region32: #{fast_conformer_encoder.43} parent=0 // pred_region
    _
  $region33: #{fast_conformer_encoder.43} parent=0 // pred_fallthru
    _

// kernel: fast_conformer_encoder.44
$region0: #{fast_conformer_encoder.44}
  #allocation0 [shape = 'u32[]', space=smem, size = 0x4, offset = 0x4, fixed_abs, tag = 'smem constant byte address 0x4 - core index']
  #allocation1 [shape = 'u32[144,128]{1,0:T(1,128)}', space=vmem, size = 0x12000, scoped, tag = 'internal scratch']
  #allocation2 [shape = 'f32[16,128]{1,0:T(8,128)}', space=vmem, size = 0x2000, scoped, tag = 'scratch operand']
  %s0 = inlined_call_operand.vmem [shape: bf16[16,128], index: 0, kind: input, shape index: {}]
  %s1 = inlined_call_operand.vmem [shape: bf16[128,128], index: 1, kind: input, shape index: {}]
  %s2 = inlined_call_operand.vmem [shape: f32[1,128], index: 2, kind: input, shape index: {}]
  %s3 = inlined_call_operand.vmem [shape: f32[1,128], index: 3, kind: input, shape index: {}]
  %s4 = inlined_call_operand.vmem [shape: f32[1,128], index: 4, kind: input, shape index: {}]
  %s5 = inlined_call_operand.vmem [shape: bf16[16,128], index: 5, kind: output, shape index: {}]
  %s6 = sld [smem:[#allocation0]]
  $region38: #{fast_conformer_encoder.44} parent=0
    _
  %s8 = ssub.s32 1, %s6
  %s9 = scalar_select 0, %s8, %s6
  // Predicated region
  $region2: #{fast_conformer_encoder.44} parent=0 // pred_check
    _
  $region3: #{fast_conformer_encoder.44} parent=0 // pred_check_branch
    %11 = sbr.rel (0) target = $region5
  $region4: #{fast_conformer_encoder.44} parent=0 // pred_region
    _
  $region5: #{fast_conformer_encoder.44} parent=0 // pred_fallthru
    _
  // Predicated region
  $region6: #{fast_conformer_encoder.44} parent=0 // pred_check
    _
  $region7: #{fast_conformer_encoder.44} parent=0 // pred_check_branch
    %13 = sbr.rel (0) target = $region9
  $region8: #{fast_conformer_encoder.44} parent=0 // pred_region
    _
  $region9: #{fast_conformer_encoder.44} parent=0 // pred_fallthru
    _
  // Predicated region
  $region10: #{fast_conformer_encoder.44} parent=0 // pred_check
    _
  $region11: #{fast_conformer_encoder.44} parent=0 // pred_check_branch
    %15 = sbr.rel (0) target = $region13
  $region12: #{fast_conformer_encoder.44} parent=0 // pred_region
    _
  $region13: #{fast_conformer_encoder.44} parent=0 // pred_fallthru
    _
  // Predicated region
  $region14: #{fast_conformer_encoder.44} parent=0 // pred_check
    _
  $region15: #{fast_conformer_encoder.44} parent=0 // pred_check_branch
    %17 = sbr.rel (0) target = $region17
  $region16: #{fast_conformer_encoder.44} parent=0 // pred_region
    _
  $region17: #{fast_conformer_encoder.44} parent=0 // pred_fallthru
    _
  // Predicated region
  $region18: #{fast_conformer_encoder.44} parent=0 // pred_check
    _
  $region19: #{fast_conformer_encoder.44} parent=0 // pred_check_branch
    %19 = sbr.rel (0) target = $region21
  $region20: #{fast_conformer_encoder.44} parent=0 // pred_region
    _
  $region21: #{fast_conformer_encoder.44} parent=0 // pred_fallthru
    _
  %v21 = vld [vmem:[%s0] sm:$0xf]
  %v22 = vld [vmem:[%s0 + $0x4] sm:$0xf]
  %v23 = vunpack.c.l.bf16 %v21
  %v24 = vunpack.c.l.bf16 %v22
  %25 = vadd.xlane.f32.xlu0 %v23
  %v26 = vpop.xlane.xlu0 %25
  %27 = vadd.xlane.f32.xlu0 %v24
  %v28 = vpop.xlane.xlu0 %27
  %v29 = vmul.f32 %v26, 0.03125
  %v30 = vmul.f32 %v28, 0.03125
  %v31 = vmul.f32 %v23, %v23
  %v32 = vmul.f32 %v24, %v24
  %33 = vadd.xlane.f32.xlu0 %v31
  %v34 = vpop.xlane.xlu0 %33
  %35 = vadd.xlane.f32.xlu0 %v32
  %v36 = vpop.xlane.xlu0 %35
  %v37 = vmul.f32 %v34, 0.03125
  %v38 = vmul.f32 %v36, 0.03125
  %v39 = vmul.f32 %v29, %v29
  %v40 = vmul.f32 %v30, %v30
  %v41 = vsub.f32 %v37, %v39
  %v42 = vsub.f32 %v38, %v40
  %v43 = vsub.f32 %v23, %v29
  %v44 = vsub.f32 %v24, %v30
  %v45 = vadd.f32 %v41, 1e-05
  %v46 = vadd.f32 %v42, 1e-05
  %v47 = vrsqrt.pop %v45
  %v48 = vrsqrt.pop %v46
  %v49 = vmul.f32 %v43, %v47
  %v50 = vmul.f32 %v44, %v48
  %v51 = vld [vmem:[%s3] sm:$0x1]
  %v53 = vlaneseq
  %v54 = vshrl.u32 %v53, 7
  %v55 = vsub.s32 0, %v54
  %v56 = vrot.slane %v51, %v55
  %v58 = vmul.f32 %v49, %v56
  %v59 = vmul.f32 %v50, %v56
  %v60 = vld [vmem:[%s4] sm:$0x1]
  %v62 = vlaneseq
  %v63 = vshrl.u32 %v62, 7
  %v64 = vsub.s32 0, %v63
  %v65 = vrot.slane %v60, %v64
  %v67 = vadd.f32 %v58, %v65
  %v68 = vadd.f32 %v59, %v65
  %v69 = vpack.c.bf16 %v68, %v67
  %p70 = scmp.eq.s32.totalorder 0, 0
  // Predicated region
  $region22: #{fast_conformer_encoder.44} parent=0 // pred_check
    %p71 = pneg %p70
  $region23: #{fast_conformer_encoder.44} parent=0 // pred_check_branch
    %73 = sbr.rel (%p71) target = $region25
  $region24: #{fast_conformer_encoder.44} parent=0 // pred_region
    %74 = vst [vmem:[#allocation2] sm:$0xff] 0.0
    %75 = vst [vmem:[#allocation2 + $0x8] sm:$0xff] 0.0
  $region25: #{fast_conformer_encoder.44} parent=0 // pred_fallthru
    _
  %v76 = vld [vmem:[#allocation2] sm:$0xff]
  %v77 = vld [vmem:[#allocation2 + $0x8] sm:$0xff]
  %v78 = vld [vmem:[%s1] sm:$0xf]
  %v79 = vld [vmem:[%s1 + $0x4] sm:$0xf]
  %v80 = vld [vmem:[%s1 + $0x8] sm:$0xf]
  %v81 = vld [vmem:[%s1 + $0xc] sm:$0xf]
  %v82 = vld [vmem:[%s1 + $0x10] sm:$0xf]
  %v83 = vld [vmem:[%s1 + $0x14] sm:$0xf]
  %v84 = vld [vmem:[%s1 + $0x18] sm:$0xf]
  %v85 = vld [vmem:[%s1 + $0x1c] sm:$0xf]
  %v86 = vld [vmem:[%s1 + $0x20] sm:$0xf]
  %v87 = vld [vmem:[%s1 + $0x24] sm:$0xf]
  %v88 = vld [vmem:[%s1 + $0x28] sm:$0xf]
  %v89 = vld [vmem:[%s1 + $0x2c] sm:$0xf]
  %v90 = vld [vmem:[%s1 + $0x30] sm:$0xf]
  %v91 = vld [vmem:[%s1 + $0x34] sm:$0xf]
  %v92 = vld [vmem:[%s1 + $0x38] sm:$0xf]
  %v93 = vld [vmem:[%s1 + $0x3c] sm:$0xf]
  %v110 = vunpack.c.l.b16 %v78
  %v111 = vunpack.c.l.b16 %v79
  %v112 = vunpack.c.l.b16 %v80
  %v113 = vunpack.c.l.b16 %v81
  %v114 = vunpack.c.l.b16 %v82
  %v115 = vunpack.c.l.b16 %v83
  %v116 = vunpack.c.l.b16 %v84
  %v117 = vunpack.c.l.b16 %v85
  %v118 = vunpack.c.l.b16 %v86
  %v119 = vunpack.c.l.b16 %v87
  %v120 = vunpack.c.l.b16 %v88
  %v121 = vunpack.c.l.b16 %v89
  %v122 = vunpack.c.l.b16 %v90
  %v123 = vunpack.c.l.b16 %v91
  %v124 = vunpack.c.l.b16 %v92
  %v125 = vunpack.c.l.b16 %v93
  %v126 = vpack.c.b16 %v111, %v110
  %v127 = vpack.c.b16 %v113, %v112
  %v128 = vpack.c.b16 %v115, %v114
  %v129 = vpack.c.b16 %v117, %v116
  %v130 = vpack.c.b16 %v119, %v118
  %v131 = vpack.c.b16 %v121, %v120
  %v132 = vpack.c.b16 %v123, %v122
  %v133 = vpack.c.b16 %v125, %v124
  %142 = vmatprep.subr.bf16.mxu0 0
  %143 = vmatpush1.bf16.msra.mxu0 %v126
  %144 = vmatprep.subr.bf16.mxu0 0
  %145 = vmatpush1.bf16.msra.mxu0 %v127
  %146 = vmatprep.subr.bf16.mxu0 0
  %147 = vmatpush1.bf16.msra.mxu0 %v128
  %148 = vmatprep.subr.bf16.mxu0 0
  %149 = vmatpush1.bf16.msra.mxu0 %v129
  %150 = vmatprep.subr.bf16.mxu0 0
  %151 = vmatpush1.bf16.msra.mxu0 %v130
  %152 = vmatprep.subr.bf16.mxu0 0
  %153 = vmatpush1.bf16.msra.mxu0 %v131
  %154 = vmatprep.subr.bf16.mxu0 0
  %155 = vmatpush1.bf16.msra.mxu0 %v132
  %156 = vmatprep.subr.bf16.mxu0 0
  %157 = vmatpush1.bf16.msra.mxu0 %v133
  %158 = vmatprep.subr.bf16.mxu0 0
  %159 = vmatpush1.bf16.msra.mxu0 0
  %160 = vmatprep.subr.bf16.mxu0 0
  %161 = vmatpush1.bf16.msra.mxu0 0
  %162 = vmatprep.subr.bf16.mxu0 0
  %163 = vmatpush1.bf16.msra.mxu0 0
  %164 = vmatprep.subr.bf16.mxu0 0
  %165 = vmatpush1.bf16.msra.mxu0 0
  %166 = vmatprep.subr.bf16.mxu0 0
  %167 = vmatpush1.bf16.msra.mxu0 0
  %168 = vmatprep.subr.bf16.mxu0 0
  %169 = vmatpush1.bf16.msra.mxu0 0
  %170 = vmatprep.subr.bf16.mxu0 0
  %171 = vmatpush1.bf16.msra.mxu0 0
  %172 = vmatprep.subr.bf16.mxu0 0
  %173 = vmatpush1.bf16.msra.mxu0 0
  %174 = vmatprep.mubr.bf16.mxu0 0
  %175 = vmatmul.mubr.bf16.gmra.mrb[0].mxu0 %v69
  %v176 = vpop.f32.mrb[0].mxu0
  %v177 = vadd.f32 0.0, %v176
  %v178 = vpop.f32.mrb[0].mxu0
  %v179 = vpop.f32.mrb[0].mxu0
  %v180 = vadd.f32 0.0, %v179
  %v181 = vpop.f32.mrb[0].mxu0
  %182 = vdwg.mxu0
  %v183 = vadd.f32 %v76, %v177
  %v184 = vadd.f32 %v77, %v180
  %185 = vst [vmem:[#allocation2] sm:$0xff] %v183
  %186 = vst [vmem:[#allocation2 + $0x8] sm:$0xff] %v184
  // Predicated region
  $region26: #{fast_conformer_encoder.44} parent=0 // pred_check
    %p187 = pneg %p70
  $region27: #{fast_conformer_encoder.44} parent=0 // pred_check_branch
    %189 = sbr.rel (%p187) target = $region29
  $region28: #{fast_conformer_encoder.44} parent=0 // pred_region
    %v190 = vld [vmem:[#allocation2] sm:$0xff]
    %v191 = vld [vmem:[#allocation2 + $0x8] sm:$0xff]
    %v192 = vld [vmem:[%s2] sm:$0x1]
    %v194 = vlaneseq
    %v195 = vshrl.u32 %v194, 7
    %v196 = vsub.s32 0, %v195
    %v197 = vrot.slane %v192, %v196
    %v199 = vadd.f32 %v190, %v197
    %v200 = vadd.f32 %v191, %v197
    %v201 = vxor.u32 %v199, 2147483648
    %v202 = vxor.u32 %v200, 2147483648
    %v203 = vmul.f32 %v201, 1.442695
    %v204 = vpow.pop %v203
    %v205 = vmul.f32 %v202, 1.442695
    %v206 = vpow.pop %v205
    %v207 = vadd.f32 %v204, 1.0
    %v208 = vadd.f32 %v206, 1.0
    %v209 = vrcp.pop %v207
    %v210 = vmul.f32 1.0, %v209
    %v211 = vrcp.pop %v208
    %v212 = vmul.f32 1.0, %v211
    %215 = vrot.lane.b32.xlu0 %v210, 96
    %v216 = vpop.permute.xlu0 %215
    %217 = vrot.lane.b32.xlu0 %v212, 96
    %v218 = vpop.permute.xlu0 %217
    %v221 = vmul.f32 %v199, %v216
    %v222 = vmul.f32 %v200, %v218
    %vm223 = vcmask 261120
    %v224 = vsel %vm223, %v221, 0.0
    %v225 = vsel %vm223, %v222, 0.0
    %v226 = vpack.c.bf16 %v225, %v224
    %v228 = vunpack.c.l.b16 %v226
    %v229 = vunpack.c.h.b16 %v226
    %v230 = vpack.c.b16 %v228, %v228
    %v231 = vpack.c.b16 %v229, %v229
    %234 = vst [vmem:[%s5] sm:$0xf] %v230
    %235 = vst [vmem:[%s5 + $0x4] sm:$0xf] %v231
  $region29: #{fast_conformer_encoder.44} parent=0 // pred_fallthru
    _
  // Predicated region
  $region30: #{fast_conformer_encoder.44} parent=0 // pred_check
    _
  $region31: #{fast_conformer_encoder.44} parent=0 // pred_check_branch
    %237 = sbr.rel (0) target = $region33
  $region32: #{fast_conformer_encoder.44} parent=0 // pred_region
    _
  $region33: #{fast_conformer_encoder.44} parent=0 // pred_fallthru
    _
  // Predicated region
  $region34: #{fast_conformer_encoder.44} parent=0 // pred_check
    _
  $region35: #{fast_conformer_encoder.44} parent=0 // pred_check_branch
    %239 = sbr.rel (0) target = $region37
  $region36: #{fast_conformer_encoder.44} parent=0 // pred_region
    _
  $region37: #{fast_conformer_encoder.44} parent=0 // pred_fallthru
    _

// kernel: fast_conformer_encoder.45
$region0: #{fast_conformer_encoder.45}
  #allocation0 [shape = 'u32[]', space=smem, size = 0x4, offset = 0x4, fixed_abs, tag = 'smem constant byte address 0x4 - core index']
  #allocation1 [shape = 'u32[144,128]{1,0:T(1,128)}', space=vmem, size = 0x12000, scoped, tag = 'internal scratch']
  %s0 = inlined_call_operand.vmem [shape: bf16[2,16,32], index: 0, kind: input, shape index: {}]
  %s1 = inlined_call_operand.vmem [shape: f32[9,32], index: 1, kind: input, shape index: {}]
  %s2 = inlined_call_operand.vmem [shape: f32[1,32], index: 2, kind: input, shape index: {}]
  %s3 = inlined_call_operand.vmem [shape: f32[1,32], index: 3, kind: input, shape index: {}]
  %s4 = inlined_call_operand.vmem [shape: f32[1,32], index: 4, kind: input, shape index: {}]
  %s5 = inlined_call_operand.vmem [shape: f32[1,32], index: 5, kind: input, shape index: {}]
  %s6 = inlined_call_operand.vmem [shape: bf16[2,8,32], index: 6, kind: output, shape index: {}]
  %s7 = sld [smem:[#allocation0]]
  $region57: #{fast_conformer_encoder.45} parent=0
    _
  %s9 = ssub.s32 1, %s7
  %s10 = scalar_select 0, %s9, %s7
  loop: start=0, step=1, limit=4
  $region2: #{fast_conformer_encoder.45} parent=0 // loop_pre_header
    _
  $region3: #{fast_conformer_encoder.45} parent=0 // loop_header
    %s12 = sphi 0, %s16
    %p13 = scmp.ge.s32.totalorder %s12, 4
    %s19 = sphi 0, %s31
    %s20 = sphi 0, %s27
    %s21 = sphi 0, %s19
    %s22 = sphi 0, %s20
    %s23 = sphi 0, %s21
    %s24 = sphi 0, %s22
    %s34 = sphi 0, %s36
    %s37 = sphi 0, %s34
    %s38 = sphi 0, %s37
    %s54 = sphi 0, %s38
    %s58 = sphi 0, %s58
    %s60 = sphi 0, %s58
    %s61 = sphi 0, %s60
    %s75 = sphi 0, %s61
    %s79 = sphi 0, %s79
    %s81 = sphi 0, %s79
    %s82 = sphi 0, %s81
    %s96 = sphi 0, %s82
    %s100 = sphi 0, %s100
    %s102 = sphi 0, %s100
    %s103 = sphi 0, %s102
    %s117 = sphi 0, %s103
    %s121 = sphi 0, %s121
    %s123 = sphi 0, %s121
    %s124 = sphi 0, %s123
    %s138 = sphi 0, %s124
    %s142 = sphi 0, %s142
    %s144 = sphi 0, %s142
    %s145 = sphi 0, %s144
    %s159 = sphi 0, %s145
    %s167 = sphi 0, %s169
    %s170 = sphi 0, %s167
    %s171 = sphi 0, %s170
    %s187 = sphi 0, %s171
  $region4: #{fast_conformer_encoder.45} parent=0 // loop_header_branch
    %15 = sbr.rel (%p13) target = $region8
  $region5: #{fast_conformer_encoder.45} parent=0 // loop_body
    %s17 = ssub.s32 %s12, 1
    %s18 = ssub.s32 %s12, 2
    %s25 = sadd.s32 1, %s20
    %p26 = scmp.ge.s32.totalorder %s25, 1
    %s27 = scalar_select %p26, 0, %s25
    %s28 = sadd.s32 1, %s19
    %s29 = scalar_select %p26, %s28, %s19
    %p30 = scmp.ge.s32.totalorder %s29, 2
    %s31 = scalar_select %p30, 0, %s29
    %s32 = ssub.s32 %s19, %s31
    %p33 = scmp.eq.s32.totalorder %s32, 0
    %s35 = sadd.s32 %s34, 1
    %s36 = scalar_select %p33, %s34, %s35
    %p39 = pneg %p33
    %p40 = scmp.eq.s32.totalorder %s12, 1
    %p41 = por %p39, %p40
    %p42 = scmp.ne.s32.totalorder %s34, %s37
    %p43 = scmp.eq.s32.totalorder %s12, 0
    %p44 = por %p42, %p43
    %p45 = scmp.ne.s32.totalorder %s34, %s37
    %p46 = scmp.eq.s32.totalorder %s17, 1
    %p47 = por %p45, %p46
    %p48 = scmp.ne.s32.totalorder %s37, %s38
    %p49 = scmp.eq.s32.totalorder %s17, 0
    %p50 = por %p48, %p49
    %p51 = scmp.ne.s32.totalorder %s37, %s38
    %p52 = scmp.eq.s32.totalorder %s18, 1
    %p53 = por %p51, %p52
    %p55 = scmp.ne.s32.totalorder %s38, %s54
    %p56 = scmp.eq.s32.totalorder %s18, 0
    %p57 = por %p55, %p56
    %s59 = sadd.s32 %s58, 1
    %p62 = scmp.eq.s32.totalorder %s12, 1
    %p63 = scmp.ne.s32.totalorder %s58, %s60
    %p64 = scmp.eq.s32.totalorder %s12, 0
    %p65 = por %p63, %p64
    %p66 = scmp.ne.s32.totalorder %s58, %s60
    %p67 = scmp.eq.s32.totalorder %s17, 1
    %p68 = por %p66, %p67
    %p69 = scmp.ne.s32.totalorder %s60, %s61
    %p70 = scmp.eq.s32.totalorder %s17, 0
    %p71 = por %p69, %p70
    %p72 = scmp.ne.s32.totalorder %s60, %s61
    %p73 = scmp.eq.s32.totalorder %s18, 1
    %p74 = por %p72, %p73
    %p76 = scmp.ne.s32.totalorder %s61, %s75
    %p77 = scmp.eq.s32.totalorder %s18, 0
    %p78 = por %p76, %p77
    %s80 = sadd.s32 %s79, 1
    %p83 = scmp.eq.s32.totalorder %s12, 1
    %p84 = scmp.ne.s32.totalorder %s79, %s81
    %p85 = scmp.eq.s32.totalorder %s12, 0
    %p86 = por %p84, %p85
    %p87 = scmp.ne.s32.totalorder %s79, %s81
    %p88 = scmp.eq.s32.totalorder %s17, 1
    %p89 = por %p87, %p88
    %p90 = scmp.ne.s32.totalorder %s81, %s82
    %p91 = scmp.eq.s32.totalorder %s17, 0
    %p92 = por %p90, %p91
    %p93 = scmp.ne.s32.totalorder %s81, %s82
    %p94 = scmp.eq.s32.totalorder %s18, 1
    %p95 = por %p93, %p94
    %p97 = scmp.ne.s32.totalorder %s82, %s96
    %p98 = scmp.eq.s32.totalorder %s18, 0
    %p99 = por %p97, %p98
    %s101 = sadd.s32 %s100, 1
    %p104 = scmp.eq.s32.totalorder %s12, 1
    %p105 = scmp.ne.s32.totalorder %s100, %s102
    %p106 = scmp.eq.s32.totalorder %s12, 0
    %p107 = por %p105, %p106
    %p108 = scmp.ne.s32.totalorder %s100, %s102
    %p109 = scmp.eq.s32.totalorder %s17, 1
    %p110 = por %p108, %p109
    %p111 = scmp.ne.s32.totalorder %s102, %s103
    %p112 = scmp.eq.s32.totalorder %s17, 0
    %p113 = por %p111, %p112
    %p114 = scmp.ne.s32.totalorder %s102, %s103
    %p115 = scmp.eq.s32.totalorder %s18, 1
    %p116 = por %p114, %p115
    %p118 = scmp.ne.s32.totalorder %s103, %s117
    %p119 = scmp.eq.s32.totalorder %s18, 0
    %p120 = por %p118, %p119
    %s122 = sadd.s32 %s121, 1
    %p125 = scmp.eq.s32.totalorder %s12, 1
    %p126 = scmp.ne.s32.totalorder %s121, %s123
    %p127 = scmp.eq.s32.totalorder %s12, 0
    %p128 = por %p126, %p127
    %p129 = scmp.ne.s32.totalorder %s121, %s123
    %p130 = scmp.eq.s32.totalorder %s17, 1
    %p131 = por %p129, %p130
    %p132 = scmp.ne.s32.totalorder %s123, %s124
    %p133 = scmp.eq.s32.totalorder %s17, 0
    %p134 = por %p132, %p133
    %p135 = scmp.ne.s32.totalorder %s123, %s124
    %p136 = scmp.eq.s32.totalorder %s18, 1
    %p137 = por %p135, %p136
    %p139 = scmp.ne.s32.totalorder %s124, %s138
    %p140 = scmp.eq.s32.totalorder %s18, 0
    %p141 = por %p139, %p140
    %s143 = sadd.s32 %s142, 1
    %p146 = scmp.eq.s32.totalorder %s12, 1
    %p147 = scmp.ne.s32.totalorder %s142, %s144
    %p148 = scmp.eq.s32.totalorder %s12, 0
    %p149 = por %p147, %p148
    %p150 = scmp.ne.s32.totalorder %s142, %s144
    %p151 = scmp.eq.s32.totalorder %s17, 1
    %p152 = por %p150, %p151
    %p153 = scmp.ne.s32.totalorder %s144, %s145
    %p154 = scmp.eq.s32.totalorder %s17, 0
    %p155 = por %p153, %p154
    %p156 = scmp.ne.s32.totalorder %s144, %s145
    %p157 = scmp.eq.s32.totalorder %s18, 1
    %p158 = por %p156, %p157
    %p160 = scmp.ne.s32.totalorder %s145, %s159
    %p161 = scmp.eq.s32.totalorder %s18, 0
    %p162 = por %p160, %p161
    %s163 = ssub.s32 %s19, %s31
    %s164 = ssub.s32 %s20, %s27
    %s165 = sor.u32 %s163, %s164
    %p166 = scmp.eq.s32.totalorder %s165, 0
    %s168 = sadd.s32 %s167, 1
    %s169 = scalar_select %p166, %s167, %s168
    %p172 = pneg %p166
    %p173 = scmp.eq.s32.totalorder %s12, 1
    %p174 = por %p172, %p173
    %p175 = scmp.ne.s32.totalorder %s167, %s170
    %p176 = scmp.eq.s32.totalorder %s12, 0
    %p177 = por %p175, %p176
    %p178 = scmp.ne.s32.totalorder %s167, %s170
    %p179 = scmp.eq.s32.totalorder %s17, 1
    %p180 = por %p178, %p179
    %p181 = scmp.ne.s32.totalorder %s170, %s171
    %p182 = scmp.eq.s32.totalorder %s17, 0
    %p183 = por %p181, %p182
    %p184 = scmp.ne.s32.totalorder %s170, %s171
    %p185 = scmp.eq.s32.totalorder %s18, 1
    %p186 = por %p184, %p185
    %p188 = scmp.ne.s32.totalorder %s171, %s187
    %p189 = scmp.eq.s32.totalorder %s18, 0
    %p190 = por %p188, %p189
    %p191 = scmp.le.s32.totalorder 1, %s12
    %p192 = scmp.lt.s32.totalorder %s12, 3
    %p193 = pnand %p191, %p192
    %p194 = pneg %p193
    // Predicated region
    $region9: #{fast_conformer_encoder.45} parent=5 // pred_check
      _
    $region10: #{fast_conformer_encoder.45} parent=5 // pred_check_branch
      %196 = sbr.rel (%p193) target = $region12
    $region11: #{fast_conformer_encoder.45} parent=5 // pred_region
      %s197 = ssub.s32 %s12, 1
      // Predicated region
      $region13: #{fast_conformer_encoder.45} parent=11 // pred_check
        %p198 = pneg %p71
      $region14: #{fast_conformer_encoder.45} parent=11 // pred_check_branch
        %200 = sbr.rel (%p198) target = $region16
      $region15: #{fast_conformer_encoder.45} parent=11 // pred_region
        _
      $region16: #{fast_conformer_encoder.45} parent=11 // pred_fallthru
        _
      // Predicated region
      $region17: #{fast_conformer_encoder.45} parent=11 // pred_check
        %p201 = pneg %p92
      $region18: #{fast_conformer_encoder.45} parent=11 // pred_check_branch
        %203 = sbr.rel (%p201) target = $region20
      $region19: #{fast_conformer_encoder.45} parent=11 // pred_region
        _
      $region20: #{fast_conformer_encoder.45} parent=11 // pred_fallthru
        _
      // Predicated region
      $region21: #{fast_conformer_encoder.45} parent=11 // pred_check
        %p204 = pneg %p113
      $region22: #{fast_conformer_encoder.45} parent=11 // pred_check_branch
        %206 = sbr.rel (%p204) target = $region24
      $region23: #{fast_conformer_encoder.45} parent=11 // pred_region
        _
      $region24: #{fast_conformer_encoder.45} parent=11 // pred_fallthru
        _
      // Predicated region
      $region25: #{fast_conformer_encoder.45} parent=11 // pred_check
        %p207 = pneg %p134
      $region26: #{fast_conformer_encoder.45} parent=11 // pred_check_branch
        %209 = sbr.rel (%p207) target = $region28
      $region27: #{fast_conformer_encoder.45} parent=11 // pred_region
        _
      $region28: #{fast_conformer_encoder.45} parent=11 // pred_fallthru
        _
      // Predicated region
      $region29: #{fast_conformer_encoder.45} parent=11 // pred_check
        %p210 = pneg %p155
      $region30: #{fast_conformer_encoder.45} parent=11 // pred_check_branch
        %212 = sbr.rel (%p210) target = $region32
      $region31: #{fast_conformer_encoder.45} parent=11 // pred_region
        _
      $region32: #{fast_conformer_encoder.45} parent=11 // pred_fallthru
        _
    $region12: #{fast_conformer_encoder.45} parent=5 // pred_fallthru
      _
    %p213 = scmp.lt.s32.totalorder %s12, 2
    // Predicated region
    $region33: #{fast_conformer_encoder.45} parent=5 // pred_check
      %p214 = pneg %p213
    $region34: #{fast_conformer_encoder.45} parent=5 // pred_check_branch
      %216 = sbr.rel (%p214) target = $region36
    $region35: #{fast_conformer_encoder.45} parent=5 // pred_region
      // Predicated region
      $region37: #{fast_conformer_encoder.45} parent=35 // pred_check
        %p217 = pneg %p44
      $region38: #{fast_conformer_encoder.45} parent=35 // pred_check_branch
        %219 = sbr.rel (%p217) target = $region40
      $region39: #{fast_conformer_encoder.45} parent=35 // pred_region
        %p220 = scmp.lt.s32.totalorder %s19, 1
        %s221 = scalar_select %p220, %s19, 1
        %s222 = smul.addr %s221, 2
        %s223 = smul.addr %s222, 4
        %s224 = scalar_lea.vmem %s0, %s223
      $region40: #{fast_conformer_encoder.45} parent=35 // pred_fallthru
        _
    $region36: #{fast_conformer_encoder.45} parent=5 // pred_fallthru
      _
    %p225 = scmp.le.s32.totalorder 1, %s12
    %p226 = scmp.lt.s32.totalorder %s12, 3
    %p227 = pnand %p225, %p226
    %p228 = pneg %p227
    // Predicated region
    $region41: #{fast_conformer_encoder.45} parent=5 // pred_check
      _
    $region42: #{fast_conformer_encoder.45} parent=5 // pred_check_branch
      %230 = sbr.rel (%p227) target = $region44
    $region43: #{fast_conformer_encoder.45} parent=5 // pred_region
      %s231 = ssub.s32 %s12, 1
      %p232 = scmp.lt.s32.totalorder %s21, 1
      %s233 = scalar_select %p232, %s21, 1
      %s234 = smul.addr %s233, 2
      %s235 = smul.addr %s234, 4
      %s236 = scalar_lea.vmem %s0, %s235
      %p237 = pneg %p50
      %p238 = pneg %p47
      %p239 = pneg %p71
      %p240 = pneg %p68
      %p241 = pneg %p92
      %p242 = pneg %p89
      %p243 = pneg %p113
      %p244 = pneg %p110
      %p245 = pneg %p134
      %p246 = pneg %p131
      %p247 = pneg %p155
      %p248 = pneg %p152
      %p249 = pneg %p183
      %p250 = pneg %p180
      %p251 = scmp.lt.s32.totalorder %s21, 1
      %s252 = scalar_select %p251, %s21, 1
      %p253 = scmp.lt.s32.totalorder %s22, 0
      %s254 = scalar_select %p253, %s22, 0
      %s255 = sadd.s32 %s254, %s252
      %s256 = smul.addr %s255, 4
      %s257 = scalar_lea.vmem %s6, %s256
      %p258 = scmp.lt.s32.totalorder %s21, 1
      %s259 = scalar_select %p258, %s21, 1
      %s260 = smul.addr %s259, 2
      %s261 = smul.addr %s260, 4
      %s262 = scalar_lea.vmem %s0, %s261
      %p263 = scmp.lt.s32.totalorder %s21, 1
      %s264 = scalar_select %p263, %s21, 1
      %p265 = scmp.lt.s32.totalorder %s22, 0
      %s266 = scalar_select %p265, %s22, 0
      %s267 = sadd.s32 %s266, %s264
      %s268 = smul.addr %s267, 4
      %s269 = scalar_lea.vmem %s6, %s268
      %s270 = smul.u32 %s22, 8
      %s271 = sshra.s32 %s270, 3
      %s272 = sand.u32 %s270, 7
      %s273 = smul.addr %s271, 4
      %s274 = scalar_lea.vmem %s262, %s273
      %v275 = vld [vmem:[%s274] sm:$0xf]
      %v276 = vld [vmem:[%s274 + $0x4] sm:$0xf]
      %v277 = vunpack.c.l.bf16 %v275
      %v278 = vunpack.c.l.bf16 %v276
      %v279 = vld [vmem:[%s1] sm:$0xff]
      %v280 = vld [vmem:[%s1 + $0x8] sm:$0x1]
      %v281 = vlaneseq
      %v282 = vshrl.u32 %v281, 7
      %v283 = vsub.s32 0, %v282
      %v284 = vrot.slane %v279, %v283
      %v285 = vmul.f32 %v277, %v284
      %v286 = vadd.f32 %v285, 0.0
      %v287 = vlaneseq
      %v288 = vshrl.u32 %v287, 7
      %v289 = vsub.s32 1, %v288
      %v290 = vrot.slane %v279, %v289
      %v291 = vmul.f32 %v277, %v290
      %v292 = vmul.f32 %v278, %v290
      %vm295 = vcmask 1046528
      %v296 = vrot.slane %v291, 1
      %v297 = vrot.slane %v292, 1
      %v298 = vsel %vm295, %v296, %v297
      %v300 = vadd.f32 %v286, %v298
      %v301 = vlaneseq
      %v302 = vshrl.u32 %v301, 7
      %v303 = vsub.s32 2, %v302
      %v304 = vrot.slane %v279, %v303
      %v305 = vmul.f32 %v277, %v304
      %v306 = vmul.f32 %v278, %v304
      %vm309 = vcmask 1045504
      %v310 = vrot.slane %v305, 2
      %v311 = vrot.slane %v306, 2
      %v312 = vsel %vm309, %v310, %v311
      %v314 = vadd.f32 %v300, %v312
      %v315 = vlaneseq
      %v316 = vshrl.u32 %v315, 7
      %v317 = vsub.s32 3, %v316
      %v318 = vrot.slane %v279, %v317
      %v319 = vmul.f32 %v277, %v318
      %v320 = vmul.f32 %v278, %v318
      %vm323 = vcmask 1044480
      %v324 = vrot.slane %v319, 3
      %v325 = vrot.slane %v320, 3
      %v326 = vsel %vm323, %v324, %v325
      %v328 = vadd.f32 %v314, %v326
      %v329 = vlaneseq
      %v330 = vshrl.u32 %v329, 7
      %v331 = vsub.s32 4, %v330
      %v332 = vrot.slane %v279, %v331
      %v333 = vmul.f32 %v277, %v332
      %v334 = vmul.f32 %v278, %v332
      %vm337 = vcmask 1043456
      %v338 = vrot.slane %v333, 4
      %v339 = vrot.slane %v334, 4
      %v340 = vsel %vm337, %v338, %v339
      %v342 = vadd.f32 %v328, %v340
      %v343 = vlaneseq
      %v344 = vshrl.u32 %v343, 7
      %v345 = vsub.s32 5, %v344
      %v346 = vrot.slane %v279, %v345
      %v347 = vmul.f32 %v277, %v346
      %v348 = vmul.f32 %v278, %v346
      %vm351 = vcmask 1042432
      %v352 = vrot.slane %v347, 5
      %v353 = vrot.slane %v348, 5
      %v354 = vsel %vm351, %v352, %v353
      %v356 = vadd.f32 %v342, %v354
      %v357 = vlaneseq
      %v358 = vshrl.u32 %v357, 7
      %v359 = vsub.s32 6, %v358
      %v360 = vrot.slane %v279, %v359
      %v361 = vmul.f32 %v277, %v360
      %v362 = vmul.f32 %v278, %v360
      %vm365 = vcmask 1041408
      %v366 = vrot.slane %v361, 6
      %v367 = vrot.slane %v362, 6
      %v368 = vsel %vm365, %v366, %v367
      %v370 = vadd.f32 %v356, %v368
      %v371 = vlaneseq
      %v372 = vshrl.u32 %v371, 7
      %v373 = vsub.s32 7, %v372
      %v374 = vrot.slane %v279, %v373
      %v375 = vmul.f32 %v277, %v374
      %v376 = vmul.f32 %v278, %v374
      %vm379 = vcmask 1040384
      %v380 = vrot.slane %v375, 7
      %v381 = vrot.slane %v376, 7
      %v382 = vsel %vm379, %v380, %v381
      %v384 = vadd.f32 %v370, %v382
      %v385 = vlaneseq
      %v386 = vshrl.u32 %v385, 7
      %v387 = vsub.s32 0, %v386
      %v388 = vrot.slane %v280, %v387
      %v389 = vmul.f32 %v278, %v388
      %v390 = vadd.f32 %v384, %v389
      %v391 = vld [vmem:[%s4] sm:$0x1]
      %v393 = vlaneseq
      %v394 = vshrl.u32 %v393, 7
      %v395 = vsub.s32 0, %v394
      %v396 = vrot.slane %v391, %v395
      %v398 = vsub.f32 %v390, %v396
      %v399 = vld [vmem:[%s5] sm:$0x1]
      %v400 = vadd.f32 %v399, 1e-05
      %v401 = vrsqrt.pop %v400
      %v403 = vlaneseq
      %v404 = vshrl.u32 %v403, 7
      %v405 = vsub.s32 0, %v404
      %v406 = vrot.slane %v401, %v405
      %v408 = vmul.f32 %v398, %v406
      %v409 = vld [vmem:[%s2] sm:$0x1]
      %v411 = vlaneseq
      %v412 = vshrl.u32 %v411, 7
      %v413 = vsub.s32 0, %v412
      %v414 = vrot.slane %v409, %v413
      %v416 = vmul.f32 %v408, %v414
      %v417 = vld [vmem:[%s3] sm:$0x1]
      %v419 = vlaneseq
      %v420 = vshrl.u32 %v419, 7
      %v421 = vsub.s32 0, %v420
      %v422 = vrot.slane %v417, %v421
      %v424 = vadd.f32 %v416, %v422
      %v425 = vxor.u32 %v424, 2147483648
      %v426 = vmul.f32 %v425, 1.442695
      %v427 = vpow.pop %v426
      %v428 = vadd.f32 %v427, 1.0
      %v429 = vrcp.pop %v428
      %v430 = vmul.f32 1.0, %v429
      %v431 = vmul.f32 %v424, %v430
      %v432 = vpack.c.bf16 %v431, %v431
      %vm433 = vcmask 257024
      %434 = vst.msk [vmem:[%s269] sm:$0xf] %vm433, %v432
      %p435 = scmp.lt.s32.totalorder %s21, 1
      %s436 = scalar_select %p435, %s21, 1
      %p437 = scmp.lt.s32.totalorder %s22, 0
      %s438 = scalar_select %p437, %s22, 0
      %s439 = sadd.s32 %s438, %s436
      %s440 = smul.addr %s439, 4
      %s441 = scalar_lea.vmem %s6, %s440
      // Predicated region
      $region45: #{fast_conformer_encoder.45} parent=43 // pred_check
        %p442 = pneg %p180
      $region46: #{fast_conformer_encoder.45} parent=43 // pred_check_branch
        %444 = sbr.rel (%p442) target = $region48
      $region47: #{fast_conformer_encoder.45} parent=43 // pred_region
        _
      $region48: #{fast_conformer_encoder.45} parent=43 // pred_fallthru
        _
    $region44: #{fast_conformer_encoder.45} parent=5 // pred_fallthru
      _
    %p445 = scmp.le.s32.totalorder 2, %s12
    // Predicated region
    $region49: #{fast_conformer_encoder.45} parent=5 // pred_check
      %p446 = pneg %p445
    $region50: #{fast_conformer_encoder.45} parent=5 // pred_check_branch
      %448 = sbr.rel (%p446) target = $region52
    $region51: #{fast_conformer_encoder.45} parent=5 // pred_region
      %s449 = ssub.s32 %s12, 2
      // Predicated region
      $region53: #{fast_conformer_encoder.45} parent=51 // pred_check
        %p450 = pneg %p186
      $region54: #{fast_conformer_encoder.45} parent=51 // pred_check_branch
        %452 = sbr.rel (%p450) target = $region56
      $region55: #{fast_conformer_encoder.45} parent=51 // pred_region
        %p453 = scmp.lt.s32.totalorder %s23, 1
        %s454 = scalar_select %p453, %s23, 1
        %p455 = scmp.lt.s32.totalorder %s24, 0
        %s456 = scalar_select %p455, %s24, 0
        %s457 = sadd.s32 %s456, %s454
        %s458 = smul.addr %s457, 4
        %s459 = scalar_lea.vmem %s6, %s458
      $region56: #{fast_conformer_encoder.45} parent=51 // pred_fallthru
        _
    $region52: #{fast_conformer_encoder.45} parent=5 // pred_fallthru
      _
  $region6: #{fast_conformer_encoder.45} parent=0 // loop_footer
    %s16 = sadd.s32 1, %s12
  $region7: #{fast_conformer_encoder.45} parent=0 // loop_footer_branch
    %11 = sbr.rel target = $region3
  $region8: #{fast_conformer_encoder.45} parent=0 // loop_exit
    _

// kernel: fast_conformer_encoder.42
$region0: #{fast_conformer_encoder.42}
  #allocation0 [shape = 'u32[]', space=smem, size = 0x4, offset = 0x4, fixed_abs, tag = 'smem constant byte address 0x4 - core index']
  #allocation1 [shape = 'u32[144,128]{1,0:T(1,128)}', space=vmem, size = 0x12000, scoped, tag = 'internal scratch']
  %s0 = inlined_call_operand.vmem [shape: bf16[2,8,32], index: 0, kind: input, shape index: {}]
  %s1 = inlined_call_operand.vmem [shape: bf16[2,8,32], index: 1, kind: input, shape index: {}]
  %s2 = inlined_call_operand.vmem [shape: bf16[2,8,32], index: 2, kind: input, shape index: {}]
  %s3 = inlined_call_operand.vmem [shape: f32[2,4,8,128], index: 3, kind: input, shape index: {}]
  %s4 = inlined_call_operand.vmem [shape: f32[1,32], index: 4, kind: input, shape index: {}]
  %s5 = inlined_call_operand.vmem [shape: f32[1,32], index: 5, kind: input, shape index: {}]
  %s6 = inlined_call_operand.vmem [shape: bf16[2,8,32], index: 6, kind: output, shape index: {}]
  %s7 = sld [smem:[#allocation0]]
  $region57: #{fast_conformer_encoder.42} parent=0
    _
  %s9 = ssub.s32 1, %s7
  %s10 = scalar_select 0, %s9, %s7
  loop: start=0, step=1, limit=4
  $region2: #{fast_conformer_encoder.42} parent=0 // loop_pre_header
    _
  $region3: #{fast_conformer_encoder.42} parent=0 // loop_header
    %s12 = sphi 0, %s16
    %p13 = scmp.ge.s32.totalorder %s12, 4
    %s19 = sphi 0, %s31
    %s20 = sphi 0, %s27
    %s21 = sphi 0, %s19
    %s22 = sphi 0, %s20
    %s23 = sphi 0, %s21
    %s24 = sphi 0, %s22
    %s36 = sphi 0, %s38
    %s39 = sphi 0, %s36
    %s40 = sphi 0, %s39
    %s56 = sphi 0, %s40
    %s64 = sphi 0, %s66
    %s67 = sphi 0, %s64
    %s68 = sphi 0, %s67
    %s84 = sphi 0, %s68
    %s92 = sphi 0, %s94
    %s95 = sphi 0, %s92
    %s96 = sphi 0, %s95
    %s112 = sphi 0, %s96
    %s120 = sphi 0, %s122
    %s123 = sphi 0, %s120
    %s124 = sphi 0, %s123
    %s140 = sphi 0, %s124
    %s146 = sphi 0, %s148
    %s149 = sphi 0, %s146
    %s150 = sphi 0, %s149
    %s166 = sphi 0, %s150
    %s172 = sphi 0, %s174
    %s175 = sphi 0, %s172
    %s176 = sphi 0, %s175
    %s192 = sphi 0, %s176
    %s200 = sphi 0, %s202
    %s203 = sphi 0, %s200
    %s204 = sphi 0, %s203
    %s220 = sphi 0, %s204
  $region4: #{fast_conformer_encoder.42} parent=0 // loop_header_branch
    %15 = sbr.rel (%p13) target = $region8
  $region5: #{fast_conformer_encoder.42} parent=0 // loop_body
    %s17 = ssub.s32 %s12, 1
    %s18 = ssub.s32 %s12, 2
    %s25 = sadd.s32 1, %s20
    %p26 = scmp.ge.s32.totalorder %s25, 1
    %s27 = scalar_select %p26, 0, %s25
    %s28 = sadd.s32 1, %s19
    %s29 = scalar_select %p26, %s28, %s19
    %p30 = scmp.ge.s32.totalorder %s29, 2
    %s31 = scalar_select %p30, 0, %s29
    %s32 = ssub.s32 %s19, %s31
    %s33 = ssub.s32 %s20, %s27
    %s34 = sor.u32 %s32, %s33
    %p35 = scmp.eq.s32.totalorder %s34, 0
    %s37 = sadd.s32 %s36, 1
    %s38 = scalar_select %p35, %s36, %s37
    %p41 = pneg %p35
    %p42 = scmp.eq.s32.totalorder %s12, 1
    %p43 = por %p41, %p42
    %p44 = scmp.ne.s32.totalorder %s36, %s39
    %p45 = scmp.eq.s32.totalorder %s12, 0
    %p46 = por %p44, %p45
    %p47 = scmp.ne.s32.totalorder %s36, %s39
    %p48 = scmp.eq.s32.totalorder %s17, 1
    %p49 = por %p47, %p48
    %p50 = scmp.ne.s32.totalorder %s39, %s40
    %p51 = scmp.eq.s32.totalorder %s17, 0
    %p52 = por %p50, %p51
    %p53 = scmp.ne.s32.totalorder %s39, %s40
    %p54 = scmp.eq.s32.totalorder %s18, 1
    %p55 = por %p53, %p54
    %p57 = scmp.ne.s32.totalorder %s40, %s56
    %p58 = scmp.eq.s32.totalorder %s18, 0
    %p59 = por %p57, %p58
    %s60 = ssub.s32 %s19, %s31
    %s61 = ssub.s32 %s20, %s27
    %s62 = sor.u32 %s60, %s61
    %p63 = scmp.eq.s32.totalorder %s62, 0
    %s65 = sadd.s32 %s64, 1
    %s66 = scalar_select %p63, %s64, %s65
    %p69 = pneg %p63
    %p70 = scmp.eq.s32.totalorder %s12, 1
    %p71 = por %p69, %p70
    %p72 = scmp.ne.s32.totalorder %s64, %s67
    %p73 = scmp.eq.s32.totalorder %s12, 0
    %p74 = por %p72, %p73
    %p75 = scmp.ne.s32.totalorder %s64, %s67
    %p76 = scmp.eq.s32.totalorder %s17, 1
    %p77 = por %p75, %p76
    %p78 = scmp.ne.s32.totalorder %s67, %s68
    %p79 = scmp.eq.s32.totalorder %s17, 0
    %p80 = por %p78, %p79
    %p81 = scmp.ne.s32.totalorder %s67, %s68
    %p82 = scmp.eq.s32.totalorder %s18, 1
    %p83 = por %p81, %p82
    %p85 = scmp.ne.s32.totalorder %s68, %s84
    %p86 = scmp.eq.s32.totalorder %s18, 0
    %p87 = por %p85, %p86
    %s88 = ssub.s32 %s19, %s31
    %s89 = ssub.s32 %s20, %s27
    %s90 = sor.u32 %s88, %s89
    %p91 = scmp.eq.s32.totalorder %s90, 0
    %s93 = sadd.s32 %s92, 1
    %s94 = scalar_select %p91, %s92, %s93
    %p97 = pneg %p91
    %p98 = scmp.eq.s32.totalorder %s12, 1
    %p99 = por %p97, %p98
    %p100 = scmp.ne.s32.totalorder %s92, %s95
    %p101 = scmp.eq.s32.totalorder %s12, 0
    %p102 = por %p100, %p101
    %p103 = scmp.ne.s32.totalorder %s92, %s95
    %p104 = scmp.eq.s32.totalorder %s17, 1
    %p105 = por %p103, %p104
    %p106 = scmp.ne.s32.totalorder %s95, %s96
    %p107 = scmp.eq.s32.totalorder %s17, 0
    %p108 = por %p106, %p107
    %p109 = scmp.ne.s32.totalorder %s95, %s96
    %p110 = scmp.eq.s32.totalorder %s18, 1
    %p111 = por %p109, %p110
    %p113 = scmp.ne.s32.totalorder %s96, %s112
    %p114 = scmp.eq.s32.totalorder %s18, 0
    %p115 = por %p113, %p114
    %s116 = ssub.s32 %s19, %s31
    %s117 = ssub.s32 %s20, %s27
    %s118 = sor.u32 %s116, %s117
    %p119 = scmp.eq.s32.totalorder %s118, 0
    %s121 = sadd.s32 %s120, 1
    %s122 = scalar_select %p119, %s120, %s121
    %p125 = pneg %p119
    %p126 = scmp.eq.s32.totalorder %s12, 1
    %p127 = por %p125, %p126
    %p128 = scmp.ne.s32.totalorder %s120, %s123
    %p129 = scmp.eq.s32.totalorder %s12, 0
    %p130 = por %p128, %p129
    %p131 = scmp.ne.s32.totalorder %s120, %s123
    %p132 = scmp.eq.s32.totalorder %s17, 1
    %p133 = por %p131, %p132
    %p134 = scmp.ne.s32.totalorder %s123, %s124
    %p135 = scmp.eq.s32.totalorder %s17, 0
    %p136 = por %p134, %p135
    %p137 = scmp.ne.s32.totalorder %s123, %s124
    %p138 = scmp.eq.s32.totalorder %s18, 1
    %p139 = por %p137, %p138
    %p141 = scmp.ne.s32.totalorder %s124, %s140
    %p142 = scmp.eq.s32.totalorder %s18, 0
    %p143 = por %p141, %p142
    %s144 = ssub.s32 %s20, %s27
    %p145 = scmp.eq.s32.totalorder %s144, 0
    %s147 = sadd.s32 %s146, 1
    %s148 = scalar_select %p145, %s146, %s147
    %p151 = pneg %p145
    %p152 = scmp.eq.s32.totalorder %s12, 1
    %p153 = por %p151, %p152
    %p154 = scmp.ne.s32.totalorder %s146, %s149
    %p155 = scmp.eq.s32.totalorder %s12, 0
    %p156 = por %p154, %p155
    %p157 = scmp.ne.s32.totalorder %s146, %s149
    %p158 = scmp.eq.s32.totalorder %s17, 1
    %p159 = por %p157, %p158
    %p160 = scmp.ne.s32.totalorder %s149, %s150
    %p161 = scmp.eq.s32.totalorder %s17, 0
    %p162 = por %p160, %p161
    %p163 = scmp.ne.s32.totalorder %s149, %s150
    %p164 = scmp.eq.s32.totalorder %s18, 1
    %p165 = por %p163, %p164
    %p167 = scmp.ne.s32.totalorder %s150, %s166
    %p168 = scmp.eq.s32.totalorder %s18, 0
    %p169 = por %p167, %p168
    %s170 = ssub.s32 %s20, %s27
    %p171 = scmp.eq.s32.totalorder %s170, 0
    %s173 = sadd.s32 %s172, 1
    %s174 = scalar_select %p171, %s172, %s173
    %p177 = pneg %p171
    %p178 = scmp.eq.s32.totalorder %s12, 1
    %p179 = por %p177, %p178
    %p180 = scmp.ne.s32.totalorder %s172, %s175
    %p181 = scmp.eq.s32.totalorder %s12, 0
    %p182 = por %p180, %p181
    %p183 = scmp.ne.s32.totalorder %s172, %s175
    %p184 = scmp.eq.s32.totalorder %s17, 1
    %p185 = por %p183, %p184
    %p186 = scmp.ne.s32.totalorder %s175, %s176
    %p187 = scmp.eq.s32.totalorder %s17, 0
    %p188 = por %p186, %p187
    %p189 = scmp.ne.s32.totalorder %s175, %s176
    %p190 = scmp.eq.s32.totalorder %s18, 1
    %p191 = por %p189, %p190
    %p193 = scmp.ne.s32.totalorder %s176, %s192
    %p194 = scmp.eq.s32.totalorder %s18, 0
    %p195 = por %p193, %p194
    %s196 = ssub.s32 %s19, %s31
    %s197 = ssub.s32 %s20, %s27
    %s198 = sor.u32 %s196, %s197
    %p199 = scmp.eq.s32.totalorder %s198, 0
    %s201 = sadd.s32 %s200, 1
    %s202 = scalar_select %p199, %s200, %s201
    %p205 = pneg %p199
    %p206 = scmp.eq.s32.totalorder %s12, 1
    %p207 = por %p205, %p206
    %p208 = scmp.ne.s32.totalorder %s200, %s203
    %p209 = scmp.eq.s32.totalorder %s12, 0
    %p210 = por %p208, %p209
    %p211 = scmp.ne.s32.totalorder %s200, %s203
    %p212 = scmp.eq.s32.totalorder %s17, 1
    %p213 = por %p211, %p212
    %p214 = scmp.ne.s32.totalorder %s203, %s204
    %p215 = scmp.eq.s32.totalorder %s17, 0
    %p216 = por %p214, %p215
    %p217 = scmp.ne.s32.totalorder %s203, %s204
    %p218 = scmp.eq.s32.totalorder %s18, 1
    %p219 = por %p217, %p218
    %p221 = scmp.ne.s32.totalorder %s204, %s220
    %p222 = scmp.eq.s32.totalorder %s18, 0
    %p223 = por %p221, %p222
    %p224 = scmp.le.s32.totalorder 1, %s12
    %p225 = scmp.lt.s32.totalorder %s12, 3
    %p226 = pnand %p224, %p225
    %p227 = pneg %p226
    // Predicated region
    $region9: #{fast_conformer_encoder.42} parent=5 // pred_check
      _
    $region10: #{fast_conformer_encoder.42} parent=5 // pred_check_branch
      %229 = sbr.rel (%p226) target = $region12
    $region11: #{fast_conformer_encoder.42} parent=5 // pred_region
      %s230 = ssub.s32 %s12, 1
      // Predicated region
      $region13: #{fast_conformer_encoder.42} parent=11 // pred_check
        %p231 = pneg %p162
      $region14: #{fast_conformer_encoder.42} parent=11 // pred_check_branch
        %233 = sbr.rel (%p231) target = $region16
      $region15: #{fast_conformer_encoder.42} parent=11 // pred_region
        %p234 = scmp.lt.s32.totalorder %s22, 0
        %s235 = scalar_select %p234, %s22, 0
        %s236 = scalar_lea.vmem %s4, %s235
      $region16: #{fast_conformer_encoder.42} parent=11 // pred_fallthru
        _
      // Predicated region
      $region17: #{fast_conformer_encoder.42} parent=11 // pred_check
        %p237 = pneg %p188
      $region18: #{fast_conformer_encoder.42} parent=11 // pred_check_branch
        %239 = sbr.rel (%p237) target = $region20
      $region19: #{fast_conformer_encoder.42} parent=11 // pred_region
        %p240 = scmp.lt.s32.totalorder %s22, 0
        %s241 = scalar_select %p240, %s22, 0
        %s242 = scalar_lea.vmem %s5, %s241
      $region20: #{fast_conformer_encoder.42} parent=11 // pred_fallthru
        _
    $region12: #{fast_conformer_encoder.42} parent=5 // pred_fallthru
      _
    %p243 = scmp.lt.s32.totalorder %s12, 2
    // Predicated region
    $region21: #{fast_conformer_encoder.42} parent=5 // pred_check
      %p244 = pneg %p243
    $region22: #{fast_conformer_encoder.42} parent=5 // pred_check_branch
      %246 = sbr.rel (%p244) target = $region24
    $region23: #{fast_conformer_encoder.42} parent=5 // pred_region
      // Predicated region
      $region25: #{fast_conformer_encoder.42} parent=23 // pred_check
        %p247 = pneg %p46
      $region26: #{fast_conformer_encoder.42} parent=23 // pred_check_branch
        %249 = sbr.rel (%p247) target = $region28
      $region27: #{fast_conformer_encoder.42} parent=23 // pred_region
        %p250 = scmp.lt.s32.totalorder %s19, 1
        %s251 = scalar_select %p250, %s19, 1
        %p252 = scmp.lt.s32.totalorder %s20, 0
        %s253 = scalar_select %p252, %s20, 0
        %s254 = sadd.s32 %s253, %s251
        %s255 = smul.addr %s254, 4
        %s256 = scalar_lea.vmem %s0, %s255
      $region28: #{fast_conformer_encoder.42} parent=23 // pred_fallthru
        _
      // Predicated region
      $region29: #{fast_conformer_encoder.42} parent=23 // pred_check
        %p257 = pneg %p74
      $region30: #{fast_conformer_encoder.42} parent=23 // pred_check_branch
        %259 = sbr.rel (%p257) target = $region32
      $region31: #{fast_conformer_encoder.42} parent=23 // pred_region
        %p260 = scmp.lt.s32.totalorder %s19, 1
        %s261 = scalar_select %p260, %s19, 1
        %p262 = scmp.lt.s32.totalorder %s20, 0
        %s263 = scalar_select %p262, %s20, 0
        %s264 = sadd.s32 %s263, %s261
        %s265 = smul.addr %s264, 4
        %s266 = scalar_lea.vmem %s1, %s265
      $region32: #{fast_conformer_encoder.42} parent=23 // pred_fallthru
        _
      // Predicated region
      $region33: #{fast_conformer_encoder.42} parent=23 // pred_check
        %p267 = pneg %p102
      $region34: #{fast_conformer_encoder.42} parent=23 // pred_check_branch
        %269 = sbr.rel (%p267) target = $region36
      $region35: #{fast_conformer_encoder.42} parent=23 // pred_region
        %p270 = scmp.lt.s32.totalorder %s19, 1
        %s271 = scalar_select %p270, %s19, 1
        %p272 = scmp.lt.s32.totalorder %s20, 0
        %s273 = scalar_select %p272, %s20, 0
        %s274 = sadd.s32 %s273, %s271
        %s275 = smul.addr %s274, 4
        %s276 = scalar_lea.vmem %s2, %s275
      $region36: #{fast_conformer_encoder.42} parent=23 // pred_fallthru
        _
      // Predicated region
      $region37: #{fast_conformer_encoder.42} parent=23 // pred_check
        %p277 = pneg %p130
      $region38: #{fast_conformer_encoder.42} parent=23 // pred_check_branch
        %279 = sbr.rel (%p277) target = $region40
      $region39: #{fast_conformer_encoder.42} parent=23 // pred_region
        %s280 = smul.u32 4, %s20
        %p281 = scmp.lt.s32.totalorder %s19, 1
        %s282 = scalar_select %p281, %s19, 1
        %p283 = scmp.lt.s32.totalorder %s280, 3
        %s284 = scalar_select %p283, %s280, 3
        %s285 = smul.addr %s282, 4
        %s286 = sadd.s32 %s284, %s285
        %s287 = smul.addr %s286, 8
        %s288 = scalar_lea.vmem %s3, %s287
        %s289 = smul.u32 4, %s20
      $region40: #{fast_conformer_encoder.42} parent=23 // pred_fallthru
        _
    $region24: #{fast_conformer_encoder.42} parent=5 // pred_fallthru
      _
    %p290 = scmp.le.s32.totalorder 1, %s12
    %p291 = scmp.lt.s32.totalorder %s12, 3
    %p292 = pnand %p290, %p291
    %p293 = pneg %p292
    // Predicated region
    $region41: #{fast_conformer_encoder.42} parent=5 // pred_check
      _
    $region42: #{fast_conformer_encoder.42} parent=5 // pred_check_branch
      %295 = sbr.rel (%p292) target = $region44
    $region43: #{fast_conformer_encoder.42} parent=5 // pred_region
      %s296 = ssub.s32 %s12, 1
      %p297 = scmp.lt.s32.totalorder %s21, 1
      %s298 = scalar_select %p297, %s21, 1
      %p299 = scmp.lt.s32.totalorder %s22, 0
      %s300 = scalar_select %p299, %s22, 0
      %s301 = sadd.s32 %s300, %s298
      %s302 = smul.addr %s301, 4
      %s303 = scalar_lea.vmem %s0, %s302
      %p304 = pneg %p52
      %p305 = pneg %p49
      %p306 = scmp.lt.s32.totalorder %s21, 1
      %s307 = scalar_select %p306, %s21, 1
      %p308 = scmp.lt.s32.totalorder %s22, 0
      %s309 = scalar_select %p308, %s22, 0
      %s310 = sadd.s32 %s309, %s307
      %s311 = smul.addr %s310, 4
      %s312 = scalar_lea.vmem %s1, %s311
      %p313 = pneg %p80
      %p314 = pneg %p77
      %p315 = scmp.lt.s32.totalorder %s21, 1
      %s316 = scalar_select %p315, %s21, 1
      %p317 = scmp.lt.s32.totalorder %s22, 0
      %s318 = scalar_select %p317, %s22, 0
      %s319 = sadd.s32 %s318, %s316
      %s320 = smul.addr %s319, 4
      %s321 = scalar_lea.vmem %s2, %s320
      %p322 = pneg %p108
      %p323 = pneg %p105
      %s324 = smul.u32 4, %s22
      %p325 = scmp.lt.s32.totalorder %s21, 1
      %s326 = scalar_select %p325, %s21, 1
      %p327 = scmp.lt.s32.totalorder %s324, 3
      %s328 = scalar_select %p327, %s324, 3
      %s329 = smul.addr %s326, 4
      %s330 = sadd.s32 %s328, %s329
      %s331 = smul.addr %s330, 8
      %s332 = scalar_lea.vmem %s3, %s331
      %p333 = pneg %p136
      %p334 = pneg %p133
      %p335 = scmp.lt.s32.totalorder %s22, 0
      %s336 = scalar_select %p335, %s22, 0
      %s337 = scalar_lea.vmem %s4, %s336
      %p338 = pneg %p162
      %p339 = pneg %p159
      %p340 = scmp.lt.s32.totalorder %s22, 0
      %s341 = scalar_select %p340, %s22, 0
      %s342 = scalar_lea.vmem %s5, %s341
      %p343 = pneg %p188
      %p344 = pneg %p185
      %p345 = pneg %p216
      %p346 = pneg %p213
      %p347 = scmp.lt.s32.totalorder %s21, 1
      %s348 = scalar_select %p347, %s21, 1
      %p349 = scmp.lt.s32.totalorder %s22, 0
      %s350 = scalar_select %p349, %s22, 0
      %s351 = sadd.s32 %s350, %s348
      %s352 = smul.addr %s351, 4
      %s353 = scalar_lea.vmem %s6, %s352
      %p354 = scmp.lt.s32.totalorder %s21, 1
      %s355 = scalar_select %p354, %s21, 1
      %p356 = scmp.lt.s32.totalorder %s22, 0
      %s357 = scalar_select %p356, %s22, 0
      %s358 = sadd.s32 %s357, %s355
      %s359 = smul.addr %s358, 4
      %s360 = scalar_lea.vmem %s0, %s359
      %p361 = scmp.lt.s32.totalorder %s21, 1
      %s362 = scalar_select %p361, %s21, 1
      %p363 = scmp.lt.s32.totalorder %s22, 0
      %s364 = scalar_select %p363, %s22, 0
      %s365 = sadd.s32 %s364, %s362
      %s366 = smul.addr %s365, 4
      %s367 = scalar_lea.vmem %s1, %s366
      %p368 = scmp.lt.s32.totalorder %s21, 1
      %s369 = scalar_select %p368, %s21, 1
      %p370 = scmp.lt.s32.totalorder %s22, 0
      %s371 = scalar_select %p370, %s22, 0
      %s372 = sadd.s32 %s371, %s369
      %s373 = smul.addr %s372, 4
      %s374 = scalar_lea.vmem %s2, %s373
      %s375 = smul.u32 4, %s22
      %p376 = scmp.lt.s32.totalorder %s21, 1
      %s377 = scalar_select %p376, %s21, 1
      %p378 = scmp.lt.s32.totalorder %s375, 3
      %s379 = scalar_select %p378, %s375, 3
      %s380 = smul.addr %s377, 4
      %s381 = sadd.s32 %s379, %s380
      %s382 = smul.addr %s381, 8
      %s383 = scalar_lea.vmem %s3, %s382
      %s384 = smul.u32 4, %s22
      %p385 = scmp.lt.s32.totalorder %s22, 0
      %s386 = scalar_select %p385, %s22, 0
      %s387 = scalar_lea.vmem %s4, %s386
      %p388 = scmp.lt.s32.totalorder %s22, 0
      %s389 = scalar_select %p388, %s22, 0
      %s390 = scalar_lea.vmem %s5, %s389
      %p391 = scmp.lt.s32.totalorder %s21, 1
      %s392 = scalar_select %p391, %s21, 1
      %p393 = scmp.lt.s32.totalorder %s22, 0
      %s394 = scalar_select %p393, %s22, 0
      %s395 = sadd.s32 %s394, %s392
      %s396 = smul.addr %s395, 4
      %s397 = scalar_lea.vmem %s6, %s396
      %v399 = vlaneseq
      %v400 = vand.u32 %v399, 127
      %vm401 = vcmp.lt.s32.totalorder %v400, 8
      %v402 = vld [vmem:[%s360] sm:$0xf]
      %v403 = vld [vmem:[%s367] sm:$0xf]
      %v404 = vld [vmem:[%s374] sm:$0xf]
      %v405 = vld [vmem:[%s387] sm:$0x1]
      %v406 = vld [vmem:[%s383] sm:$0xff]
      %v407 = vld [vmem:[%s383 + $0x8] sm:$0xff]
      %v408 = vld [vmem:[%s383 + $0x10] sm:$0xff]
      %v409 = vld [vmem:[%s383 + $0x18] sm:$0xff]
      %v410 = vunpack.c.l.bf16 %v402
      %v412 = vlaneseq
      %v413 = vshrl.u32 %v412, 7
      %v414 = vsub.s32 0, %v413
      %v415 = vrot.slane %v405, %v414
      %v417 = vadd.f32 %v410, %v415
      %v418 = vpack.c.bf16 %v417, %v417
      %vm419 = vcmask 1043456
      %v422 = vsel %vm419, %v403, 0
      %v424 = vsel %vm419, %v404, 0
      %vm426 = vcmask 64512
      %v428 = vsel %vm426, %v418, 0
      %v430 = vsel %vm426, %v422, 0
      %v432 = vsel %vm426, 0, 0
      %434 = vmatprep.subr.bf16.mxu0 0
      %435 = vmatpush1.bf16.xpose.msra.mxu0 %v430
      %436 = vmatprep.subr.bf16.mxu0 0
      %437 = vmatpush1.bf16.xpose.msra.mxu0 %v432
      %438 = vmatprep.subr.bf16.mxu0 0
      %439 = vmatpush1.bf16.xpose.msra.mxu0 %v432
      %440 = vmatprep.subr.bf16.mxu0 0
      %441 = vmatpush1.bf16.xpose.msra.mxu0 %v432
      %442 = vmatprep.subr.bf16.mxu0 0
      %443 = vmatpush1.bf16.xpose.msra.mxu0 %v432
      %444 = vmatprep.subr.bf16.mxu0 0
      %445 = vmatpush1.bf16.xpose.msra.mxu0 %v432
      %446 = vmatprep.subr.bf16.mxu0 0
      %447 = vmatpush1.bf16.xpose.msra.mxu0 %v432
      %448 = vmatprep.subr.bf16.mxu0 0
      %449 = vmatpush1.bf16.xpose.msra.mxu0 %v432
      %450 = vmatprep.subr.bf16.mxu0 0
      %451 = vmatpush1.bf16.xpose.msra.mxu0 0
      %452 = vmatprep.subr.bf16.mxu0 0
      %453 = vmatpush1.bf16.xpose.msra.mxu0 0
      %454 = vmatprep.subr.bf16.mxu0 0
      %455 = vmatpush1.bf16.xpose.msra.mxu0 0
      %456 = vmatprep.subr.bf16.mxu0 0
      %457 = vmatpush1.bf16.xpose.msra.mxu0 0
      %458 = vmatprep.subr.bf16.mxu0 0
      %459 = vmatpush1.bf16.xpose.msra.mxu0 0
      %460 = vmatprep.subr.bf16.mxu0 0
      %461 = vmatpush1.bf16.xpose.msra.mxu0 0
      %462 = vmatprep.subr.bf16.mxu0 0
      %463 = vmatpush1.bf16.xpose.msra.mxu0 0
      %464 = vmatprep.subr.bf16.mxu0 0
      %465 = vmatpush1.bf16.xpose.msra.mxu0 0
      %466 = vmatprep.mubr.bf16.mxu0 0
      %467 = vmatmul.mubr.bf16.gmra.mrb[0].mxu0 %v428
      %v468 = vpop.f32.mrb[0].mxu0
      %v469 = vadd.f32 %v406, %v468
      %v470 = vpop.f32.mrb[0].mxu0
      %v471 = vpop.f32.mrb[0].mxu0
      %v472 = vpop.f32.mrb[0].mxu0
      %473 = vdwg.mxu0
      %v474 = vmul.f32 %v469, 0.17677669
      %v475 = vsel %vm401, %v474, -1e+30
      %476 = vmax.xlane.f32.xlu0 %v475
      %v477 = vpop.xlane.xlu0 %476
      %v478 = vsub.f32 %v475, %v477
      %v479 = vmul.f32 %v478, 1.442695
      %v480 = vpow.pop %v479
      %481 = vadd.xlane.f32.xlu0 %v480
      %v482 = vpop.xlane.xlu0 %481
      %v483 = vrcp.pop %v482
      %v484 = vmul.f32 %v480, %v483
      %v485 = vpack.c.bf16 %v484, %v484
      %486 = vmatprep.subr.bf16.mxu0 0
      %487 = vmatpush1.bf16.msra.mxu0 %v424
      %488 = vmatprep.subr.bf16.mxu0 0
      %489 = vmatpush1.bf16.msra.mxu0 0
      %490 = vmatprep.subr.bf16.mxu0 0
      %491 = vmatpush1.bf16.msra.mxu0 0
      %492 = vmatprep.subr.bf16.mxu0 0
      %493 = vmatpush1.bf16.msra.mxu0 0
      %494 = vmatprep.subr.bf16.mxu0 0
      %495 = vmatpush1.bf16.msra.mxu0 0
      %496 = vmatprep.subr.bf16.mxu0 0
      %497 = vmatpush1.bf16.msra.mxu0 0
      %498 = vmatprep.subr.bf16.mxu0 0
      %499 = vmatpush1.bf16.msra.mxu0 0
      %500 = vmatprep.subr.bf16.mxu0 0
      %501 = vmatpush1.bf16.msra.mxu0 0
      %502 = vmatprep.subr.bf16.mxu0 0
      %503 = vmatpush1.bf16.msra.mxu0 0
      %504 = vmatprep.subr.bf16.mxu0 0
      %505 = vmatpush1.bf16.msra.mxu0 0
      %506 = vmatprep.subr.bf16.mxu0 0
      %507 = vmatpush1.bf16.msra.mxu0 0
      %508 = vmatprep.subr.bf16.mxu0 0
      %509 = vmatpush1.bf16.msra.mxu0 0
      %510 = vmatprep.subr.bf16.mxu0 0
      %511 = vmatpush1.bf16.msra.mxu0 0
      %512 = vmatprep.subr.bf16.mxu0 0
      %513 = vmatpush1.bf16.msra.mxu0 0
      %514 = vmatprep.subr.bf16.mxu0 0
      %515 = vmatpush1.bf16.msra.mxu0 0
      %516 = vmatprep.subr.bf16.mxu0 0
      %517 = vmatpush1.bf16.msra.mxu0 0
      %518 = vmatprep.mubr.bf16.mxu0 0
      %519 = vmatmul.mubr.bf16.gmra.mrb[0].mxu0 %v485
      %v520 = vpop.f32.mrb[0].mxu0
      %v521 = vadd.f32 0.0, %v520
      %v522 = vpop.f32.mrb[0].mxu0
      %v523 = vpop.f32.mrb[0].mxu0
      %v524 = vpop.f32.mrb[0].mxu0
      %525 = vdwg.mxu0
      %527 = vrot.lane.b32.xlu0 %v418, 120
      %v528 = vpop.permute.xlu0 %527
      %531 = vrot.lane.b32.xlu0 %v422, 120
      %v532 = vpop.permute.xlu0 %531
      %533 = vrot.lane.b32.xlu0 0, 120
      %v534 = vpop.permute.xlu0 %533
      %v536 = vsel %vm426, %v528, 0
      %v539 = vsel %vm426, %v532, 0
      %v542 = vsel %vm426, %v534, 0
      %544 = vmatprep.subr.bf16.mxu0 0
      %545 = vmatpush1.bf16.xpose.msra.mxu0 %v539
      %546 = vmatprep.subr.bf16.mxu0 0
      %547 = vmatpush1.bf16.xpose.msra.mxu0 %v542
      %548 = vmatprep.subr.bf16.mxu0 0
      %549 = vmatpush1.bf16.xpose.msra.mxu0 %v542
      %550 = vmatprep.subr.bf16.mxu0 0
      %551 = vmatpush1.bf16.xpose.msra.mxu0 %v542
      %552 = vmatprep.subr.bf16.mxu0 0
      %553 = vmatpush1.bf16.xpose.msra.mxu0 %v542
      %554 = vmatprep.subr.bf16.mxu0 0
      %555 = vmatpush1.bf16.xpose.msra.mxu0 %v542
      %556 = vmatprep.subr.bf16.mxu0 0
      %557 = vmatpush1.bf16.xpose.msra.mxu0 %v542
      %558 = vmatprep.subr.bf16.mxu0 0
      %559 = vmatpush1.bf16.xpose.msra.mxu0 %v542
      %560 = vmatprep.subr.bf16.mxu0 0
      %561 = vmatpush1.bf16.xpose.msra.mxu0 0
      %562 = vmatprep.subr.bf16.mxu0 0
      %563 = vmatpush1.bf16.xpose.msra.mxu0 0
      %564 = vmatprep.subr.bf16.mxu0 0
      %565 = vmatpush1.bf16.xpose.msra.mxu0 0
      %566 = vmatprep.subr.bf16.mxu0 0
      %567 = vmatpush1.bf16.xpose.msra.mxu0 0
      %568 = vmatprep.subr.bf16.mxu0 0
      %569 = vmatpush1.bf16.xpose.msra.mxu0 0
      %570 = vmatprep.subr.bf16.mxu0 0
      %571 = vmatpush1.bf16.xpose.msra.mxu0 0
      %572 = vmatprep.subr.bf16.mxu0 0
      %573 = vmatpush1.bf16.xpose.msra.mxu0 0
      %574 = vmatprep.subr.bf16.mxu0 0
      %575 = vmatpush1.bf16.xpose.msra.mxu0 0
      %576 = vmatprep.mubr.bf16.mxu0 0
      %577 = vmatmul.mubr.bf16.gmra.mrb[0].mxu0 %v536
      %v578 = vpop.f32.mrb[0].mxu0
      %v579 = vadd.f32 %v407, %v578
      %v580 = vpop.f32.mrb[0].mxu0
      %v581 = vpop.f32.mrb[0].mxu0
      %v582 = vpop.f32.mrb[0].mxu0
      %583 = vdwg.mxu0
      %v584 = vmul.f32 %v579, 0.17677669
      %v585 = vsel %vm401, %v584, -1e+30
      %586 = vmax.xlane.f32.xlu0 %v585
      %v587 = vpop.xlane.xlu0 %586
      %v588 = vsub.f32 %v585, %v587
      %v589 = vmul.f32 %v588, 1.442695
      %v590 = vpow.pop %v589
      %591 = vadd.xlane.f32.xlu0 %v590
      %v592 = vpop.xlane.xlu0 %591
      %v593 = vrcp.pop %v592
      %v594 = vmul.f32 %v590, %v593
      %v595 = vpack.c.bf16 %v594, %v594
      %597 = vrot.lane.b32.xlu0 %v424, 120
      %v598 = vpop.permute.xlu0 %597
      %601 = vmatprep.subr.bf16.mxu0 0
      %602 = vmatpush1.bf16.msra.mxu0 %v598
      %603 = vmatprep.subr.bf16.mxu0 0
      %604 = vmatpush1.bf16.msra.mxu0 %v534
      %605 = vmatprep.subr.bf16.mxu0 0
      %606 = vmatpush1.bf16.msra.mxu0 %v534
      %607 = vmatprep.subr.bf16.mxu0 0
      %608 = vmatpush1.bf16.msra.mxu0 %v534
      %609 = vmatprep.subr.bf16.mxu0 0
      %610 = vmatpush1.bf16.msra.mxu0 %v534
      %611 = vmatprep.subr.bf16.mxu0 0
      %612 = vmatpush1.bf16.msra.mxu0 %v534
      %613 = vmatprep.subr.bf16.mxu0 0
      %614 = vmatpush1.bf16.msra.mxu0 %v534
      %615 = vmatprep.subr.bf16.mxu0 0
      %616 = vmatpush1.bf16.msra.mxu0 %v534
      %617 = vmatprep.subr.bf16.mxu0 0
      %618 = vmatpush1.bf16.msra.mxu0 0
      %619 = vmatprep.subr.bf16.mxu0 0
      %620 = vmatpush1.bf16.msra.mxu0 0
      %621 = vmatprep.subr.bf16.mxu0 0
      %622 = vmatpush1.bf16.msra.mxu0 0
      %623 = vmatprep.subr.bf16.mxu0 0
      %624 = vmatpush1.bf16.msra.mxu0 0
      %625 = vmatprep.subr.bf16.mxu0 0
      %626 = vmatpush1.bf16.msra.mxu0 0
      %627 = vmatprep.subr.bf16.mxu0 0
      %628 = vmatpush1.bf16.msra.mxu0 0
      %629 = vmatprep.subr.bf16.mxu0 0
      %630 = vmatpush1.bf16.msra.mxu0 0
      %631 = vmatprep.subr.bf16.mxu0 0
      %632 = vmatpush1.bf16.msra.mxu0 0
      %633 = vmatprep.mubr.bf16.mxu0 0
      %634 = vmatmul.mubr.bf16.gmra.mrb[0].mxu0 %v595
      %v635 = vpop.f32.mrb[0].mxu0
      %v636 = vadd.f32 0.0, %v635
      %v637 = vpop.f32.mrb[0].mxu0
      %v638 = vpop.f32.mrb[0].mxu0
      %v639 = vpop.f32.mrb[0].mxu0
      %640 = vdwg.mxu0
      %641 = vrot.lane.b32.xlu0 %v418, 112
      %v642 = vpop.permute.xlu0 %641
      %643 = vrot.lane.b32.xlu0 %v422, 112
      %v644 = vpop.permute.xlu0 %643
      %645 = vrot.lane.b32.xlu0 0, 112
      %v646 = vpop.permute.xlu0 %645
      %v648 = vsel %vm426, %v642, 0
      %v651 = vsel %vm426, %v644, 0
      %v654 = vsel %vm426, %v646, 0
      %656 = vmatprep.subr.bf16.mxu0 0
      %657 = vmatpush1.bf16.xpose.msra.mxu0 %v651
      %658 = vmatprep.subr.bf16.mxu0 0
      %659 = vmatpush1.bf16.xpose.msra.mxu0 %v654
      %660 = vmatprep.subr.bf16.mxu0 0
      %661 = vmatpush1.bf16.xpose.msra.mxu0 %v654
      %662 = vmatprep.subr.bf16.mxu0 0
      %663 = vmatpush1.bf16.xpose.msra.mxu0 %v654
      %664 = vmatprep.subr.bf16.mxu0 0
      %665 = vmatpush1.bf16.xpose.msra.mxu0 %v654
      %666 = vmatprep.subr.bf16.mxu0 0
      %667 = vmatpush1.bf16.xpose.msra.mxu0 %v654
      %668 = vmatprep.subr.bf16.mxu0 0
      %669 = vmatpush1.bf16.xpose.msra.mxu0 %v654
      %670 = vmatprep.subr.bf16.mxu0 0
      %671 = vmatpush1.bf16.xpose.msra.mxu0 %v654
      %672 = vmatprep.subr.bf16.mxu0 0
      %673 = vmatpush1.bf16.xpose.msra.mxu0 0
      %674 = vmatprep.subr.bf16.mxu0 0
      %675 = vmatpush1.bf16.xpose.msra.mxu0 0
      %676 = vmatprep.subr.bf16.mxu0 0
      %677 = vmatpush1.bf16.xpose.msra.mxu0 0
      %678 = vmatprep.subr.bf16.mxu0 0
      %679 = vmatpush1.bf16.xpose.msra.mxu0 0
      %680 = vmatprep.subr.bf16.mxu0 0
      %681 = vmatpush1.bf16.xpose.msra.mxu0 0
      %682 = vmatprep.subr.bf16.mxu0 0
      %683 = vmatpush1.bf16.xpose.msra.mxu0 0
      %684 = vmatprep.subr.bf16.mxu0 0
      %685 = vmatpush1.bf16.xpose.msra.mxu0 0
      %686 = vmatprep.subr.bf16.mxu0 0
      %687 = vmatpush1.bf16.xpose.msra.mxu0 0
      %688 = vmatprep.mubr.bf16.mxu0 0
      %689 = vmatmul.mubr.bf16.gmra.mrb[0].mxu0 %v648
      %v690 = vpop.f32.mrb[0].mxu0
      %v691 = vadd.f32 %v408, %v690
      %v692 = vpop.f32.mrb[0].mxu0
      %v693 = vpop.f32.mrb[0].mxu0
      %v694 = vpop.f32.mrb[0].mxu0
      %695 = vdwg.mxu0
      %v696 = vmul.f32 %v691, 0.17677669
      %v697 = vsel %vm401, %v696, -1e+30
      %698 = vmax.xlane.f32.xlu0 %v697
      %v699 = vpop.xlane.xlu0 %698
      %v700 = vsub.f32 %v697, %v699
      %v701 = vmul.f32 %v700, 1.442695
      %v702 = vpow.pop %v701
      %703 = vadd.xlane.f32.xlu0 %v702
      %v704 = vpop.xlane.xlu0 %703
      %v705 = vrcp.pop %v704
      %v706 = vmul.f32 %v702, %v705
      %v707 = vpack.c.bf16 %v706, %v706
      %708 = vrot.lane.b32.xlu0 %v424, 112
      %v709 = vpop.permute.xlu0 %708
      %712 = vmatprep.subr.bf16.mxu0 0
      %713 = vmatpush1.bf16.msra.mxu0 %v709
      %714 = vmatprep.subr.bf16.mxu0 0
      %715 = vmatpush1.bf16.msra.mxu0 %v646
      %716 = vmatprep.subr.bf16.mxu0 0
      %717 = vmatpush1.bf16.msra.mxu0 %v646
      %718 = vmatprep.subr.bf16.mxu0 0
      %719 = vmatpush1.bf16.msra.mxu0 %v646
      %720 = vmatprep.subr.bf16.mxu0 0
      %721 = vmatpush1.bf16.msra.mxu0 %v646
      %722 = vmatprep.subr.bf16.mxu0 0
      %723 = vmatpush1.bf16.msra.mxu0 %v646
      %724 = vmatprep.subr.bf16.mxu0 0
      %725 = vmatpush1.bf16.msra.mxu0 %v646
      %726 = vmatprep.subr.bf16.mxu0 0
      %727 = vmatpush1.bf16.msra.mxu0 %v646
      %728 = vmatprep.subr.bf16.mxu0 0
      %729 = vmatpush1.bf16.msra.mxu0 0
      %730 = vmatprep.subr.bf16.mxu0 0
      %731 = vmatpush1.bf16.msra.mxu0 0
      %732 = vmatprep.subr.bf16.mxu0 0
      %733 = vmatpush1.bf16.msra.mxu0 0
      %734 = vmatprep.subr.bf16.mxu0 0
      %735 = vmatpush1.bf16.msra.mxu0 0
      %736 = vmatprep.subr.bf16.mxu0 0
      %737 = vmatpush1.bf16.msra.mxu0 0
      %738 = vmatprep.subr.bf16.mxu0 0
      %739 = vmatpush1.bf16.msra.mxu0 0
      %740 = vmatprep.subr.bf16.mxu0 0
      %741 = vmatpush1.bf16.msra.mxu0 0
      %742 = vmatprep.subr.bf16.mxu0 0
      %743 = vmatpush1.bf16.msra.mxu0 0
      %744 = vmatprep.mubr.bf16.mxu0 0
      %745 = vmatmul.mubr.bf16.gmra.mrb[0].mxu0 %v707
      %v746 = vpop.f32.mrb[0].mxu0
      %v747 = vadd.f32 0.0, %v746
      %v748 = vpop.f32.mrb[0].mxu0
      %v749 = vpop.f32.mrb[0].mxu0
      %v750 = vpop.f32.mrb[0].mxu0
      %751 = vdwg.mxu0
      %752 = vrot.lane.b32.xlu0 %v418, 104
      %v753 = vpop.permute.xlu0 %752
      %754 = vrot.lane.b32.xlu0 %v422, 104
      %v755 = vpop.permute.xlu0 %754
      %756 = vrot.lane.b32.xlu0 0, 104
      %v757 = vpop.permute.xlu0 %756
      %v759 = vsel %vm426, %v753, 0
      %v762 = vsel %vm426, %v755, 0
      %v765 = vsel %vm426, %v757, 0
      %767 = vmatprep.subr.bf16.mxu0 0
      %768 = vmatpush1.bf16.xpose.msra.mxu0 %v762
      %769 = vmatprep.subr.bf16.mxu0 0
      %770 = vmatpush1.bf16.xpose.msra.mxu0 %v765
      %771 = vmatprep.subr.bf16.mxu0 0
      %772 = vmatpush1.bf16.xpose.msra.mxu0 %v765
      %773 = vmatprep.subr.bf16.mxu0 0
      %774 = vmatpush1.bf16.xpose.msra.mxu0 %v765
      %775 = vmatprep.subr.bf16.mxu0 0
      %776 = vmatpush1.bf16.xpose.msra.mxu0 %v765
      %777 = vmatprep.subr.bf16.mxu0 0
      %778 = vmatpush1.bf16.xpose.msra.mxu0 %v765
      %779 = vmatprep.subr.bf16.mxu0 0
      %780 = vmatpush1.bf16.xpose.msra.mxu0 %v765
      %781 = vmatprep.subr.bf16.mxu0 0
      %782 = vmatpush1.bf16.xpose.msra.mxu0 %v765
      %783 = vmatprep.subr.bf16.mxu0 0
      %784 = vmatpush1.bf16.xpose.msra.mxu0 0
      %785 = vmatprep.subr.bf16.mxu0 0
      %786 = vmatpush1.bf16.xpose.msra.mxu0 0
      %787 = vmatprep.subr.bf16.mxu0 0
      %788 = vmatpush1.bf16.xpose.msra.mxu0 0
      %789 = vmatprep.subr.bf16.mxu0 0
      %790 = vmatpush1.bf16.xpose.msra.mxu0 0
      %791 = vmatprep.subr.bf16.mxu0 0
      %792 = vmatpush1.bf16.xpose.msra.mxu0 0
      %793 = vmatprep.subr.bf16.mxu0 0
      %794 = vmatpush1.bf16.xpose.msra.mxu0 0
      %795 = vmatprep.subr.bf16.mxu0 0
      %796 = vmatpush1.bf16.xpose.msra.mxu0 0
      %797 = vmatprep.subr.bf16.mxu0 0
      %798 = vmatpush1.bf16.xpose.msra.mxu0 0
      %799 = vmatprep.mubr.bf16.mxu0 0
      %800 = vmatmul.mubr.bf16.gmra.mrb[0].mxu0 %v759
      %v801 = vpop.f32.mrb[0].mxu0
      %v802 = vadd.f32 %v409, %v801
      %v803 = vpop.f32.mrb[0].mxu0
      %v804 = vpop.f32.mrb[0].mxu0
      %v805 = vpop.f32.mrb[0].mxu0
      %806 = vdwg.mxu0
      %v807 = vmul.f32 %v802, 0.17677669
      %v808 = vsel %vm401, %v807, -1e+30
      %809 = vmax.xlane.f32.xlu0 %v808
      %v810 = vpop.xlane.xlu0 %809
      %v811 = vsub.f32 %v808, %v810
      %v812 = vmul.f32 %v811, 1.442695
      %v813 = vpow.pop %v812
      %814 = vadd.xlane.f32.xlu0 %v813
      %v815 = vpop.xlane.xlu0 %814
      %v816 = vrcp.pop %v815
      %v817 = vmul.f32 %v813, %v816
      %v818 = vpack.c.bf16 %v817, %v817
      %819 = vrot.lane.b32.xlu0 %v424, 104
      %v820 = vpop.permute.xlu0 %819
      %823 = vmatprep.subr.bf16.mxu0 0
      %824 = vmatpush1.bf16.msra.mxu0 %v820
      %825 = vmatprep.subr.bf16.mxu0 0
      %826 = vmatpush1.bf16.msra.mxu0 %v757
      %827 = vmatprep.subr.bf16.mxu0 0
      %828 = vmatpush1.bf16.msra.mxu0 %v757
      %829 = vmatprep.subr.bf16.mxu0 0
      %830 = vmatpush1.bf16.msra.mxu0 %v757
      %831 = vmatprep.subr.bf16.mxu0 0
      %832 = vmatpush1.bf16.msra.mxu0 %v757
      %833 = vmatprep.subr.bf16.mxu0 0
      %834 = vmatpush1.bf16.msra.mxu0 %v757
      %835 = vmatprep.subr.bf16.mxu0 0
      %836 = vmatpush1.bf16.msra.mxu0 %v757
      %837 = vmatprep.subr.bf16.mxu0 0
      %838 = vmatpush1.bf16.msra.mxu0 %v757
      %839 = vmatprep.subr.bf16.mxu0 0
      %840 = vmatpush1.bf16.msra.mxu0 0
      %841 = vmatprep.subr.bf16.mxu0 0
      %842 = vmatpush1.bf16.msra.mxu0 0
      %843 = vmatprep.subr.bf16.mxu0 0
      %844 = vmatpush1.bf16.msra.mxu0 0
      %845 = vmatprep.subr.bf16.mxu0 0
      %846 = vmatpush1.bf16.msra.mxu0 0
      %847 = vmatprep.subr.bf16.mxu0 0
      %848 = vmatpush1.bf16.msra.mxu0 0
      %849 = vmatprep.subr.bf16.mxu0 0
      %850 = vmatpush1.bf16.msra.mxu0 0
      %851 = vmatprep.subr.bf16.mxu0 0
      %852 = vmatpush1.bf16.msra.mxu0 0
      %853 = vmatprep.subr.bf16.mxu0 0
      %854 = vmatpush1.bf16.msra.mxu0 0
      %855 = vmatprep.mubr.bf16.mxu0 0
      %856 = vmatmul.mubr.bf16.gmra.mrb[0].mxu0 %v818
      %v857 = vpop.f32.mrb[0].mxu0
      %v858 = vadd.f32 0.0, %v857
      %v859 = vpop.f32.mrb[0].mxu0
      %v860 = vpop.f32.mrb[0].mxu0
      %v861 = vpop.f32.mrb[0].mxu0
      %862 = vdwg.mxu0
      %864 = vrot.lane.b32.xlu0 %v636, 8
      %v865 = vpop.permute.xlu0 %864
      %868 = vrot.lane.b32.xlu0 %v747, 16
      %v869 = vpop.permute.xlu0 %868
      %872 = vrot.lane.b32.xlu0 %v858, 24
      %v873 = vpop.permute.xlu0 %872
      %v875 = vsel %vm426, %v521, %v865
      %vm876 = vcmask 130048
      %v877 = vsel %vm876, %v875, %v869
      %vm878 = vcmask 195584
      %v879 = vsel %vm878, %v877, %v873
      %v880 = vpack.c.bf16 %v879, %v879
      %vm881 = vcmask 257024
      %882 = vst.msk [vmem:[%s397] sm:$0xf] %vm881, %v880
      %p883 = scmp.lt.s32.totalorder %s21, 1
      %s884 = scalar_select %p883, %s21, 1
      %p885 = scmp.lt.s32.totalorder %s22, 0
      %s886 = scalar_select %p885, %s22, 0
      %s887 = sadd.s32 %s886, %s884
      %s888 = smul.addr %s887, 4
      %s889 = scalar_lea.vmem %s6, %s888
      // Predicated region
      $region45: #{fast_conformer_encoder.42} parent=43 // pred_check
        %p890 = pneg %p213
      $region46: #{fast_conformer_encoder.42} parent=43 // pred_check_branch
        %892 = sbr.rel (%p890) target = $region48
      $region47: #{fast_conformer_encoder.42} parent=43 // pred_region
        _
      $region48: #{fast_conformer_encoder.42} parent=43 // pred_fallthru
        _
    $region44: #{fast_conformer_encoder.42} parent=5 // pred_fallthru
      _
    %p893 = scmp.le.s32.totalorder 2, %s12
    // Predicated region
    $region49: #{fast_conformer_encoder.42} parent=5 // pred_check
      %p894 = pneg %p893
    $region50: #{fast_conformer_encoder.42} parent=5 // pred_check_branch
      %896 = sbr.rel (%p894) target = $region52
    $region51: #{fast_conformer_encoder.42} parent=5 // pred_region
      %s897 = ssub.s32 %s12, 2
      // Predicated region
      $region53: #{fast_conformer_encoder.42} parent=51 // pred_check
        %p898 = pneg %p219
      $region54: #{fast_conformer_encoder.42} parent=51 // pred_check_branch
        %900 = sbr.rel (%p898) target = $region56
      $region55: #{fast_conformer_encoder.42} parent=51 // pred_region
        %p901 = scmp.lt.s32.totalorder %s23, 1
        %s902 = scalar_select %p901, %s23, 1
        %p903 = scmp.lt.s32.totalorder %s24, 0
        %s904 = scalar_select %p903, %s24, 0
        %s905 = sadd.s32 %s904, %s902
        %s906 = smul.addr %s905, 4
        %s907 = scalar_lea.vmem %s6, %s906
      $region56: #{fast_conformer_encoder.42} parent=51 // pred_fallthru
        _
    $region52: #{fast_conformer_encoder.42} parent=5 // pred_fallthru
      _
  $region6: #{fast_conformer_encoder.42} parent=0 // loop_footer
    %s16 = sadd.s32 1, %s12
  $region7: #{fast_conformer_encoder.42} parent=0 // loop_footer_branch
    %11 = sbr.rel target = $region3
  $region8: #{fast_conformer_encoder.42} parent=0 // loop_exit
    _

// kernel: fast_conformer_encoder.49
$region0: #{fast_conformer_encoder.49}
  #allocation0 [shape = 'u32[]', space=smem, size = 0x4, offset = 0x4, fixed_abs, tag = 'smem constant byte address 0x4 - core index']
  #allocation1 [shape = 'u32[144,128]{1,0:T(1,128)}', space=vmem, size = 0x12000, scoped, tag = 'internal scratch']
  %s0 = inlined_call_operand.vmem [shape: bf16[16,32], index: 0, kind: input, shape index: {}]
  %s1 = inlined_call_operand.vmem [shape: f32[1,32], index: 1, kind: input, shape index: {}]
  %s2 = inlined_call_operand.vmem [shape: f32[1,32], index: 2, kind: input, shape index: {}]
  %s3 = inlined_call_operand.vmem [shape: bf16[16,32], index: 3, kind: output, shape index: {}]
  %s4 = sld [smem:[#allocation0]]
  $region22: #{fast_conformer_encoder.49} parent=0
    _
  %s6 = ssub.s32 1, %s4
  %s7 = scalar_select 0, %s6, %s4
  // Predicated region
  $region2: #{fast_conformer_encoder.49} parent=0 // pred_check
    _
  $region3: #{fast_conformer_encoder.49} parent=0 // pred_check_branch
    %9 = sbr.rel (0) target = $region5
  $region4: #{fast_conformer_encoder.49} parent=0 // pred_region
    _
  $region5: #{fast_conformer_encoder.49} parent=0 // pred_fallthru
    _
  // Predicated region
  $region6: #{fast_conformer_encoder.49} parent=0 // pred_check
    _
  $region7: #{fast_conformer_encoder.49} parent=0 // pred_check_branch
    %11 = sbr.rel (0) target = $region9
  $region8: #{fast_conformer_encoder.49} parent=0 // pred_region
    _
  $region9: #{fast_conformer_encoder.49} parent=0 // pred_fallthru
    _
  // Predicated region
  $region10: #{fast_conformer_encoder.49} parent=0 // pred_check
    _
  $region11: #{fast_conformer_encoder.49} parent=0 // pred_check_branch
    %13 = sbr.rel (0) target = $region13
  $region12: #{fast_conformer_encoder.49} parent=0 // pred_region
    _
  $region13: #{fast_conformer_encoder.49} parent=0 // pred_fallthru
    _
  %v14 = vld [vmem:[%s0] sm:$0xf]
  %v15 = vld [vmem:[%s0 + $0x4] sm:$0xf]
  %v16 = vunpack.c.l.bf16 %v14
  %v17 = vunpack.c.l.bf16 %v15
  %vm18 = vcmask 261120
  %v19 = vsel %vm18, %v16, 0.0
  %20 = vadd.xlane.f32.xlu0 %v19
  %v21 = vpop.xlane.xlu0 %20
  %v22 = vsel %vm18, %v17, 0.0
  %23 = vadd.xlane.f32.xlu0 %v22
  %v24 = vpop.xlane.xlu0 %23
  %v25 = vrcp.pop 32.0
  %v26 = vmul.f32 %v21, %v25
  %v27 = vmul.f32 %v24, %v25
  %v28 = vsub.f32 %v16, %v26
  %v29 = vsub.f32 %v17, %v27
  %v30 = vmul.f32 %v28, %v28
  %v31 = vmul.f32 %v29, %v29
  %v32 = vsel %vm18, %v30, 0.0
  %33 = vadd.xlane.f32.xlu0 %v32
  %v34 = vpop.xlane.xlu0 %33
  %v35 = vsel %vm18, %v31, 0.0
  %36 = vadd.xlane.f32.xlu0 %v35
  %v37 = vpop.xlane.xlu0 %36
  %v38 = vmul.f32 %v34, %v25
  %v39 = vmul.f32 %v37, %v25
  %v40 = vadd.f32 %v38, 1e-05
  %v41 = vadd.f32 %v39, 1e-05
  %v42 = vrsqrt.pop %v40
  %v43 = vrsqrt.pop %v41
  %v44 = vmul.f32 %v28, %v42
  %v45 = vmul.f32 %v29, %v43
  %v46 = vld [vmem:[%s1] sm:$0x1]
  %v48 = vlaneseq
  %v49 = vshrl.u32 %v48, 7
  %v50 = vsub.s32 0, %v49
  %v51 = vrot.slane %v46, %v50
  %v53 = vmul.f32 %v44, %v51
  %v54 = vmul.f32 %v45, %v51
  %v55 = vld [vmem:[%s2] sm:$0x1]
  %v57 = vlaneseq
  %v58 = vshrl.u32 %v57, 7
  %v59 = vsub.s32 0, %v58
  %v60 = vrot.slane %v55, %v59
  %v62 = vadd.f32 %v53, %v60
  %v63 = vadd.f32 %v54, %v60
  %v64 = vpack.c.bf16 %v63, %v62
  %v66 = vunpack.c.l.b16 %v64
  %v67 = vunpack.c.h.b16 %v64
  %v68 = vpack.c.b16 %v66, %v66
  %v69 = vpack.c.b16 %v67, %v67
  %vm72 = vcmask 257024
  %73 = vst.msk [vmem:[%s3] sm:$0xf] %vm72, %v68
  %74 = vst.msk [vmem:[%s3 + $0x4] sm:$0xf] %vm72, %v69
  // Predicated region
  $region14: #{fast_conformer_encoder.49} parent=0 // pred_check
    _
  $region15: #{fast_conformer_encoder.49} parent=0 // pred_check_branch
    %76 = sbr.rel (0) target = $region17
  $region16: #{fast_conformer_encoder.49} parent=0 // pred_region
    _
  $region17: #{fast_conformer_encoder.49} parent=0 // pred_fallthru
    _
  // Predicated region
  $region18: #{fast_conformer_encoder.49} parent=0 // pred_check
    _
  $region19: #{fast_conformer_encoder.49} parent=0 // pred_check_branch
    %78 = sbr.rel (0) target = $region21
  $region20: #{fast_conformer_encoder.49} parent=0 // pred_region
    _
  $region21: #{fast_conformer_encoder.49} parent=0 // pred_fallthru
    _

</llo_original>
